<compile_context>
chip_gen: v7x
topology: tpu7x:2x2x1
jax: 0.10.0
libtpu: 0.0.40
codegen_flags: <defaults>
</compile_context>

<pallas_src>
import functools

import jax
import jax.numpy as jnp
from jax.experimental import pallas as pl
from jax.experimental.pallas import tpu as pltpu

EPS = 1e-5


# ---------------------------------------------------------------------------
# Kernels
# ---------------------------------------------------------------------------
def _conv1_stats_kernel(x_ref, w1_ref, y_ref, s_ref):
    """Pass 1: y = x @ w1 (1x1 conv, bias dropped); accumulate BN1 sum/sumsq."""
    i = pl.program_id(0)
    tr, w, cin = x_ref.shape
    c4 = w1_ref.shape[1]

    x = x_ref[...].reshape(tr * w, cin)
    y = jnp.dot(x.astype(jnp.bfloat16), w1_ref[...],
                preferred_element_type=jnp.float32)
    y_ref[...] = y.reshape(tr, w, c4)

    @pl.when(i == 0)
    def _init():
        s_ref[...] = jnp.zeros_like(s_ref)

    s_ref[0:1, :] += jnp.sum(y, axis=0, keepdims=True)
    s_ref[1:2, :] += jnp.sum(y * y, axis=0, keepdims=True)


def _deconv_stats_kernel(h, y_ref, yh_ref, aff1_ref, wd_ref, q_ref, s_ref):
    """Pass 2: BN1+ReLU, ConvTranspose2d(3,3,s=2,p=1,op=1) as one wide matmul
    plus parity decomposition; accumulate BN2 sum/sumsq over all 4 quadrants."""
    i = pl.program_id(0)
    tr, w, c4 = y_ref.shape

    sc = aff1_ref[0:1, :].reshape(1, 1, c4)
    sh = aff1_ref[1:2, :].reshape(1, 1, c4)

    # BN1 + ReLU on the tile plus one halo image-row (first row of next tile).
    y_ext = jnp.concatenate([y_ref[...], yh_ref[...]], axis=0)       # (tr+1, w, c4)
    yb = jnp.maximum(y_ext * sc + sh, 0.0)

    # One wide matmul against all 9 taps; taps are shifted AFTER the matmul.
    t = jnp.dot(yb.reshape((tr + 1) * w, c4).astype(jnp.bfloat16), wd_ref[...],
                preferred_element_type=jnp.float32).reshape(tr + 1, w, 9 * c4)

    tt = t[:tr, :, :]      # current image rows
    td = t[1:, :, :]       # next image row (uses the halo for the last row)

    def tap(src, k):       # tap k = 3*kh + kw of the transposed-conv kernel
        return src[:, :, k * c4:(k + 1) * c4]

    def cshift(a):         # a'[m, n] = a[m, n+1]; zero-fill at n == w-1
        return jnp.concatenate([a[:, 1:, :], jnp.zeros_like(a[:, :1, :])], axis=1)

    # zero contributions that would cross the bottom edge of each image
    gr = i * tr + jax.lax.broadcasted_iota(jnp.int32, (tr, w, c4), 0)
    not_last_row = (gr % h) != (h - 1)

    ee = tap(tt, 4)                                               # out (2m  , 2n  )
    eo = cshift(tap(tt, 3)) + tap(tt, 5)                          # out (2m  , 2n+1)
    oe = jnp.where(not_last_row, tap(td, 1), 0.0) + tap(tt, 7)    # out (2m+1, 2n  )
    oo = (jnp.where(not_last_row, cshift(tap(td, 0)), 0.0)
          + jnp.where(not_last_row, tap(td, 2), 0.0)
          + cshift(tap(tt, 6)) + tap(tt, 8))                      # out (2m+1, 2n+1)

    q_ref[0] = ee
    q_ref[1] = eo
    q_ref[2] = oe
    q_ref[3] = oo

    @pl.when(i == 0)
    def _init():
        s_ref[...] = jnp.zeros_like(s_ref)

    ssum = jnp.zeros((1, c4), jnp.float32)
    ssq = jnp.zeros((1, c4), jnp.float32)
    for quad in (ee, eo, oe, oo):
        f = quad.reshape(tr * w, c4)
        ssum = ssum + jnp.sum(f, axis=0, keepdims=True)
        ssq = ssq + jnp.sum(f * f, axis=0, keepdims=True)
    s_ref[0:1, :] += ssum
    s_ref[1:2, :] += ssq


def _conv3_stats_kernel(q_ref, aff2_ref, w3_ref, s_ref):
    """Pass 3: BN2+ReLU, z = q @ w3; accumulate BN3 sum/sumsq (z not stored)."""
    i = pl.program_id(0)
    nq, tr, w, c4 = q_ref.shape

    q = q_ref[...].reshape(nq * tr * w, c4)
    qb = jnp.maximum(q * aff2_ref[0:1, :] + aff2_ref[1:2, :], 0.0)
    z = jnp.dot(qb.astype(jnp.bfloat16), w3_ref[...],
                preferred_element_type=jnp.float32)

    @pl.when(i == 0)
    def _init():
        s_ref[...] = jnp.zeros_like(s_ref)

    s_ref[0:1, :] += jnp.sum(z, axis=0, keepdims=True)
    s_ref[1:2, :] += jnp.sum(z * z, axis=0, keepdims=True)


def _conv3_apply_kernel(q_ref, aff2_ref, w3_ref, aff3_ref, o_ref):
    """Pass 4: BN2+ReLU, conv3 (recomputed), BN3+ReLU, write the output."""
    nq, tr, w, c4 = q_ref.shape
    nf = w3_ref.shape[1]

    q = q_ref[...].reshape(nq * tr * w, c4)
    qb = jnp.maximum(q * aff2_ref[0:1, :] + aff2_ref[1:2, :], 0.0)
    z = jnp.dot(qb.astype(jnp.bfloat16), w3_ref[...],
                preferred_element_type=jnp.float32)
    zb = jnp.maximum(z * aff3_ref[0:1, :] + aff3_ref[1:2, :], 0.0)
    o_ref[...] = zb.reshape(nq, tr, w, nf)


# ---------------------------------------------------------------------------
# Wrapper
# ---------------------------------------------------------------------------
def _largest_divisor_leq(n, cap):
    d = max(1, min(n, cap))
    while n % d:
        d -= 1
    return d


def _bn_affine(stats, count, gamma, beta):
    """Fold a batch-stat BatchNorm into per-channel (scale, shift)."""
    mean = stats[0] / count
    var = jnp.maximum(stats[1] / count - mean * mean, 0.0)   # biased variance
    scale = gamma * jax.lax.rsqrt(var + EPS)
    shift = beta - mean * scale
    return jnp.stack([scale, shift], axis=0).astype(jnp.float32)   # (2, C)


def decoder_block(x_nchw, params, *, block_rows=128):
    n, cin, h, w = x_nchw.shape
    c4 = params["w1"].shape[1]
    nf = params["w3"].shape[1]
    nh = n * h
    tr = _largest_divisor_leq(nh, block_rows)
    nt = nh // tr
    npix = nh * w

    # channels-last pixel-row layout: (N*H, W, C); channels on the lane axis.
    x = jnp.transpose(x_nchw, (0, 2, 3, 1)).reshape(nh, w, cin).astype(jnp.float32)
    w1 = params["w1"].astype(jnp.bfloat16)
    # deconv weight wd[3*kh+kw, ci, co]  ->  one wide (c4, 9*c4) matrix
    w_wide = jnp.transpose(params["wd"], (1, 0, 2)).reshape(c4, 9 * c4).astype(jnp.bfloat16)
    w3 = params["w3"].astype(jnp.bfloat16)

    seq = pltpu.CompilerParams(dimension_semantics=("arbitrary",))
    par = pltpu.CompilerParams(dimension_semantics=("parallel",))

    # ---- pass 1: conv1 + BN1 statistics -----------------------------------
    y, s1 = pl.pallas_call(
        _conv1_stats_kernel,
        grid=(nt,),
        in_specs=[pl.BlockSpec((tr, w, cin), lambda i: (i, 0, 0)),
                  pl.BlockSpec((cin, c4), lambda i: (0, 0))],
        out_specs=(pl.BlockSpec((tr, w, c4), lambda i: (i, 0, 0)),
                   pl.BlockSpec((2, c4), lambda i: (0, 0))),
        out_shape=(jax.ShapeDtypeStruct((nh, w, c4), jnp.float32),
                   jax.ShapeDtypeStruct((2, c4), jnp.float32)),
        compiler_params=seq,
    )(x, w1)
    aff1 = _bn_affine(s1, npix, params["g1"][0], params["bt1"][0])

    # ---- pass 2: BN1+ReLU, fused deconv, BN2 statistics --------------------
    q, s2 = pl.pallas_call(
        functools.partial(_deconv_stats_kernel, h),
        grid=(nt,),
        in_specs=[pl.BlockSpec((tr, w, c4), lambda i: (i, 0, 0)),
                  # 1-image-row halo from the next tile (clamped; masked anyway
                  # for the last row of each image / the last tile).
                  pl.BlockSpec((1, w, c4),
                               lambda i: (jnp.minimum((i + 1) * tr, nh - 1), 0, 0)),
                  pl.BlockSpec((2, c4), lambda i: (0, 0)),
                  pl.BlockSpec((c4, 9 * c4), lambda i: (0, 0))],
        out_specs=(pl.BlockSpec((4, tr, w, c4), lambda i: (0, i, 0, 0)),
                   pl.BlockSpec((2, c4), lambda i: (0, 0))),
        out_shape=(jax.ShapeDtypeStruct((4, nh, w, c4), jnp.float32),
                   jax.ShapeDtypeStruct((2, c4), jnp.float32)),
        compiler_params=seq,
    )(y, y, aff1, w_wide)
    aff2 = _bn_affine(s2, 4 * npix, params["g2"][0], params["bt2"][0])

    # ---- pass 3: BN2+ReLU, conv3 -> BN3 statistics only ---------------------
    s3 = pl.pallas_call(
        _conv3_stats_kernel,
        grid=(nt,),
        in_specs=[pl.BlockSpec((4, tr, w, c4), lambda i: (0, i, 0, 0)),
                  pl.BlockSpec((2, c4), lambda i: (0, 0)),
                  pl.BlockSpec((c4, nf), lambda i: (0, 0))],
        out_specs=pl.BlockSpec((2, nf), lambda i: (0, 0)),
        out_shape=jax.ShapeDtypeStruct((2, nf), jnp.float32),
        compiler_params=seq,
    )(q, aff2, w3)
    aff3 = _bn_affine(s3, 4 * npix, params["g3"][0], params["bt3"][0])

    # ---- pass 4: BN2+ReLU, conv3, BN3+ReLU -> output (parallel / megacore) ---
    quads = pl.pallas_call(
        _conv3_apply_kernel,
        grid=(nt,),
        in_specs=[pl.BlockSpec((4, tr, w, c4), lambda i: (0, i, 0, 0)),
                  pl.BlockSpec((2, c4), lambda i: (0, 0)),
                  pl.BlockSpec((c4, nf), lambda i: (0, 0)),
                  pl.BlockSpec((2, nf), lambda i: (0, 0))],
        out_specs=pl.BlockSpec((4, tr, w, nf), lambda i: (0, i, 0, 0)),
        out_shape=jax.ShapeDtypeStruct((4, nh, w, nf), jnp.float32),
        compiler_params=par,
    )(q, aff2, w3, aff3)

    # interleave the parity quadrants and go back to NCHW with ONE transpose
    out = (quads.reshape(2, 2, n, h, w, nf)
           .transpose(2, 5, 3, 0, 4, 1)
           .reshape(n, nf, 2 * h, 2 * w))
    return out


# ---------------------------------------------------------------------------
# Parameters / pure-JAX reference
# ---------------------------------------------------------------------------
def init_params(key, in_channels, n_filters):
    c4 = in_channels // 4
    ks = jax.random.split(key, 12)
    nrm = lambda k, shape, s=0.1: (s * jax.random.normal(k, shape)).astype(jnp.float32)
    return {
        "w1": nrm(ks[0], (in_channels, c4), 0.3),     # conv1 weight (Cin, Cin/4)
        "b1": nrm(ks[1], (1, c4)),
        "g1": 1.0 + nrm(ks[2], (1, c4)),
        "bt1": nrm(ks[3], (1, c4)),
        # ConvTranspose2d weight W[ci, co, kh, kw] stored as wd[3*kh+kw, ci, co]
        "wd": nrm(ks[4], (9, c4, c4), 0.3),
        "b2": nrm(ks[5], (1, c4)),
        "g2": 1.0 + nrm(ks[6], (1, c4)),
        "bt2": nrm(ks[7], (1, c4)),
        "w3": nrm(ks[8], (c4, n_filters), 0.3),       # conv3 weight (Cin/4, NF)
        "b3": nrm(ks[9], (1, n_filters)),
        "g3": 1.0 + nrm(ks[10], (1, n_filters)),
        "bt3": nrm(ks[11], (1, n_filters)),
    }


def reference(x_nchw, prm):
    # Pure-JAX (XLA) reference of the same forward pass (includes the conv
    # biases, which cancel inside the train-mode BatchNorms).
    x = jnp.transpose(x_nchw, (0, 2, 3, 1)).astype(jnp.float32)
    c4 = prm["w1"].shape[1]

    def bn_relu(v, g, b):
        mean = v.mean(axis=(0, 1, 2), keepdims=True)
        var = ((v - mean) ** 2).mean(axis=(0, 1, 2), keepdims=True)
        return jnp.maximum((v - mean) * jax.lax.rsqrt(var + EPS) * g[0] + b[0], 0.0)

    y = jnp.einsum("nhwc,cd->nhwd", x, prm["w1"]) + prm["b1"][0]
    y = bn_relu(y, prm["g1"], prm["bt1"])

    # ConvTranspose2d == dilated conv with flipped kernel, pad (k-1-p, k-1-p+op)
    k = prm["wd"].reshape(3, 3, c4, c4)[::-1, ::-1]   # HWIO, spatially flipped
    y = jax.lax.conv_general_dilated(
        y, k, window_strides=(1, 1), padding=[(1, 2), (1, 2)],
        lhs_dilation=(2, 2),
        dimension_numbers=("NHWC", "HWIO", "NHWC")) + prm["b2"][0]
    y = bn_relu(y, prm["g2"], prm["bt2"])

    y = jnp.einsum("nhwc,cd->nhwd", y, prm["w3"]) + prm["b3"][0]
    y = bn_relu(y, prm["g3"], prm["bt3"])
    return jnp.transpose(y, (0, 3, 1, 2))


if __name__ == "__main__":
    key = jax.random.PRNGKey(0)
    kx, kp = jax.random.split(key)
    N, CIN, H, W, NF = 2, 16, 16, 16, 8          # in_channels=16 -> bottleneck 4
    x = jax.random.normal(kx, (N, CIN, H, W), dtype=jnp.float32)
    params = init_params(kp, CIN, NF)

    fwd = jax.jit(functools.partial(decoder_block, block_rows=8))  # 4 row-tiles
    out = jax.block_until_ready(fwd(x, params))
    assert out.shape == (N, NF, 2 * H, 2 * W), out.shape

    ref = reference(x, params)
    err = float(jnp.max(jnp.abs(out - ref)))
    # matmuls run in bf16 on the MXU (f32 accumulation) -> relaxed tolerance.
    if not bool(jnp.allclose(out, ref, rtol=5e-2, atol=5e-2)):
        raise AssertionError(
            f"Pallas output mismatch vs JAX reference (max abs err={err:g})")
    print("KERNEL_OK")
</pallas_src>

<mosaic_0001>
module attributes {stable_mosaic.version = 11 : i64} {
  func.func @_conv1_stats_kernel(%arg0: i32, %arg1: memref<8x16x16xf32, #tpu.memory_space<vmem>>, %arg2: memref<16x4xbf16, #tpu.memory_space<vmem>>, %arg3: memref<8x16x4xf32, #tpu.memory_space<vmem>>, %arg4: memref<2x4xf32, #tpu.memory_space<vmem>>) attributes {dimension_semantics = [#tpu.dimension_semantics<arbitrary>], iteration_bounds = array<i64: 4>, scalar_prefetch = 0 : i64, scratch_operands = 0 : i64, tpu.core_type = #tpu.core_type<tc>, window_params = [{transform_indices = @transform_0, window_bounds = array<i64: 8, 16, 16>}, {pipeline_mode = #tpu.pipeline_mode<synchronous>, transform_indices = @transform_1, window_bounds = array<i64: 16, 4>}, {transform_indices = @transform_2, window_bounds = array<i64: 8, 16, 4>}, {pipeline_mode = #tpu.pipeline_mode<synchronous>, transform_indices = @transform_3, window_bounds = array<i64: 2, 4>}]} {
    %c0 = arith.constant 0 : index
    %c0_0 = arith.constant 0 : index
    %c0_1 = arith.constant 0 : index
    %0 = vector.load %arg1[%c0, %c0_0, %c0_1] : memref<8x16x16xf32, #tpu.memory_space<vmem>>, vector<8x16x16xf32>
    %1 = vector.shape_cast %0 : vector<8x16x16xf32> to vector<128x16xf32>
    %2 = arith.truncf %1 : vector<128x16xf32> to vector<128x16xbf16>
    %c0_2 = arith.constant 0 : index
    %c0_3 = arith.constant 0 : index
    %3 = vector.load %arg2[%c0_2, %c0_3] : memref<16x4xbf16, #tpu.memory_space<vmem>>, vector<16x4xbf16>
    %cst = arith.constant dense<0.000000e+00> : vector<128x4xf32>
    %4 = tpu.matmul %2, %3, %cst {dimension_numbers = #tpu.dot_dimension_numbers<[1], [0], [0], [1], [0, 0, 1, 1], [], []>} : vector<128x16xbf16>, vector<16x4xbf16>, vector<128x4xf32> -> vector<128x4xf32>
    %5 = vector.shape_cast %4 : vector<128x4xf32> to vector<8x16x4xf32>
    %c0_4 = arith.constant 0 : index
    %c0_5 = arith.constant 0 : index
    %c0_6 = arith.constant 0 : index
    %6 = vector.load %arg3[%c0_4, %c0_5, %c0_6] : memref<8x16x4xf32, #tpu.memory_space<vmem>>, vector<8x16x4xf32>
    tpu.vector_store %arg3[%c0_4, %c0_5, %c0_6], %5 {strides = array<i32>} : memref<8x16x4xf32, #tpu.memory_space<vmem>>, vector<8x16x4xf32>,
    %c0_i32 = arith.constant 0 : i32
    %7 = arith.cmpi eq, %arg0, %c0_i32 : i32
    %8 = arith.extui %7 : i1 to i32
    %c0_i32_7 = arith.constant 0 : i32
    %9 = arith.cmpi ne, %8, %c0_i32_7 : i32
    scf.if %9 {
      %cst_17 = arith.constant 0.000000e+00 : f32
      %21 = vector.broadcast %cst_17 : f32 to vector<2x4xf32>
      %c0_18 = arith.constant 0 : index
      %c0_19 = arith.constant 0 : index
      %22 = vector.load %arg4[%c0_18, %c0_19] : memref<2x4xf32, #tpu.memory_space<vmem>>, vector<2x4xf32>
      tpu.vector_store %arg4[%c0_18, %c0_19], %21 {strides = array<i32>} : memref<2x4xf32, #tpu.memory_space<vmem>>, vector<2x4xf32>,
    } else {
    }
    %c0_8 = arith.constant 0 : index
    %c0_9 = arith.constant 0 : index
    %10 = vector.load %arg4[%c0_8, %c0_9] : memref<2x4xf32, #tpu.memory_space<vmem>>, vector<1x4xf32>
    %cst_10 = arith.constant dense<0.000000e+00> : vector<4xf32>
    %11 = vector.multi_reduction <add>, %4, %cst_10 [0] : vector<128x4xf32> to vector<4xf32>
    %12 = vector.shape_cast %11 : vector<4xf32> to vector<1x4xf32>
    %13 = arith.addf %10, %12 : vector<1x4xf32>
    %c0_11 = arith.constant 0 : index
    %c0_12 = arith.constant 0 : index
    %14 = vector.load %arg4[%c0_11, %c0_12] : memref<2x4xf32, #tpu.memory_space<vmem>>, vector<1x4xf32>
    tpu.vector_store %arg4[%c0_11, %c0_12], %13 {strides = array<i32>} : memref<2x4xf32, #tpu.memory_space<vmem>>, vector<1x4xf32>,
    %c1 = arith.constant 1 : index
    %c0_13 = arith.constant 0 : index
    %15 = vector.load %arg4[%c1, %c0_13] : memref<2x4xf32, #tpu.memory_space<vmem>>, vector<1x4xf32>
    %16 = arith.mulf %4, %4 : vector<128x4xf32>
    %cst_14 = arith.constant dense<0.000000e+00> : vector<4xf32>
    %17 = vector.multi_reduction <add>, %16, %cst_14 [0] : vector<128x4xf32> to vector<4xf32>
    %18 = vector.shape_cast %17 : vector<4xf32> to vector<1x4xf32>
    %19 = arith.addf %15, %18 : vector<1x4xf32>
    %c1_15 = arith.constant 1 : index
    %c0_16 = arith.constant 0 : index
    %20 = vector.load %arg4[%c1_15, %c0_16] : memref<2x4xf32, #tpu.memory_space<vmem>>, vector<1x4xf32>
    tpu.vector_store %arg4[%c1_15, %c0_16], %19 {strides = array<i32>} : memref<2x4xf32, #tpu.memory_space<vmem>>, vector<1x4xf32>,
    return
  }
  func.func @transform_0(%arg0: i32) -> (i32, i32, i32) {
    %c0_i32 = arith.constant 0 : i32
    %c0_i32_0 = arith.constant 0 : i32
    %c0_i32_1 = arith.constant 0 : i32
    return %arg0, %c0_i32, %c0_i32_0 : i32, i32, i32
  }
  func.func @transform_1(%arg0: i32) -> (i32, i32) {
    %c0_i32 = arith.constant 0 : i32
    %c0_i32_0 = arith.constant 0 : i32
    %c0_i32_1 = arith.constant 0 : i32
    return %c0_i32, %c0_i32_0 : i32, i32
  }
  func.func @transform_2(%arg0: i32) -> (i32, i32, i32) {
    %c0_i32 = arith.constant 0 : i32
    %c0_i32_0 = arith.constant 0 : i32
    %c0_i32_1 = arith.constant 0 : i32
    return %arg0, %c0_i32, %c0_i32_0 : i32, i32, i32
  }
  func.func @transform_3(%arg0: i32) -> (i32, i32) {
    %c0_i32 = arith.constant 0 : i32
    %c0_i32_0 = arith.constant 0 : i32
    %c0_i32_1 = arith.constant 0 : i32
    return %c0_i32, %c0_i32_0 : i32, i32
  }
}

module attributes {stable_mosaic.version = 11 : i64} {
  func.func @_deconv_stats_kernel(%arg0: i32, %arg1: memref<8x16x4xf32, #tpu.memory_space<vmem>>, %arg2: memref<1x16x4xf32, #tpu.memory_space<vmem>>, %arg3: memref<2x4xf32, #tpu.memory_space<vmem>>, %arg4: memref<4x36xbf16, #tpu.memory_space<vmem>>, %arg5: memref<4x8x16x4xf32, #tpu.memory_space<vmem>>, %arg6: memref<2x4xf32, #tpu.memory_space<vmem>>) attributes {dimension_semantics = [#tpu.dimension_semantics<arbitrary>], iteration_bounds = array<i64: 4>, scalar_prefetch = 0 : i64, scratch_operands = 0 : i64, tpu.core_type = #tpu.core_type<tc>, window_params = [{transform_indices = @transform_0, window_bounds = array<i64: 8, 16, 4>}, {transform_indices = @transform_1, window_bounds = array<i64: 1, 16, 4>}, {pipeline_mode = #tpu.pipeline_mode<synchronous>, transform_indices = @transform_2, window_bounds = array<i64: 2, 4>}, {pipeline_mode = #tpu.pipeline_mode<synchronous>, transform_indices = @transform_3, window_bounds = array<i64: 4, 36>}, {transform_indices = @transform_4, window_bounds = array<i64: 4, 8, 16, 4>}, {pipeline_mode = #tpu.pipeline_mode<synchronous>, transform_indices = @transform_5, window_bounds = array<i64: 2, 4>}]} {
    %c0 = arith.constant 0 : index
    %c0_0 = arith.constant 0 : index
    %0 = vector.load %arg3[%c0, %c0_0] : memref<2x4xf32, #tpu.memory_space<vmem>>, vector<1x4xf32>
    %1 = vector.shape_cast %0 : vector<1x4xf32> to vector<1x1x4xf32>
    %c1 = arith.constant 1 : index
    %c0_1 = arith.constant 0 : index
    %2 = vector.load %arg3[%c1, %c0_1] : memref<2x4xf32, #tpu.memory_space<vmem>>, vector<1x4xf32>
    %3 = vector.shape_cast %2 : vector<1x4xf32> to vector<1x1x4xf32>
    %c0_2 = arith.constant 0 : index
    %c0_3 = arith.constant 0 : index
    %c0_4 = arith.constant 0 : index
    %4 = vector.load %arg1[%c0_2, %c0_3, %c0_4] : memref<8x16x4xf32, #tpu.memory_space<vmem>>, vector<8x16x4xf32>
    %c0_5 = arith.constant 0 : index
    %c0_6 = arith.constant 0 : index
    %c0_7 = arith.constant 0 : index
    %5 = vector.load %arg2[%c0_5, %c0_6, %c0_7] : memref<1x16x4xf32, #tpu.memory_space<vmem>>, vector<1x16x4xf32>
    %6 = tpu.concatenate %4, %5 in 0 : vector<8x16x4xf32>, vector<1x16x4xf32> -> vector<9x16x4xf32>
    %7 = vector.broadcast %1 : vector<1x1x4xf32> to vector<9x16x4xf32>
    %8 = arith.mulf %6, %7 : vector<9x16x4xf32>
    %9 = vector.broadcast %3 : vector<1x1x4xf32> to vector<9x16x4xf32>
    %10 = arith.addf %8, %9 : vector<9x16x4xf32>
    %cst = arith.constant 0.000000e+00 : f32
    %11 = vector.broadcast %cst : f32 to vector<9x16x4xf32>
    %12 = arith.maximumf %10, %11 : vector<9x16x4xf32>
    %13 = vector.shape_cast %12 : vector<9x16x4xf32> to vector<144x4xf32>
    %14 = arith.truncf %13 : vector<144x4xf32> to vector<144x4xbf16>
    %c0_8 = arith.constant 0 : index
    %c0_9 = arith.constant 0 : index
    %15 = vector.load %arg4[%c0_8, %c0_9] : memref<4x36xbf16, #tpu.memory_space<vmem>>, vector<4x36xbf16>
    %cst_10 = arith.constant dense<0.000000e+00> : vector<144x36xf32>
    %16 = tpu.matmul %14, %15, %cst_10 {dimension_numbers = #tpu.dot_dimension_numbers<[1], [0], [0], [1], [0, 0, 1, 1], [], []>} : vector<144x4xbf16>, vector<4x36xbf16>, vector<144x36xf32> -> vector<144x36xf32>
    %17 = vector.shape_cast %16 : vector<144x36xf32> to vector<9x16x36xf32>
    %18 = vector.extract_strided_slice %17 {offsets = [0, 0, 0], sizes = [8, 16, 36], strides = [1, 1, 1]} : vector<9x16x36xf32> to vector<8x16x36xf32>
    %19 = vector.extract_strided_slice %17 {offsets = [1, 0, 0], sizes = [8, 16, 36], strides = [1, 1, 1]} : vector<9x16x36xf32> to vector<8x16x36xf32>
    %c8_i32 = arith.constant 8 : i32
    %20 = arith.muli %arg0, %c8_i32 : i32
    %21 = tpu.iota {dimensions = array<i32: 0>} : vector<8x16x4xi32>
    %22 = vector.broadcast %20 : i32 to vector<8x16x4xi32>
    %23 = arith.addi %22, %21 : vector<8x16x4xi32>
    %c16_i32 = arith.constant 16 : i32
    %c0_i32 = arith.constant 0 : i32
    %24 = arith.cmpi eq, %c16_i32, %c0_i32 : i32
    %c1_i32 = arith.constant 1 : i32
    %25 = arith.select %24, %c1_i32, %c16_i32 : i32
    %26 = vector.broadcast %25 : i32 to vector<8x16x4xi32>
    %27 = arith.remsi %23, %26 : vector<8x16x4xi32>
    %c0_i32_11 = arith.constant 0 : i32
    %28 = vector.broadcast %c0_i32_11 : i32 to vector<8x16x4xi32>
    %29 = arith.cmpi ne, %27, %28 : vector<8x16x4xi32>
    %c0_i32_12 = arith.constant 0 : i32
    %30 = vector.broadcast %c0_i32_12 : i32 to vector<8x16x4xi32>
    %31 = arith.cmpi slt, %27, %30 : vector<8x16x4xi32>
    %c0_i32_13 = arith.constant 0 : i32
    %32 = arith.cmpi slt, %25, %c0_i32_13 : i32
    %33 = vector.broadcast %32 : i1 to vector<8x16x4xi1>
    %34 = vector.broadcast %33 : vector<8x16x4xi1> to vector<8x16x4xi1>
    %35 = arith.xori %31, %34 : vector<8x16x4xi1>
    %36 = arith.andi %35, %29 : vector<8x16x4xi1>
    %37 = vector.broadcast %25 : i32 to vector<8x16x4xi32>
    %38 = arith.addi %27, %37 : vector<8x16x4xi32>
    %39 = arith.select %36, %38, %27 : vector<8x16x4xi1>, vector<8x16x4xi32>
    %c15_i32 = arith.constant 15 : i32
    %40 = vector.broadcast %c15_i32 : i32 to vector<8x16x4xi32>
    %41 = arith.cmpi ne, %39, %40 : vector<8x16x4xi32>
    %42 = vector.extract_strided_slice %18 {offsets = [0, 0, 16], sizes = [8, 16, 4], strides = [1, 1, 1]} : vector<8x16x36xf32> to vector<8x16x4xf32>
    %43 = vector.extract_strided_slice %18 {offsets = [0, 0, 12], sizes = [8, 16, 4], strides = [1, 1, 1]} : vector<8x16x36xf32> to vector<8x16x4xf32>
    %44 = vector.extract_strided_slice %43 {offsets = [0, 1, 0], sizes = [8, 15, 4], strides = [1, 1, 1]} : vector<8x16x4xf32> to vector<8x15x4xf32>
    %cst_14 = arith.constant 0.000000e+00 : f32
    %45 = vector.broadcast %cst_14 : f32 to vector<8x1x4xf32>
    %46 = tpu.concatenate %44, %45 in 1 : vector<8x15x4xf32>, vector<8x1x4xf32> -> vector<8x16x4xf32>
    %47 = vector.extract_strided_slice %18 {offsets = [0, 0, 20], sizes = [8, 16, 4], strides = [1, 1, 1]} : vector<8x16x36xf32> to vector<8x16x4xf32>
    %48 = arith.addf %46, %47 : vector<8x16x4xf32>
    %49 = vector.extract_strided_slice %19 {offsets = [0, 0, 4], sizes = [8, 16, 4], strides = [1, 1, 1]} : vector<8x16x36xf32> to vector<8x16x4xf32>
    %cst_15 = arith.constant 0.000000e+00 : f32
    %50 = vector.broadcast %cst_15 : f32 to vector<8x16x4xf32>
    %51 = arith.select %41, %49, %50 : vector<8x16x4xi1>, vector<8x16x4xf32>
    %52 = vector.extract_strided_slice %18 {offsets = [0, 0, 28], sizes = [8, 16, 4], strides = [1, 1, 1]} : vector<8x16x36xf32> to vector<8x16x4xf32>
    %53 = arith.addf %51, %52 : vector<8x16x4xf32>
    %54 = vector.extract_strided_slice %19 {offsets = [0, 0, 0], sizes = [8, 16, 4], strides = [1, 1, 1]} : vector<8x16x36xf32> to vector<8x16x4xf32>
    %55 = vector.extract_strided_slice %54 {offsets = [0, 1, 0], sizes = [8, 15, 4], strides = [1, 1, 1]} : vector<8x16x4xf32> to vector<8x15x4xf32>
    %cst_16 = arith.constant 0.000000e+00 : f32
    %56 = vector.broadcast %cst_16 : f32 to vector<8x1x4xf32>
    %57 = tpu.concatenate %55, %56 in 1 : vector<8x15x4xf32>, vector<8x1x4xf32> -> vector<8x16x4xf32>
    %cst_17 = arith.constant 0.000000e+00 : f32
    %58 = vector.broadcast %cst_17 : f32 to vector<8x16x4xf32>
    %59 = arith.select %41, %57, %58 : vector<8x16x4xi1>, vector<8x16x4xf32>
    %60 = vector.extract_strided_slice %19 {offsets = [0, 0, 8], sizes = [8, 16, 4], strides = [1, 1, 1]} : vector<8x16x36xf32> to vector<8x16x4xf32>
    %cst_18 = arith.constant 0.000000e+00 : f32
    %61 = vector.broadcast %cst_18 : f32 to vector<8x16x4xf32>
    %62 = arith.select %41, %60, %61 : vector<8x16x4xi1>, vector<8x16x4xf32>
    %63 = arith.addf %59, %62 : vector<8x16x4xf32>
    %64 = vector.extract_strided_slice %18 {offsets = [0, 0, 24], sizes = [8, 16, 4], strides = [1, 1, 1]} : vector<8x16x36xf32> to vector<8x16x4xf32>
    %65 = vector.extract_strided_slice %64 {offsets = [0, 1, 0], sizes = [8, 15, 4], strides = [1, 1, 1]} : vector<8x16x4xf32> to vector<8x15x4xf32>
    %cst_19 = arith.constant 0.000000e+00 : f32
    %66 = vector.broadcast %cst_19 : f32 to vector<8x1x4xf32>
    %67 = tpu.concatenate %65, %66 in 1 : vector<8x15x4xf32>, vector<8x1x4xf32> -> vector<8x16x4xf32>
    %68 = arith.addf %63, %67 : vector<8x16x4xf32>
    %69 = vector.extract_strided_slice %18 {offsets = [0, 0, 32], sizes = [8, 16, 4], strides = [1, 1, 1]} : vector<8x16x36xf32> to vector<8x16x4xf32>
    %70 = arith.addf %68, %69 : vector<8x16x4xf32>
    %c0_20 = arith.constant 0 : index
    %c0_21 = arith.constant 0 : index
    %c0_22 = arith.constant 0 : index
    %c0_23 = arith.constant 0 : index
    %71 = vector.load %arg5[%c0_20, %c0_21, %c0_22, %c0_23] : memref<4x8x16x4xf32, #tpu.memory_space<vmem>>, vector<1x8x16x4xf32>
    %72 = vector.shape_cast %71 : vector<1x8x16x4xf32> to vector<8x16x4xf32>
    %73 = vector.shape_cast %42 : vector<8x16x4xf32> to vector<1x8x16x4xf32>
    tpu.vector_store %arg5[%c0_20, %c0_21, %c0_22, %c0_23], %73 {strides = array<i32>} : memref<4x8x16x4xf32, #tpu.memory_space<vmem>>, vector<1x8x16x4xf32>,
    %c1_24 = arith.constant 1 : index
    %c0_25 = arith.constant 0 : index
    %c0_26 = arith.constant 0 : index
    %c0_27 = arith.constant 0 : index
    %74 = vector.load %arg5[%c1_24, %c0_25, %c0_26, %c0_27] : memref<4x8x16x4xf32, #tpu.memory_space<vmem>>, vector<1x8x16x4xf32>
    %75 = vector.shape_cast %74 : vector<1x8x16x4xf32> to vector<8x16x4xf32>
    %76 = vector.shape_cast %48 : vector<8x16x4xf32> to vector<1x8x16x4xf32>
    tpu.vector_store %arg5[%c1_24, %c0_25, %c0_26, %c0_27], %76 {strides = array<i32>} : memref<4x8x16x4xf32, #tpu.memory_space<vmem>>, vector<1x8x16x4xf32>,
    %c2 = arith.constant 2 : index
    %c0_28 = arith.constant 0 : index
    %c0_29 = arith.constant 0 : index
    %c0_30 = arith.constant 0 : index
    %77 = vector.load %arg5[%c2, %c0_28, %c0_29, %c0_30] : memref<4x8x16x4xf32, #tpu.memory_space<vmem>>, vector<1x8x16x4xf32>
    %78 = vector.shape_cast %77 : vector<1x8x16x4xf32> to vector<8x16x4xf32>
    %79 = vector.shape_cast %53 : vector<8x16x4xf32> to vector<1x8x16x4xf32>
    tpu.vector_store %arg5[%c2, %c0_28, %c0_29, %c0_30], %79 {strides = array<i32>} : memref<4x8x16x4xf32, #tpu.memory_space<vmem>>, vector<1x8x16x4xf32>,
    %c3 = arith.constant 3 : index
    %c0_31 = arith.constant 0 : index
    %c0_32 = arith.constant 0 : index
    %c0_33 = arith.constant 0 : index
    %80 = vector.load %arg5[%c3, %c0_31, %c0_32, %c0_33] : memref<4x8x16x4xf32, #tpu.memory_space<vmem>>, vector<1x8x16x4xf32>
    %81 = vector.shape_cast %80 : vector<1x8x16x4xf32> to vector<8x16x4xf32>
    %82 = vector.shape_cast %70 : vector<8x16x4xf32> to vector<1x8x16x4xf32>
    tpu.vector_store %arg5[%c3, %c0_31, %c0_32, %c0_33], %82 {strides = array<i32>} : memref<4x8x16x4xf32, #tpu.memory_space<vmem>>, vector<1x8x16x4xf32>,
    %c0_i32_34 = arith.constant 0 : i32
    %83 = arith.cmpi eq, %arg0, %c0_i32_34 : i32
    %84 = arith.extui %83 : i1 to i32
    %c0_i32_35 = arith.constant 0 : i32
    %85 = arith.cmpi ne, %84, %c0_i32_35 : i32
    scf.if %85 {
      %cst_54 = arith.constant 0.000000e+00 : f32
      %126 = vector.broadcast %cst_54 : f32 to vector<2x4xf32>
      %c0_55 = arith.constant 0 : index
      %c0_56 = arith.constant 0 : index
      %127 = vector.load %arg6[%c0_55, %c0_56] : memref<2x4xf32, #tpu.memory_space<vmem>>, vector<2x4xf32>
      tpu.vector_store %arg6[%c0_55, %c0_56], %126 {strides = array<i32>} : memref<2x4xf32, #tpu.memory_space<vmem>>, vector<2x4xf32>,
    } else {
    }
    %cst_36 = arith.constant 0.000000e+00 : f32
    %86 = vector.broadcast %cst_36 : f32 to vector<1x4xf32>
    %cst_37 = arith.constant 0.000000e+00 : f32
    %87 = vector.broadcast %cst_37 : f32 to vector<1x4xf32>
    %88 = vector.shape_cast %42 : vector<8x16x4xf32> to vector<128x4xf32>
    %cst_38 = arith.constant dense<0.000000e+00> : vector<4xf32>
    %89 = vector.multi_reduction <add>, %88, %cst_38 [0] : vector<128x4xf32> to vector<4xf32>
    %90 = vector.shape_cast %89 : vector<4xf32> to vector<1x4xf32>
    %91 = arith.addf %86, %90 : vector<1x4xf32>
    %92 = arith.mulf %88, %88 : vector<128x4xf32>
    %cst_39 = arith.constant dense<0.000000e+00> : vector<4xf32>
    %93 = vector.multi_reduction <add>, %92, %cst_39 [0] : vector<128x4xf32> to vector<4xf32>
    %94 = vector.shape_cast %93 : vector<4xf32> to vector<1x4xf32>
    %95 = arith.addf %87, %94 : vector<1x4xf32>
    %96 = vector.shape_cast %48 : vector<8x16x4xf32> to vector<128x4xf32>
    %cst_40 = arith.constant dense<0.000000e+00> : vector<4xf32>
    %97 = vector.multi_reduction <add>, %96, %cst_40 [0] : vector<128x4xf32> to vector<4xf32>
    %98 = vector.shape_cast %97 : vector<4xf32> to vector<1x4xf32>
    %99 = arith.addf %91, %98 : vector<1x4xf32>
    %100 = arith.mulf %96, %96 : vector<128x4xf32>
    %cst_41 = arith.constant dense<0.000000e+00> : vector<4xf32>
    %101 = vector.multi_reduction <add>, %100, %cst_41 [0] : vector<128x4xf32> to vector<4xf32>
    %102 = vector.shape_cast %101 : vector<4xf32> to vector<1x4xf32>
    %103 = arith.addf %95, %102 : vector<1x4xf32>
    %104 = vector.shape_cast %53 : vector<8x16x4xf32> to vector<128x4xf32>
    %cst_42 = arith.constant dense<0.000000e+00> : vector<4xf32>
    %105 = vector.multi_reduction <add>, %104, %cst_42 [0] : vector<128x4xf32> to vector<4xf32>
    %106 = vector.shape_cast %105 : vector<4xf32> to vector<1x4xf32>
    %107 = arith.addf %99, %106 : vector<1x4xf32>
    %108 = arith.mulf %104, %104 : vector<128x4xf32>
    %cst_43 = arith.constant dense<0.000000e+00> : vector<4xf32>
    %109 = vector.multi_reduction <add>, %108, %cst_43 [0] : vector<128x4xf32> to vector<4xf32>
    %110 = vector.shape_cast %109 : vector<4xf32> to vector<1x4xf32>
    %111 = arith.addf %103, %110 : vector<1x4xf32>
    %112 = vector.shape_cast %70 : vector<8x16x4xf32> to vector<128x4xf32>
    %cst_44 = arith.constant dense<0.000000e+00> : vector<4xf32>
    %113 = vector.multi_reduction <add>, %112, %cst_44 [0] : vector<128x4xf32> to vector<4xf32>
    %114 = vector.shape_cast %113 : vector<4xf32> to vector<1x4xf32>
    %115 = arith.addf %107, %114 : vector<1x4xf32>
    %116 = arith.mulf %112, %112 : vector<128x4xf32>
    %cst_45 = arith.constant dense<0.000000e+00> : vector<4xf32>
    %117 = vector.multi_reduction <add>, %116, %cst_45 [0] : vector<128x4xf32> to vector<4xf32>
    %118 = vector.shape_cast %117 : vector<4xf32> to vector<1x4xf32>
    %119 = arith.addf %111, %118 : vector<1x4xf32>
    %c0_46 = arith.constant 0 : index
    %c0_47 = arith.constant 0 : index
    %120 = vector.load %arg6[%c0_46, %c0_47] : memref<2x4xf32, #tpu.memory_space<vmem>>, vector<1x4xf32>
    %121 = arith.addf %120, %115 : vector<1x4xf32>
    %c0_48 = arith.constant 0 : index
    %c0_49 = arith.constant 0 : index
    %122 = vector.load %arg6[%c0_48, %c0_49] : memref<2x4xf32, #tpu.memory_space<vmem>>, vector<1x4xf32>
    tpu.vector_store %arg6[%c0_48, %c0_49], %121 {strides = array<i32>} : memref<2x4xf32, #tpu.memory_space<vmem>>, vector<1x4xf32>,
    %c1_50 = arith.constant 1 : index
    %c0_51 = arith.constant 0 : index
    %123 = vector.load %arg6[%c1_50, %c0_51] : memref<2x4xf32, #tpu.memory_space<vmem>>, vector<1x4xf32>
    %124 = arith.addf %123, %119 : vector<1x4xf32>
    %c1_52 = arith.constant 1 : index
    %c0_53 = arith.constant 0 : index
    %125 = vector.load %arg6[%c1_52, %c0_53] : memref<2x4xf32, #tpu.memory_space<vmem>>, vector<1x4xf32>
    tpu.vector_store %arg6[%c1_52, %c0_53], %124 {strides = array<i32>} : memref<2x4xf32, #tpu.memory_space<vmem>>, vector<1x4xf32>,
    return
  }
  func.func @transform_0(%arg0: i32) -> (i32, i32, i32) {
    %c0_i32 = arith.constant 0 : i32
    %c0_i32_0 = arith.constant 0 : i32
    %c0_i32_1 = arith.constant 0 : i32
    return %arg0, %c0_i32, %c0_i32_0 : i32, i32, i32
  }
  func.func @transform_1(%arg0: i32) -> (i32, i32, i32) {
    %c1_i32 = arith.constant 1 : i32
    %0 = arith.addi %arg0, %c1_i32 : i32
    %c8_i32 = arith.constant 8 : i32
    %1 = arith.muli %0, %c8_i32 : i32
    %c31_i32 = arith.constant 31 : i32
    %2 = arith.minsi %1, %c31_i32 : i32
    %c0_i32 = arith.constant 0 : i32
    %c0_i32_0 = arith.constant 0 : i32
    %c0_i32_1 = arith.constant 0 : i32
    return %2, %c0_i32, %c0_i32_0 : i32, i32, i32
  }
  func.func @transform_2(%arg0: i32) -> (i32, i32) {
    %c0_i32 = arith.constant 0 : i32
    %c0_i32_0 = arith.constant 0 : i32
    %c0_i32_1 = arith.constant 0 : i32
    return %c0_i32, %c0_i32_0 : i32, i32
  }
  func.func @transform_3(%arg0: i32) -> (i32, i32) {
    %c0_i32 = arith.constant 0 : i32
    %c0_i32_0 = arith.constant 0 : i32
    %c0_i32_1 = arith.constant 0 : i32
    return %c0_i32, %c0_i32_0 : i32, i32
  }
  func.func @transform_4(%arg0: i32) -> (i32, i32, i32, i32) {
    %c0_i32 = arith.constant 0 : i32
    %c0_i32_0 = arith.constant 0 : i32
    %c0_i32_1 = arith.constant 0 : i32
    %c0_i32_2 = arith.constant 0 : i32
    return %c0_i32, %arg0, %c0_i32_0, %c0_i32_1 : i32, i32, i32, i32
  }
  func.func @transform_5(%arg0: i32) -> (i32, i32) {
    %c0_i32 = arith.constant 0 : i32
    %c0_i32_0 = arith.constant 0 : i32
    %c0_i32_1 = arith.constant 0 : i32
    return %c0_i32, %c0_i32_0 : i32, i32
  }
}

module attributes {stable_mosaic.version = 11 : i64} {
  func.func @_conv3_stats_kernel(%arg0: i32, %arg1: memref<4x8x16x4xf32, #tpu.memory_space<vmem>>, %arg2: memref<2x4xf32, #tpu.memory_space<vmem>>, %arg3: memref<4x8xbf16, #tpu.memory_space<vmem>>, %arg4: memref<2x8xf32, #tpu.memory_space<vmem>>) attributes {dimension_semantics = [#tpu.dimension_semantics<arbitrary>], iteration_bounds = array<i64: 4>, scalar_prefetch = 0 : i64, scratch_operands = 0 : i64, tpu.core_type = #tpu.core_type<tc>, window_params = [{transform_indices = @transform_0, window_bounds = array<i64: 4, 8, 16, 4>}, {pipeline_mode = #tpu.pipeline_mode<synchronous>, transform_indices = @transform_1, window_bounds = array<i64: 2, 4>}, {pipeline_mode = #tpu.pipeline_mode<synchronous>, transform_indices = @transform_2, window_bounds = array<i64: 4, 8>}, {pipeline_mode = #tpu.pipeline_mode<synchronous>, transform_indices = @transform_3, window_bounds = array<i64: 2, 8>}]} {
    %c0 = arith.constant 0 : index
    %c0_0 = arith.constant 0 : index
    %c0_1 = arith.constant 0 : index
    %c0_2 = arith.constant 0 : index
    %0 = vector.load %arg1[%c0, %c0_0, %c0_1, %c0_2] : memref<4x8x16x4xf32, #tpu.memory_space<vmem>>, vector<4x8x16x4xf32>
    %1 = vector.shape_cast %0 : vector<4x8x16x4xf32> to vector<512x4xf32>
    %c0_3 = arith.constant 0 : index
    %c0_4 = arith.constant 0 : index
    %2 = vector.load %arg2[%c0_3, %c0_4] : memref<2x4xf32, #tpu.memory_space<vmem>>, vector<1x4xf32>
    %3 = vector.broadcast %2 : vector<1x4xf32> to vector<512x4xf32>
    %4 = arith.mulf %1, %3 : vector<512x4xf32>
    %c1 = arith.constant 1 : index
    %c0_5 = arith.constant 0 : index
    %5 = vector.load %arg2[%c1, %c0_5] : memref<2x4xf32, #tpu.memory_space<vmem>>, vector<1x4xf32>
    %6 = vector.broadcast %5 : vector<1x4xf32> to vector<512x4xf32>
    %7 = arith.addf %4, %6 : vector<512x4xf32>
    %cst = arith.constant 0.000000e+00 : f32
    %8 = vector.broadcast %cst : f32 to vector<512x4xf32>
    %9 = arith.maximumf %7, %8 : vector<512x4xf32>
    %10 = arith.truncf %9 : vector<512x4xf32> to vector<512x4xbf16>
    %c0_6 = arith.constant 0 : index
    %c0_7 = arith.constant 0 : index
    %11 = vector.load %arg3[%c0_6, %c0_7] : memref<4x8xbf16, #tpu.memory_space<vmem>>, vector<4x8xbf16>
    %cst_8 = arith.constant dense<0.000000e+00> : vector<512x8xf32>
    %12 = tpu.matmul %10, %11, %cst_8 {dimension_numbers = #tpu.dot_dimension_numbers<[1], [0], [0], [1], [0, 0, 1, 1], [], []>} : vector<512x4xbf16>, vector<4x8xbf16>, vector<512x8xf32> -> vector<512x8xf32>
    %c0_i32 = arith.constant 0 : i32
    %13 = arith.cmpi eq, %arg0, %c0_i32 : i32
    %14 = arith.extui %13 : i1 to i32
    %c0_i32_9 = arith.constant 0 : i32
    %15 = arith.cmpi ne, %14, %c0_i32_9 : i32
    scf.if %15 {
      %cst_20 = arith.constant 0.000000e+00 : f32
      %27 = vector.broadcast %cst_20 : f32 to vector<2x8xf32>
      %c0_21 = arith.constant 0 : index
      %c0_22 = arith.constant 0 : index
      %28 = vector.load %arg4[%c0_21, %c0_22] : memref<2x8xf32, #tpu.memory_space<vmem>>, vector<2x8xf32>
      tpu.vector_store %arg4[%c0_21, %c0_22], %27 {strides = array<i32>} : memref<2x8xf32, #tpu.memory_space<vmem>>, vector<2x8xf32>,
    } else {
    }
    %c0_10 = arith.constant 0 : index
    %c0_11 = arith.constant 0 : index
    %16 = vector.load %arg4[%c0_10, %c0_11] : memref<2x8xf32, #tpu.memory_space<vmem>>, vector<1x8xf32>
    %cst_12 = arith.constant dense<0.000000e+00> : vector<8xf32>
    %17 = vector.multi_reduction <add>, %12, %cst_12 [0] : vector<512x8xf32> to vector<8xf32>
    %18 = vector.shape_cast %17 : vector<8xf32> to vector<1x8xf32>
    %19 = arith.addf %16, %18 : vector<1x8xf32>
    %c0_13 = arith.constant 0 : index
    %c0_14 = arith.constant 0 : index
    %20 = vector.load %arg4[%c0_13, %c0_14] : memref<2x8xf32, #tpu.memory_space<vmem>>, vector<1x8xf32>
    tpu.vector_store %arg4[%c0_13, %c0_14], %19 {strides = array<i32>} : memref<2x8xf32, #tpu.memory_space<vmem>>, vector<1x8xf32>,
    %c1_15 = arith.constant 1 : index
    %c0_16 = arith.constant 0 : index
    %21 = vector.load %arg4[%c1_15, %c0_16] : memref<2x8xf32, #tpu.memory_space<vmem>>, vector<1x8xf32>
    %22 = arith.mulf %12, %12 : vector<512x8xf32>
    %cst_17 = arith.constant dense<0.000000e+00> : vector<8xf32>
    %23 = vector.multi_reduction <add>, %22, %cst_17 [0] : vector<512x8xf32> to vector<8xf32>
    %24 = vector.shape_cast %23 : vector<8xf32> to vector<1x8xf32>
    %25 = arith.addf %21, %24 : vector<1x8xf32>
    %c1_18 = arith.constant 1 : index
    %c0_19 = arith.constant 0 : index
    %26 = vector.load %arg4[%c1_18, %c0_19] : memref<2x8xf32, #tpu.memory_space<vmem>>, vector<1x8xf32>
    tpu.vector_store %arg4[%c1_18, %c0_19], %25 {strides = array<i32>} : memref<2x8xf32, #tpu.memory_space<vmem>>, vector<1x8xf32>,
    return
  }
  func.func @transform_0(%arg0: i32) -> (i32, i32, i32, i32) {
    %c0_i32 = arith.constant 0 : i32
    %c0_i32_0 = arith.constant 0 : i32
    %c0_i32_1 = arith.constant 0 : i32
    %c0_i32_2 = arith.constant 0 : i32
    return %c0_i32, %arg0, %c0_i32_0, %c0_i32_1 : i32, i32, i32, i32
  }
  func.func @transform_1(%arg0: i32) -> (i32, i32) {
    %c0_i32 = arith.constant 0 : i32
    %c0_i32_0 = arith.constant 0 : i32
    %c0_i32_1 = arith.constant 0 : i32
    return %c0_i32, %c0_i32_0 : i32, i32
  }
  func.func @transform_2(%arg0: i32) -> (i32, i32) {
    %c0_i32 = arith.constant 0 : i32
    %c0_i32_0 = arith.constant 0 : i32
    %c0_i32_1 = arith.constant 0 : i32
    return %c0_i32, %c0_i32_0 : i32, i32
  }
  func.func @transform_3(%arg0: i32) -> (i32, i32) {
    %c0_i32 = arith.constant 0 : i32
    %c0_i32_0 = arith.constant 0 : i32
    %c0_i32_1 = arith.constant 0 : i32
    return %c0_i32, %c0_i32_0 : i32, i32
  }
}

module attributes {stable_mosaic.version = 11 : i64} {
  func.func @_conv3_apply_kernel(%arg0: i32, %arg1: memref<4x8x16x4xf32, #tpu.memory_space<vmem>>, %arg2: memref<2x4xf32, #tpu.memory_space<vmem>>, %arg3: memref<4x8xbf16, #tpu.memory_space<vmem>>, %arg4: memref<2x8xf32, #tpu.memory_space<vmem>>, %arg5: memref<4x8x16x8xf32, #tpu.memory_space<vmem>>) attributes {dimension_semantics = [#tpu.dimension_semantics<parallel>], iteration_bounds = array<i64: 4>, scalar_prefetch = 0 : i64, scratch_operands = 0 : i64, tpu.core_type = #tpu.core_type<tc>, window_params = [{transform_indices = @transform_0, window_bounds = array<i64: 4, 8, 16, 4>}, {pipeline_mode = #tpu.pipeline_mode<synchronous>, transform_indices = @transform_1, window_bounds = array<i64: 2, 4>}, {pipeline_mode = #tpu.pipeline_mode<synchronous>, transform_indices = @transform_2, window_bounds = array<i64: 4, 8>}, {pipeline_mode = #tpu.pipeline_mode<synchronous>, transform_indices = @transform_3, window_bounds = array<i64: 2, 8>}, {transform_indices = @transform_4, window_bounds = array<i64: 4, 8, 16, 8>}]} {
    %c0 = arith.constant 0 : index
    %c0_0 = arith.constant 0 : index
    %c0_1 = arith.constant 0 : index
    %c0_2 = arith.constant 0 : index
    %0 = vector.load %arg1[%c0, %c0_0, %c0_1, %c0_2] : memref<4x8x16x4xf32, #tpu.memory_space<vmem>>, vector<4x8x16x4xf32>
    %1 = vector.shape_cast %0 : vector<4x8x16x4xf32> to vector<512x4xf32>
    %c0_3 = arith.constant 0 : index
    %c0_4 = arith.constant 0 : index
    %2 = vector.load %arg2[%c0_3, %c0_4] : memref<2x4xf32, #tpu.memory_space<vmem>>, vector<1x4xf32>
    %3 = vector.broadcast %2 : vector<1x4xf32> to vector<512x4xf32>
    %4 = arith.mulf %1, %3 : vector<512x4xf32>
    %c1 = arith.constant 1 : index
    %c0_5 = arith.constant 0 : index
    %5 = vector.load %arg2[%c1, %c0_5] : memref<2x4xf32, #tpu.memory_space<vmem>>, vector<1x4xf32>
    %6 = vector.broadcast %5 : vector<1x4xf32> to vector<512x4xf32>
    %7 = arith.addf %4, %6 : vector<512x4xf32>
    %cst = arith.constant 0.000000e+00 : f32
    %8 = vector.broadcast %cst : f32 to vector<512x4xf32>
    %9 = arith.maximumf %7, %8 : vector<512x4xf32>
    %10 = arith.truncf %9 : vector<512x4xf32> to vector<512x4xbf16>
    %c0_6 = arith.constant 0 : index
    %c0_7 = arith.constant 0 : index
    %11 = vector.load %arg3[%c0_6, %c0_7] : memref<4x8xbf16, #tpu.memory_space<vmem>>, vector<4x8xbf16>
    %cst_8 = arith.constant dense<0.000000e+00> : vector<512x8xf32>
    %12 = tpu.matmul %10, %11, %cst_8 {dimension_numbers = #tpu.dot_dimension_numbers<[1], [0], [0], [1], [0, 0, 1, 1], [], []>} : vector<512x4xbf16>, vector<4x8xbf16>, vector<512x8xf32> -> vector<512x8xf32>
    %c0_9 = arith.constant 0 : index
    %c0_10 = arith.constant 0 : index
    %13 = vector.load %arg4[%c0_9, %c0_10] : memref<2x8xf32, #tpu.memory_space<vmem>>, vector<1x8xf32>
    %14 = vector.broadcast %13 : vector<1x8xf32> to vector<512x8xf32>
    %15 = arith.mulf %12, %14 : vector<512x8xf32>
    %c1_11 = arith.constant 1 : index
    %c0_12 = arith.constant 0 : index
    %16 = vector.load %arg4[%c1_11, %c0_12] : memref<2x8xf32, #tpu.memory_space<vmem>>, vector<1x8xf32>
    %17 = vector.broadcast %16 : vector<1x8xf32> to vector<512x8xf32>
    %18 = arith.addf %15, %17 : vector<512x8xf32>
    %cst_13 = arith.constant 0.000000e+00 : f32
    %19 = vector.broadcast %cst_13 : f32 to vector<512x8xf32>
    %20 = arith.maximumf %18, %19 : vector<512x8xf32>
    %21 = vector.shape_cast %20 : vector<512x8xf32> to vector<4x8x16x8xf32>
    %c0_14 = arith.constant 0 : index
    %c0_15 = arith.constant 0 : index
    %c0_16 = arith.constant 0 : index
    %c0_17 = arith.constant 0 : index
    %22 = vector.load %arg5[%c0_14, %c0_15, %c0_16, %c0_17] : memref<4x8x16x8xf32, #tpu.memory_space<vmem>>, vector<4x8x16x8xf32>
    tpu.vector_store %arg5[%c0_14, %c0_15, %c0_16, %c0_17], %21 {strides = array<i32>} : memref<4x8x16x8xf32, #tpu.memory_space<vmem>>, vector<4x8x16x8xf32>,
    return
  }
  func.func @transform_0(%arg0: i32) -> (i32, i32, i32, i32) {
    %c0_i32 = arith.constant 0 : i32
    %c0_i32_0 = arith.constant 0 : i32
    %c0_i32_1 = arith.constant 0 : i32
    %c0_i32_2 = arith.constant 0 : i32
    return %c0_i32, %arg0, %c0_i32_0, %c0_i32_1 : i32, i32, i32, i32
  }
  func.func @transform_1(%arg0: i32) -> (i32, i32) {
    %c0_i32 = arith.constant 0 : i32
    %c0_i32_0 = arith.constant 0 : i32
    %c0_i32_1 = arith.constant 0 : i32
    return %c0_i32, %c0_i32_0 : i32, i32
  }
  func.func @transform_2(%arg0: i32) -> (i32, i32) {
    %c0_i32 = arith.constant 0 : i32
    %c0_i32_0 = arith.constant 0 : i32
    %c0_i32_1 = arith.constant 0 : i32
    return %c0_i32, %c0_i32_0 : i32, i32
  }
  func.func @transform_3(%arg0: i32) -> (i32, i32) {
    %c0_i32 = arith.constant 0 : i32
    %c0_i32_0 = arith.constant 0 : i32
    %c0_i32_1 = arith.constant 0 : i32
    return %c0_i32, %c0_i32_0 : i32, i32
  }
  func.func @transform_4(%arg0: i32) -> (i32, i32, i32, i32) {
    %c0_i32 = arith.constant 0 : i32
    %c0_i32_0 = arith.constant 0 : i32
    %c0_i32_1 = arith.constant 0 : i32
    %c0_i32_2 = arith.constant 0 : i32
    return %c0_i32, %arg0, %c0_i32_0, %c0_i32_1 : i32, i32, i32, i32
  }
}

</mosaic_0001>

<llo_original>
// kernel: decoder_block.4
$region0: #{decoder_block.4}
  #allocation0 [shape = 'u32[]', space=smem, size = 0x4, offset = 0x4, fixed_abs, tag = 'smem constant byte address 0x4 - core index']
  #allocation1 [shape = 'u32[144,128]{1,0:T(1,128)}', space=vmem, size = 0x12000, scoped, tag = 'internal scratch']
  %s0 = inlined_call_operand.vmem [shape: f32[32,16,16], index: 0, kind: input, shape index: {}]
  %s1 = inlined_call_operand.vmem [shape: bf16[16,4], index: 1, kind: input, shape index: {}]
  %s2 = inlined_call_operand.vmem [shape: f32[32,16,4], index: 2, kind: output, shape index: {0}]
  %s3 = inlined_call_operand.vmem [shape: f32[2,4], index: 3, kind: output, shape index: {1}]
  %4 = xla_tuple %s2, %s3
  %s5 = sld [smem:[#allocation0]]
  $region53: #{decoder_block.4} parent=0
    _
  %s7 = ssub.s32 1, %s5
  %s8 = scalar_select 0, %s7, %s5
  loop: start=0, step=1, limit=6
  $region2: #{decoder_block.4} parent=0 // loop_pre_header
    _
  $region3: #{decoder_block.4} parent=0 // loop_header
    %s10 = sphi 0, %s14
    %p11 = scmp.ge.s32.totalorder %s10, 6
    %s20 = sphi 0, %s22
    %s23 = sphi 0, %s20
    %s24 = sphi 0, %s23
    %s40 = sphi 0, %s24
    %s44 = sphi 0, %s44
    %s46 = sphi 0, %s44
    %s47 = sphi 0, %s46
    %s61 = sphi 0, %s47
    %s67 = sphi 0, %s69
    %s70 = sphi 0, %s67
    %s71 = sphi 0, %s70
    %s87 = sphi 0, %s71
    %s91 = sphi 0, %s91
    %s93 = sphi 0, %s91
    %s94 = sphi 0, %s93
    %s108 = sphi 0, %s94
  $region4: #{decoder_block.4} parent=0 // loop_header_branch
    %13 = sbr.rel (%p11) target = $region8
  $region5: #{decoder_block.4} parent=0 // loop_body
    %s15 = ssub.s32 %s10, 1
    %s16 = ssub.s32 %s10, 2
    %s17 = sadd.s32 %s10, 1
    %s18 = ssub.s32 %s10, %s17
    %p19 = scmp.eq.s32.totalorder %s18, 0
    %s21 = sadd.s32 %s20, 1
    %s22 = scalar_select %p19, %s20, %s21
    %p25 = pneg %p19
    %p26 = scmp.eq.s32.totalorder %s10, 3
    %p27 = por %p25, %p26
    %p28 = scmp.ne.s32.totalorder %s20, %s23
    %p29 = scmp.eq.s32.totalorder %s10, 0
    %p30 = por %p28, %p29
    %p31 = scmp.ne.s32.totalorder %s20, %s23
    %p32 = scmp.eq.s32.totalorder %s15, 3
    %p33 = por %p31, %p32
    %p34 = scmp.ne.s32.totalorder %s23, %s24
    %p35 = scmp.eq.s32.totalorder %s15, 0
    %p36 = por %p34, %p35
    %p37 = scmp.ne.s32.totalorder %s23, %s24
    %p38 = scmp.eq.s32.totalorder %s16, 3
    %p39 = por %p37, %p38
    %p41 = scmp.ne.s32.totalorder %s24, %s40
    %p42 = scmp.eq.s32.totalorder %s16, 0
    %p43 = por %p41, %p42
    %s45 = sadd.s32 %s44, 1
    %p48 = scmp.eq.s32.totalorder %s10, 3
    %p49 = scmp.ne.s32.totalorder %s44, %s46
    %p50 = scmp.eq.s32.totalorder %s10, 0
    %p51 = por %p49, %p50
    %p52 = scmp.ne.s32.totalorder %s44, %s46
    %p53 = scmp.eq.s32.totalorder %s15, 3
    %p54 = por %p52, %p53
    %p55 = scmp.ne.s32.totalorder %s46, %s47
    %p56 = scmp.eq.s32.totalorder %s15, 0
    %p57 = por %p55, %p56
    %p58 = scmp.ne.s32.totalorder %s46, %s47
    %p59 = scmp.eq.s32.totalorder %s16, 3
    %p60 = por %p58, %p59
    %p62 = scmp.ne.s32.totalorder %s47, %s61
    %p63 = scmp.eq.s32.totalorder %s16, 0
    %p64 = por %p62, %p63
    %s65 = ssub.s32 %s10, %s17
    %p66 = scmp.eq.s32.totalorder %s65, 0
    %s68 = sadd.s32 %s67, 1
    %s69 = scalar_select %p66, %s67, %s68
    %p72 = pneg %p66
    %p73 = scmp.eq.s32.totalorder %s10, 3
    %p74 = por %p72, %p73
    %p75 = scmp.ne.s32.totalorder %s67, %s70
    %p76 = scmp.eq.s32.totalorder %s10, 0
    %p77 = por %p75, %p76
    %p78 = scmp.ne.s32.totalorder %s67, %s70
    %p79 = scmp.eq.s32.totalorder %s15, 3
    %p80 = por %p78, %p79
    %p81 = scmp.ne.s32.totalorder %s70, %s71
    %p82 = scmp.eq.s32.totalorder %s15, 0
    %p83 = por %p81, %p82
    %p84 = scmp.ne.s32.totalorder %s70, %s71
    %p85 = scmp.eq.s32.totalorder %s16, 3
    %p86 = por %p84, %p85
    %p88 = scmp.ne.s32.totalorder %s71, %s87
    %p89 = scmp.eq.s32.totalorder %s16, 0
    %p90 = por %p88, %p89
    %s92 = sadd.s32 %s91, 1
    %p95 = scmp.eq.s32.totalorder %s10, 3
    %p96 = scmp.ne.s32.totalorder %s91, %s93
    %p97 = scmp.eq.s32.totalorder %s10, 0
    %p98 = por %p96, %p97
    %p99 = scmp.ne.s32.totalorder %s91, %s93
    %p100 = scmp.eq.s32.totalorder %s15, 3
    %p101 = por %p99, %p100
    %p102 = scmp.ne.s32.totalorder %s93, %s94
    %p103 = scmp.eq.s32.totalorder %s15, 0
    %p104 = por %p102, %p103
    %p105 = scmp.ne.s32.totalorder %s93, %s94
    %p106 = scmp.eq.s32.totalorder %s16, 3
    %p107 = por %p105, %p106
    %p109 = scmp.ne.s32.totalorder %s94, %s108
    %p110 = scmp.eq.s32.totalorder %s16, 0
    %p111 = por %p109, %p110
    %p112 = scmp.le.s32.totalorder 1, %s10
    %p113 = scmp.lt.s32.totalorder %s10, 5
    %p114 = pnand %p112, %p113
    %p115 = pneg %p114
    // Predicated region
    $region9: #{decoder_block.4} parent=5 // pred_check
      _
    $region10: #{decoder_block.4} parent=5 // pred_check_branch
      %117 = sbr.rel (%p114) target = $region12
    $region11: #{decoder_block.4} parent=5 // pred_region
      %s118 = ssub.s32 %s10, 1
      // Predicated region
      $region13: #{decoder_block.4} parent=11 // pred_check
        %p119 = pneg %p57
      $region14: #{decoder_block.4} parent=11 // pred_check_branch
        %121 = sbr.rel (%p119) target = $region16
      $region15: #{decoder_block.4} parent=11 // pred_region
        _
      $region16: #{decoder_block.4} parent=11 // pred_fallthru
        _
    $region12: #{decoder_block.4} parent=5 // pred_fallthru
      _
    %p122 = scmp.lt.s32.totalorder %s10, 4
    // Predicated region
    $region17: #{decoder_block.4} parent=5 // pred_check
      %p123 = pneg %p122
    $region18: #{decoder_block.4} parent=5 // pred_check_branch
      %125 = sbr.rel (%p123) target = $region20
    $region19: #{decoder_block.4} parent=5 // pred_region
      // Predicated region
      $region21: #{decoder_block.4} parent=19 // pred_check
        %p126 = pneg %p30
      $region22: #{decoder_block.4} parent=19 // pred_check_branch
        %128 = sbr.rel (%p126) target = $region24
      $region23: #{decoder_block.4} parent=19 // pred_region
        %s129 = smul.u32 8, %s10
        %p130 = scmp.lt.s32.totalorder %s129, 31
        %s131 = scalar_select %p130, %s129, 31
        %s132 = smul.addr %s131, 2
        %s133 = smul.addr %s132, 8
        %s134 = scalar_lea.vmem %s0, %s133
        %s135 = smul.u32 8, %s10
      $region24: #{decoder_block.4} parent=19 // pred_fallthru
        _
    $region20: #{decoder_block.4} parent=5 // pred_fallthru
      _
    %p136 = scmp.le.s32.totalorder 1, %s10
    %p137 = scmp.lt.s32.totalorder %s10, 5
    %p138 = pnand %p136, %p137
    %p139 = pneg %p138
    // Predicated region
    $region25: #{decoder_block.4} parent=5 // pred_check
      _
    $region26: #{decoder_block.4} parent=5 // pred_check_branch
      %141 = sbr.rel (%p138) target = $region28
    $region27: #{decoder_block.4} parent=5 // pred_region
      %s142 = ssub.s32 %s10, 1
      %s143 = smul.u32 8, %s15
      %p144 = scmp.lt.s32.totalorder %s143, 31
      %s145 = scalar_select %p144, %s143, 31
      %s146 = smul.addr %s145, 2
      %s147 = smul.addr %s146, 8
      %s148 = scalar_lea.vmem %s0, %s147
      %p149 = pneg %p36
      %p150 = pneg %p33
      %p151 = pneg %p57
      %p152 = pneg %p54
      %p153 = pneg %p83
      %p154 = pneg %p80
      %s155 = smul.u32 8, %s15
      %p156 = scmp.lt.s32.totalorder %s155, 31
      %s157 = scalar_select %p156, %s155, 31
      %s158 = smul.addr %s157, 2
      %s159 = smul.addr %s158, 8
      %s160 = scalar_lea.vmem %s2, %s159
      %p161 = pneg %p104
      %p162 = pneg %p101
      %s163 = smul.u32 8, %s15
      %p164 = scmp.lt.s32.totalorder %s163, 31
      %s165 = scalar_select %p164, %s163, 31
      %s166 = smul.addr %s165, 2
      %s167 = smul.addr %s166, 8
      %s168 = scalar_lea.vmem %s0, %s167
      %s169 = smul.u32 8, %s15
      %s170 = smul.u32 8, %s15
      %p171 = scmp.lt.s32.totalorder %s170, 31
      %s172 = scalar_select %p171, %s170, 31
      %s173 = smul.addr %s172, 2
      %s174 = smul.addr %s173, 8
      %s175 = scalar_lea.vmem %s2, %s174
      %s176 = smul.u32 8, %s15
      %v178 = vld [vmem:[%s168] sm:$0xff]
      %v179 = vld [vmem:[%s168 + $0x8] sm:$0xff]
      %v180 = vld [vmem:[%s168 + $0x10] sm:$0xff]
      %v181 = vld [vmem:[%s168 + $0x18] sm:$0xff]
      %v182 = vld [vmem:[%s168 + $0x20] sm:$0xff]
      %v183 = vld [vmem:[%s168 + $0x28] sm:$0xff]
      %v184 = vld [vmem:[%s168 + $0x30] sm:$0xff]
      %v185 = vld [vmem:[%s168 + $0x38] sm:$0xff]
      %v186 = vld [vmem:[%s168 + $0x40] sm:$0xff]
      %v187 = vld [vmem:[%s168 + $0x48] sm:$0xff]
      %v188 = vld [vmem:[%s168 + $0x50] sm:$0xff]
      %v189 = vld [vmem:[%s168 + $0x58] sm:$0xff]
      %v190 = vld [vmem:[%s168 + $0x60] sm:$0xff]
      %v191 = vld [vmem:[%s168 + $0x68] sm:$0xff]
      %v192 = vld [vmem:[%s168 + $0x70] sm:$0xff]
      %v193 = vld [vmem:[%s168 + $0x78] sm:$0xff]
      %v194 = vpack.c.bf16 %v179, %v178
      %v195 = vpack.c.bf16 %v181, %v180
      %v196 = vpack.c.bf16 %v183, %v182
      %v197 = vpack.c.bf16 %v185, %v184
      %v198 = vpack.c.bf16 %v187, %v186
      %v199 = vpack.c.bf16 %v189, %v188
      %v200 = vpack.c.bf16 %v191, %v190
      %v201 = vpack.c.bf16 %v193, %v192
      %v202 = vld [vmem:[%s1] sm:$0xf]
      %v203 = vld [vmem:[%s1 + $0x4] sm:$0xf]
      %v206 = vunpack.c.l.b16 %v202
      %v207 = vunpack.c.l.b16 %v203
      %v208 = vpack.c.b16 %v207, %v206
      %vm210 = vcmask 130048
      %v212 = vsel %vm210, %v194, 0
      %v215 = vsel %vm210, %v195, 0
      %v218 = vsel %vm210, %v196, 0
      %v221 = vsel %vm210, %v197, 0
      %v224 = vsel %vm210, %v198, 0
      %v227 = vsel %vm210, %v199, 0
      %v230 = vsel %vm210, %v200, 0
      %v233 = vsel %vm210, %v201, 0
      %235 = vmatprep.subr.bf16.mxu0 0
      %236 = vmatpush1.bf16.msra.mxu0 %v208
      %237 = vmatprep.subr.bf16.mxu0 0
      %238 = vmatpush1.bf16.msra.mxu0 0
      %239 = vmatprep.subr.bf16.mxu0 0
      %240 = vmatpush1.bf16.msra.mxu0 0
      %241 = vmatprep.subr.bf16.mxu0 0
      %242 = vmatpush1.bf16.msra.mxu0 0
      %243 = vmatprep.subr.bf16.mxu0 0
      %244 = vmatpush1.bf16.msra.mxu0 0
      %245 = vmatprep.subr.bf16.mxu0 0
      %246 = vmatpush1.bf16.msra.mxu0 0
      %247 = vmatprep.subr.bf16.mxu0 0
      %248 = vmatpush1.bf16.msra.mxu0 0
      %249 = vmatprep.subr.bf16.mxu0 0
      %250 = vmatpush1.bf16.msra.mxu0 0
      %251 = vmatprep.subr.bf16.mxu0 0
      %252 = vmatpush1.bf16.msra.mxu0 0
      %253 = vmatprep.subr.bf16.mxu0 0
      %254 = vmatpush1.bf16.msra.mxu0 0
      %255 = vmatprep.subr.bf16.mxu0 0
      %256 = vmatpush1.bf16.msra.mxu0 0
      %257 = vmatprep.subr.bf16.mxu0 0
      %258 = vmatpush1.bf16.msra.mxu0 0
      %259 = vmatprep.subr.bf16.mxu0 0
      %260 = vmatpush1.bf16.msra.mxu0 0
      %261 = vmatprep.subr.bf16.mxu0 0
      %262 = vmatpush1.bf16.msra.mxu0 0
      %263 = vmatprep.subr.bf16.mxu0 0
      %264 = vmatpush1.bf16.msra.mxu0 0
      %265 = vmatprep.subr.bf16.mxu0 0
      %266 = vmatpush1.bf16.msra.mxu0 0
      %267 = vmatprep.mubr.bf16.mxu0 0
      %268 = vmatmul.mubr.bf16.gmra.mrb[0].mxu0 %v212
      %v269 = vpop.f32.mrb[0].mxu0
      %v270 = vadd.f32 0.0, %v269
      %v271 = vpop.f32.mrb[0].mxu0
      %v272 = vpop.f32.mrb[0].mxu0
      %v273 = vadd.f32 0.0, %v272
      %v274 = vpop.f32.mrb[0].mxu0
      %275 = vmatprep.mubr.bf16.mxu0 0
      %276 = vmatmul.mubr.bf16.gmra.mrb[0].mxu0 %v215
      %v277 = vpop.f32.mrb[0].mxu0
      %v278 = vadd.f32 0.0, %v277
      %v279 = vpop.f32.mrb[0].mxu0
      %v280 = vpop.f32.mrb[0].mxu0
      %v281 = vadd.f32 0.0, %v280
      %v282 = vpop.f32.mrb[0].mxu0
      %283 = vmatprep.mubr.bf16.mxu0 0
      %284 = vmatmul.mubr.bf16.gmra.mrb[0].mxu0 %v218
      %v285 = vpop.f32.mrb[0].mxu0
      %v286 = vadd.f32 0.0, %v285
      %v287 = vpop.f32.mrb[0].mxu0
      %v288 = vpop.f32.mrb[0].mxu0
      %v289 = vadd.f32 0.0, %v288
      %v290 = vpop.f32.mrb[0].mxu0
      %291 = vmatprep.mubr.bf16.mxu0 0
      %292 = vmatmul.mubr.bf16.gmra.mrb[0].mxu0 %v221
      %v293 = vpop.f32.mrb[0].mxu0
      %v294 = vadd.f32 0.0, %v293
      %v295 = vpop.f32.mrb[0].mxu0
      %v296 = vpop.f32.mrb[0].mxu0
      %v297 = vadd.f32 0.0, %v296
      %v298 = vpop.f32.mrb[0].mxu0
      %299 = vmatprep.mubr.bf16.mxu0 0
      %300 = vmatmul.mubr.bf16.gmra.mrb[0].mxu0 %v224
      %v301 = vpop.f32.mrb[0].mxu0
      %v302 = vadd.f32 0.0, %v301
      %v303 = vpop.f32.mrb[0].mxu0
      %v304 = vpop.f32.mrb[0].mxu0
      %v305 = vadd.f32 0.0, %v304
      %v306 = vpop.f32.mrb[0].mxu0
      %307 = vmatprep.mubr.bf16.mxu0 0
      %308 = vmatmul.mubr.bf16.gmra.mrb[0].mxu0 %v227
      %v309 = vpop.f32.mrb[0].mxu0
      %v310 = vadd.f32 0.0, %v309
      %v311 = vpop.f32.mrb[0].mxu0
      %v312 = vpop.f32.mrb[0].mxu0
      %v313 = vadd.f32 0.0, %v312
      %v314 = vpop.f32.mrb[0].mxu0
      %315 = vmatprep.mubr.bf16.mxu0 0
      %316 = vmatmul.mubr.bf16.gmra.mrb[0].mxu0 %v230
      %v317 = vpop.f32.mrb[0].mxu0
      %v318 = vadd.f32 0.0, %v317
      %v319 = vpop.f32.mrb[0].mxu0
      %v320 = vpop.f32.mrb[0].mxu0
      %v321 = vadd.f32 0.0, %v320
      %v322 = vpop.f32.mrb[0].mxu0
      %323 = vmatprep.mubr.bf16.mxu0 0
      %324 = vmatmul.mubr.bf16.gmra.mrb[0].mxu0 %v233
      %v325 = vpop.f32.mrb[0].mxu0
      %v326 = vadd.f32 0.0, %v325
      %v327 = vpop.f32.mrb[0].mxu0
      %v328 = vpop.f32.mrb[0].mxu0
      %v329 = vadd.f32 0.0, %v328
      %v330 = vpop.f32.mrb[0].mxu0
      %331 = vdwg.mxu0
      %vm332 = vcmask 31744
      %333 = vst.msk [vmem:[%s175] sm:$0xff] %vm332, %v270
      %334 = vst.msk [vmem:[%s175 + $0x8] sm:$0xff] %vm332, %v273
      %335 = vst.msk [vmem:[%s175 + $0x10] sm:$0xff] %vm332, %v278
      %336 = vst.msk [vmem:[%s175 + $0x18] sm:$0xff] %vm332, %v281
      %337 = vst.msk [vmem:[%s175 + $0x20] sm:$0xff] %vm332, %v286
      %338 = vst.msk [vmem:[%s175 + $0x28] sm:$0xff] %vm332, %v289
      %339 = vst.msk [vmem:[%s175 + $0x30] sm:$0xff] %vm332, %v294
      %340 = vst.msk [vmem:[%s175 + $0x38] sm:$0xff] %vm332, %v297
      %341 = vst.msk [vmem:[%s175 + $0x40] sm:$0xff] %vm332, %v302
      %342 = vst.msk [vmem:[%s175 + $0x48] sm:$0xff] %vm332, %v305
      %343 = vst.msk [vmem:[%s175 + $0x50] sm:$0xff] %vm332, %v310
      %344 = vst.msk [vmem:[%s175 + $0x58] sm:$0xff] %vm332, %v313
      %345 = vst.msk [vmem:[%s175 + $0x60] sm:$0xff] %vm332, %v318
      %346 = vst.msk [vmem:[%s175 + $0x68] sm:$0xff] %vm332, %v321
      %347 = vst.msk [vmem:[%s175 + $0x70] sm:$0xff] %vm332, %v326
      %348 = vst.msk [vmem:[%s175 + $0x78] sm:$0xff] %vm332, %v329
      %p349 = scmp.eq.s32.totalorder %s15, 0
      // Predicated region
      $region29: #{decoder_block.4} parent=27 // pred_check
        %p350 = pneg %p349
      $region30: #{decoder_block.4} parent=27 // pred_check_branch
        %352 = sbr.rel (%p350) target = $region32
      $region31: #{decoder_block.4} parent=27 // pred_region
        %vm353 = vcmask 25600
        %354 = vst.msk [vmem:[%s3] sm:$0x3] %vm353, 0.0
      $region32: #{decoder_block.4} parent=27 // pred_fallthru
        _
      %v355 = vld [vmem:[%s3] sm:$0x1]
      %v356 = vsel %vm332, %v270, 0.0
      %v357 = vsel %vm332, %v273, 0.0
      %v358 = vadd.f32 %v356, %v357
      %v359 = vsel %vm332, %v278, 0.0
      %v360 = vadd.f32 %v358, %v359
      %v361 = vsel %vm332, %v281, 0.0
      %v362 = vadd.f32 %v360, %v361
      %v363 = vsel %vm332, %v286, 0.0
      %v364 = vadd.f32 %v362, %v363
      %v365 = vsel %vm332, %v289, 0.0
      %v366 = vadd.f32 %v364, %v365
      %v367 = vsel %vm332, %v294, 0.0
      %v368 = vadd.f32 %v366, %v367
      %v369 = vsel %vm332, %v297, 0.0
      %v370 = vadd.f32 %v368, %v369
      %v371 = vsel %vm332, %v302, 0.0
      %v372 = vadd.f32 %v370, %v371
      %v373 = vsel %vm332, %v305, 0.0
      %v374 = vadd.f32 %v372, %v373
      %v375 = vsel %vm332, %v310, 0.0
      %v376 = vadd.f32 %v374, %v375
      %v377 = vsel %vm332, %v313, 0.0
      %v378 = vadd.f32 %v376, %v377
      %v379 = vsel %vm332, %v318, 0.0
      %v380 = vadd.f32 %v378, %v379
      %v381 = vsel %vm332, %v321, 0.0
      %v382 = vadd.f32 %v380, %v381
      %v383 = vsel %vm332, %v326, 0.0
      %v384 = vadd.f32 %v382, %v383
      %v385 = vsel %vm332, %v329, 0.0
      %v386 = vadd.f32 %v384, %v385
      %v387 = vrot.slane %v386, 4
      %v388 = vadd.f32 %v386, %v387
      %v389 = vrot.slane %v388, 2
      %v390 = vadd.f32 %v388, %v389
      %v391 = vrot.slane %v390, 1
      %v392 = vadd.f32 %v390, %v391
      %v393 = vadd.f32 %v355, %v392
      %vm394 = vcmask 24576
      %395 = vst.msk [vmem:[%s3] sm:$0x1] %vm394, %v393
      %v396 = vld [vmem:[%s3 + $0x1] sm:$0x1]
      %v397 = vmul.f32 %v270, %v270
      %v398 = vmul.f32 %v273, %v273
      %v399 = vmul.f32 %v278, %v278
      %v400 = vmul.f32 %v281, %v281
      %v401 = vmul.f32 %v286, %v286
      %v402 = vmul.f32 %v289, %v289
      %v403 = vmul.f32 %v294, %v294
      %v404 = vmul.f32 %v297, %v297
      %v405 = vmul.f32 %v302, %v302
      %v406 = vmul.f32 %v305, %v305
      %v407 = vmul.f32 %v310, %v310
      %v408 = vmul.f32 %v313, %v313
      %v409 = vmul.f32 %v318, %v318
      %v410 = vmul.f32 %v321, %v321
      %v411 = vmul.f32 %v326, %v326
      %v412 = vmul.f32 %v329, %v329
      %v413 = vsel %vm332, %v397, 0.0
      %v414 = vsel %vm332, %v398, 0.0
      %v415 = vadd.f32 %v413, %v414
      %v416 = vsel %vm332, %v399, 0.0
      %v417 = vadd.f32 %v415, %v416
      %v418 = vsel %vm332, %v400, 0.0
      %v419 = vadd.f32 %v417, %v418
      %v420 = vsel %vm332, %v401, 0.0
      %v421 = vadd.f32 %v419, %v420
      %v422 = vsel %vm332, %v402, 0.0
      %v423 = vadd.f32 %v421, %v422
      %v424 = vsel %vm332, %v403, 0.0
      %v425 = vadd.f32 %v423, %v424
      %v426 = vsel %vm332, %v404, 0.0
      %v427 = vadd.f32 %v425, %v426
      %v428 = vsel %vm332, %v405, 0.0
      %v429 = vadd.f32 %v427, %v428
      %v430 = vsel %vm332, %v406, 0.0
      %v431 = vadd.f32 %v429, %v430
      %v432 = vsel %vm332, %v407, 0.0
      %v433 = vadd.f32 %v431, %v432
      %v434 = vsel %vm332, %v408, 0.0
      %v435 = vadd.f32 %v433, %v434
      %v436 = vsel %vm332, %v409, 0.0
      %v437 = vadd.f32 %v435, %v436
      %v438 = vsel %vm332, %v410, 0.0
      %v439 = vadd.f32 %v437, %v438
      %v440 = vsel %vm332, %v411, 0.0
      %v441 = vadd.f32 %v439, %v440
      %v442 = vsel %vm332, %v412, 0.0
      %v443 = vadd.f32 %v441, %v442
      %v444 = vrot.slane %v443, 4
      %v445 = vadd.f32 %v443, %v444
      %v446 = vrot.slane %v445, 2
      %v447 = vadd.f32 %v445, %v446
      %v448 = vrot.slane %v447, 1
      %v449 = vadd.f32 %v447, %v448
      %v450 = vadd.f32 %v396, %v449
      %451 = vst.msk [vmem:[%s3 + $0x1] sm:$0x1] %vm394, %v450
      %s452 = smul.u32 8, %s15
      %p453 = scmp.lt.s32.totalorder %s452, 31
      %s454 = scalar_select %p453, %s452, 31
      %s455 = smul.addr %s454, 2
      %s456 = smul.addr %s455, 8
      %s457 = scalar_lea.vmem %s2, %s456
      // Predicated region
      $region33: #{decoder_block.4} parent=27 // pred_check
        %p458 = pneg %p80
      $region34: #{decoder_block.4} parent=27 // pred_check_branch
        %460 = sbr.rel (%p458) target = $region36
      $region35: #{decoder_block.4} parent=27 // pred_region
        %s461 = smul.u32 8, %s15
      $region36: #{decoder_block.4} parent=27 // pred_fallthru
        _
      // Predicated region
      $region37: #{decoder_block.4} parent=27 // pred_check
        %p462 = pneg %p101
      $region38: #{decoder_block.4} parent=27 // pred_check_branch
        %464 = sbr.rel (%p462) target = $region40
      $region39: #{decoder_block.4} parent=27 // pred_region
        _
      $region40: #{decoder_block.4} parent=27 // pred_fallthru
        _
      // Predicated region
      $region41: #{decoder_block.4} parent=27 // pred_check
        %p465 = pneg %p101
      $region42: #{decoder_block.4} parent=27 // pred_check_branch
        %467 = sbr.rel (%p465) target = $region44
      $region43: #{decoder_block.4} parent=27 // pred_region
        _
      $region44: #{decoder_block.4} parent=27 // pred_fallthru
        _
    $region28: #{decoder_block.4} parent=5 // pred_fallthru
      _
    %p468 = scmp.le.s32.totalorder 2, %s10
    // Predicated region
    $region45: #{decoder_block.4} parent=5 // pred_check
      %p469 = pneg %p468
    $region46: #{decoder_block.4} parent=5 // pred_check_branch
      %471 = sbr.rel (%p469) target = $region48
    $region47: #{decoder_block.4} parent=5 // pred_region
      %s472 = ssub.s32 %s10, 2
      // Predicated region
      $region49: #{decoder_block.4} parent=47 // pred_check
        %p473 = pneg %p86
      $region50: #{decoder_block.4} parent=47 // pred_check_branch
        %475 = sbr.rel (%p473) target = $region52
      $region51: #{decoder_block.4} parent=47 // pred_region
        %s476 = smul.u32 8, %s16
        %p477 = scmp.lt.s32.totalorder %s476, 31
        %s478 = scalar_select %p477, %s476, 31
        %s479 = smul.addr %s478, 2
        %s480 = smul.addr %s479, 8
        %s481 = scalar_lea.vmem %s2, %s480
      $region52: #{decoder_block.4} parent=47 // pred_fallthru
        _
    $region48: #{decoder_block.4} parent=5 // pred_fallthru
      _
  $region6: #{decoder_block.4} parent=0 // loop_footer
    %s14 = sadd.s32 1, %s10
  $region7: #{decoder_block.4} parent=0 // loop_footer_branch
    %9 = sbr.rel target = $region3
  $region8: #{decoder_block.4} parent=0 // loop_exit
    _

// kernel: decoder_block.6
$region0: #{decoder_block.6}
  #allocation0 [shape = 'u32[]', space=smem, size = 0x4, offset = 0x4, fixed_abs, tag = 'smem constant byte address 0x4 - core index']
  #allocation1 [shape = 'u32[144,128]{1,0:T(1,128)}', space=vmem, size = 0x12000, scoped, tag = 'internal scratch']
  %s0 = inlined_call_operand.vmem [shape: f32[4,32,16,4], index: 0, kind: input, shape index: {}]
  %s1 = inlined_call_operand.vmem [shape: f32[2,4], index: 1, kind: input, shape index: {}]
  %s2 = inlined_call_operand.vmem [shape: bf16[4,8], index: 2, kind: input, shape index: {}]
  %s3 = inlined_call_operand.vmem [shape: f32[2,8], index: 3, kind: output, shape index: {}]
  %s4 = sld [smem:[#allocation0]]
  $region87: #{decoder_block.6} parent=0
    _
  %s6 = ssub.s32 1, %s4
  %s7 = scalar_select 0, %s6, %s4
  $region1: #{decoder_block.6} parent=0
    #allocation2 [shape = 'u8[524288]{0}', space=vmem, size = 0x80000, scoped, tag = 'input window, operand 0']
    loop: start=0, step=1, limit=6
    $region2: #{decoder_block.6} parent=1 // loop_pre_header
      _
    $region3: #{decoder_block.6} parent=1 // loop_header
      %s9 = sphi 0, %s13
      %p10 = scmp.ge.s32.totalorder %s9, 6
      %s19 = sphi 0, %s21
      %s22 = sphi 0, %s19
      %s23 = sphi 0, %s22
      %s39 = sphi 0, %s23
      %s43 = sphi 0, %s43
      %s45 = sphi 0, %s43
      %s46 = sphi 0, %s45
      %s60 = sphi 0, %s46
      %s64 = sphi 0, %s64
      %s66 = sphi 0, %s64
      %s67 = sphi 0, %s66
      %s81 = sphi 0, %s67
      %s85 = sphi 0, %s85
      %s87 = sphi 0, %s85
      %s88 = sphi 0, %s87
      %s102 = sphi 0, %s88
    $region4: #{decoder_block.6} parent=1 // loop_header_branch
      %12 = sbr.rel (%p10) target = $region8
    $region5: #{decoder_block.6} parent=1 // loop_body
      %s14 = ssub.s32 %s9, 1
      %s15 = ssub.s32 %s9, 2
      %s16 = sadd.s32 %s9, 1
      %s17 = ssub.s32 %s9, %s16
      %p18 = scmp.eq.s32.totalorder %s17, 0
      %s20 = sadd.s32 %s19, 1
      %s21 = scalar_select %p18, %s19, %s20
      %p24 = pneg %p18
      %p25 = scmp.eq.s32.totalorder %s9, 3
      %p26 = por %p24, %p25
      %p27 = scmp.ne.s32.totalorder %s19, %s22
      %p28 = scmp.eq.s32.totalorder %s9, 0
      %p29 = por %p27, %p28
      %p30 = scmp.ne.s32.totalorder %s19, %s22
      %p31 = scmp.eq.s32.totalorder %s14, 3
      %p32 = por %p30, %p31
      %p33 = scmp.ne.s32.totalorder %s22, %s23
      %p34 = scmp.eq.s32.totalorder %s14, 0
      %p35 = por %p33, %p34
      %p36 = scmp.ne.s32.totalorder %s22, %s23
      %p37 = scmp.eq.s32.totalorder %s15, 3
      %p38 = por %p36, %p37
      %p40 = scmp.ne.s32.totalorder %s23, %s39
      %p41 = scmp.eq.s32.totalorder %s15, 0
      %p42 = por %p40, %p41
      %s44 = sadd.s32 %s43, 1
      %p47 = scmp.eq.s32.totalorder %s9, 3
      %p48 = scmp.ne.s32.totalorder %s43, %s45
      %p49 = scmp.eq.s32.totalorder %s9, 0
      %p50 = por %p48, %p49
      %p51 = scmp.ne.s32.totalorder %s43, %s45
      %p52 = scmp.eq.s32.totalorder %s14, 3
      %p53 = por %p51, %p52
      %p54 = scmp.ne.s32.totalorder %s45, %s46
      %p55 = scmp.eq.s32.totalorder %s14, 0
      %p56 = por %p54, %p55
      %p57 = scmp.ne.s32.totalorder %s45, %s46
      %p58 = scmp.eq.s32.totalorder %s15, 3
      %p59 = por %p57, %p58
      %p61 = scmp.ne.s32.totalorder %s46, %s60
      %p62 = scmp.eq.s32.totalorder %s15, 0
      %p63 = por %p61, %p62
      %s65 = sadd.s32 %s64, 1
      %p68 = scmp.eq.s32.totalorder %s9, 3
      %p69 = scmp.ne.s32.totalorder %s64, %s66
      %p70 = scmp.eq.s32.totalorder %s9, 0
      %p71 = por %p69, %p70
      %p72 = scmp.ne.s32.totalorder %s64, %s66
      %p73 = scmp.eq.s32.totalorder %s14, 3
      %p74 = por %p72, %p73
      %p75 = scmp.ne.s32.totalorder %s66, %s67
      %p76 = scmp.eq.s32.totalorder %s14, 0
      %p77 = por %p75, %p76
      %p78 = scmp.ne.s32.totalorder %s66, %s67
      %p79 = scmp.eq.s32.totalorder %s15, 3
      %p80 = por %p78, %p79
      %p82 = scmp.ne.s32.totalorder %s67, %s81
      %p83 = scmp.eq.s32.totalorder %s15, 0
      %p84 = por %p82, %p83
      %s86 = sadd.s32 %s85, 1
      %p89 = scmp.eq.s32.totalorder %s9, 3
      %p90 = scmp.ne.s32.totalorder %s85, %s87
      %p91 = scmp.eq.s32.totalorder %s9, 0
      %p92 = por %p90, %p91
      %p93 = scmp.ne.s32.totalorder %s85, %s87
      %p94 = scmp.eq.s32.totalorder %s14, 3
      %p95 = por %p93, %p94
      %p96 = scmp.ne.s32.totalorder %s87, %s88
      %p97 = scmp.eq.s32.totalorder %s14, 0
      %p98 = por %p96, %p97
      %p99 = scmp.ne.s32.totalorder %s87, %s88
      %p100 = scmp.eq.s32.totalorder %s15, 3
      %p101 = por %p99, %p100
      %p103 = scmp.ne.s32.totalorder %s88, %s102
      %p104 = scmp.eq.s32.totalorder %s15, 0
      %p105 = por %p103, %p104
      %p106 = scmp.le.s32.totalorder 1, %s9
      %p107 = scmp.lt.s32.totalorder %s9, 5
      %p108 = pnand %p106, %p107
      %p109 = pneg %p108
      // Predicated region
      $region9: #{decoder_block.6} parent=5 // pred_check
        _
      $region10: #{decoder_block.6} parent=5 // pred_check_branch
        %111 = sbr.rel (%p108) target = $region12
      $region11: #{decoder_block.6} parent=5 // pred_region
        %s112 = ssub.s32 %s9, 1
        // Predicated region
        $region13: #{decoder_block.6} parent=11 // pred_check
          %p113 = pneg %p56
        $region14: #{decoder_block.6} parent=11 // pred_check_branch
          %115 = sbr.rel (%p113) target = $region16
        $region15: #{decoder_block.6} parent=11 // pred_region
          _
        $region16: #{decoder_block.6} parent=11 // pred_fallthru
          _
        // Predicated region
        $region17: #{decoder_block.6} parent=11 // pred_check
          %p116 = pneg %p77
        $region18: #{decoder_block.6} parent=11 // pred_check_branch
          %118 = sbr.rel (%p116) target = $region20
        $region19: #{decoder_block.6} parent=11 // pred_region
          _
        $region20: #{decoder_block.6} parent=11 // pred_fallthru
          _
      $region12: #{decoder_block.6} parent=5 // pred_fallthru
        _
      %p119 = scmp.lt.s32.totalorder %s9, 4
      // Predicated region
      $region21: #{decoder_block.6} parent=5 // pred_check
        %p120 = pneg %p119
      $region22: #{decoder_block.6} parent=5 // pred_check_branch
        %122 = sbr.rel (%p120) target = $region24
      $region23: #{decoder_block.6} parent=5 // pred_region
        // Predicated region
        $region25: #{decoder_block.6} parent=23 // pred_check
          %p123 = pneg %p29
        $region26: #{decoder_block.6} parent=23 // pred_check_branch
          %125 = sbr.rel (%p123) target = $region28
        $region27: #{decoder_block.6} parent=23 // pred_region
          %s126 = sand.u32 %s19, 1
          %s127 = sand.u32 %s19, 1
          %s128 = smul.addr %s127, 512
          %s129 = scalar_lea.vmem [#allocation2], %s128
          %s130 = smul.u32 8, %s9
          %s131 = smul.addr %s130, 2
          %s132 = smul.addr %s131, 8
          %s133 = scalar_lea.vmem %s0, %s132
          // Predicated region
          $region29: #{decoder_block.6} parent=27 // pred_check
            _
          $region30: #{decoder_block.6} parent=27 // pred_check_branch
            %135 = sbr.rel (0) target = $region32
          $region31: #{decoder_block.6} parent=27 // pred_region
            // Predicated region
            $region33: #{decoder_block.6} parent=31 // pred_check
              _
            $region34: #{decoder_block.6} parent=31 // pred_check_branch
              %137 = sbr.rel (0) target = $region36
            $region35: #{decoder_block.6} parent=31 // pred_region
              // Predicated region
              $region48: #{decoder_block.6} parent=35 // pred_check
                _
              $region49: #{decoder_block.6} parent=35 // pred_check_branch
                %278 = sbr.rel (0) target = $region51
              $region50: #{decoder_block.6} parent=35 // pred_region
                loop: start=0, step=1, limit=1
                $region52: #{decoder_block.6} parent=50 // loop_pre_header
                  _
                $region53: #{decoder_block.6} parent=50 // loop_header
                  %s280 = sphi 0, %s284
                  %p281 = scmp.ge.s32.totalorder %s280, 1
                  %s285 = sphi %s133, %s133
                  %s286 = sphi %s129, %s129
                $region54: #{decoder_block.6} parent=50 // loop_header_branch
                  %283 = sbr.rel (%p281) target = $region58
                $region55: #{decoder_block.6} parent=50 // loop_body
                  %v287 = vld [vmem:[%s285] sm:$0xff]
                  %288 = vst [vmem:[%s286] sm:$0xff] %v287
                  %v289 = vld [vmem:[%s285 + $0x8] sm:$0xff]
                  %290 = vst [vmem:[%s286 + $0x8] sm:$0xff] %v289
                  %v291 = vld [vmem:[%s285 + $0x10] sm:$0xff]
                  %292 = vst [vmem:[%s286 + $0x10] sm:$0xff] %v291
                  %v293 = vld [vmem:[%s285 + $0x18] sm:$0xff]
                  %294 = vst [vmem:[%s286 + $0x18] sm:$0xff] %v293
                  %v295 = vld [vmem:[%s285 + $0x20] sm:$0xff]
                  %296 = vst [vmem:[%s286 + $0x20] sm:$0xff] %v295
                  %v297 = vld [vmem:[%s285 + $0x28] sm:$0xff]
                  %298 = vst [vmem:[%s286 + $0x28] sm:$0xff] %v297
                  %v299 = vld [vmem:[%s285 + $0x30] sm:$0xff]
                  %300 = vst [vmem:[%s286 + $0x30] sm:$0xff] %v299
                  %v301 = vld [vmem:[%s285 + $0x38] sm:$0xff]
                  %302 = vst [vmem:[%s286 + $0x38] sm:$0xff] %v301
                  %v303 = vld [vmem:[%s285 + $0x40] sm:$0xff]
                  %304 = vst [vmem:[%s286 + $0x40] sm:$0xff] %v303
                  %v305 = vld [vmem:[%s285 + $0x48] sm:$0xff]
                  %306 = vst [vmem:[%s286 + $0x48] sm:$0xff] %v305
                  %v307 = vld [vmem:[%s285 + $0x50] sm:$0xff]
                  %308 = vst [vmem:[%s286 + $0x50] sm:$0xff] %v307
                  %v309 = vld [vmem:[%s285 + $0x58] sm:$0xff]
                  %310 = vst [vmem:[%s286 + $0x58] sm:$0xff] %v309
                  %v311 = vld [vmem:[%s285 + $0x60] sm:$0xff]
                  %312 = vst [vmem:[%s286 + $0x60] sm:$0xff] %v311
                  %v313 = vld [vmem:[%s285 + $0x68] sm:$0xff]
                  %314 = vst [vmem:[%s286 + $0x68] sm:$0xff] %v313
                  %v315 = vld [vmem:[%s285 + $0x70] sm:$0xff]
                  %316 = vst [vmem:[%s286 + $0x70] sm:$0xff] %v315
                  %v317 = vld [vmem:[%s285 + $0x78] sm:$0xff]
                  %318 = vst [vmem:[%s286 + $0x78] sm:$0xff] %v317
                  %v319 = vld [vmem:[%s285 + $0x200] sm:$0xff]
                  %320 = vst [vmem:[%s286 + $0x80] sm:$0xff] %v319
                  %v321 = vld [vmem:[%s285 + $0x208] sm:$0xff]
                  %322 = vst [vmem:[%s286 + $0x88] sm:$0xff] %v321
                  %v323 = vld [vmem:[%s285 + $0x210] sm:$0xff]
                  %324 = vst [vmem:[%s286 + $0x90] sm:$0xff] %v323
                  %v325 = vld [vmem:[%s285 + $0x218] sm:$0xff]
                  %326 = vst [vmem:[%s286 + $0x98] sm:$0xff] %v325
                  %v327 = vld [vmem:[%s285 + $0x220] sm:$0xff]
                  %328 = vst [vmem:[%s286 + $0xa0] sm:$0xff] %v327
                  %v329 = vld [vmem:[%s285 + $0x228] sm:$0xff]
                  %330 = vst [vmem:[%s286 + $0xa8] sm:$0xff] %v329
                  %v331 = vld [vmem:[%s285 + $0x230] sm:$0xff]
                  %332 = vst [vmem:[%s286 + $0xb0] sm:$0xff] %v331
                  %v333 = vld [vmem:[%s285 + $0x238] sm:$0xff]
                  %334 = vst [vmem:[%s286 + $0xb8] sm:$0xff] %v333
                  %v335 = vld [vmem:[%s285 + $0x240] sm:$0xff]
                  %336 = vst [vmem:[%s286 + $0xc0] sm:$0xff] %v335
                  %v337 = vld [vmem:[%s285 + $0x248] sm:$0xff]
                  %338 = vst [vmem:[%s286 + $0xc8] sm:$0xff] %v337
                  %v339 = vld [vmem:[%s285 + $0x250] sm:$0xff]
                  %340 = vst [vmem:[%s286 + $0xd0] sm:$0xff] %v339
                  %v341 = vld [vmem:[%s285 + $0x258] sm:$0xff]
                  %342 = vst [vmem:[%s286 + $0xd8] sm:$0xff] %v341
                  %v343 = vld [vmem:[%s285 + $0x260] sm:$0xff]
                  %344 = vst [vmem:[%s286 + $0xe0] sm:$0xff] %v343
                  %v345 = vld [vmem:[%s285 + $0x268] sm:$0xff]
                  %346 = vst [vmem:[%s286 + $0xe8] sm:$0xff] %v345
                  %v347 = vld [vmem:[%s285 + $0x270] sm:$0xff]
                  %348 = vst [vmem:[%s286 + $0xf0] sm:$0xff] %v347
                  %v349 = vld [vmem:[%s285 + $0x278] sm:$0xff]
                  %350 = vst [vmem:[%s286 + $0xf8] sm:$0xff] %v349
                  %v351 = vld [vmem:[%s285 + $0x400] sm:$0xff]
                  %352 = vst [vmem:[%s286 + $0x100] sm:$0xff] %v351
                  %v353 = vld [vmem:[%s285 + $0x408] sm:$0xff]
                  %354 = vst [vmem:[%s286 + $0x108] sm:$0xff] %v353
                  %v355 = vld [vmem:[%s285 + $0x410] sm:$0xff]
                  %356 = vst [vmem:[%s286 + $0x110] sm:$0xff] %v355
                  %v357 = vld [vmem:[%s285 + $0x418] sm:$0xff]
                  %358 = vst [vmem:[%s286 + $0x118] sm:$0xff] %v357
                  %v359 = vld [vmem:[%s285 + $0x420] sm:$0xff]
                  %360 = vst [vmem:[%s286 + $0x120] sm:$0xff] %v359
                  %v361 = vld [vmem:[%s285 + $0x428] sm:$0xff]
                  %362 = vst [vmem:[%s286 + $0x128] sm:$0xff] %v361
                  %v363 = vld [vmem:[%s285 + $0x430] sm:$0xff]
                  %364 = vst [vmem:[%s286 + $0x130] sm:$0xff] %v363
                  %v365 = vld [vmem:[%s285 + $0x438] sm:$0xff]
                  %366 = vst [vmem:[%s286 + $0x138] sm:$0xff] %v365
                  %v367 = vld [vmem:[%s285 + $0x440] sm:$0xff]
                  %368 = vst [vmem:[%s286 + $0x140] sm:$0xff] %v367
                  %v369 = vld [vmem:[%s285 + $0x448] sm:$0xff]
                  %370 = vst [vmem:[%s286 + $0x148] sm:$0xff] %v369
                  %v371 = vld [vmem:[%s285 + $0x450] sm:$0xff]
                  %372 = vst [vmem:[%s286 + $0x150] sm:$0xff] %v371
                  %v373 = vld [vmem:[%s285 + $0x458] sm:$0xff]
                  %374 = vst [vmem:[%s286 + $0x158] sm:$0xff] %v373
                  %v375 = vld [vmem:[%s285 + $0x460] sm:$0xff]
                  %376 = vst [vmem:[%s286 + $0x160] sm:$0xff] %v375
                  %v377 = vld [vmem:[%s285 + $0x468] sm:$0xff]
                  %378 = vst [vmem:[%s286 + $0x168] sm:$0xff] %v377
                  %v379 = vld [vmem:[%s285 + $0x470] sm:$0xff]
                  %380 = vst [vmem:[%s286 + $0x170] sm:$0xff] %v379
                  %v381 = vld [vmem:[%s285 + $0x478] sm:$0xff]
                  %382 = vst [vmem:[%s286 + $0x178] sm:$0xff] %v381
                  %v383 = vld [vmem:[%s285 + $0x600] sm:$0xff]
                  %384 = vst [vmem:[%s286 + $0x180] sm:$0xff] %v383
                  %v385 = vld [vmem:[%s285 + $0x608] sm:$0xff]
                  %386 = vst [vmem:[%s286 + $0x188] sm:$0xff] %v385
                  %v387 = vld [vmem:[%s285 + $0x610] sm:$0xff]
                  %388 = vst [vmem:[%s286 + $0x190] sm:$0xff] %v387
                  %v389 = vld [vmem:[%s285 + $0x618] sm:$0xff]
                  %390 = vst [vmem:[%s286 + $0x198] sm:$0xff] %v389
                  %v391 = vld [vmem:[%s285 + $0x620] sm:$0xff]
                  %392 = vst [vmem:[%s286 + $0x1a0] sm:$0xff] %v391
                  %v393 = vld [vmem:[%s285 + $0x628] sm:$0xff]
                  %394 = vst [vmem:[%s286 + $0x1a8] sm:$0xff] %v393
                  %v395 = vld [vmem:[%s285 + $0x630] sm:$0xff]
                  %396 = vst [vmem:[%s286 + $0x1b0] sm:$0xff] %v395
                  %v397 = vld [vmem:[%s285 + $0x638] sm:$0xff]
                  %398 = vst [vmem:[%s286 + $0x1b8] sm:$0xff] %v397
                  %v399 = vld [vmem:[%s285 + $0x640] sm:$0xff]
                  %400 = vst [vmem:[%s286 + $0x1c0] sm:$0xff] %v399
                  %v401 = vld [vmem:[%s285 + $0x648] sm:$0xff]
                  %402 = vst [vmem:[%s286 + $0x1c8] sm:$0xff] %v401
                  %v403 = vld [vmem:[%s285 + $0x650] sm:$0xff]
                  %404 = vst [vmem:[%s286 + $0x1d0] sm:$0xff] %v403
                  %v405 = vld [vmem:[%s285 + $0x658] sm:$0xff]
                  %406 = vst [vmem:[%s286 + $0x1d8] sm:$0xff] %v405
                  %v407 = vld [vmem:[%s285 + $0x660] sm:$0xff]
                  %408 = vst [vmem:[%s286 + $0x1e0] sm:$0xff] %v407
                  %v409 = vld [vmem:[%s285 + $0x668] sm:$0xff]
                  %410 = vst [vmem:[%s286 + $0x1e8] sm:$0xff] %v409
                  %v411 = vld [vmem:[%s285 + $0x670] sm:$0xff]
                  %412 = vst [vmem:[%s286 + $0x1f0] sm:$0xff] %v411
                  %v413 = vld [vmem:[%s285 + $0x678] sm:$0xff]
                  %414 = vst [vmem:[%s286 + $0x1f8] sm:$0xff] %v413
                $region56: #{decoder_block.6} parent=50 // loop_footer
                  %s284 = sadd.s32 1, %s280
                $region57: #{decoder_block.6} parent=50 // loop_footer_branch
                  %279 = sbr.rel target = $region53
                $region58: #{decoder_block.6} parent=50 // loop_exit
                  _
              $region51: #{decoder_block.6} parent=35 // pred_fallthru
                _
              // Predicated region
              $region59: #{decoder_block.6} parent=35 // pred_check
                _
              $region60: #{decoder_block.6} parent=35 // pred_check_branch
                %416 = sbr.rel target = $region62
              $region61: #{decoder_block.6} parent=35 // pred_region
                _
              $region62: #{decoder_block.6} parent=35 // pred_fallthru
                _
            $region36: #{decoder_block.6} parent=31 // pred_fallthru
              _
            // Predicated region
            $region37: #{decoder_block.6} parent=31 // pred_check
              _
            $region38: #{decoder_block.6} parent=31 // pred_check_branch
              %139 = sbr.rel target = $region40
            $region39: #{decoder_block.6} parent=31 // pred_region
              loop: start=0, step=1, limit=1
              $region41: #{decoder_block.6} parent=39 // loop_pre_header
                _
              $region42: #{decoder_block.6} parent=39 // loop_header
                %s142 = sphi 0, %s146
                %p143 = scmp.ge.s32.totalorder %s142, 1
                %s147 = sphi %s133, %s133
                %s148 = sphi %s129, %s129
              $region43: #{decoder_block.6} parent=39 // loop_header_branch
                %145 = sbr.rel (%p143) target = $region47
              $region44: #{decoder_block.6} parent=39 // loop_body
                %v149 = vld [vmem:[%s147] sm:$0xff]
                %150 = vst [vmem:[%s148] sm:$0xff] %v149
                %v151 = vld [vmem:[%s147 + $0x8] sm:$0xff]
                %152 = vst [vmem:[%s148 + $0x8] sm:$0xff] %v151
                %v153 = vld [vmem:[%s147 + $0x10] sm:$0xff]
                %154 = vst [vmem:[%s148 + $0x10] sm:$0xff] %v153
                %v155 = vld [vmem:[%s147 + $0x18] sm:$0xff]
                %156 = vst [vmem:[%s148 + $0x18] sm:$0xff] %v155
                %v157 = vld [vmem:[%s147 + $0x20] sm:$0xff]
                %158 = vst [vmem:[%s148 + $0x20] sm:$0xff] %v157
                %v159 = vld [vmem:[%s147 + $0x28] sm:$0xff]
                %160 = vst [vmem:[%s148 + $0x28] sm:$0xff] %v159
                %v161 = vld [vmem:[%s147 + $0x30] sm:$0xff]
                %162 = vst [vmem:[%s148 + $0x30] sm:$0xff] %v161
                %v163 = vld [vmem:[%s147 + $0x38] sm:$0xff]
                %164 = vst [vmem:[%s148 + $0x38] sm:$0xff] %v163
                %v165 = vld [vmem:[%s147 + $0x40] sm:$0xff]
                %166 = vst [vmem:[%s148 + $0x40] sm:$0xff] %v165
                %v167 = vld [vmem:[%s147 + $0x48] sm:$0xff]
                %168 = vst [vmem:[%s148 + $0x48] sm:$0xff] %v167
                %v169 = vld [vmem:[%s147 + $0x50] sm:$0xff]
                %170 = vst [vmem:[%s148 + $0x50] sm:$0xff] %v169
                %v171 = vld [vmem:[%s147 + $0x58] sm:$0xff]
                %172 = vst [vmem:[%s148 + $0x58] sm:$0xff] %v171
                %v173 = vld [vmem:[%s147 + $0x60] sm:$0xff]
                %174 = vst [vmem:[%s148 + $0x60] sm:$0xff] %v173
                %v175 = vld [vmem:[%s147 + $0x68] sm:$0xff]
                %176 = vst [vmem:[%s148 + $0x68] sm:$0xff] %v175
                %v177 = vld [vmem:[%s147 + $0x70] sm:$0xff]
                %178 = vst [vmem:[%s148 + $0x70] sm:$0xff] %v177
                %v179 = vld [vmem:[%s147 + $0x78] sm:$0xff]
                %180 = vst [vmem:[%s148 + $0x78] sm:$0xff] %v179
                %v181 = vld [vmem:[%s147 + $0x200] sm:$0xff]
                %182 = vst [vmem:[%s148 + $0x80] sm:$0xff] %v181
                %v183 = vld [vmem:[%s147 + $0x208] sm:$0xff]
                %184 = vst [vmem:[%s148 + $0x88] sm:$0xff] %v183
                %v185 = vld [vmem:[%s147 + $0x210] sm:$0xff]
                %186 = vst [vmem:[%s148 + $0x90] sm:$0xff] %v185
                %v187 = vld [vmem:[%s147 + $0x218] sm:$0xff]
                %188 = vst [vmem:[%s148 + $0x98] sm:$0xff] %v187
                %v189 = vld [vmem:[%s147 + $0x220] sm:$0xff]
                %190 = vst [vmem:[%s148 + $0xa0] sm:$0xff] %v189
                %v191 = vld [vmem:[%s147 + $0x228] sm:$0xff]
                %192 = vst [vmem:[%s148 + $0xa8] sm:$0xff] %v191
                %v193 = vld [vmem:[%s147 + $0x230] sm:$0xff]
                %194 = vst [vmem:[%s148 + $0xb0] sm:$0xff] %v193
                %v195 = vld [vmem:[%s147 + $0x238] sm:$0xff]
                %196 = vst [vmem:[%s148 + $0xb8] sm:$0xff] %v195
                %v197 = vld [vmem:[%s147 + $0x240] sm:$0xff]
                %198 = vst [vmem:[%s148 + $0xc0] sm:$0xff] %v197
                %v199 = vld [vmem:[%s147 + $0x248] sm:$0xff]
                %200 = vst [vmem:[%s148 + $0xc8] sm:$0xff] %v199
                %v201 = vld [vmem:[%s147 + $0x250] sm:$0xff]
                %202 = vst [vmem:[%s148 + $0xd0] sm:$0xff] %v201
                %v203 = vld [vmem:[%s147 + $0x258] sm:$0xff]
                %204 = vst [vmem:[%s148 + $0xd8] sm:$0xff] %v203
                %v205 = vld [vmem:[%s147 + $0x260] sm:$0xff]
                %206 = vst [vmem:[%s148 + $0xe0] sm:$0xff] %v205
                %v207 = vld [vmem:[%s147 + $0x268] sm:$0xff]
                %208 = vst [vmem:[%s148 + $0xe8] sm:$0xff] %v207
                %v209 = vld [vmem:[%s147 + $0x270] sm:$0xff]
                %210 = vst [vmem:[%s148 + $0xf0] sm:$0xff] %v209
                %v211 = vld [vmem:[%s147 + $0x278] sm:$0xff]
                %212 = vst [vmem:[%s148 + $0xf8] sm:$0xff] %v211
                %v213 = vld [vmem:[%s147 + $0x400] sm:$0xff]
                %214 = vst [vmem:[%s148 + $0x100] sm:$0xff] %v213
                %v215 = vld [vmem:[%s147 + $0x408] sm:$0xff]
                %216 = vst [vmem:[%s148 + $0x108] sm:$0xff] %v215
                %v217 = vld [vmem:[%s147 + $0x410] sm:$0xff]
                %218 = vst [vmem:[%s148 + $0x110] sm:$0xff] %v217
                %v219 = vld [vmem:[%s147 + $0x418] sm:$0xff]
                %220 = vst [vmem:[%s148 + $0x118] sm:$0xff] %v219
                %v221 = vld [vmem:[%s147 + $0x420] sm:$0xff]
                %222 = vst [vmem:[%s148 + $0x120] sm:$0xff] %v221
                %v223 = vld [vmem:[%s147 + $0x428] sm:$0xff]
                %224 = vst [vmem:[%s148 + $0x128] sm:$0xff] %v223
                %v225 = vld [vmem:[%s147 + $0x430] sm:$0xff]
                %226 = vst [vmem:[%s148 + $0x130] sm:$0xff] %v225
                %v227 = vld [vmem:[%s147 + $0x438] sm:$0xff]
                %228 = vst [vmem:[%s148 + $0x138] sm:$0xff] %v227
                %v229 = vld [vmem:[%s147 + $0x440] sm:$0xff]
                %230 = vst [vmem:[%s148 + $0x140] sm:$0xff] %v229
                %v231 = vld [vmem:[%s147 + $0x448] sm:$0xff]
                %232 = vst [vmem:[%s148 + $0x148] sm:$0xff] %v231
                %v233 = vld [vmem:[%s147 + $0x450] sm:$0xff]
                %234 = vst [vmem:[%s148 + $0x150] sm:$0xff] %v233
                %v235 = vld [vmem:[%s147 + $0x458] sm:$0xff]
                %236 = vst [vmem:[%s148 + $0x158] sm:$0xff] %v235
                %v237 = vld [vmem:[%s147 + $0x460] sm:$0xff]
                %238 = vst [vmem:[%s148 + $0x160] sm:$0xff] %v237
                %v239 = vld [vmem:[%s147 + $0x468] sm:$0xff]
                %240 = vst [vmem:[%s148 + $0x168] sm:$0xff] %v239
                %v241 = vld [vmem:[%s147 + $0x470] sm:$0xff]
                %242 = vst [vmem:[%s148 + $0x170] sm:$0xff] %v241
                %v243 = vld [vmem:[%s147 + $0x478] sm:$0xff]
                %244 = vst [vmem:[%s148 + $0x178] sm:$0xff] %v243
                %v245 = vld [vmem:[%s147 + $0x600] sm:$0xff]
                %246 = vst [vmem:[%s148 + $0x180] sm:$0xff] %v245
                %v247 = vld [vmem:[%s147 + $0x608] sm:$0xff]
                %248 = vst [vmem:[%s148 + $0x188] sm:$0xff] %v247
                %v249 = vld [vmem:[%s147 + $0x610] sm:$0xff]
                %250 = vst [vmem:[%s148 + $0x190] sm:$0xff] %v249
                %v251 = vld [vmem:[%s147 + $0x618] sm:$0xff]
                %252 = vst [vmem:[%s148 + $0x198] sm:$0xff] %v251
                %v253 = vld [vmem:[%s147 + $0x620] sm:$0xff]
                %254 = vst [vmem:[%s148 + $0x1a0] sm:$0xff] %v253
                %v255 = vld [vmem:[%s147 + $0x628] sm:$0xff]
                %256 = vst [vmem:[%s148 + $0x1a8] sm:$0xff] %v255
                %v257 = vld [vmem:[%s147 + $0x630] sm:$0xff]
                %258 = vst [vmem:[%s148 + $0x1b0] sm:$0xff] %v257
                %v259 = vld [vmem:[%s147 + $0x638] sm:$0xff]
                %260 = vst [vmem:[%s148 + $0x1b8] sm:$0xff] %v259
                %v261 = vld [vmem:[%s147 + $0x640] sm:$0xff]
                %262 = vst [vmem:[%s148 + $0x1c0] sm:$0xff] %v261
                %v263 = vld [vmem:[%s147 + $0x648] sm:$0xff]
                %264 = vst [vmem:[%s148 + $0x1c8] sm:$0xff] %v263
                %v265 = vld [vmem:[%s147 + $0x650] sm:$0xff]
                %266 = vst [vmem:[%s148 + $0x1d0] sm:$0xff] %v265
                %v267 = vld [vmem:[%s147 + $0x658] sm:$0xff]
                %268 = vst [vmem:[%s148 + $0x1d8] sm:$0xff] %v267
                %v269 = vld [vmem:[%s147 + $0x660] sm:$0xff]
                %270 = vst [vmem:[%s148 + $0x1e0] sm:$0xff] %v269
                %v271 = vld [vmem:[%s147 + $0x668] sm:$0xff]
                %272 = vst [vmem:[%s148 + $0x1e8] sm:$0xff] %v271
                %v273 = vld [vmem:[%s147 + $0x670] sm:$0xff]
                %274 = vst [vmem:[%s148 + $0x1f0] sm:$0xff] %v273
                %v275 = vld [vmem:[%s147 + $0x678] sm:$0xff]
                %276 = vst [vmem:[%s148 + $0x1f8] sm:$0xff] %v275
              $region45: #{decoder_block.6} parent=39 // loop_footer
                %s146 = sadd.s32 1, %s142
              $region46: #{decoder_block.6} parent=39 // loop_footer_branch
                %141 = sbr.rel target = $region42
              $region47: #{decoder_block.6} parent=39 // loop_exit
                _
            $region40: #{decoder_block.6} parent=31 // pred_fallthru
              _
          $region32: #{decoder_block.6} parent=27 // pred_fallthru
            _
          %417 = vnop
        $region28: #{decoder_block.6} parent=23 // pred_fallthru
          _
      $region24: #{decoder_block.6} parent=5 // pred_fallthru
        _
      %p418 = scmp.le.s32.totalorder 1, %s9
      %p419 = scmp.lt.s32.totalorder %s9, 5
      %p420 = pnand %p418, %p419
      %p421 = pneg %p420
      // Predicated region
      $region63: #{decoder_block.6} parent=5 // pred_check
        _
      $region64: #{decoder_block.6} parent=5 // pred_check_branch
        %423 = sbr.rel (%p420) target = $region66
      $region65: #{decoder_block.6} parent=5 // pred_region
        %s424 = ssub.s32 %s9, 1
        %s425 = sand.u32 %s22, 1
        %s426 = sand.u32 %s22, 1
        %s427 = smul.addr %s426, 512
        %s428 = scalar_lea.vmem [#allocation2], %s427
        // Predicated region
        $region67: #{decoder_block.6} parent=65 // pred_check
          %p429 = pneg %p35
        $region68: #{decoder_block.6} parent=65 // pred_check_branch
          %431 = sbr.rel (%p429) target = $region70
        $region69: #{decoder_block.6} parent=65 // pred_region
          _
        $region70: #{decoder_block.6} parent=65 // pred_fallthru
          _
        %s432 = sand.u32 %s22, 1
        %s433 = sand.u32 %s22, 1
        %s434 = smul.addr %s433, 512
        %s435 = scalar_lea.vmem [#allocation2], %s434
        %p436 = pneg %p35
        %p437 = pneg %p32
        %p438 = pneg %p56
        %p439 = pneg %p53
        %p440 = pneg %p77
        %p441 = pneg %p74
        %p442 = pneg %p98
        %p443 = pneg %p95
        %s444 = smul.u32 8, %s14
        %v446 = vld [vmem:[%s428] sm:$0xff]
        %v447 = vld [vmem:[%s428 + $0x8] sm:$0xff]
        %v448 = vld [vmem:[%s428 + $0x10] sm:$0xff]
        %v449 = vld [vmem:[%s428 + $0x18] sm:$0xff]
        %v450 = vld [vmem:[%s428 + $0x20] sm:$0xff]
        %v451 = vld [vmem:[%s428 + $0x28] sm:$0xff]
        %v452 = vld [vmem:[%s428 + $0x30] sm:$0xff]
        %v453 = vld [vmem:[%s428 + $0x38] sm:$0xff]
        %v454 = vld [vmem:[%s428 + $0x40] sm:$0xff]
        %v455 = vld [vmem:[%s428 + $0x48] sm:$0xff]
        %v456 = vld [vmem:[%s428 + $0x50] sm:$0xff]
        %v457 = vld [vmem:[%s428 + $0x58] sm:$0xff]
        %v458 = vld [vmem:[%s428 + $0x60] sm:$0xff]
        %v459 = vld [vmem:[%s428 + $0x68] sm:$0xff]
        %v460 = vld [vmem:[%s428 + $0x70] sm:$0xff]
        %v461 = vld [vmem:[%s428 + $0x78] sm:$0xff]
        %v462 = vld [vmem:[%s428 + $0x80] sm:$0xff]
        %v463 = vld [vmem:[%s428 + $0x88] sm:$0xff]
        %v464 = vld [vmem:[%s428 + $0x90] sm:$0xff]
        %v465 = vld [vmem:[%s428 + $0x98] sm:$0xff]
        %v466 = vld [vmem:[%s428 + $0xa0] sm:$0xff]
        %v467 = vld [vmem:[%s428 + $0xa8] sm:$0xff]
        %v468 = vld [vmem:[%s428 + $0xb0] sm:$0xff]
        %v469 = vld [vmem:[%s428 + $0xb8] sm:$0xff]
        %v470 = vld [vmem:[%s428 + $0xc0] sm:$0xff]
        %v471 = vld [vmem:[%s428 + $0xc8] sm:$0xff]
        %v472 = vld [vmem:[%s428 + $0xd0] sm:$0xff]
        %v473 = vld [vmem:[%s428 + $0xd8] sm:$0xff]
        %v474 = vld [vmem:[%s428 + $0xe0] sm:$0xff]
        %v475 = vld [vmem:[%s428 + $0xe8] sm:$0xff]
        %v476 = vld [vmem:[%s428 + $0xf0] sm:$0xff]
        %v477 = vld [vmem:[%s428 + $0xf8] sm:$0xff]
        %v478 = vld [vmem:[%s428 + $0x100] sm:$0xff]
        %v479 = vld [vmem:[%s428 + $0x108] sm:$0xff]
        %v480 = vld [vmem:[%s428 + $0x110] sm:$0xff]
        %v481 = vld [vmem:[%s428 + $0x118] sm:$0xff]
        %v482 = vld [vmem:[%s428 + $0x120] sm:$0xff]
        %v483 = vld [vmem:[%s428 + $0x128] sm:$0xff]
        %v484 = vld [vmem:[%s428 + $0x130] sm:$0xff]
        %v485 = vld [vmem:[%s428 + $0x138] sm:$0xff]
        %v486 = vld [vmem:[%s428 + $0x140] sm:$0xff]
        %v487 = vld [vmem:[%s428 + $0x148] sm:$0xff]
        %v488 = vld [vmem:[%s428 + $0x150] sm:$0xff]
        %v489 = vld [vmem:[%s428 + $0x158] sm:$0xff]
        %v490 = vld [vmem:[%s428 + $0x160] sm:$0xff]
        %v491 = vld [vmem:[%s428 + $0x168] sm:$0xff]
        %v492 = vld [vmem:[%s428 + $0x170] sm:$0xff]
        %v493 = vld [vmem:[%s428 + $0x178] sm:$0xff]
        %v494 = vld [vmem:[%s428 + $0x180] sm:$0xff]
        %v495 = vld [vmem:[%s428 + $0x188] sm:$0xff]
        %v496 = vld [vmem:[%s428 + $0x190] sm:$0xff]
        %v497 = vld [vmem:[%s428 + $0x198] sm:$0xff]
        %v498 = vld [vmem:[%s428 + $0x1a0] sm:$0xff]
        %v499 = vld [vmem:[%s428 + $0x1a8] sm:$0xff]
        %v500 = vld [vmem:[%s428 + $0x1b0] sm:$0xff]
        %v501 = vld [vmem:[%s428 + $0x1b8] sm:$0xff]
        %v502 = vld [vmem:[%s428 + $0x1c0] sm:$0xff]
        %v503 = vld [vmem:[%s428 + $0x1c8] sm:$0xff]
        %v504 = vld [vmem:[%s428 + $0x1d0] sm:$0xff]
        %v505 = vld [vmem:[%s428 + $0x1d8] sm:$0xff]
        %v506 = vld [vmem:[%s428 + $0x1e0] sm:$0xff]
        %v507 = vld [vmem:[%s428 + $0x1e8] sm:$0xff]
        %v508 = vld [vmem:[%s428 + $0x1f0] sm:$0xff]
        %v509 = vld [vmem:[%s428 + $0x1f8] sm:$0xff]
        %v510 = vld [vmem:[%s1] sm:$0x1]
        %v511 = vlaneseq
        %v512 = vshrl.u32 %v511, 7
        %v513 = vsub.s32 0, %v512
        %v514 = vrot.slane %v510, %v513
        %v515 = vmul.f32 %v446, %v514
        %v516 = vmul.f32 %v447, %v514
        %v517 = vmul.f32 %v448, %v514
        %v518 = vmul.f32 %v449, %v514
        %v519 = vmul.f32 %v450, %v514
        %v520 = vmul.f32 %v451, %v514
        %v521 = vmul.f32 %v452, %v514
        %v522 = vmul.f32 %v453, %v514
        %v523 = vmul.f32 %v454, %v514
        %v524 = vmul.f32 %v455, %v514
        %v525 = vmul.f32 %v456, %v514
        %v526 = vmul.f32 %v457, %v514
        %v527 = vmul.f32 %v458, %v514
        %v528 = vmul.f32 %v459, %v514
        %v529 = vmul.f32 %v460, %v514
        %v530 = vmul.f32 %v461, %v514
        %v531 = vmul.f32 %v462, %v514
        %v532 = vmul.f32 %v463, %v514
        %v533 = vmul.f32 %v464, %v514
        %v534 = vmul.f32 %v465, %v514
        %v535 = vmul.f32 %v466, %v514
        %v536 = vmul.f32 %v467, %v514
        %v537 = vmul.f32 %v468, %v514
        %v538 = vmul.f32 %v469, %v514
        %v539 = vmul.f32 %v470, %v514
        %v540 = vmul.f32 %v471, %v514
        %v541 = vmul.f32 %v472, %v514
        %v542 = vmul.f32 %v473, %v514
        %v543 = vmul.f32 %v474, %v514
        %v544 = vmul.f32 %v475, %v514
        %v545 = vmul.f32 %v476, %v514
        %v546 = vmul.f32 %v477, %v514
        %v547 = vmul.f32 %v478, %v514
        %v548 = vmul.f32 %v479, %v514
        %v549 = vmul.f32 %v480, %v514
        %v550 = vmul.f32 %v481, %v514
        %v551 = vmul.f32 %v482, %v514
        %v552 = vmul.f32 %v483, %v514
        %v553 = vmul.f32 %v484, %v514
        %v554 = vmul.f32 %v485, %v514
        %v555 = vmul.f32 %v486, %v514
        %v556 = vmul.f32 %v487, %v514
        %v557 = vmul.f32 %v488, %v514
        %v558 = vmul.f32 %v489, %v514
        %v559 = vmul.f32 %v490, %v514
        %v560 = vmul.f32 %v491, %v514
        %v561 = vmul.f32 %v492, %v514
        %v562 = vmul.f32 %v493, %v514
        %v563 = vmul.f32 %v494, %v514
        %v564 = vmul.f32 %v495, %v514
        %v565 = vmul.f32 %v496, %v514
        %v566 = vmul.f32 %v497, %v514
        %v567 = vmul.f32 %v498, %v514
        %v568 = vmul.f32 %v499, %v514
        %v569 = vmul.f32 %v500, %v514
        %v570 = vmul.f32 %v501, %v514
        %v571 = vmul.f32 %v502, %v514
        %v572 = vmul.f32 %v503, %v514
        %v573 = vmul.f32 %v504, %v514
        %v574 = vmul.f32 %v505, %v514
        %v575 = vmul.f32 %v506, %v514
        %v576 = vmul.f32 %v507, %v514
        %v577 = vmul.f32 %v508, %v514
        %v578 = vmul.f32 %v509, %v514
        %v579 = vld [vmem:[%s1 + $0x1] sm:$0x1]
        %v580 = vlaneseq
        %v581 = vshrl.u32 %v580, 7
        %v582 = vsub.s32 0, %v581
        %v583 = vrot.slane %v579, %v582
        %v584 = vadd.f32 %v515, %v583
        %v585 = vadd.f32 %v516, %v583
        %v586 = vadd.f32 %v517, %v583
        %v587 = vadd.f32 %v518, %v583
        %v588 = vadd.f32 %v519, %v583
        %v589 = vadd.f32 %v520, %v583
        %v590 = vadd.f32 %v521, %v583
        %v591 = vadd.f32 %v522, %v583
        %v592 = vadd.f32 %v523, %v583
        %v593 = vadd.f32 %v524, %v583
        %v594 = vadd.f32 %v525, %v583
        %v595 = vadd.f32 %v526, %v583
        %v596 = vadd.f32 %v527, %v583
        %v597 = vadd.f32 %v528, %v583
        %v598 = vadd.f32 %v529, %v583
        %v599 = vadd.f32 %v530, %v583
        %v600 = vadd.f32 %v531, %v583
        %v601 = vadd.f32 %v532, %v583
        %v602 = vadd.f32 %v533, %v583
        %v603 = vadd.f32 %v534, %v583
        %v604 = vadd.f32 %v535, %v583
        %v605 = vadd.f32 %v536, %v583
        %v606 = vadd.f32 %v537, %v583
        %v607 = vadd.f32 %v538, %v583
        %v608 = vadd.f32 %v539, %v583
        %v609 = vadd.f32 %v540, %v583
        %v610 = vadd.f32 %v541, %v583
        %v611 = vadd.f32 %v542, %v583
        %v612 = vadd.f32 %v543, %v583
        %v613 = vadd.f32 %v544, %v583
        %v614 = vadd.f32 %v545, %v583
        %v615 = vadd.f32 %v546, %v583
        %v616 = vadd.f32 %v547, %v583
        %v617 = vadd.f32 %v548, %v583
        %v618 = vadd.f32 %v549, %v583
        %v619 = vadd.f32 %v550, %v583
        %v620 = vadd.f32 %v551, %v583
        %v621 = vadd.f32 %v552, %v583
        %v622 = vadd.f32 %v553, %v583
        %v623 = vadd.f32 %v554, %v583
        %v624 = vadd.f32 %v555, %v583
        %v625 = vadd.f32 %v556, %v583
        %v626 = vadd.f32 %v557, %v583
        %v627 = vadd.f32 %v558, %v583
        %v628 = vadd.f32 %v559, %v583
        %v629 = vadd.f32 %v560, %v583
        %v630 = vadd.f32 %v561, %v583
        %v631 = vadd.f32 %v562, %v583
        %v632 = vadd.f32 %v563, %v583
        %v633 = vadd.f32 %v564, %v583
        %v634 = vadd.f32 %v565, %v583
        %v635 = vadd.f32 %v566, %v583
        %v636 = vadd.f32 %v567, %v583
        %v637 = vadd.f32 %v568, %v583
        %v638 = vadd.f32 %v569, %v583
        %v639 = vadd.f32 %v570, %v583
        %v640 = vadd.f32 %v571, %v583
        %v641 = vadd.f32 %v572, %v583
        %v642 = vadd.f32 %v573, %v583
        %v643 = vadd.f32 %v574, %v583
        %v644 = vadd.f32 %v575, %v583
        %v645 = vadd.f32 %v576, %v583
        %v646 = vadd.f32 %v577, %v583
        %v647 = vadd.f32 %v578, %v583
        %v648 = vmax.f32 %v584, 0.0
        %v649 = vmax.f32 %v585, 0.0
        %v650 = vmax.f32 %v586, 0.0
        %v651 = vmax.f32 %v587, 0.0
        %v652 = vmax.f32 %v588, 0.0
        %v653 = vmax.f32 %v589, 0.0
        %v654 = vmax.f32 %v590, 0.0
        %v655 = vmax.f32 %v591, 0.0
        %v656 = vmax.f32 %v592, 0.0
        %v657 = vmax.f32 %v593, 0.0
        %v658 = vmax.f32 %v594, 0.0
        %v659 = vmax.f32 %v595, 0.0
        %v660 = vmax.f32 %v596, 0.0
        %v661 = vmax.f32 %v597, 0.0
        %v662 = vmax.f32 %v598, 0.0
        %v663 = vmax.f32 %v599, 0.0
        %v664 = vmax.f32 %v600, 0.0
        %v665 = vmax.f32 %v601, 0.0
        %v666 = vmax.f32 %v602, 0.0
        %v667 = vmax.f32 %v603, 0.0
        %v668 = vmax.f32 %v604, 0.0
        %v669 = vmax.f32 %v605, 0.0
        %v670 = vmax.f32 %v606, 0.0
        %v671 = vmax.f32 %v607, 0.0
        %v672 = vmax.f32 %v608, 0.0
        %v673 = vmax.f32 %v609, 0.0
        %v674 = vmax.f32 %v610, 0.0
        %v675 = vmax.f32 %v611, 0.0
        %v676 = vmax.f32 %v612, 0.0
        %v677 = vmax.f32 %v613, 0.0
        %v678 = vmax.f32 %v614, 0.0
        %v679 = vmax.f32 %v615, 0.0
        %v680 = vmax.f32 %v616, 0.0
        %v681 = vmax.f32 %v617, 0.0
        %v682 = vmax.f32 %v618, 0.0
        %v683 = vmax.f32 %v619, 0.0
        %v684 = vmax.f32 %v620, 0.0
        %v685 = vmax.f32 %v621, 0.0
        %v686 = vmax.f32 %v622, 0.0
        %v687 = vmax.f32 %v623, 0.0
        %v688 = vmax.f32 %v624, 0.0
        %v689 = vmax.f32 %v625, 0.0
        %v690 = vmax.f32 %v626, 0.0
        %v691 = vmax.f32 %v627, 0.0
        %v692 = vmax.f32 %v628, 0.0
        %v693 = vmax.f32 %v629, 0.0
        %v694 = vmax.f32 %v630, 0.0
        %v695 = vmax.f32 %v631, 0.0
        %v696 = vmax.f32 %v632, 0.0
        %v697 = vmax.f32 %v633, 0.0
        %v698 = vmax.f32 %v634, 0.0
        %v699 = vmax.f32 %v635, 0.0
        %v700 = vmax.f32 %v636, 0.0
        %v701 = vmax.f32 %v637, 0.0
        %v702 = vmax.f32 %v638, 0.0
        %v703 = vmax.f32 %v639, 0.0
        %v704 = vmax.f32 %v640, 0.0
        %v705 = vmax.f32 %v641, 0.0
        %v706 = vmax.f32 %v642, 0.0
        %v707 = vmax.f32 %v643, 0.0
        %v708 = vmax.f32 %v644, 0.0
        %v709 = vmax.f32 %v645, 0.0
        %v710 = vmax.f32 %v646, 0.0
        %v711 = vmax.f32 %v647, 0.0
        %v712 = vpack.c.bf16 %v649, %v648
        %v713 = vpack.c.bf16 %v651, %v650
        %v714 = vpack.c.bf16 %v653, %v652
        %v715 = vpack.c.bf16 %v655, %v654
        %v716 = vpack.c.bf16 %v657, %v656
        %v717 = vpack.c.bf16 %v659, %v658
        %v718 = vpack.c.bf16 %v661, %v660
        %v719 = vpack.c.bf16 %v663, %v662
        %v720 = vpack.c.bf16 %v665, %v664
        %v721 = vpack.c.bf16 %v667, %v666
        %v722 = vpack.c.bf16 %v669, %v668
        %v723 = vpack.c.bf16 %v671, %v670
        %v724 = vpack.c.bf16 %v673, %v672
        %v725 = vpack.c.bf16 %v675, %v674
        %v726 = vpack.c.bf16 %v677, %v676
        %v727 = vpack.c.bf16 %v679, %v678
        %v728 = vpack.c.bf16 %v681, %v680
        %v729 = vpack.c.bf16 %v683, %v682
        %v730 = vpack.c.bf16 %v685, %v684
        %v731 = vpack.c.bf16 %v687, %v686
        %v732 = vpack.c.bf16 %v689, %v688
        %v733 = vpack.c.bf16 %v691, %v690
        %v734 = vpack.c.bf16 %v693, %v692
        %v735 = vpack.c.bf16 %v695, %v694
        %v736 = vpack.c.bf16 %v697, %v696
        %v737 = vpack.c.bf16 %v699, %v698
        %v738 = vpack.c.bf16 %v701, %v700
        %v739 = vpack.c.bf16 %v703, %v702
        %v740 = vpack.c.bf16 %v705, %v704
        %v741 = vpack.c.bf16 %v707, %v706
        %v742 = vpack.c.bf16 %v709, %v708
        %v743 = vpack.c.bf16 %v711, %v710
        %v744 = vld [vmem:[%s2] sm:$0x3]
        %vm745 = vcmask 31744
        %v747 = vsel %vm745, %v712, 0
        %v750 = vsel %vm745, %v713, 0
        %v753 = vsel %vm745, %v714, 0
        %v756 = vsel %vm745, %v715, 0
        %v759 = vsel %vm745, %v716, 0
        %v762 = vsel %vm745, %v717, 0
        %v765 = vsel %vm745, %v718, 0
        %v768 = vsel %vm745, %v719, 0
        %v771 = vsel %vm745, %v720, 0
        %v774 = vsel %vm745, %v721, 0
        %v777 = vsel %vm745, %v722, 0
        %v780 = vsel %vm745, %v723, 0
        %v783 = vsel %vm745, %v724, 0
        %v786 = vsel %vm745, %v725, 0
        %v789 = vsel %vm745, %v726, 0
        %v792 = vsel %vm745, %v727, 0
        %v795 = vsel %vm745, %v728, 0
        %v798 = vsel %vm745, %v729, 0
        %v801 = vsel %vm745, %v730, 0
        %v804 = vsel %vm745, %v731, 0
        %v807 = vsel %vm745, %v732, 0
        %v810 = vsel %vm745, %v733, 0
        %v813 = vsel %vm745, %v734, 0
        %v816 = vsel %vm745, %v735, 0
        %v819 = vsel %vm745, %v736, 0
        %v822 = vsel %vm745, %v737, 0
        %v825 = vsel %vm745, %v738, 0
        %v828 = vsel %vm745, %v739, 0
        %v831 = vsel %vm745, %v740, 0
        %v834 = vsel %vm745, %v741, 0
        %v837 = vsel %vm745, %v742, 0
        %v840 = vsel %vm745, %v743, 0
        %vm842 = vcmask 1041408
        %v844 = vsel %vm842, %v744, 0
        %846 = vmatprep.subr.bf16.mxu0 0
        %847 = vmatpush1.bf16.msra.mxu0 %v844
        %848 = vmatprep.subr.bf16.mxu0 0
        %849 = vmatpush1.bf16.msra.mxu0 0
        %850 = vmatprep.subr.bf16.mxu0 0
        %851 = vmatpush1.bf16.msra.mxu0 0
        %852 = vmatprep.subr.bf16.mxu0 0
        %853 = vmatpush1.bf16.msra.mxu0 0
        %854 = vmatprep.subr.bf16.mxu0 0
        %855 = vmatpush1.bf16.msra.mxu0 0
        %856 = vmatprep.subr.bf16.mxu0 0
        %857 = vmatpush1.bf16.msra.mxu0 0
        %858 = vmatprep.subr.bf16.mxu0 0
        %859 = vmatpush1.bf16.msra.mxu0 0
        %860 = vmatprep.subr.bf16.mxu0 0
        %861 = vmatpush1.bf16.msra.mxu0 0
        %862 = vmatprep.subr.bf16.mxu0 0
        %863 = vmatpush1.bf16.msra.mxu0 0
        %864 = vmatprep.subr.bf16.mxu0 0
        %865 = vmatpush1.bf16.msra.mxu0 0
        %866 = vmatprep.subr.bf16.mxu0 0
        %867 = vmatpush1.bf16.msra.mxu0 0
        %868 = vmatprep.subr.bf16.mxu0 0
        %869 = vmatpush1.bf16.msra.mxu0 0
        %870 = vmatprep.subr.bf16.mxu0 0
        %871 = vmatpush1.bf16.msra.mxu0 0
        %872 = vmatprep.subr.bf16.mxu0 0
        %873 = vmatpush1.bf16.msra.mxu0 0
        %874 = vmatprep.subr.bf16.mxu0 0
        %875 = vmatpush1.bf16.msra.mxu0 0
        %876 = vmatprep.subr.bf16.mxu0 0
        %877 = vmatpush1.bf16.msra.mxu0 0
        %878 = vmatprep.mubr.bf16.mxu0 0
        %879 = vmatmul.mubr.bf16.gmra.mrb[0].mxu0 %v747
        %v880 = vpop.f32.mrb[0].mxu0
        %v881 = vadd.f32 0.0, %v880
        %v882 = vpop.f32.mrb[0].mxu0
        %v883 = vpop.f32.mrb[0].mxu0
        %v884 = vadd.f32 0.0, %v883
        %v885 = vpop.f32.mrb[0].mxu0
        %886 = vmatprep.mubr.bf16.mxu0 0
        %887 = vmatmul.mubr.bf16.gmra.mrb[0].mxu0 %v750
        %v888 = vpop.f32.mrb[0].mxu0
        %v889 = vadd.f32 0.0, %v888
        %v890 = vpop.f32.mrb[0].mxu0
        %v891 = vpop.f32.mrb[0].mxu0
        %v892 = vadd.f32 0.0, %v891
        %v893 = vpop.f32.mrb[0].mxu0
        %894 = vmatprep.mubr.bf16.mxu0 0
        %895 = vmatmul.mubr.bf16.gmra.mrb[0].mxu0 %v753
        %v896 = vpop.f32.mrb[0].mxu0
        %v897 = vadd.f32 0.0, %v896
        %v898 = vpop.f32.mrb[0].mxu0
        %v899 = vpop.f32.mrb[0].mxu0
        %v900 = vadd.f32 0.0, %v899
        %v901 = vpop.f32.mrb[0].mxu0
        %902 = vmatprep.mubr.bf16.mxu0 0
        %903 = vmatmul.mubr.bf16.gmra.mrb[0].mxu0 %v756
        %v904 = vpop.f32.mrb[0].mxu0
        %v905 = vadd.f32 0.0, %v904
        %v906 = vpop.f32.mrb[0].mxu0
        %v907 = vpop.f32.mrb[0].mxu0
        %v908 = vadd.f32 0.0, %v907
        %v909 = vpop.f32.mrb[0].mxu0
        %910 = vmatprep.mubr.bf16.mxu0 0
        %911 = vmatmul.mubr.bf16.gmra.mrb[0].mxu0 %v759
        %v912 = vpop.f32.mrb[0].mxu0
        %v913 = vadd.f32 0.0, %v912
        %v914 = vpop.f32.mrb[0].mxu0
        %v915 = vpop.f32.mrb[0].mxu0
        %v916 = vadd.f32 0.0, %v915
        %v917 = vpop.f32.mrb[0].mxu0
        %918 = vmatprep.mubr.bf16.mxu0 0
        %919 = vmatmul.mubr.bf16.gmra.mrb[0].mxu0 %v762
        %v920 = vpop.f32.mrb[0].mxu0
        %v921 = vadd.f32 0.0, %v920
        %v922 = vpop.f32.mrb[0].mxu0
        %v923 = vpop.f32.mrb[0].mxu0
        %v924 = vadd.f32 0.0, %v923
        %v925 = vpop.f32.mrb[0].mxu0
        %926 = vmatprep.mubr.bf16.mxu0 0
        %927 = vmatmul.mubr.bf16.gmra.mrb[0].mxu0 %v765
        %v928 = vpop.f32.mrb[0].mxu0
        %v929 = vadd.f32 0.0, %v928
        %v930 = vpop.f32.mrb[0].mxu0
        %v931 = vpop.f32.mrb[0].mxu0
        %v932 = vadd.f32 0.0, %v931
        %v933 = vpop.f32.mrb[0].mxu0
        %934 = vmatprep.mubr.bf16.mxu0 0
        %935 = vmatmul.mubr.bf16.gmra.mrb[0].mxu0 %v768
        %v936 = vpop.f32.mrb[0].mxu0
        %v937 = vadd.f32 0.0, %v936
        %v938 = vpop.f32.mrb[0].mxu0
        %v939 = vpop.f32.mrb[0].mxu0
        %v940 = vadd.f32 0.0, %v939
        %v941 = vpop.f32.mrb[0].mxu0
        %942 = vmatprep.mubr.bf16.mxu0 0
        %943 = vmatmul.mubr.bf16.gmra.mrb[0].mxu0 %v771
        %v944 = vpop.f32.mrb[0].mxu0
        %v945 = vadd.f32 0.0, %v944
        %v946 = vpop.f32.mrb[0].mxu0
        %v947 = vpop.f32.mrb[0].mxu0
        %v948 = vadd.f32 0.0, %v947
        %v949 = vpop.f32.mrb[0].mxu0
        %950 = vmatprep.mubr.bf16.mxu0 0
        %951 = vmatmul.mubr.bf16.gmra.mrb[0].mxu0 %v774
        %v952 = vpop.f32.mrb[0].mxu0
        %v953 = vadd.f32 0.0, %v952
        %v954 = vpop.f32.mrb[0].mxu0
        %v955 = vpop.f32.mrb[0].mxu0
        %v956 = vadd.f32 0.0, %v955
        %v957 = vpop.f32.mrb[0].mxu0
        %958 = vmatprep.mubr.bf16.mxu0 0
        %959 = vmatmul.mubr.bf16.gmra.mrb[0].mxu0 %v777
        %v960 = vpop.f32.mrb[0].mxu0
        %v961 = vadd.f32 0.0, %v960
        %v962 = vpop.f32.mrb[0].mxu0
        %v963 = vpop.f32.mrb[0].mxu0
        %v964 = vadd.f32 0.0, %v963
        %v965 = vpop.f32.mrb[0].mxu0
        %966 = vmatprep.mubr.bf16.mxu0 0
        %967 = vmatmul.mubr.bf16.gmra.mrb[0].mxu0 %v780
        %v968 = vpop.f32.mrb[0].mxu0
        %v969 = vadd.f32 0.0, %v968
        %v970 = vpop.f32.mrb[0].mxu0
        %v971 = vpop.f32.mrb[0].mxu0
        %v972 = vadd.f32 0.0, %v971
        %v973 = vpop.f32.mrb[0].mxu0
        %974 = vmatprep.mubr.bf16.mxu0 0
        %975 = vmatmul.mubr.bf16.gmra.mrb[0].mxu0 %v783
        %v976 = vpop.f32.mrb[0].mxu0
        %v977 = vadd.f32 0.0, %v976
        %v978 = vpop.f32.mrb[0].mxu0
        %v979 = vpop.f32.mrb[0].mxu0
        %v980 = vadd.f32 0.0, %v979
        %v981 = vpop.f32.mrb[0].mxu0
        %982 = vmatprep.mubr.bf16.mxu0 0
        %983 = vmatmul.mubr.bf16.gmra.mrb[0].mxu0 %v786
        %v984 = vpop.f32.mrb[0].mxu0
        %v985 = vadd.f32 0.0, %v984
        %v986 = vpop.f32.mrb[0].mxu0
        %v987 = vpop.f32.mrb[0].mxu0
        %v988 = vadd.f32 0.0, %v987
        %v989 = vpop.f32.mrb[0].mxu0
        %990 = vmatprep.mubr.bf16.mxu0 0
        %991 = vmatmul.mubr.bf16.gmra.mrb[0].mxu0 %v789
        %v992 = vpop.f32.mrb[0].mxu0
        %v993 = vadd.f32 0.0, %v992
        %v994 = vpop.f32.mrb[0].mxu0
        %v995 = vpop.f32.mrb[0].mxu0
        %v996 = vadd.f32 0.0, %v995
        %v997 = vpop.f32.mrb[0].mxu0
        %998 = vmatprep.mubr.bf16.mxu0 0
        %999 = vmatmul.mubr.bf16.gmra.mrb[0].mxu0 %v792
        %v1000 = vpop.f32.mrb[0].mxu0
        %v1001 = vadd.f32 0.0, %v1000
        %v1002 = vpop.f32.mrb[0].mxu0
        %v1003 = vpop.f32.mrb[0].mxu0
        %v1004 = vadd.f32 0.0, %v1003
        %v1005 = vpop.f32.mrb[0].mxu0
        %1006 = vmatprep.mubr.bf16.mxu0 0
        %1007 = vmatmul.mubr.bf16.gmra.mrb[0].mxu0 %v795
        %v1008 = vpop.f32.mrb[0].mxu0
        %v1009 = vadd.f32 0.0, %v1008
        %v1010 = vpop.f32.mrb[0].mxu0
        %v1011 = vpop.f32.mrb[0].mxu0
        %v1012 = vadd.f32 0.0, %v1011
        %v1013 = vpop.f32.mrb[0].mxu0
        %1014 = vmatprep.mubr.bf16.mxu0 0
        %1015 = vmatmul.mubr.bf16.gmra.mrb[0].mxu0 %v798
        %v1016 = vpop.f32.mrb[0].mxu0
        %v1017 = vadd.f32 0.0, %v1016
        %v1018 = vpop.f32.mrb[0].mxu0
        %v1019 = vpop.f32.mrb[0].mxu0
        %v1020 = vadd.f32 0.0, %v1019
        %v1021 = vpop.f32.mrb[0].mxu0
        %1022 = vmatprep.mubr.bf16.mxu0 0
        %1023 = vmatmul.mubr.bf16.gmra.mrb[0].mxu0 %v801
        %v1024 = vpop.f32.mrb[0].mxu0
        %v1025 = vadd.f32 0.0, %v1024
        %v1026 = vpop.f32.mrb[0].mxu0
        %v1027 = vpop.f32.mrb[0].mxu0
        %v1028 = vadd.f32 0.0, %v1027
        %v1029 = vpop.f32.mrb[0].mxu0
        %1030 = vmatprep.mubr.bf16.mxu0 0
        %1031 = vmatmul.mubr.bf16.gmra.mrb[0].mxu0 %v804
        %v1032 = vpop.f32.mrb[0].mxu0
        %v1033 = vadd.f32 0.0, %v1032
        %v1034 = vpop.f32.mrb[0].mxu0
        %v1035 = vpop.f32.mrb[0].mxu0
        %v1036 = vadd.f32 0.0, %v1035
        %v1037 = vpop.f32.mrb[0].mxu0
        %1038 = vmatprep.mubr.bf16.mxu0 0
        %1039 = vmatmul.mubr.bf16.gmra.mrb[0].mxu0 %v807
        %v1040 = vpop.f32.mrb[0].mxu0
        %v1041 = vadd.f32 0.0, %v1040
        %v1042 = vpop.f32.mrb[0].mxu0
        %v1043 = vpop.f32.mrb[0].mxu0
        %v1044 = vadd.f32 0.0, %v1043
        %v1045 = vpop.f32.mrb[0].mxu0
        %1046 = vmatprep.mubr.bf16.mxu0 0
        %1047 = vmatmul.mubr.bf16.gmra.mrb[0].mxu0 %v810
        %v1048 = vpop.f32.mrb[0].mxu0
        %v1049 = vadd.f32 0.0, %v1048
        %v1050 = vpop.f32.mrb[0].mxu0
        %v1051 = vpop.f32.mrb[0].mxu0
        %v1052 = vadd.f32 0.0, %v1051
        %v1053 = vpop.f32.mrb[0].mxu0
        %1054 = vmatprep.mubr.bf16.mxu0 0
        %1055 = vmatmul.mubr.bf16.gmra.mrb[0].mxu0 %v813
        %v1056 = vpop.f32.mrb[0].mxu0
        %v1057 = vadd.f32 0.0, %v1056
        %v1058 = vpop.f32.mrb[0].mxu0
        %v1059 = vpop.f32.mrb[0].mxu0
        %v1060 = vadd.f32 0.0, %v1059
        %v1061 = vpop.f32.mrb[0].mxu0
        %1062 = vmatprep.mubr.bf16.mxu0 0
        %1063 = vmatmul.mubr.bf16.gmra.mrb[0].mxu0 %v816
        %v1064 = vpop.f32.mrb[0].mxu0
        %v1065 = vadd.f32 0.0, %v1064
        %v1066 = vpop.f32.mrb[0].mxu0
        %v1067 = vpop.f32.mrb[0].mxu0
        %v1068 = vadd.f32 0.0, %v1067
        %v1069 = vpop.f32.mrb[0].mxu0
        %1070 = vmatprep.mubr.bf16.mxu0 0
        %1071 = vmatmul.mubr.bf16.gmra.mrb[0].mxu0 %v819
        %v1072 = vpop.f32.mrb[0].mxu0
        %v1073 = vadd.f32 0.0, %v1072
        %v1074 = vpop.f32.mrb[0].mxu0
        %v1075 = vpop.f32.mrb[0].mxu0
        %v1076 = vadd.f32 0.0, %v1075
        %v1077 = vpop.f32.mrb[0].mxu0
        %1078 = vmatprep.mubr.bf16.mxu0 0
        %1079 = vmatmul.mubr.bf16.gmra.mrb[0].mxu0 %v822
        %v1080 = vpop.f32.mrb[0].mxu0
        %v1081 = vadd.f32 0.0, %v1080
        %v1082 = vpop.f32.mrb[0].mxu0
        %v1083 = vpop.f32.mrb[0].mxu0
        %v1084 = vadd.f32 0.0, %v1083
        %v1085 = vpop.f32.mrb[0].mxu0
        %1086 = vmatprep.mubr.bf16.mxu0 0
        %1087 = vmatmul.mubr.bf16.gmra.mrb[0].mxu0 %v825
        %v1088 = vpop.f32.mrb[0].mxu0
        %v1089 = vadd.f32 0.0, %v1088
        %v1090 = vpop.f32.mrb[0].mxu0
        %v1091 = vpop.f32.mrb[0].mxu0
        %v1092 = vadd.f32 0.0, %v1091
        %v1093 = vpop.f32.mrb[0].mxu0
        %1094 = vmatprep.mubr.bf16.mxu0 0
        %1095 = vmatmul.mubr.bf16.gmra.mrb[0].mxu0 %v828
        %v1096 = vpop.f32.mrb[0].mxu0
        %v1097 = vadd.f32 0.0, %v1096
        %v1098 = vpop.f32.mrb[0].mxu0
        %v1099 = vpop.f32.mrb[0].mxu0
        %v1100 = vadd.f32 0.0, %v1099
        %v1101 = vpop.f32.mrb[0].mxu0
        %1102 = vmatprep.mubr.bf16.mxu0 0
        %1103 = vmatmul.mubr.bf16.gmra.mrb[0].mxu0 %v831
        %v1104 = vpop.f32.mrb[0].mxu0
        %v1105 = vadd.f32 0.0, %v1104
        %v1106 = vpop.f32.mrb[0].mxu0
        %v1107 = vpop.f32.mrb[0].mxu0
        %v1108 = vadd.f32 0.0, %v1107
        %v1109 = vpop.f32.mrb[0].mxu0
        %1110 = vmatprep.mubr.bf16.mxu0 0
        %1111 = vmatmul.mubr.bf16.gmra.mrb[0].mxu0 %v834
        %v1112 = vpop.f32.mrb[0].mxu0
        %v1113 = vadd.f32 0.0, %v1112
        %v1114 = vpop.f32.mrb[0].mxu0
        %v1115 = vpop.f32.mrb[0].mxu0
        %v1116 = vadd.f32 0.0, %v1115
        %v1117 = vpop.f32.mrb[0].mxu0
        %1118 = vmatprep.mubr.bf16.mxu0 0
        %1119 = vmatmul.mubr.bf16.gmra.mrb[0].mxu0 %v837
        %v1120 = vpop.f32.mrb[0].mxu0
        %v1121 = vadd.f32 0.0, %v1120
        %v1122 = vpop.f32.mrb[0].mxu0
        %v1123 = vpop.f32.mrb[0].mxu0
        %v1124 = vadd.f32 0.0, %v1123
        %v1125 = vpop.f32.mrb[0].mxu0
        %1126 = vmatprep.mubr.bf16.mxu0 0
        %1127 = vmatmul.mubr.bf16.gmra.mrb[0].mxu0 %v840
        %v1128 = vpop.f32.mrb[0].mxu0
        %v1129 = vadd.f32 0.0, %v1128
        %v1130 = vpop.f32.mrb[0].mxu0
        %v1131 = vpop.f32.mrb[0].mxu0
        %v1132 = vadd.f32 0.0, %v1131
        %v1133 = vpop.f32.mrb[0].mxu0
        %1134 = vdwg.mxu0
        %p1135 = scmp.eq.s32.totalorder %s14, 0
        // Predicated region
        $region71: #{decoder_block.6} parent=65 // pred_check
          %p1136 = pneg %p1135
        $region72: #{decoder_block.6} parent=65 // pred_check_branch
          %1138 = sbr.rel (%p1136) target = $region74
        $region73: #{decoder_block.6} parent=65 // pred_region
          %vm1139 = vcmask 58368
          %1140 = vst.msk [vmem:[%s3] sm:$0x3] %vm1139, 0.0
        $region74: #{decoder_block.6} parent=65 // pred_fallthru
          _
        %v1141 = vld [vmem:[%s3] sm:$0x1]
        %vm1142 = vcmask 64512
        %v1143 = vsel %vm1142, %v881, 0.0
        %v1144 = vsel %vm1142, %v884, 0.0
        %v1145 = vadd.f32 %v1143, %v1144
        %v1146 = vsel %vm1142, %v889, 0.0
        %v1147 = vadd.f32 %v1145, %v1146
        %v1148 = vsel %vm1142, %v892, 0.0
        %v1149 = vadd.f32 %v1147, %v1148
        %v1150 = vsel %vm1142, %v897, 0.0
        %v1151 = vadd.f32 %v1149, %v1150
        %v1152 = vsel %vm1142, %v900, 0.0
        %v1153 = vadd.f32 %v1151, %v1152
        %v1154 = vsel %vm1142, %v905, 0.0
        %v1155 = vadd.f32 %v1153, %v1154
        %v1156 = vsel %vm1142, %v908, 0.0
        %v1157 = vadd.f32 %v1155, %v1156
        %v1158 = vsel %vm1142, %v913, 0.0
        %v1159 = vadd.f32 %v1157, %v1158
        %v1160 = vsel %vm1142, %v916, 0.0
        %v1161 = vadd.f32 %v1159, %v1160
        %v1162 = vsel %vm1142, %v921, 0.0
        %v1163 = vadd.f32 %v1161, %v1162
        %v1164 = vsel %vm1142, %v924, 0.0
        %v1165 = vadd.f32 %v1163, %v1164
        %v1166 = vsel %vm1142, %v929, 0.0
        %v1167 = vadd.f32 %v1165, %v1166
        %v1168 = vsel %vm1142, %v932, 0.0
        %v1169 = vadd.f32 %v1167, %v1168
        %v1170 = vsel %vm1142, %v937, 0.0
        %v1171 = vadd.f32 %v1169, %v1170
        %v1172 = vsel %vm1142, %v940, 0.0
        %v1173 = vadd.f32 %v1171, %v1172
        %v1174 = vsel %vm1142, %v945, 0.0
        %v1175 = vadd.f32 %v1173, %v1174
        %v1176 = vsel %vm1142, %v948, 0.0
        %v1177 = vadd.f32 %v1175, %v1176
        %v1178 = vsel %vm1142, %v953, 0.0
        %v1179 = vadd.f32 %v1177, %v1178
        %v1180 = vsel %vm1142, %v956, 0.0
        %v1181 = vadd.f32 %v1179, %v1180
        %v1182 = vsel %vm1142, %v961, 0.0
        %v1183 = vadd.f32 %v1181, %v1182
        %v1184 = vsel %vm1142, %v964, 0.0
        %v1185 = vadd.f32 %v1183, %v1184
        %v1186 = vsel %vm1142, %v969, 0.0
        %v1187 = vadd.f32 %v1185, %v1186
        %v1188 = vsel %vm1142, %v972, 0.0
        %v1189 = vadd.f32 %v1187, %v1188
        %v1190 = vsel %vm1142, %v977, 0.0
        %v1191 = vadd.f32 %v1189, %v1190
        %v1192 = vsel %vm1142, %v980, 0.0
        %v1193 = vadd.f32 %v1191, %v1192
        %v1194 = vsel %vm1142, %v985, 0.0
        %v1195 = vadd.f32 %v1193, %v1194
        %v1196 = vsel %vm1142, %v988, 0.0
        %v1197 = vadd.f32 %v1195, %v1196
        %v1198 = vsel %vm1142, %v993, 0.0
        %v1199 = vadd.f32 %v1197, %v1198
        %v1200 = vsel %vm1142, %v996, 0.0
        %v1201 = vadd.f32 %v1199, %v1200
        %v1202 = vsel %vm1142, %v1001, 0.0
        %v1203 = vadd.f32 %v1201, %v1202
        %v1204 = vsel %vm1142, %v1004, 0.0
        %v1205 = vadd.f32 %v1203, %v1204
        %v1206 = vsel %vm1142, %v1009, 0.0
        %v1207 = vadd.f32 %v1205, %v1206
        %v1208 = vsel %vm1142, %v1012, 0.0
        %v1209 = vadd.f32 %v1207, %v1208
        %v1210 = vsel %vm1142, %v1017, 0.0
        %v1211 = vadd.f32 %v1209, %v1210
        %v1212 = vsel %vm1142, %v1020, 0.0
        %v1213 = vadd.f32 %v1211, %v1212
        %v1214 = vsel %vm1142, %v1025, 0.0
        %v1215 = vadd.f32 %v1213, %v1214
        %v1216 = vsel %vm1142, %v1028, 0.0
        %v1217 = vadd.f32 %v1215, %v1216
        %v1218 = vsel %vm1142, %v1033, 0.0
        %v1219 = vadd.f32 %v1217, %v1218
        %v1220 = vsel %vm1142, %v1036, 0.0
        %v1221 = vadd.f32 %v1219, %v1220
        %v1222 = vsel %vm1142, %v1041, 0.0
        %v1223 = vadd.f32 %v1221, %v1222
        %v1224 = vsel %vm1142, %v1044, 0.0
        %v1225 = vadd.f32 %v1223, %v1224
        %v1226 = vsel %vm1142, %v1049, 0.0
        %v1227 = vadd.f32 %v1225, %v1226
        %v1228 = vsel %vm1142, %v1052, 0.0
        %v1229 = vadd.f32 %v1227, %v1228
        %v1230 = vsel %vm1142, %v1057, 0.0
        %v1231 = vadd.f32 %v1229, %v1230
        %v1232 = vsel %vm1142, %v1060, 0.0
        %v1233 = vadd.f32 %v1231, %v1232
        %v1234 = vsel %vm1142, %v1065, 0.0
        %v1235 = vadd.f32 %v1233, %v1234
        %v1236 = vsel %vm1142, %v1068, 0.0
        %v1237 = vadd.f32 %v1235, %v1236
        %v1238 = vsel %vm1142, %v1073, 0.0
        %v1239 = vadd.f32 %v1237, %v1238
        %v1240 = vsel %vm1142, %v1076, 0.0
        %v1241 = vadd.f32 %v1239, %v1240
        %v1242 = vsel %vm1142, %v1081, 0.0
        %v1243 = vadd.f32 %v1241, %v1242
        %v1244 = vsel %vm1142, %v1084, 0.0
        %v1245 = vadd.f32 %v1243, %v1244
        %v1246 = vsel %vm1142, %v1089, 0.0
        %v1247 = vadd.f32 %v1245, %v1246
        %v1248 = vsel %vm1142, %v1092, 0.0
        %v1249 = vadd.f32 %v1247, %v1248
        %v1250 = vsel %vm1142, %v1097, 0.0
        %v1251 = vadd.f32 %v1249, %v1250
        %v1252 = vsel %vm1142, %v1100, 0.0
        %v1253 = vadd.f32 %v1251, %v1252
        %v1254 = vsel %vm1142, %v1105, 0.0
        %v1255 = vadd.f32 %v1253, %v1254
        %v1256 = vsel %vm1142, %v1108, 0.0
        %v1257 = vadd.f32 %v1255, %v1256
        %v1258 = vsel %vm1142, %v1113, 0.0
        %v1259 = vadd.f32 %v1257, %v1258
        %v1260 = vsel %vm1142, %v1116, 0.0
        %v1261 = vadd.f32 %v1259, %v1260
        %v1262 = vsel %vm1142, %v1121, 0.0
        %v1263 = vadd.f32 %v1261, %v1262
        %v1264 = vsel %vm1142, %v1124, 0.0
        %v1265 = vadd.f32 %v1263, %v1264
        %v1266 = vsel %vm1142, %v1129, 0.0
        %v1267 = vadd.f32 %v1265, %v1266
        %v1268 = vsel %vm1142, %v1132, 0.0
        %v1269 = vadd.f32 %v1267, %v1268
        %v1270 = vrot.slane %v1269, 4
        %v1271 = vadd.f32 %v1269, %v1270
        %v1272 = vrot.slane %v1271, 2
        %v1273 = vadd.f32 %v1271, %v1272
        %v1274 = vrot.slane %v1273, 1
        %v1275 = vadd.f32 %v1273, %v1274
        %v1276 = vadd.f32 %v1141, %v1275
        %vm1277 = vcmask 57344
        %1278 = vst.msk [vmem:[%s3] sm:$0x1] %vm1277, %v1276
        %v1279 = vld [vmem:[%s3 + $0x1] sm:$0x1]
        %v1280 = vmul.f32 %v881, %v881
        %v1281 = vmul.f32 %v884, %v884
        %v1282 = vmul.f32 %v889, %v889
        %v1283 = vmul.f32 %v892, %v892
        %v1284 = vmul.f32 %v897, %v897
        %v1285 = vmul.f32 %v900, %v900
        %v1286 = vmul.f32 %v905, %v905
        %v1287 = vmul.f32 %v908, %v908
        %v1288 = vmul.f32 %v913, %v913
        %v1289 = vmul.f32 %v916, %v916
        %v1290 = vmul.f32 %v921, %v921
        %v1291 = vmul.f32 %v924, %v924
        %v1292 = vmul.f32 %v929, %v929
        %v1293 = vmul.f32 %v932, %v932
        %v1294 = vmul.f32 %v937, %v937
        %v1295 = vmul.f32 %v940, %v940
        %v1296 = vmul.f32 %v945, %v945
        %v1297 = vmul.f32 %v948, %v948
        %v1298 = vmul.f32 %v953, %v953
        %v1299 = vmul.f32 %v956, %v956
        %v1300 = vmul.f32 %v961, %v961
        %v1301 = vmul.f32 %v964, %v964
        %v1302 = vmul.f32 %v969, %v969
        %v1303 = vmul.f32 %v972, %v972
        %v1304 = vmul.f32 %v977, %v977
        %v1305 = vmul.f32 %v980, %v980
        %v1306 = vmul.f32 %v985, %v985
        %v1307 = vmul.f32 %v988, %v988
        %v1308 = vmul.f32 %v993, %v993
        %v1309 = vmul.f32 %v996, %v996
        %v1310 = vmul.f32 %v1001, %v1001
        %v1311 = vmul.f32 %v1004, %v1004
        %v1312 = vmul.f32 %v1009, %v1009
        %v1313 = vmul.f32 %v1012, %v1012
        %v1314 = vmul.f32 %v1017, %v1017
        %v1315 = vmul.f32 %v1020, %v1020
        %v1316 = vmul.f32 %v1025, %v1025
        %v1317 = vmul.f32 %v1028, %v1028
        %v1318 = vmul.f32 %v1033, %v1033
        %v1319 = vmul.f32 %v1036, %v1036
        %v1320 = vmul.f32 %v1041, %v1041
        %v1321 = vmul.f32 %v1044, %v1044
        %v1322 = vmul.f32 %v1049, %v1049
        %v1323 = vmul.f32 %v1052, %v1052
        %v1324 = vmul.f32 %v1057, %v1057
        %v1325 = vmul.f32 %v1060, %v1060
        %v1326 = vmul.f32 %v1065, %v1065
        %v1327 = vmul.f32 %v1068, %v1068
        %v1328 = vmul.f32 %v1073, %v1073
        %v1329 = vmul.f32 %v1076, %v1076
        %v1330 = vmul.f32 %v1081, %v1081
        %v1331 = vmul.f32 %v1084, %v1084
        %v1332 = vmul.f32 %v1089, %v1089
        %v1333 = vmul.f32 %v1092, %v1092
        %v1334 = vmul.f32 %v1097, %v1097
        %v1335 = vmul.f32 %v1100, %v1100
        %v1336 = vmul.f32 %v1105, %v1105
        %v1337 = vmul.f32 %v1108, %v1108
        %v1338 = vmul.f32 %v1113, %v1113
        %v1339 = vmul.f32 %v1116, %v1116
        %v1340 = vmul.f32 %v1121, %v1121
        %v1341 = vmul.f32 %v1124, %v1124
        %v1342 = vmul.f32 %v1129, %v1129
        %v1343 = vmul.f32 %v1132, %v1132
        %v1344 = vsel %vm1142, %v1280, 0.0
        %v1345 = vsel %vm1142, %v1281, 0.0
        %v1346 = vadd.f32 %v1344, %v1345
        %v1347 = vsel %vm1142, %v1282, 0.0
        %v1348 = vadd.f32 %v1346, %v1347
        %v1349 = vsel %vm1142, %v1283, 0.0
        %v1350 = vadd.f32 %v1348, %v1349
        %v1351 = vsel %vm1142, %v1284, 0.0
        %v1352 = vadd.f32 %v1350, %v1351
        %v1353 = vsel %vm1142, %v1285, 0.0
        %v1354 = vadd.f32 %v1352, %v1353
        %v1355 = vsel %vm1142, %v1286, 0.0
        %v1356 = vadd.f32 %v1354, %v1355
        %v1357 = vsel %vm1142, %v1287, 0.0
        %v1358 = vadd.f32 %v1356, %v1357
        %v1359 = vsel %vm1142, %v1288, 0.0
        %v1360 = vadd.f32 %v1358, %v1359
        %v1361 = vsel %vm1142, %v1289, 0.0
        %v1362 = vadd.f32 %v1360, %v1361
        %v1363 = vsel %vm1142, %v1290, 0.0
        %v1364 = vadd.f32 %v1362, %v1363
        %v1365 = vsel %vm1142, %v1291, 0.0
        %v1366 = vadd.f32 %v1364, %v1365
        %v1367 = vsel %vm1142, %v1292, 0.0
        %v1368 = vadd.f32 %v1366, %v1367
        %v1369 = vsel %vm1142, %v1293, 0.0
        %v1370 = vadd.f32 %v1368, %v1369
        %v1371 = vsel %vm1142, %v1294, 0.0
        %v1372 = vadd.f32 %v1370, %v1371
        %v1373 = vsel %vm1142, %v1295, 0.0
        %v1374 = vadd.f32 %v1372, %v1373
        %v1375 = vsel %vm1142, %v1296, 0.0
        %v1376 = vadd.f32 %v1374, %v1375
        %v1377 = vsel %vm1142, %v1297, 0.0
        %v1378 = vadd.f32 %v1376, %v1377
        %v1379 = vsel %vm1142, %v1298, 0.0
        %v1380 = vadd.f32 %v1378, %v1379
        %v1381 = vsel %vm1142, %v1299, 0.0
        %v1382 = vadd.f32 %v1380, %v1381
        %v1383 = vsel %vm1142, %v1300, 0.0
        %v1384 = vadd.f32 %v1382, %v1383
        %v1385 = vsel %vm1142, %v1301, 0.0
        %v1386 = vadd.f32 %v1384, %v1385
        %v1387 = vsel %vm1142, %v1302, 0.0
        %v1388 = vadd.f32 %v1386, %v1387
        %v1389 = vsel %vm1142, %v1303, 0.0
        %v1390 = vadd.f32 %v1388, %v1389
        %v1391 = vsel %vm1142, %v1304, 0.0
        %v1392 = vadd.f32 %v1390, %v1391
        %v1393 = vsel %vm1142, %v1305, 0.0
        %v1394 = vadd.f32 %v1392, %v1393
        %v1395 = vsel %vm1142, %v1306, 0.0
        %v1396 = vadd.f32 %v1394, %v1395
        %v1397 = vsel %vm1142, %v1307, 0.0
        %v1398 = vadd.f32 %v1396, %v1397
        %v1399 = vsel %vm1142, %v1308, 0.0
        %v1400 = vadd.f32 %v1398, %v1399
        %v1401 = vsel %vm1142, %v1309, 0.0
        %v1402 = vadd.f32 %v1400, %v1401
        %v1403 = vsel %vm1142, %v1310, 0.0
        %v1404 = vadd.f32 %v1402, %v1403
        %v1405 = vsel %vm1142, %v1311, 0.0
        %v1406 = vadd.f32 %v1404, %v1405
        %v1407 = vsel %vm1142, %v1312, 0.0
        %v1408 = vadd.f32 %v1406, %v1407
        %v1409 = vsel %vm1142, %v1313, 0.0
        %v1410 = vadd.f32 %v1408, %v1409
        %v1411 = vsel %vm1142, %v1314, 0.0
        %v1412 = vadd.f32 %v1410, %v1411
        %v1413 = vsel %vm1142, %v1315, 0.0
        %v1414 = vadd.f32 %v1412, %v1413
        %v1415 = vsel %vm1142, %v1316, 0.0
        %v1416 = vadd.f32 %v1414, %v1415
        %v1417 = vsel %vm1142, %v1317, 0.0
        %v1418 = vadd.f32 %v1416, %v1417
        %v1419 = vsel %vm1142, %v1318, 0.0
        %v1420 = vadd.f32 %v1418, %v1419
        %v1421 = vsel %vm1142, %v1319, 0.0
        %v1422 = vadd.f32 %v1420, %v1421
        %v1423 = vsel %vm1142, %v1320, 0.0
        %v1424 = vadd.f32 %v1422, %v1423
        %v1425 = vsel %vm1142, %v1321, 0.0
        %v1426 = vadd.f32 %v1424, %v1425
        %v1427 = vsel %vm1142, %v1322, 0.0
        %v1428 = vadd.f32 %v1426, %v1427
        %v1429 = vsel %vm1142, %v1323, 0.0
        %v1430 = vadd.f32 %v1428, %v1429
        %v1431 = vsel %vm1142, %v1324, 0.0
        %v1432 = vadd.f32 %v1430, %v1431
        %v1433 = vsel %vm1142, %v1325, 0.0
        %v1434 = vadd.f32 %v1432, %v1433
        %v1435 = vsel %vm1142, %v1326, 0.0
        %v1436 = vadd.f32 %v1434, %v1435
        %v1437 = vsel %vm1142, %v1327, 0.0
        %v1438 = vadd.f32 %v1436, %v1437
        %v1439 = vsel %vm1142, %v1328, 0.0
        %v1440 = vadd.f32 %v1438, %v1439
        %v1441 = vsel %vm1142, %v1329, 0.0
        %v1442 = vadd.f32 %v1440, %v1441
        %v1443 = vsel %vm1142, %v1330, 0.0
        %v1444 = vadd.f32 %v1442, %v1443
        %v1445 = vsel %vm1142, %v1331, 0.0
        %v1446 = vadd.f32 %v1444, %v1445
        %v1447 = vsel %vm1142, %v1332, 0.0
        %v1448 = vadd.f32 %v1446, %v1447
        %v1449 = vsel %vm1142, %v1333, 0.0
        %v1450 = vadd.f32 %v1448, %v1449
        %v1451 = vsel %vm1142, %v1334, 0.0
        %v1452 = vadd.f32 %v1450, %v1451
        %v1453 = vsel %vm1142, %v1335, 0.0
        %v1454 = vadd.f32 %v1452, %v1453
        %v1455 = vsel %vm1142, %v1336, 0.0
        %v1456 = vadd.f32 %v1454, %v1455
        %v1457 = vsel %vm1142, %v1337, 0.0
        %v1458 = vadd.f32 %v1456, %v1457
        %v1459 = vsel %vm1142, %v1338, 0.0
        %v1460 = vadd.f32 %v1458, %v1459
        %v1461 = vsel %vm1142, %v1339, 0.0
        %v1462 = vadd.f32 %v1460, %v1461
        %v1463 = vsel %vm1142, %v1340, 0.0
        %v1464 = vadd.f32 %v1462, %v1463
        %v1465 = vsel %vm1142, %v1341, 0.0
        %v1466 = vadd.f32 %v1464, %v1465
        %v1467 = vsel %vm1142, %v1342, 0.0
        %v1468 = vadd.f32 %v1466, %v1467
        %v1469 = vsel %vm1142, %v1343, 0.0
        %v1470 = vadd.f32 %v1468, %v1469
        %v1471 = vrot.slane %v1470, 4
        %v1472 = vadd.f32 %v1470, %v1471
        %v1473 = vrot.slane %v1472, 2
        %v1474 = vadd.f32 %v1472, %v1473
        %v1475 = vrot.slane %v1474, 1
        %v1476 = vadd.f32 %v1474, %v1475
        %v1477 = vadd.f32 %v1279, %v1476
        %1478 = vst.msk [vmem:[%s3 + $0x1] sm:$0x1] %vm1277, %v1477
        // Predicated region
        $region75: #{decoder_block.6} parent=65 // pred_check
          %p1479 = pneg %p95
        $region76: #{decoder_block.6} parent=65 // pred_check_branch
          %1481 = sbr.rel (%p1479) target = $region78
        $region77: #{decoder_block.6} parent=65 // pred_region
          _
        $region78: #{decoder_block.6} parent=65 // pred_fallthru
          _
        // Predicated region
        $region79: #{decoder_block.6} parent=65 // pred_check
          %p1482 = pneg %p95
        $region80: #{decoder_block.6} parent=65 // pred_check_branch
          %1484 = sbr.rel (%p1482) target = $region82
        $region81: #{decoder_block.6} parent=65 // pred_region
          _
        $region82: #{decoder_block.6} parent=65 // pred_fallthru
          _
      $region66: #{decoder_block.6} parent=5 // pred_fallthru
        _
      %p1485 = scmp.le.s32.totalorder 2, %s9
      // Predicated region
      $region83: #{decoder_block.6} parent=5 // pred_check
        %p1486 = pneg %p1485
      $region84: #{decoder_block.6} parent=5 // pred_check_branch
        %1488 = sbr.rel (%p1486) target = $region86
      $region85: #{decoder_block.6} parent=5 // pred_region
        %s1489 = ssub.s32 %s9, 2
      $region86: #{decoder_block.6} parent=5 // pred_fallthru
        _
    $region6: #{decoder_block.6} parent=1 // loop_footer
      %s13 = sadd.s32 1, %s9
    $region7: #{decoder_block.6} parent=1 // loop_footer_branch
      %8 = sbr.rel target = $region3
    $region8: #{decoder_block.6} parent=1 // loop_exit
      _

// kernel: decoder_block.7
$region0: #{decoder_block.7}
  #allocation0 [shape = 'u32[]', space=smem, size = 0x4, offset = 0x4, fixed_abs, tag = 'smem constant byte address 0x4 - core index']
  #allocation1 [shape = 'u32[144,128]{1,0:T(1,128)}', space=vmem, size = 0x12000, scoped, tag = 'internal scratch']
  %s0 = inlined_call_operand.vmem [shape: f32[4,32,16,4], index: 0, kind: input, shape index: {}]
  %s1 = inlined_call_operand.vmem [shape: f32[2,4], index: 1, kind: input, shape index: {}]
  %s2 = inlined_call_operand.vmem [shape: bf16[4,8], index: 2, kind: input, shape index: {}]
  %s3 = inlined_call_operand.vmem [shape: f32[2,8], index: 3, kind: input, shape index: {}]
  %s4 = inlined_call_operand.vmem [shape: f32[4,32,16,8], index: 4, kind: output, shape index: {}]
  %s5 = sld [smem:[#allocation0]]
  $region121: #{decoder_block.7} parent=0
    _
  %s7 = ssub.s32 1, %s5
  %s8 = scalar_select 0, %s7, %s5
  $region1: #{decoder_block.7} parent=0
    #allocation2 [shape = 'u8[524288]{0}', space=vmem, size = 0x80000, scoped, tag = 'input window, operand 0']
    #allocation3 [shape = 'u8[524288]{0}', space=vmem, size = 0x80000, scoped, tag = 'output window, operand 0']
    loop: start=0, step=1, limit=6
    $region2: #{decoder_block.7} parent=1 // loop_pre_header
      _
    $region3: #{decoder_block.7} parent=1 // loop_header
      %s10 = sphi 0, %s14
      %p11 = scmp.ge.s32.totalorder %s10, 6
      %s20 = sphi 0, %s22
      %s23 = sphi 0, %s20
      %s24 = sphi 0, %s23
      %s40 = sphi 0, %s24
      %s44 = sphi 0, %s44
      %s46 = sphi 0, %s44
      %s47 = sphi 0, %s46
      %s61 = sphi 0, %s47
      %s65 = sphi 0, %s65
      %s67 = sphi 0, %s65
      %s68 = sphi 0, %s67
      %s82 = sphi 0, %s68
      %s86 = sphi 0, %s86
      %s88 = sphi 0, %s86
      %s89 = sphi 0, %s88
      %s103 = sphi 0, %s89
      %s109 = sphi 0, %s111
      %s112 = sphi 0, %s109
      %s113 = sphi 0, %s112
      %s129 = sphi 0, %s113
    $region4: #{decoder_block.7} parent=1 // loop_header_branch
      %13 = sbr.rel (%p11) target = $region8
    $region5: #{decoder_block.7} parent=1 // loop_body
      %s15 = ssub.s32 %s10, 1
      %s16 = ssub.s32 %s10, 2
      %s17 = sadd.s32 %s10, 1
      %s18 = ssub.s32 %s10, %s17
      %p19 = scmp.eq.s32.totalorder %s18, 0
      %s21 = sadd.s32 %s20, 1
      %s22 = scalar_select %p19, %s20, %s21
      %p25 = pneg %p19
      %p26 = scmp.eq.s32.totalorder %s10, 3
      %p27 = por %p25, %p26
      %p28 = scmp.ne.s32.totalorder %s20, %s23
      %p29 = scmp.eq.s32.totalorder %s10, 0
      %p30 = por %p28, %p29
      %p31 = scmp.ne.s32.totalorder %s20, %s23
      %p32 = scmp.eq.s32.totalorder %s15, 3
      %p33 = por %p31, %p32
      %p34 = scmp.ne.s32.totalorder %s23, %s24
      %p35 = scmp.eq.s32.totalorder %s15, 0
      %p36 = por %p34, %p35
      %p37 = scmp.ne.s32.totalorder %s23, %s24
      %p38 = scmp.eq.s32.totalorder %s16, 3
      %p39 = por %p37, %p38
      %p41 = scmp.ne.s32.totalorder %s24, %s40
      %p42 = scmp.eq.s32.totalorder %s16, 0
      %p43 = por %p41, %p42
      %s45 = sadd.s32 %s44, 1
      %p48 = scmp.eq.s32.totalorder %s10, 3
      %p49 = scmp.ne.s32.totalorder %s44, %s46
      %p50 = scmp.eq.s32.totalorder %s10, 0
      %p51 = por %p49, %p50
      %p52 = scmp.ne.s32.totalorder %s44, %s46
      %p53 = scmp.eq.s32.totalorder %s15, 3
      %p54 = por %p52, %p53
      %p55 = scmp.ne.s32.totalorder %s46, %s47
      %p56 = scmp.eq.s32.totalorder %s15, 0
      %p57 = por %p55, %p56
      %p58 = scmp.ne.s32.totalorder %s46, %s47
      %p59 = scmp.eq.s32.totalorder %s16, 3
      %p60 = por %p58, %p59
      %p62 = scmp.ne.s32.totalorder %s47, %s61
      %p63 = scmp.eq.s32.totalorder %s16, 0
      %p64 = por %p62, %p63
      %s66 = sadd.s32 %s65, 1
      %p69 = scmp.eq.s32.totalorder %s10, 3
      %p70 = scmp.ne.s32.totalorder %s65, %s67
      %p71 = scmp.eq.s32.totalorder %s10, 0
      %p72 = por %p70, %p71
      %p73 = scmp.ne.s32.totalorder %s65, %s67
      %p74 = scmp.eq.s32.totalorder %s15, 3
      %p75 = por %p73, %p74
      %p76 = scmp.ne.s32.totalorder %s67, %s68
      %p77 = scmp.eq.s32.totalorder %s15, 0
      %p78 = por %p76, %p77
      %p79 = scmp.ne.s32.totalorder %s67, %s68
      %p80 = scmp.eq.s32.totalorder %s16, 3
      %p81 = por %p79, %p80
      %p83 = scmp.ne.s32.totalorder %s68, %s82
      %p84 = scmp.eq.s32.totalorder %s16, 0
      %p85 = por %p83, %p84
      %s87 = sadd.s32 %s86, 1
      %p90 = scmp.eq.s32.totalorder %s10, 3
      %p91 = scmp.ne.s32.totalorder %s86, %s88
      %p92 = scmp.eq.s32.totalorder %s10, 0
      %p93 = por %p91, %p92
      %p94 = scmp.ne.s32.totalorder %s86, %s88
      %p95 = scmp.eq.s32.totalorder %s15, 3
      %p96 = por %p94, %p95
      %p97 = scmp.ne.s32.totalorder %s88, %s89
      %p98 = scmp.eq.s32.totalorder %s15, 0
      %p99 = por %p97, %p98
      %p100 = scmp.ne.s32.totalorder %s88, %s89
      %p101 = scmp.eq.s32.totalorder %s16, 3
      %p102 = por %p100, %p101
      %p104 = scmp.ne.s32.totalorder %s89, %s103
      %p105 = scmp.eq.s32.totalorder %s16, 0
      %p106 = por %p104, %p105
      %s107 = ssub.s32 %s10, %s17
      %p108 = scmp.eq.s32.totalorder %s107, 0
      %s110 = sadd.s32 %s109, 1
      %s111 = scalar_select %p108, %s109, %s110
      %p114 = pneg %p108
      %p115 = scmp.eq.s32.totalorder %s10, 3
      %p116 = por %p114, %p115
      %p117 = scmp.ne.s32.totalorder %s109, %s112
      %p118 = scmp.eq.s32.totalorder %s10, 0
      %p119 = por %p117, %p118
      %p120 = scmp.ne.s32.totalorder %s109, %s112
      %p121 = scmp.eq.s32.totalorder %s15, 3
      %p122 = por %p120, %p121
      %p123 = scmp.ne.s32.totalorder %s112, %s113
      %p124 = scmp.eq.s32.totalorder %s15, 0
      %p125 = por %p123, %p124
      %p126 = scmp.ne.s32.totalorder %s112, %s113
      %p127 = scmp.eq.s32.totalorder %s16, 3
      %p128 = por %p126, %p127
      %p130 = scmp.ne.s32.totalorder %s113, %s129
      %p131 = scmp.eq.s32.totalorder %s16, 0
      %p132 = por %p130, %p131
      %p133 = scmp.le.s32.totalorder 1, %s10
      %p134 = scmp.lt.s32.totalorder %s10, 5
      %p135 = pnand %p133, %p134
      %p136 = pneg %p135
      // Predicated region
      $region9: #{decoder_block.7} parent=5 // pred_check
        _
      $region10: #{decoder_block.7} parent=5 // pred_check_branch
        %138 = sbr.rel (%p135) target = $region12
      $region11: #{decoder_block.7} parent=5 // pred_region
        %s139 = ssub.s32 %s10, 1
        // Predicated region
        $region13: #{decoder_block.7} parent=11 // pred_check
          %p140 = pneg %p57
        $region14: #{decoder_block.7} parent=11 // pred_check_branch
          %142 = sbr.rel (%p140) target = $region16
        $region15: #{decoder_block.7} parent=11 // pred_region
          _
        $region16: #{decoder_block.7} parent=11 // pred_fallthru
          _
        // Predicated region
        $region17: #{decoder_block.7} parent=11 // pred_check
          %p143 = pneg %p78
        $region18: #{decoder_block.7} parent=11 // pred_check_branch
          %145 = sbr.rel (%p143) target = $region20
        $region19: #{decoder_block.7} parent=11 // pred_region
          _
        $region20: #{decoder_block.7} parent=11 // pred_fallthru
          _
        // Predicated region
        $region21: #{decoder_block.7} parent=11 // pred_check
          %p146 = pneg %p99
        $region22: #{decoder_block.7} parent=11 // pred_check_branch
          %148 = sbr.rel (%p146) target = $region24
        $region23: #{decoder_block.7} parent=11 // pred_region
          _
        $region24: #{decoder_block.7} parent=11 // pred_fallthru
          _
      $region12: #{decoder_block.7} parent=5 // pred_fallthru
        _
      %p149 = scmp.lt.s32.totalorder %s10, 4
      // Predicated region
      $region25: #{decoder_block.7} parent=5 // pred_check
        %p150 = pneg %p149
      $region26: #{decoder_block.7} parent=5 // pred_check_branch
        %152 = sbr.rel (%p150) target = $region28
      $region27: #{decoder_block.7} parent=5 // pred_region
        // Predicated region
        $region29: #{decoder_block.7} parent=27 // pred_check
          %p153 = pneg %p30
        $region30: #{decoder_block.7} parent=27 // pred_check_branch
          %155 = sbr.rel (%p153) target = $region32
        $region31: #{decoder_block.7} parent=27 // pred_region
          %s156 = sand.u32 %s20, 1
          %s157 = sand.u32 %s20, 1
          %s158 = smul.addr %s157, 512
          %s159 = scalar_lea.vmem [#allocation2], %s158
          %s160 = smul.u32 8, %s10
          %s161 = smul.addr %s160, 2
          %s162 = smul.addr %s161, 8
          %s163 = scalar_lea.vmem %s0, %s162
          // Predicated region
          $region33: #{decoder_block.7} parent=31 // pred_check
            _
          $region34: #{decoder_block.7} parent=31 // pred_check_branch
            %165 = sbr.rel (0) target = $region36
          $region35: #{decoder_block.7} parent=31 // pred_region
            // Predicated region
            $region37: #{decoder_block.7} parent=35 // pred_check
              _
            $region38: #{decoder_block.7} parent=35 // pred_check_branch
              %167 = sbr.rel (0) target = $region40
            $region39: #{decoder_block.7} parent=35 // pred_region
              // Predicated region
              $region52: #{decoder_block.7} parent=39 // pred_check
                _
              $region53: #{decoder_block.7} parent=39 // pred_check_branch
                %308 = sbr.rel (0) target = $region55
              $region54: #{decoder_block.7} parent=39 // pred_region
                loop: start=0, step=1, limit=1
                $region56: #{decoder_block.7} parent=54 // loop_pre_header
                  _
                $region57: #{decoder_block.7} parent=54 // loop_header
                  %s310 = sphi 0, %s314
                  %p311 = scmp.ge.s32.totalorder %s310, 1
                  %s315 = sphi %s163, %s163
                  %s316 = sphi %s159, %s159
                $region58: #{decoder_block.7} parent=54 // loop_header_branch
                  %313 = sbr.rel (%p311) target = $region62
                $region59: #{decoder_block.7} parent=54 // loop_body
                  %v317 = vld [vmem:[%s315] sm:$0xff]
                  %318 = vst [vmem:[%s316] sm:$0xff] %v317
                  %v319 = vld [vmem:[%s315 + $0x8] sm:$0xff]
                  %320 = vst [vmem:[%s316 + $0x8] sm:$0xff] %v319
                  %v321 = vld [vmem:[%s315 + $0x10] sm:$0xff]
                  %322 = vst [vmem:[%s316 + $0x10] sm:$0xff] %v321
                  %v323 = vld [vmem:[%s315 + $0x18] sm:$0xff]
                  %324 = vst [vmem:[%s316 + $0x18] sm:$0xff] %v323
                  %v325 = vld [vmem:[%s315 + $0x20] sm:$0xff]
                  %326 = vst [vmem:[%s316 + $0x20] sm:$0xff] %v325
                  %v327 = vld [vmem:[%s315 + $0x28] sm:$0xff]
                  %328 = vst [vmem:[%s316 + $0x28] sm:$0xff] %v327
                  %v329 = vld [vmem:[%s315 + $0x30] sm:$0xff]
                  %330 = vst [vmem:[%s316 + $0x30] sm:$0xff] %v329
                  %v331 = vld [vmem:[%s315 + $0x38] sm:$0xff]
                  %332 = vst [vmem:[%s316 + $0x38] sm:$0xff] %v331
                  %v333 = vld [vmem:[%s315 + $0x40] sm:$0xff]
                  %334 = vst [vmem:[%s316 + $0x40] sm:$0xff] %v333
                  %v335 = vld [vmem:[%s315 + $0x48] sm:$0xff]
                  %336 = vst [vmem:[%s316 + $0x48] sm:$0xff] %v335
                  %v337 = vld [vmem:[%s315 + $0x50] sm:$0xff]
                  %338 = vst [vmem:[%s316 + $0x50] sm:$0xff] %v337
                  %v339 = vld [vmem:[%s315 + $0x58] sm:$0xff]
                  %340 = vst [vmem:[%s316 + $0x58] sm:$0xff] %v339
                  %v341 = vld [vmem:[%s315 + $0x60] sm:$0xff]
                  %342 = vst [vmem:[%s316 + $0x60] sm:$0xff] %v341
                  %v343 = vld [vmem:[%s315 + $0x68] sm:$0xff]
                  %344 = vst [vmem:[%s316 + $0x68] sm:$0xff] %v343
                  %v345 = vld [vmem:[%s315 + $0x70] sm:$0xff]
                  %346 = vst [vmem:[%s316 + $0x70] sm:$0xff] %v345
                  %v347 = vld [vmem:[%s315 + $0x78] sm:$0xff]
                  %348 = vst [vmem:[%s316 + $0x78] sm:$0xff] %v347
                  %v349 = vld [vmem:[%s315 + $0x200] sm:$0xff]
                  %350 = vst [vmem:[%s316 + $0x80] sm:$0xff] %v349
                  %v351 = vld [vmem:[%s315 + $0x208] sm:$0xff]
                  %352 = vst [vmem:[%s316 + $0x88] sm:$0xff] %v351
                  %v353 = vld [vmem:[%s315 + $0x210] sm:$0xff]
                  %354 = vst [vmem:[%s316 + $0x90] sm:$0xff] %v353
                  %v355 = vld [vmem:[%s315 + $0x218] sm:$0xff]
                  %356 = vst [vmem:[%s316 + $0x98] sm:$0xff] %v355
                  %v357 = vld [vmem:[%s315 + $0x220] sm:$0xff]
                  %358 = vst [vmem:[%s316 + $0xa0] sm:$0xff] %v357
                  %v359 = vld [vmem:[%s315 + $0x228] sm:$0xff]
                  %360 = vst [vmem:[%s316 + $0xa8] sm:$0xff] %v359
                  %v361 = vld [vmem:[%s315 + $0x230] sm:$0xff]
                  %362 = vst [vmem:[%s316 + $0xb0] sm:$0xff] %v361
                  %v363 = vld [vmem:[%s315 + $0x238] sm:$0xff]
                  %364 = vst [vmem:[%s316 + $0xb8] sm:$0xff] %v363
                  %v365 = vld [vmem:[%s315 + $0x240] sm:$0xff]
                  %366 = vst [vmem:[%s316 + $0xc0] sm:$0xff] %v365
                  %v367 = vld [vmem:[%s315 + $0x248] sm:$0xff]
                  %368 = vst [vmem:[%s316 + $0xc8] sm:$0xff] %v367
                  %v369 = vld [vmem:[%s315 + $0x250] sm:$0xff]
                  %370 = vst [vmem:[%s316 + $0xd0] sm:$0xff] %v369
                  %v371 = vld [vmem:[%s315 + $0x258] sm:$0xff]
                  %372 = vst [vmem:[%s316 + $0xd8] sm:$0xff] %v371
                  %v373 = vld [vmem:[%s315 + $0x260] sm:$0xff]
                  %374 = vst [vmem:[%s316 + $0xe0] sm:$0xff] %v373
                  %v375 = vld [vmem:[%s315 + $0x268] sm:$0xff]
                  %376 = vst [vmem:[%s316 + $0xe8] sm:$0xff] %v375
                  %v377 = vld [vmem:[%s315 + $0x270] sm:$0xff]
                  %378 = vst [vmem:[%s316 + $0xf0] sm:$0xff] %v377
                  %v379 = vld [vmem:[%s315 + $0x278] sm:$0xff]
                  %380 = vst [vmem:[%s316 + $0xf8] sm:$0xff] %v379
                  %v381 = vld [vmem:[%s315 + $0x400] sm:$0xff]
                  %382 = vst [vmem:[%s316 + $0x100] sm:$0xff] %v381
                  %v383 = vld [vmem:[%s315 + $0x408] sm:$0xff]
                  %384 = vst [vmem:[%s316 + $0x108] sm:$0xff] %v383
                  %v385 = vld [vmem:[%s315 + $0x410] sm:$0xff]
                  %386 = vst [vmem:[%s316 + $0x110] sm:$0xff] %v385
                  %v387 = vld [vmem:[%s315 + $0x418] sm:$0xff]
                  %388 = vst [vmem:[%s316 + $0x118] sm:$0xff] %v387
                  %v389 = vld [vmem:[%s315 + $0x420] sm:$0xff]
                  %390 = vst [vmem:[%s316 + $0x120] sm:$0xff] %v389
                  %v391 = vld [vmem:[%s315 + $0x428] sm:$0xff]
                  %392 = vst [vmem:[%s316 + $0x128] sm:$0xff] %v391
                  %v393 = vld [vmem:[%s315 + $0x430] sm:$0xff]
                  %394 = vst [vmem:[%s316 + $0x130] sm:$0xff] %v393
                  %v395 = vld [vmem:[%s315 + $0x438] sm:$0xff]
                  %396 = vst [vmem:[%s316 + $0x138] sm:$0xff] %v395
                  %v397 = vld [vmem:[%s315 + $0x440] sm:$0xff]
                  %398 = vst [vmem:[%s316 + $0x140] sm:$0xff] %v397
                  %v399 = vld [vmem:[%s315 + $0x448] sm:$0xff]
                  %400 = vst [vmem:[%s316 + $0x148] sm:$0xff] %v399
                  %v401 = vld [vmem:[%s315 + $0x450] sm:$0xff]
                  %402 = vst [vmem:[%s316 + $0x150] sm:$0xff] %v401
                  %v403 = vld [vmem:[%s315 + $0x458] sm:$0xff]
                  %404 = vst [vmem:[%s316 + $0x158] sm:$0xff] %v403
                  %v405 = vld [vmem:[%s315 + $0x460] sm:$0xff]
                  %406 = vst [vmem:[%s316 + $0x160] sm:$0xff] %v405
                  %v407 = vld [vmem:[%s315 + $0x468] sm:$0xff]
                  %408 = vst [vmem:[%s316 + $0x168] sm:$0xff] %v407
                  %v409 = vld [vmem:[%s315 + $0x470] sm:$0xff]
                  %410 = vst [vmem:[%s316 + $0x170] sm:$0xff] %v409
                  %v411 = vld [vmem:[%s315 + $0x478] sm:$0xff]
                  %412 = vst [vmem:[%s316 + $0x178] sm:$0xff] %v411
                  %v413 = vld [vmem:[%s315 + $0x600] sm:$0xff]
                  %414 = vst [vmem:[%s316 + $0x180] sm:$0xff] %v413
                  %v415 = vld [vmem:[%s315 + $0x608] sm:$0xff]
                  %416 = vst [vmem:[%s316 + $0x188] sm:$0xff] %v415
                  %v417 = vld [vmem:[%s315 + $0x610] sm:$0xff]
                  %418 = vst [vmem:[%s316 + $0x190] sm:$0xff] %v417
                  %v419 = vld [vmem:[%s315 + $0x618] sm:$0xff]
                  %420 = vst [vmem:[%s316 + $0x198] sm:$0xff] %v419
                  %v421 = vld [vmem:[%s315 + $0x620] sm:$0xff]
                  %422 = vst [vmem:[%s316 + $0x1a0] sm:$0xff] %v421
                  %v423 = vld [vmem:[%s315 + $0x628] sm:$0xff]
                  %424 = vst [vmem:[%s316 + $0x1a8] sm:$0xff] %v423
                  %v425 = vld [vmem:[%s315 + $0x630] sm:$0xff]
                  %426 = vst [vmem:[%s316 + $0x1b0] sm:$0xff] %v425
                  %v427 = vld [vmem:[%s315 + $0x638] sm:$0xff]
                  %428 = vst [vmem:[%s316 + $0x1b8] sm:$0xff] %v427
                  %v429 = vld [vmem:[%s315 + $0x640] sm:$0xff]
                  %430 = vst [vmem:[%s316 + $0x1c0] sm:$0xff] %v429
                  %v431 = vld [vmem:[%s315 + $0x648] sm:$0xff]
                  %432 = vst [vmem:[%s316 + $0x1c8] sm:$0xff] %v431
                  %v433 = vld [vmem:[%s315 + $0x650] sm:$0xff]
                  %434 = vst [vmem:[%s316 + $0x1d0] sm:$0xff] %v433
                  %v435 = vld [vmem:[%s315 + $0x658] sm:$0xff]
                  %436 = vst [vmem:[%s316 + $0x1d8] sm:$0xff] %v435
                  %v437 = vld [vmem:[%s315 + $0x660] sm:$0xff]
                  %438 = vst [vmem:[%s316 + $0x1e0] sm:$0xff] %v437
                  %v439 = vld [vmem:[%s315 + $0x668] sm:$0xff]
                  %440 = vst [vmem:[%s316 + $0x1e8] sm:$0xff] %v439
                  %v441 = vld [vmem:[%s315 + $0x670] sm:$0xff]
                  %442 = vst [vmem:[%s316 + $0x1f0] sm:$0xff] %v441
                  %v443 = vld [vmem:[%s315 + $0x678] sm:$0xff]
                  %444 = vst [vmem:[%s316 + $0x1f8] sm:$0xff] %v443
                $region60: #{decoder_block.7} parent=54 // loop_footer
                  %s314 = sadd.s32 1, %s310
                $region61: #{decoder_block.7} parent=54 // loop_footer_branch
                  %309 = sbr.rel target = $region57
                $region62: #{decoder_block.7} parent=54 // loop_exit
                  _
              $region55: #{decoder_block.7} parent=39 // pred_fallthru
                _
              // Predicated region
              $region63: #{decoder_block.7} parent=39 // pred_check
                _
              $region64: #{decoder_block.7} parent=39 // pred_check_branch
                %446 = sbr.rel target = $region66
              $region65: #{decoder_block.7} parent=39 // pred_region
                _
              $region66: #{decoder_block.7} parent=39 // pred_fallthru
                _
            $region40: #{decoder_block.7} parent=35 // pred_fallthru
              _
            // Predicated region
            $region41: #{decoder_block.7} parent=35 // pred_check
              _
            $region42: #{decoder_block.7} parent=35 // pred_check_branch
              %169 = sbr.rel target = $region44
            $region43: #{decoder_block.7} parent=35 // pred_region
              loop: start=0, step=1, limit=1
              $region45: #{decoder_block.7} parent=43 // loop_pre_header
                _
              $region46: #{decoder_block.7} parent=43 // loop_header
                %s172 = sphi 0, %s176
                %p173 = scmp.ge.s32.totalorder %s172, 1
                %s177 = sphi %s163, %s163
                %s178 = sphi %s159, %s159
              $region47: #{decoder_block.7} parent=43 // loop_header_branch
                %175 = sbr.rel (%p173) target = $region51
              $region48: #{decoder_block.7} parent=43 // loop_body
                %v179 = vld [vmem:[%s177] sm:$0xff]
                %180 = vst [vmem:[%s178] sm:$0xff] %v179
                %v181 = vld [vmem:[%s177 + $0x8] sm:$0xff]
                %182 = vst [vmem:[%s178 + $0x8] sm:$0xff] %v181
                %v183 = vld [vmem:[%s177 + $0x10] sm:$0xff]
                %184 = vst [vmem:[%s178 + $0x10] sm:$0xff] %v183
                %v185 = vld [vmem:[%s177 + $0x18] sm:$0xff]
                %186 = vst [vmem:[%s178 + $0x18] sm:$0xff] %v185
                %v187 = vld [vmem:[%s177 + $0x20] sm:$0xff]
                %188 = vst [vmem:[%s178 + $0x20] sm:$0xff] %v187
                %v189 = vld [vmem:[%s177 + $0x28] sm:$0xff]
                %190 = vst [vmem:[%s178 + $0x28] sm:$0xff] %v189
                %v191 = vld [vmem:[%s177 + $0x30] sm:$0xff]
                %192 = vst [vmem:[%s178 + $0x30] sm:$0xff] %v191
                %v193 = vld [vmem:[%s177 + $0x38] sm:$0xff]
                %194 = vst [vmem:[%s178 + $0x38] sm:$0xff] %v193
                %v195 = vld [vmem:[%s177 + $0x40] sm:$0xff]
                %196 = vst [vmem:[%s178 + $0x40] sm:$0xff] %v195
                %v197 = vld [vmem:[%s177 + $0x48] sm:$0xff]
                %198 = vst [vmem:[%s178 + $0x48] sm:$0xff] %v197
                %v199 = vld [vmem:[%s177 + $0x50] sm:$0xff]
                %200 = vst [vmem:[%s178 + $0x50] sm:$0xff] %v199
                %v201 = vld [vmem:[%s177 + $0x58] sm:$0xff]
                %202 = vst [vmem:[%s178 + $0x58] sm:$0xff] %v201
                %v203 = vld [vmem:[%s177 + $0x60] sm:$0xff]
                %204 = vst [vmem:[%s178 + $0x60] sm:$0xff] %v203
                %v205 = vld [vmem:[%s177 + $0x68] sm:$0xff]
                %206 = vst [vmem:[%s178 + $0x68] sm:$0xff] %v205
                %v207 = vld [vmem:[%s177 + $0x70] sm:$0xff]
                %208 = vst [vmem:[%s178 + $0x70] sm:$0xff] %v207
                %v209 = vld [vmem:[%s177 + $0x78] sm:$0xff]
                %210 = vst [vmem:[%s178 + $0x78] sm:$0xff] %v209
                %v211 = vld [vmem:[%s177 + $0x200] sm:$0xff]
                %212 = vst [vmem:[%s178 + $0x80] sm:$0xff] %v211
                %v213 = vld [vmem:[%s177 + $0x208] sm:$0xff]
                %214 = vst [vmem:[%s178 + $0x88] sm:$0xff] %v213
                %v215 = vld [vmem:[%s177 + $0x210] sm:$0xff]
                %216 = vst [vmem:[%s178 + $0x90] sm:$0xff] %v215
                %v217 = vld [vmem:[%s177 + $0x218] sm:$0xff]
                %218 = vst [vmem:[%s178 + $0x98] sm:$0xff] %v217
                %v219 = vld [vmem:[%s177 + $0x220] sm:$0xff]
                %220 = vst [vmem:[%s178 + $0xa0] sm:$0xff] %v219
                %v221 = vld [vmem:[%s177 + $0x228] sm:$0xff]
                %222 = vst [vmem:[%s178 + $0xa8] sm:$0xff] %v221
                %v223 = vld [vmem:[%s177 + $0x230] sm:$0xff]
                %224 = vst [vmem:[%s178 + $0xb0] sm:$0xff] %v223
                %v225 = vld [vmem:[%s177 + $0x238] sm:$0xff]
                %226 = vst [vmem:[%s178 + $0xb8] sm:$0xff] %v225
                %v227 = vld [vmem:[%s177 + $0x240] sm:$0xff]
                %228 = vst [vmem:[%s178 + $0xc0] sm:$0xff] %v227
                %v229 = vld [vmem:[%s177 + $0x248] sm:$0xff]
                %230 = vst [vmem:[%s178 + $0xc8] sm:$0xff] %v229
                %v231 = vld [vmem:[%s177 + $0x250] sm:$0xff]
                %232 = vst [vmem:[%s178 + $0xd0] sm:$0xff] %v231
                %v233 = vld [vmem:[%s177 + $0x258] sm:$0xff]
                %234 = vst [vmem:[%s178 + $0xd8] sm:$0xff] %v233
                %v235 = vld [vmem:[%s177 + $0x260] sm:$0xff]
                %236 = vst [vmem:[%s178 + $0xe0] sm:$0xff] %v235
                %v237 = vld [vmem:[%s177 + $0x268] sm:$0xff]
                %238 = vst [vmem:[%s178 + $0xe8] sm:$0xff] %v237
                %v239 = vld [vmem:[%s177 + $0x270] sm:$0xff]
                %240 = vst [vmem:[%s178 + $0xf0] sm:$0xff] %v239
                %v241 = vld [vmem:[%s177 + $0x278] sm:$0xff]
                %242 = vst [vmem:[%s178 + $0xf8] sm:$0xff] %v241
                %v243 = vld [vmem:[%s177 + $0x400] sm:$0xff]
                %244 = vst [vmem:[%s178 + $0x100] sm:$0xff] %v243
                %v245 = vld [vmem:[%s177 + $0x408] sm:$0xff]
                %246 = vst [vmem:[%s178 + $0x108] sm:$0xff] %v245
                %v247 = vld [vmem:[%s177 + $0x410] sm:$0xff]
                %248 = vst [vmem:[%s178 + $0x110] sm:$0xff] %v247
                %v249 = vld [vmem:[%s177 + $0x418] sm:$0xff]
                %250 = vst [vmem:[%s178 + $0x118] sm:$0xff] %v249
                %v251 = vld [vmem:[%s177 + $0x420] sm:$0xff]
                %252 = vst [vmem:[%s178 + $0x120] sm:$0xff] %v251
                %v253 = vld [vmem:[%s177 + $0x428] sm:$0xff]
                %254 = vst [vmem:[%s178 + $0x128] sm:$0xff] %v253
                %v255 = vld [vmem:[%s177 + $0x430] sm:$0xff]
                %256 = vst [vmem:[%s178 + $0x130] sm:$0xff] %v255
                %v257 = vld [vmem:[%s177 + $0x438] sm:$0xff]
                %258 = vst [vmem:[%s178 + $0x138] sm:$0xff] %v257
                %v259 = vld [vmem:[%s177 + $0x440] sm:$0xff]
                %260 = vst [vmem:[%s178 + $0x140] sm:$0xff] %v259
                %v261 = vld [vmem:[%s177 + $0x448] sm:$0xff]
                %262 = vst [vmem:[%s178 + $0x148] sm:$0xff] %v261
                %v263 = vld [vmem:[%s177 + $0x450] sm:$0xff]
                %264 = vst [vmem:[%s178 + $0x150] sm:$0xff] %v263
                %v265 = vld [vmem:[%s177 + $0x458] sm:$0xff]
                %266 = vst [vmem:[%s178 + $0x158] sm:$0xff] %v265
                %v267 = vld [vmem:[%s177 + $0x460] sm:$0xff]
                %268 = vst [vmem:[%s178 + $0x160] sm:$0xff] %v267
                %v269 = vld [vmem:[%s177 + $0x468] sm:$0xff]
                %270 = vst [vmem:[%s178 + $0x168] sm:$0xff] %v269
                %v271 = vld [vmem:[%s177 + $0x470] sm:$0xff]
                %272 = vst [vmem:[%s178 + $0x170] sm:$0xff] %v271
                %v273 = vld [vmem:[%s177 + $0x478] sm:$0xff]
                %274 = vst [vmem:[%s178 + $0x178] sm:$0xff] %v273
                %v275 = vld [vmem:[%s177 + $0x600] sm:$0xff]
                %276 = vst [vmem:[%s178 + $0x180] sm:$0xff] %v275
                %v277 = vld [vmem:[%s177 + $0x608] sm:$0xff]
                %278 = vst [vmem:[%s178 + $0x188] sm:$0xff] %v277
                %v279 = vld [vmem:[%s177 + $0x610] sm:$0xff]
                %280 = vst [vmem:[%s178 + $0x190] sm:$0xff] %v279
                %v281 = vld [vmem:[%s177 + $0x618] sm:$0xff]
                %282 = vst [vmem:[%s178 + $0x198] sm:$0xff] %v281
                %v283 = vld [vmem:[%s177 + $0x620] sm:$0xff]
                %284 = vst [vmem:[%s178 + $0x1a0] sm:$0xff] %v283
                %v285 = vld [vmem:[%s177 + $0x628] sm:$0xff]
                %286 = vst [vmem:[%s178 + $0x1a8] sm:$0xff] %v285
                %v287 = vld [vmem:[%s177 + $0x630] sm:$0xff]
                %288 = vst [vmem:[%s178 + $0x1b0] sm:$0xff] %v287
                %v289 = vld [vmem:[%s177 + $0x638] sm:$0xff]
                %290 = vst [vmem:[%s178 + $0x1b8] sm:$0xff] %v289
                %v291 = vld [vmem:[%s177 + $0x640] sm:$0xff]
                %292 = vst [vmem:[%s178 + $0x1c0] sm:$0xff] %v291
                %v293 = vld [vmem:[%s177 + $0x648] sm:$0xff]
                %294 = vst [vmem:[%s178 + $0x1c8] sm:$0xff] %v293
                %v295 = vld [vmem:[%s177 + $0x650] sm:$0xff]
                %296 = vst [vmem:[%s178 + $0x1d0] sm:$0xff] %v295
                %v297 = vld [vmem:[%s177 + $0x658] sm:$0xff]
                %298 = vst [vmem:[%s178 + $0x1d8] sm:$0xff] %v297
                %v299 = vld [vmem:[%s177 + $0x660] sm:$0xff]
                %300 = vst [vmem:[%s178 + $0x1e0] sm:$0xff] %v299
                %v301 = vld [vmem:[%s177 + $0x668] sm:$0xff]
                %302 = vst [vmem:[%s178 + $0x1e8] sm:$0xff] %v301
                %v303 = vld [vmem:[%s177 + $0x670] sm:$0xff]
                %304 = vst [vmem:[%s178 + $0x1f0] sm:$0xff] %v303
                %v305 = vld [vmem:[%s177 + $0x678] sm:$0xff]
                %306 = vst [vmem:[%s178 + $0x1f8] sm:$0xff] %v305
              $region49: #{decoder_block.7} parent=43 // loop_footer
                %s176 = sadd.s32 1, %s172
              $region50: #{decoder_block.7} parent=43 // loop_footer_branch
                %171 = sbr.rel target = $region46
              $region51: #{decoder_block.7} parent=43 // loop_exit
                _
            $region44: #{decoder_block.7} parent=35 // pred_fallthru
              _
          $region36: #{decoder_block.7} parent=31 // pred_fallthru
            _
          %447 = vnop
        $region32: #{decoder_block.7} parent=27 // pred_fallthru
          _
      $region28: #{decoder_block.7} parent=5 // pred_fallthru
        _
      %p448 = scmp.le.s32.totalorder 1, %s10
      %p449 = scmp.lt.s32.totalorder %s10, 5
      %p450 = pnand %p448, %p449
      %p451 = pneg %p450
      // Predicated region
      $region67: #{decoder_block.7} parent=5 // pred_check
        _
      $region68: #{decoder_block.7} parent=5 // pred_check_branch
        %453 = sbr.rel (%p450) target = $region70
      $region69: #{decoder_block.7} parent=5 // pred_region
        %s454 = ssub.s32 %s10, 1
        %s455 = sand.u32 %s23, 1
        %s456 = sand.u32 %s23, 1
        %s457 = smul.addr %s456, 512
        %s458 = scalar_lea.vmem [#allocation2], %s457
        // Predicated region
        $region71: #{decoder_block.7} parent=69 // pred_check
          %p459 = pneg %p36
        $region72: #{decoder_block.7} parent=69 // pred_check_branch
          %461 = sbr.rel (%p459) target = $region74
        $region73: #{decoder_block.7} parent=69 // pred_region
          _
        $region74: #{decoder_block.7} parent=69 // pred_fallthru
          _
        %s462 = sand.u32 %s23, 1
        %s463 = sand.u32 %s23, 1
        %s464 = smul.addr %s463, 512
        %s465 = scalar_lea.vmem [#allocation2], %s464
        %p466 = pneg %p36
        %p467 = pneg %p33
        %p468 = pneg %p57
        %p469 = pneg %p54
        %p470 = pneg %p78
        %p471 = pneg %p75
        %p472 = pneg %p99
        %p473 = pneg %p96
        %p474 = pneg %p125
        %p475 = pneg %p122
        %s476 = sand.u32 %s112, 1
        %s477 = sand.u32 %s112, 1
        %s478 = smul.addr %s477, 512
        %s479 = scalar_lea.vmem [#allocation3], %s478
        %s480 = smul.u32 8, %s15
        %s481 = smul.u32 8, %s15
        %v483 = vld [vmem:[%s458] sm:$0xff]
        %v484 = vld [vmem:[%s458 + $0x8] sm:$0xff]
        %v485 = vld [vmem:[%s458 + $0x10] sm:$0xff]
        %v486 = vld [vmem:[%s458 + $0x18] sm:$0xff]
        %v487 = vld [vmem:[%s458 + $0x20] sm:$0xff]
        %v488 = vld [vmem:[%s458 + $0x28] sm:$0xff]
        %v489 = vld [vmem:[%s458 + $0x30] sm:$0xff]
        %v490 = vld [vmem:[%s458 + $0x38] sm:$0xff]
        %v491 = vld [vmem:[%s458 + $0x40] sm:$0xff]
        %v492 = vld [vmem:[%s458 + $0x48] sm:$0xff]
        %v493 = vld [vmem:[%s458 + $0x50] sm:$0xff]
        %v494 = vld [vmem:[%s458 + $0x58] sm:$0xff]
        %v495 = vld [vmem:[%s458 + $0x60] sm:$0xff]
        %v496 = vld [vmem:[%s458 + $0x68] sm:$0xff]
        %v497 = vld [vmem:[%s458 + $0x70] sm:$0xff]
        %v498 = vld [vmem:[%s458 + $0x78] sm:$0xff]
        %v499 = vld [vmem:[%s458 + $0x80] sm:$0xff]
        %v500 = vld [vmem:[%s458 + $0x88] sm:$0xff]
        %v501 = vld [vmem:[%s458 + $0x90] sm:$0xff]
        %v502 = vld [vmem:[%s458 + $0x98] sm:$0xff]
        %v503 = vld [vmem:[%s458 + $0xa0] sm:$0xff]
        %v504 = vld [vmem:[%s458 + $0xa8] sm:$0xff]
        %v505 = vld [vmem:[%s458 + $0xb0] sm:$0xff]
        %v506 = vld [vmem:[%s458 + $0xb8] sm:$0xff]
        %v507 = vld [vmem:[%s458 + $0xc0] sm:$0xff]
        %v508 = vld [vmem:[%s458 + $0xc8] sm:$0xff]
        %v509 = vld [vmem:[%s458 + $0xd0] sm:$0xff]
        %v510 = vld [vmem:[%s458 + $0xd8] sm:$0xff]
        %v511 = vld [vmem:[%s458 + $0xe0] sm:$0xff]
        %v512 = vld [vmem:[%s458 + $0xe8] sm:$0xff]
        %v513 = vld [vmem:[%s458 + $0xf0] sm:$0xff]
        %v514 = vld [vmem:[%s458 + $0xf8] sm:$0xff]
        %v515 = vld [vmem:[%s458 + $0x100] sm:$0xff]
        %v516 = vld [vmem:[%s458 + $0x108] sm:$0xff]
        %v517 = vld [vmem:[%s458 + $0x110] sm:$0xff]
        %v518 = vld [vmem:[%s458 + $0x118] sm:$0xff]
        %v519 = vld [vmem:[%s458 + $0x120] sm:$0xff]
        %v520 = vld [vmem:[%s458 + $0x128] sm:$0xff]
        %v521 = vld [vmem:[%s458 + $0x130] sm:$0xff]
        %v522 = vld [vmem:[%s458 + $0x138] sm:$0xff]
        %v523 = vld [vmem:[%s458 + $0x140] sm:$0xff]
        %v524 = vld [vmem:[%s458 + $0x148] sm:$0xff]
        %v525 = vld [vmem:[%s458 + $0x150] sm:$0xff]
        %v526 = vld [vmem:[%s458 + $0x158] sm:$0xff]
        %v527 = vld [vmem:[%s458 + $0x160] sm:$0xff]
        %v528 = vld [vmem:[%s458 + $0x168] sm:$0xff]
        %v529 = vld [vmem:[%s458 + $0x170] sm:$0xff]
        %v530 = vld [vmem:[%s458 + $0x178] sm:$0xff]
        %v531 = vld [vmem:[%s458 + $0x180] sm:$0xff]
        %v532 = vld [vmem:[%s458 + $0x188] sm:$0xff]
        %v533 = vld [vmem:[%s458 + $0x190] sm:$0xff]
        %v534 = vld [vmem:[%s458 + $0x198] sm:$0xff]
        %v535 = vld [vmem:[%s458 + $0x1a0] sm:$0xff]
        %v536 = vld [vmem:[%s458 + $0x1a8] sm:$0xff]
        %v537 = vld [vmem:[%s458 + $0x1b0] sm:$0xff]
        %v538 = vld [vmem:[%s458 + $0x1b8] sm:$0xff]
        %v539 = vld [vmem:[%s458 + $0x1c0] sm:$0xff]
        %v540 = vld [vmem:[%s458 + $0x1c8] sm:$0xff]
        %v541 = vld [vmem:[%s458 + $0x1d0] sm:$0xff]
        %v542 = vld [vmem:[%s458 + $0x1d8] sm:$0xff]
        %v543 = vld [vmem:[%s458 + $0x1e0] sm:$0xff]
        %v544 = vld [vmem:[%s458 + $0x1e8] sm:$0xff]
        %v545 = vld [vmem:[%s458 + $0x1f0] sm:$0xff]
        %v546 = vld [vmem:[%s458 + $0x1f8] sm:$0xff]
        %v547 = vld [vmem:[%s1] sm:$0x1]
        %v548 = vlaneseq
        %v549 = vshrl.u32 %v548, 7
        %v550 = vsub.s32 0, %v549
        %v551 = vrot.slane %v547, %v550
        %v552 = vmul.f32 %v483, %v551
        %v553 = vmul.f32 %v484, %v551
        %v554 = vmul.f32 %v485, %v551
        %v555 = vmul.f32 %v486, %v551
        %v556 = vmul.f32 %v487, %v551
        %v557 = vmul.f32 %v488, %v551
        %v558 = vmul.f32 %v489, %v551
        %v559 = vmul.f32 %v490, %v551
        %v560 = vmul.f32 %v491, %v551
        %v561 = vmul.f32 %v492, %v551
        %v562 = vmul.f32 %v493, %v551
        %v563 = vmul.f32 %v494, %v551
        %v564 = vmul.f32 %v495, %v551
        %v565 = vmul.f32 %v496, %v551
        %v566 = vmul.f32 %v497, %v551
        %v567 = vmul.f32 %v498, %v551
        %v568 = vmul.f32 %v499, %v551
        %v569 = vmul.f32 %v500, %v551
        %v570 = vmul.f32 %v501, %v551
        %v571 = vmul.f32 %v502, %v551
        %v572 = vmul.f32 %v503, %v551
        %v573 = vmul.f32 %v504, %v551
        %v574 = vmul.f32 %v505, %v551
        %v575 = vmul.f32 %v506, %v551
        %v576 = vmul.f32 %v507, %v551
        %v577 = vmul.f32 %v508, %v551
        %v578 = vmul.f32 %v509, %v551
        %v579 = vmul.f32 %v510, %v551
        %v580 = vmul.f32 %v511, %v551
        %v581 = vmul.f32 %v512, %v551
        %v582 = vmul.f32 %v513, %v551
        %v583 = vmul.f32 %v514, %v551
        %v584 = vmul.f32 %v515, %v551
        %v585 = vmul.f32 %v516, %v551
        %v586 = vmul.f32 %v517, %v551
        %v587 = vmul.f32 %v518, %v551
        %v588 = vmul.f32 %v519, %v551
        %v589 = vmul.f32 %v520, %v551
        %v590 = vmul.f32 %v521, %v551
        %v591 = vmul.f32 %v522, %v551
        %v592 = vmul.f32 %v523, %v551
        %v593 = vmul.f32 %v524, %v551
        %v594 = vmul.f32 %v525, %v551
        %v595 = vmul.f32 %v526, %v551
        %v596 = vmul.f32 %v527, %v551
        %v597 = vmul.f32 %v528, %v551
        %v598 = vmul.f32 %v529, %v551
        %v599 = vmul.f32 %v530, %v551
        %v600 = vmul.f32 %v531, %v551
        %v601 = vmul.f32 %v532, %v551
        %v602 = vmul.f32 %v533, %v551
        %v603 = vmul.f32 %v534, %v551
        %v604 = vmul.f32 %v535, %v551
        %v605 = vmul.f32 %v536, %v551
        %v606 = vmul.f32 %v537, %v551
        %v607 = vmul.f32 %v538, %v551
        %v608 = vmul.f32 %v539, %v551
        %v609 = vmul.f32 %v540, %v551
        %v610 = vmul.f32 %v541, %v551
        %v611 = vmul.f32 %v542, %v551
        %v612 = vmul.f32 %v543, %v551
        %v613 = vmul.f32 %v544, %v551
        %v614 = vmul.f32 %v545, %v551
        %v615 = vmul.f32 %v546, %v551
        %v616 = vld [vmem:[%s1 + $0x1] sm:$0x1]
        %v617 = vlaneseq
        %v618 = vshrl.u32 %v617, 7
        %v619 = vsub.s32 0, %v618
        %v620 = vrot.slane %v616, %v619
        %v621 = vadd.f32 %v552, %v620
        %v622 = vadd.f32 %v553, %v620
        %v623 = vadd.f32 %v554, %v620
        %v624 = vadd.f32 %v555, %v620
        %v625 = vadd.f32 %v556, %v620
        %v626 = vadd.f32 %v557, %v620
        %v627 = vadd.f32 %v558, %v620
        %v628 = vadd.f32 %v559, %v620
        %v629 = vadd.f32 %v560, %v620
        %v630 = vadd.f32 %v561, %v620
        %v631 = vadd.f32 %v562, %v620
        %v632 = vadd.f32 %v563, %v620
        %v633 = vadd.f32 %v564, %v620
        %v634 = vadd.f32 %v565, %v620
        %v635 = vadd.f32 %v566, %v620
        %v636 = vadd.f32 %v567, %v620
        %v637 = vadd.f32 %v568, %v620
        %v638 = vadd.f32 %v569, %v620
        %v639 = vadd.f32 %v570, %v620
        %v640 = vadd.f32 %v571, %v620
        %v641 = vadd.f32 %v572, %v620
        %v642 = vadd.f32 %v573, %v620
        %v643 = vadd.f32 %v574, %v620
        %v644 = vadd.f32 %v575, %v620
        %v645 = vadd.f32 %v576, %v620
        %v646 = vadd.f32 %v577, %v620
        %v647 = vadd.f32 %v578, %v620
        %v648 = vadd.f32 %v579, %v620
        %v649 = vadd.f32 %v580, %v620
        %v650 = vadd.f32 %v581, %v620
        %v651 = vadd.f32 %v582, %v620
        %v652 = vadd.f32 %v583, %v620
        %v653 = vadd.f32 %v584, %v620
        %v654 = vadd.f32 %v585, %v620
        %v655 = vadd.f32 %v586, %v620
        %v656 = vadd.f32 %v587, %v620
        %v657 = vadd.f32 %v588, %v620
        %v658 = vadd.f32 %v589, %v620
        %v659 = vadd.f32 %v590, %v620
        %v660 = vadd.f32 %v591, %v620
        %v661 = vadd.f32 %v592, %v620
        %v662 = vadd.f32 %v593, %v620
        %v663 = vadd.f32 %v594, %v620
        %v664 = vadd.f32 %v595, %v620
        %v665 = vadd.f32 %v596, %v620
        %v666 = vadd.f32 %v597, %v620
        %v667 = vadd.f32 %v598, %v620
        %v668 = vadd.f32 %v599, %v620
        %v669 = vadd.f32 %v600, %v620
        %v670 = vadd.f32 %v601, %v620
        %v671 = vadd.f32 %v602, %v620
        %v672 = vadd.f32 %v603, %v620
        %v673 = vadd.f32 %v604, %v620
        %v674 = vadd.f32 %v605, %v620
        %v675 = vadd.f32 %v606, %v620
        %v676 = vadd.f32 %v607, %v620
        %v677 = vadd.f32 %v608, %v620
        %v678 = vadd.f32 %v609, %v620
        %v679 = vadd.f32 %v610, %v620
        %v680 = vadd.f32 %v611, %v620
        %v681 = vadd.f32 %v612, %v620
        %v682 = vadd.f32 %v613, %v620
        %v683 = vadd.f32 %v614, %v620
        %v684 = vadd.f32 %v615, %v620
        %v685 = vmax.f32 %v621, 0.0
        %v686 = vmax.f32 %v622, 0.0
        %v687 = vmax.f32 %v623, 0.0
        %v688 = vmax.f32 %v624, 0.0
        %v689 = vmax.f32 %v625, 0.0
        %v690 = vmax.f32 %v626, 0.0
        %v691 = vmax.f32 %v627, 0.0
        %v692 = vmax.f32 %v628, 0.0
        %v693 = vmax.f32 %v629, 0.0
        %v694 = vmax.f32 %v630, 0.0
        %v695 = vmax.f32 %v631, 0.0
        %v696 = vmax.f32 %v632, 0.0
        %v697 = vmax.f32 %v633, 0.0
        %v698 = vmax.f32 %v634, 0.0
        %v699 = vmax.f32 %v635, 0.0
        %v700 = vmax.f32 %v636, 0.0
        %v701 = vmax.f32 %v637, 0.0
        %v702 = vmax.f32 %v638, 0.0
        %v703 = vmax.f32 %v639, 0.0
        %v704 = vmax.f32 %v640, 0.0
        %v705 = vmax.f32 %v641, 0.0
        %v706 = vmax.f32 %v642, 0.0
        %v707 = vmax.f32 %v643, 0.0
        %v708 = vmax.f32 %v644, 0.0
        %v709 = vmax.f32 %v645, 0.0
        %v710 = vmax.f32 %v646, 0.0
        %v711 = vmax.f32 %v647, 0.0
        %v712 = vmax.f32 %v648, 0.0
        %v713 = vmax.f32 %v649, 0.0
        %v714 = vmax.f32 %v650, 0.0
        %v715 = vmax.f32 %v651, 0.0
        %v716 = vmax.f32 %v652, 0.0
        %v717 = vmax.f32 %v653, 0.0
        %v718 = vmax.f32 %v654, 0.0
        %v719 = vmax.f32 %v655, 0.0
        %v720 = vmax.f32 %v656, 0.0
        %v721 = vmax.f32 %v657, 0.0
        %v722 = vmax.f32 %v658, 0.0
        %v723 = vmax.f32 %v659, 0.0
        %v724 = vmax.f32 %v660, 0.0
        %v725 = vmax.f32 %v661, 0.0
        %v726 = vmax.f32 %v662, 0.0
        %v727 = vmax.f32 %v663, 0.0
        %v728 = vmax.f32 %v664, 0.0
        %v729 = vmax.f32 %v665, 0.0
        %v730 = vmax.f32 %v666, 0.0
        %v731 = vmax.f32 %v667, 0.0
        %v732 = vmax.f32 %v668, 0.0
        %v733 = vmax.f32 %v669, 0.0
        %v734 = vmax.f32 %v670, 0.0
        %v735 = vmax.f32 %v671, 0.0
        %v736 = vmax.f32 %v672, 0.0
        %v737 = vmax.f32 %v673, 0.0
        %v738 = vmax.f32 %v674, 0.0
        %v739 = vmax.f32 %v675, 0.0
        %v740 = vmax.f32 %v676, 0.0
        %v741 = vmax.f32 %v677, 0.0
        %v742 = vmax.f32 %v678, 0.0
        %v743 = vmax.f32 %v679, 0.0
        %v744 = vmax.f32 %v680, 0.0
        %v745 = vmax.f32 %v681, 0.0
        %v746 = vmax.f32 %v682, 0.0
        %v747 = vmax.f32 %v683, 0.0
        %v748 = vmax.f32 %v684, 0.0
        %v749 = vpack.c.bf16 %v686, %v685
        %v750 = vpack.c.bf16 %v688, %v687
        %v751 = vpack.c.bf16 %v690, %v689
        %v752 = vpack.c.bf16 %v692, %v691
        %v753 = vpack.c.bf16 %v694, %v693
        %v754 = vpack.c.bf16 %v696, %v695
        %v755 = vpack.c.bf16 %v698, %v697
        %v756 = vpack.c.bf16 %v700, %v699
        %v757 = vpack.c.bf16 %v702, %v701
        %v758 = vpack.c.bf16 %v704, %v703
        %v759 = vpack.c.bf16 %v706, %v705
        %v760 = vpack.c.bf16 %v708, %v707
        %v761 = vpack.c.bf16 %v710, %v709
        %v762 = vpack.c.bf16 %v712, %v711
        %v763 = vpack.c.bf16 %v714, %v713
        %v764 = vpack.c.bf16 %v716, %v715
        %v765 = vpack.c.bf16 %v718, %v717
        %v766 = vpack.c.bf16 %v720, %v719
        %v767 = vpack.c.bf16 %v722, %v721
        %v768 = vpack.c.bf16 %v724, %v723
        %v769 = vpack.c.bf16 %v726, %v725
        %v770 = vpack.c.bf16 %v728, %v727
        %v771 = vpack.c.bf16 %v730, %v729
        %v772 = vpack.c.bf16 %v732, %v731
        %v773 = vpack.c.bf16 %v734, %v733
        %v774 = vpack.c.bf16 %v736, %v735
        %v775 = vpack.c.bf16 %v738, %v737
        %v776 = vpack.c.bf16 %v740, %v739
        %v777 = vpack.c.bf16 %v742, %v741
        %v778 = vpack.c.bf16 %v744, %v743
        %v779 = vpack.c.bf16 %v746, %v745
        %v780 = vpack.c.bf16 %v748, %v747
        %v781 = vld [vmem:[%s2] sm:$0x3]
        %vm782 = vcmask 31744
        %v784 = vsel %vm782, %v749, 0
        %v787 = vsel %vm782, %v750, 0
        %v790 = vsel %vm782, %v751, 0
        %v793 = vsel %vm782, %v752, 0
        %v796 = vsel %vm782, %v753, 0
        %v799 = vsel %vm782, %v754, 0
        %v802 = vsel %vm782, %v755, 0
        %v805 = vsel %vm782, %v756, 0
        %v808 = vsel %vm782, %v757, 0
        %v811 = vsel %vm782, %v758, 0
        %v814 = vsel %vm782, %v759, 0
        %v817 = vsel %vm782, %v760, 0
        %v820 = vsel %vm782, %v761, 0
        %v823 = vsel %vm782, %v762, 0
        %v826 = vsel %vm782, %v763, 0
        %v829 = vsel %vm782, %v764, 0
        %v832 = vsel %vm782, %v765, 0
        %v835 = vsel %vm782, %v766, 0
        %v838 = vsel %vm782, %v767, 0
        %v841 = vsel %vm782, %v768, 0
        %v844 = vsel %vm782, %v769, 0
        %v847 = vsel %vm782, %v770, 0
        %v850 = vsel %vm782, %v771, 0
        %v853 = vsel %vm782, %v772, 0
        %v856 = vsel %vm782, %v773, 0
        %v859 = vsel %vm782, %v774, 0
        %v862 = vsel %vm782, %v775, 0
        %v865 = vsel %vm782, %v776, 0
        %v868 = vsel %vm782, %v777, 0
        %v871 = vsel %vm782, %v778, 0
        %v874 = vsel %vm782, %v779, 0
        %v877 = vsel %vm782, %v780, 0
        %vm879 = vcmask 1041408
        %v881 = vsel %vm879, %v781, 0
        %883 = vmatprep.subr.bf16.mxu0 0
        %884 = vmatpush1.bf16.msra.mxu0 %v881
        %885 = vmatprep.subr.bf16.mxu0 0
        %886 = vmatpush1.bf16.msra.mxu0 0
        %887 = vmatprep.subr.bf16.mxu0 0
        %888 = vmatpush1.bf16.msra.mxu0 0
        %889 = vmatprep.subr.bf16.mxu0 0
        %890 = vmatpush1.bf16.msra.mxu0 0
        %891 = vmatprep.subr.bf16.mxu0 0
        %892 = vmatpush1.bf16.msra.mxu0 0
        %893 = vmatprep.subr.bf16.mxu0 0
        %894 = vmatpush1.bf16.msra.mxu0 0
        %895 = vmatprep.subr.bf16.mxu0 0
        %896 = vmatpush1.bf16.msra.mxu0 0
        %897 = vmatprep.subr.bf16.mxu0 0
        %898 = vmatpush1.bf16.msra.mxu0 0
        %899 = vmatprep.subr.bf16.mxu0 0
        %900 = vmatpush1.bf16.msra.mxu0 0
        %901 = vmatprep.subr.bf16.mxu0 0
        %902 = vmatpush1.bf16.msra.mxu0 0
        %903 = vmatprep.subr.bf16.mxu0 0
        %904 = vmatpush1.bf16.msra.mxu0 0
        %905 = vmatprep.subr.bf16.mxu0 0
        %906 = vmatpush1.bf16.msra.mxu0 0
        %907 = vmatprep.subr.bf16.mxu0 0
        %908 = vmatpush1.bf16.msra.mxu0 0
        %909 = vmatprep.subr.bf16.mxu0 0
        %910 = vmatpush1.bf16.msra.mxu0 0
        %911 = vmatprep.subr.bf16.mxu0 0
        %912 = vmatpush1.bf16.msra.mxu0 0
        %913 = vmatprep.subr.bf16.mxu0 0
        %914 = vmatpush1.bf16.msra.mxu0 0
        %915 = vmatprep.mubr.bf16.mxu0 0
        %916 = vmatmul.mubr.bf16.gmra.mrb[0].mxu0 %v784
        %v917 = vpop.f32.mrb[0].mxu0
        %v918 = vadd.f32 0.0, %v917
        %v919 = vpop.f32.mrb[0].mxu0
        %v920 = vpop.f32.mrb[0].mxu0
        %v921 = vadd.f32 0.0, %v920
        %v922 = vpop.f32.mrb[0].mxu0
        %923 = vmatprep.mubr.bf16.mxu0 0
        %924 = vmatmul.mubr.bf16.gmra.mrb[0].mxu0 %v787
        %v925 = vpop.f32.mrb[0].mxu0
        %v926 = vadd.f32 0.0, %v925
        %v927 = vpop.f32.mrb[0].mxu0
        %v928 = vpop.f32.mrb[0].mxu0
        %v929 = vadd.f32 0.0, %v928
        %v930 = vpop.f32.mrb[0].mxu0
        %931 = vmatprep.mubr.bf16.mxu0 0
        %932 = vmatmul.mubr.bf16.gmra.mrb[0].mxu0 %v790
        %v933 = vpop.f32.mrb[0].mxu0
        %v934 = vadd.f32 0.0, %v933
        %v935 = vpop.f32.mrb[0].mxu0
        %v936 = vpop.f32.mrb[0].mxu0
        %v937 = vadd.f32 0.0, %v936
        %v938 = vpop.f32.mrb[0].mxu0
        %939 = vmatprep.mubr.bf16.mxu0 0
        %940 = vmatmul.mubr.bf16.gmra.mrb[0].mxu0 %v793
        %v941 = vpop.f32.mrb[0].mxu0
        %v942 = vadd.f32 0.0, %v941
        %v943 = vpop.f32.mrb[0].mxu0
        %v944 = vpop.f32.mrb[0].mxu0
        %v945 = vadd.f32 0.0, %v944
        %v946 = vpop.f32.mrb[0].mxu0
        %947 = vmatprep.mubr.bf16.mxu0 0
        %948 = vmatmul.mubr.bf16.gmra.mrb[0].mxu0 %v796
        %v949 = vpop.f32.mrb[0].mxu0
        %v950 = vadd.f32 0.0, %v949
        %v951 = vpop.f32.mrb[0].mxu0
        %v952 = vpop.f32.mrb[0].mxu0
        %v953 = vadd.f32 0.0, %v952
        %v954 = vpop.f32.mrb[0].mxu0
        %955 = vmatprep.mubr.bf16.mxu0 0
        %956 = vmatmul.mubr.bf16.gmra.mrb[0].mxu0 %v799
        %v957 = vpop.f32.mrb[0].mxu0
        %v958 = vadd.f32 0.0, %v957
        %v959 = vpop.f32.mrb[0].mxu0
        %v960 = vpop.f32.mrb[0].mxu0
        %v961 = vadd.f32 0.0, %v960
        %v962 = vpop.f32.mrb[0].mxu0
        %963 = vmatprep.mubr.bf16.mxu0 0
        %964 = vmatmul.mubr.bf16.gmra.mrb[0].mxu0 %v802
        %v965 = vpop.f32.mrb[0].mxu0
        %v966 = vadd.f32 0.0, %v965
        %v967 = vpop.f32.mrb[0].mxu0
        %v968 = vpop.f32.mrb[0].mxu0
        %v969 = vadd.f32 0.0, %v968
        %v970 = vpop.f32.mrb[0].mxu0
        %971 = vmatprep.mubr.bf16.mxu0 0
        %972 = vmatmul.mubr.bf16.gmra.mrb[0].mxu0 %v805
        %v973 = vpop.f32.mrb[0].mxu0
        %v974 = vadd.f32 0.0, %v973
        %v975 = vpop.f32.mrb[0].mxu0
        %v976 = vpop.f32.mrb[0].mxu0
        %v977 = vadd.f32 0.0, %v976
        %v978 = vpop.f32.mrb[0].mxu0
        %979 = vmatprep.mubr.bf16.mxu0 0
        %980 = vmatmul.mubr.bf16.gmra.mrb[0].mxu0 %v808
        %v981 = vpop.f32.mrb[0].mxu0
        %v982 = vadd.f32 0.0, %v981
        %v983 = vpop.f32.mrb[0].mxu0
        %v984 = vpop.f32.mrb[0].mxu0
        %v985 = vadd.f32 0.0, %v984
        %v986 = vpop.f32.mrb[0].mxu0
        %987 = vmatprep.mubr.bf16.mxu0 0
        %988 = vmatmul.mubr.bf16.gmra.mrb[0].mxu0 %v811
        %v989 = vpop.f32.mrb[0].mxu0
        %v990 = vadd.f32 0.0, %v989
        %v991 = vpop.f32.mrb[0].mxu0
        %v992 = vpop.f32.mrb[0].mxu0
        %v993 = vadd.f32 0.0, %v992
        %v994 = vpop.f32.mrb[0].mxu0
        %995 = vmatprep.mubr.bf16.mxu0 0
        %996 = vmatmul.mubr.bf16.gmra.mrb[0].mxu0 %v814
        %v997 = vpop.f32.mrb[0].mxu0
        %v998 = vadd.f32 0.0, %v997
        %v999 = vpop.f32.mrb[0].mxu0
        %v1000 = vpop.f32.mrb[0].mxu0
        %v1001 = vadd.f32 0.0, %v1000
        %v1002 = vpop.f32.mrb[0].mxu0
        %1003 = vmatprep.mubr.bf16.mxu0 0
        %1004 = vmatmul.mubr.bf16.gmra.mrb[0].mxu0 %v817
        %v1005 = vpop.f32.mrb[0].mxu0
        %v1006 = vadd.f32 0.0, %v1005
        %v1007 = vpop.f32.mrb[0].mxu0
        %v1008 = vpop.f32.mrb[0].mxu0
        %v1009 = vadd.f32 0.0, %v1008
        %v1010 = vpop.f32.mrb[0].mxu0
        %1011 = vmatprep.mubr.bf16.mxu0 0
        %1012 = vmatmul.mubr.bf16.gmra.mrb[0].mxu0 %v820
        %v1013 = vpop.f32.mrb[0].mxu0
        %v1014 = vadd.f32 0.0, %v1013
        %v1015 = vpop.f32.mrb[0].mxu0
        %v1016 = vpop.f32.mrb[0].mxu0
        %v1017 = vadd.f32 0.0, %v1016
        %v1018 = vpop.f32.mrb[0].mxu0
        %1019 = vmatprep.mubr.bf16.mxu0 0
        %1020 = vmatmul.mubr.bf16.gmra.mrb[0].mxu0 %v823
        %v1021 = vpop.f32.mrb[0].mxu0
        %v1022 = vadd.f32 0.0, %v1021
        %v1023 = vpop.f32.mrb[0].mxu0
        %v1024 = vpop.f32.mrb[0].mxu0
        %v1025 = vadd.f32 0.0, %v1024
        %v1026 = vpop.f32.mrb[0].mxu0
        %1027 = vmatprep.mubr.bf16.mxu0 0
        %1028 = vmatmul.mubr.bf16.gmra.mrb[0].mxu0 %v826
        %v1029 = vpop.f32.mrb[0].mxu0
        %v1030 = vadd.f32 0.0, %v1029
        %v1031 = vpop.f32.mrb[0].mxu0
        %v1032 = vpop.f32.mrb[0].mxu0
        %v1033 = vadd.f32 0.0, %v1032
        %v1034 = vpop.f32.mrb[0].mxu0
        %1035 = vmatprep.mubr.bf16.mxu0 0
        %1036 = vmatmul.mubr.bf16.gmra.mrb[0].mxu0 %v829
        %v1037 = vpop.f32.mrb[0].mxu0
        %v1038 = vadd.f32 0.0, %v1037
        %v1039 = vpop.f32.mrb[0].mxu0
        %v1040 = vpop.f32.mrb[0].mxu0
        %v1041 = vadd.f32 0.0, %v1040
        %v1042 = vpop.f32.mrb[0].mxu0
        %1043 = vmatprep.mubr.bf16.mxu0 0
        %1044 = vmatmul.mubr.bf16.gmra.mrb[0].mxu0 %v832
        %v1045 = vpop.f32.mrb[0].mxu0
        %v1046 = vadd.f32 0.0, %v1045
        %v1047 = vpop.f32.mrb[0].mxu0
        %v1048 = vpop.f32.mrb[0].mxu0
        %v1049 = vadd.f32 0.0, %v1048
        %v1050 = vpop.f32.mrb[0].mxu0
        %1051 = vmatprep.mubr.bf16.mxu0 0
        %1052 = vmatmul.mubr.bf16.gmra.mrb[0].mxu0 %v835
        %v1053 = vpop.f32.mrb[0].mxu0
        %v1054 = vadd.f32 0.0, %v1053
        %v1055 = vpop.f32.mrb[0].mxu0
        %v1056 = vpop.f32.mrb[0].mxu0
        %v1057 = vadd.f32 0.0, %v1056
        %v1058 = vpop.f32.mrb[0].mxu0
        %1059 = vmatprep.mubr.bf16.mxu0 0
        %1060 = vmatmul.mubr.bf16.gmra.mrb[0].mxu0 %v838
        %v1061 = vpop.f32.mrb[0].mxu0
        %v1062 = vadd.f32 0.0, %v1061
        %v1063 = vpop.f32.mrb[0].mxu0
        %v1064 = vpop.f32.mrb[0].mxu0
        %v1065 = vadd.f32 0.0, %v1064
        %v1066 = vpop.f32.mrb[0].mxu0
        %1067 = vmatprep.mubr.bf16.mxu0 0
        %1068 = vmatmul.mubr.bf16.gmra.mrb[0].mxu0 %v841
        %v1069 = vpop.f32.mrb[0].mxu0
        %v1070 = vadd.f32 0.0, %v1069
        %v1071 = vpop.f32.mrb[0].mxu0
        %v1072 = vpop.f32.mrb[0].mxu0
        %v1073 = vadd.f32 0.0, %v1072
        %v1074 = vpop.f32.mrb[0].mxu0
        %1075 = vmatprep.mubr.bf16.mxu0 0
        %1076 = vmatmul.mubr.bf16.gmra.mrb[0].mxu0 %v844
        %v1077 = vpop.f32.mrb[0].mxu0
        %v1078 = vadd.f32 0.0, %v1077
        %v1079 = vpop.f32.mrb[0].mxu0
        %v1080 = vpop.f32.mrb[0].mxu0
        %v1081 = vadd.f32 0.0, %v1080
        %v1082 = vpop.f32.mrb[0].mxu0
        %1083 = vmatprep.mubr.bf16.mxu0 0
        %1084 = vmatmul.mubr.bf16.gmra.mrb[0].mxu0 %v847
        %v1085 = vpop.f32.mrb[0].mxu0
        %v1086 = vadd.f32 0.0, %v1085
        %v1087 = vpop.f32.mrb[0].mxu0
        %v1088 = vpop.f32.mrb[0].mxu0
        %v1089 = vadd.f32 0.0, %v1088
        %v1090 = vpop.f32.mrb[0].mxu0
        %1091 = vmatprep.mubr.bf16.mxu0 0
        %1092 = vmatmul.mubr.bf16.gmra.mrb[0].mxu0 %v850
        %v1093 = vpop.f32.mrb[0].mxu0
        %v1094 = vadd.f32 0.0, %v1093
        %v1095 = vpop.f32.mrb[0].mxu0
        %v1096 = vpop.f32.mrb[0].mxu0
        %v1097 = vadd.f32 0.0, %v1096
        %v1098 = vpop.f32.mrb[0].mxu0
        %1099 = vmatprep.mubr.bf16.mxu0 0
        %1100 = vmatmul.mubr.bf16.gmra.mrb[0].mxu0 %v853
        %v1101 = vpop.f32.mrb[0].mxu0
        %v1102 = vadd.f32 0.0, %v1101
        %v1103 = vpop.f32.mrb[0].mxu0
        %v1104 = vpop.f32.mrb[0].mxu0
        %v1105 = vadd.f32 0.0, %v1104
        %v1106 = vpop.f32.mrb[0].mxu0
        %1107 = vmatprep.mubr.bf16.mxu0 0
        %1108 = vmatmul.mubr.bf16.gmra.mrb[0].mxu0 %v856
        %v1109 = vpop.f32.mrb[0].mxu0
        %v1110 = vadd.f32 0.0, %v1109
        %v1111 = vpop.f32.mrb[0].mxu0
        %v1112 = vpop.f32.mrb[0].mxu0
        %v1113 = vadd.f32 0.0, %v1112
        %v1114 = vpop.f32.mrb[0].mxu0
        %1115 = vmatprep.mubr.bf16.mxu0 0
        %1116 = vmatmul.mubr.bf16.gmra.mrb[0].mxu0 %v859
        %v1117 = vpop.f32.mrb[0].mxu0
        %v1118 = vadd.f32 0.0, %v1117
        %v1119 = vpop.f32.mrb[0].mxu0
        %v1120 = vpop.f32.mrb[0].mxu0
        %v1121 = vadd.f32 0.0, %v1120
        %v1122 = vpop.f32.mrb[0].mxu0
        %1123 = vmatprep.mubr.bf16.mxu0 0
        %1124 = vmatmul.mubr.bf16.gmra.mrb[0].mxu0 %v862
        %v1125 = vpop.f32.mrb[0].mxu0
        %v1126 = vadd.f32 0.0, %v1125
        %v1127 = vpop.f32.mrb[0].mxu0
        %v1128 = vpop.f32.mrb[0].mxu0
        %v1129 = vadd.f32 0.0, %v1128
        %v1130 = vpop.f32.mrb[0].mxu0
        %1131 = vmatprep.mubr.bf16.mxu0 0
        %1132 = vmatmul.mubr.bf16.gmra.mrb[0].mxu0 %v865
        %v1133 = vpop.f32.mrb[0].mxu0
        %v1134 = vadd.f32 0.0, %v1133
        %v1135 = vpop.f32.mrb[0].mxu0
        %v1136 = vpop.f32.mrb[0].mxu0
        %v1137 = vadd.f32 0.0, %v1136
        %v1138 = vpop.f32.mrb[0].mxu0
        %1139 = vmatprep.mubr.bf16.mxu0 0
        %1140 = vmatmul.mubr.bf16.gmra.mrb[0].mxu0 %v868
        %v1141 = vpop.f32.mrb[0].mxu0
        %v1142 = vadd.f32 0.0, %v1141
        %v1143 = vpop.f32.mrb[0].mxu0
        %v1144 = vpop.f32.mrb[0].mxu0
        %v1145 = vadd.f32 0.0, %v1144
        %v1146 = vpop.f32.mrb[0].mxu0
        %1147 = vmatprep.mubr.bf16.mxu0 0
        %1148 = vmatmul.mubr.bf16.gmra.mrb[0].mxu0 %v871
        %v1149 = vpop.f32.mrb[0].mxu0
        %v1150 = vadd.f32 0.0, %v1149
        %v1151 = vpop.f32.mrb[0].mxu0
        %v1152 = vpop.f32.mrb[0].mxu0
        %v1153 = vadd.f32 0.0, %v1152
        %v1154 = vpop.f32.mrb[0].mxu0
        %1155 = vmatprep.mubr.bf16.mxu0 0
        %1156 = vmatmul.mubr.bf16.gmra.mrb[0].mxu0 %v874
        %v1157 = vpop.f32.mrb[0].mxu0
        %v1158 = vadd.f32 0.0, %v1157
        %v1159 = vpop.f32.mrb[0].mxu0
        %v1160 = vpop.f32.mrb[0].mxu0
        %v1161 = vadd.f32 0.0, %v1160
        %v1162 = vpop.f32.mrb[0].mxu0
        %1163 = vmatprep.mubr.bf16.mxu0 0
        %1164 = vmatmul.mubr.bf16.gmra.mrb[0].mxu0 %v877
        %v1165 = vpop.f32.mrb[0].mxu0
        %v1166 = vadd.f32 0.0, %v1165
        %v1167 = vpop.f32.mrb[0].mxu0
        %v1168 = vpop.f32.mrb[0].mxu0
        %v1169 = vadd.f32 0.0, %v1168
        %v1170 = vpop.f32.mrb[0].mxu0
        %1171 = vdwg.mxu0
        %v1172 = vld [vmem:[%s3] sm:$0x1]
        %v1173 = vlaneseq
        %v1174 = vshrl.u32 %v1173, 7
        %v1175 = vsub.s32 0, %v1174
        %v1176 = vrot.slane %v1172, %v1175
        %v1177 = vmul.f32 %v918, %v1176
        %v1178 = vmul.f32 %v921, %v1176
        %v1179 = vmul.f32 %v926, %v1176
        %v1180 = vmul.f32 %v929, %v1176
        %v1181 = vmul.f32 %v934, %v1176
        %v1182 = vmul.f32 %v937, %v1176
        %v1183 = vmul.f32 %v942, %v1176
        %v1184 = vmul.f32 %v945, %v1176
        %v1185 = vmul.f32 %v950, %v1176
        %v1186 = vmul.f32 %v953, %v1176
        %v1187 = vmul.f32 %v958, %v1176
        %v1188 = vmul.f32 %v961, %v1176
        %v1189 = vmul.f32 %v966, %v1176
        %v1190 = vmul.f32 %v969, %v1176
        %v1191 = vmul.f32 %v974, %v1176
        %v1192 = vmul.f32 %v977, %v1176
        %v1193 = vmul.f32 %v982, %v1176
        %v1194 = vmul.f32 %v985, %v1176
        %v1195 = vmul.f32 %v990, %v1176
        %v1196 = vmul.f32 %v993, %v1176
        %v1197 = vmul.f32 %v998, %v1176
        %v1198 = vmul.f32 %v1001, %v1176
        %v1199 = vmul.f32 %v1006, %v1176
        %v1200 = vmul.f32 %v1009, %v1176
        %v1201 = vmul.f32 %v1014, %v1176
        %v1202 = vmul.f32 %v1017, %v1176
        %v1203 = vmul.f32 %v1022, %v1176
        %v1204 = vmul.f32 %v1025, %v1176
        %v1205 = vmul.f32 %v1030, %v1176
        %v1206 = vmul.f32 %v1033, %v1176
        %v1207 = vmul.f32 %v1038, %v1176
        %v1208 = vmul.f32 %v1041, %v1176
        %v1209 = vmul.f32 %v1046, %v1176
        %v1210 = vmul.f32 %v1049, %v1176
        %v1211 = vmul.f32 %v1054, %v1176
        %v1212 = vmul.f32 %v1057, %v1176
        %v1213 = vmul.f32 %v1062, %v1176
        %v1214 = vmul.f32 %v1065, %v1176
        %v1215 = vmul.f32 %v1070, %v1176
        %v1216 = vmul.f32 %v1073, %v1176
        %v1217 = vmul.f32 %v1078, %v1176
        %v1218 = vmul.f32 %v1081, %v1176
        %v1219 = vmul.f32 %v1086, %v1176
        %v1220 = vmul.f32 %v1089, %v1176
        %v1221 = vmul.f32 %v1094, %v1176
        %v1222 = vmul.f32 %v1097, %v1176
        %v1223 = vmul.f32 %v1102, %v1176
        %v1224 = vmul.f32 %v1105, %v1176
        %v1225 = vmul.f32 %v1110, %v1176
        %v1226 = vmul.f32 %v1113, %v1176
        %v1227 = vmul.f32 %v1118, %v1176
        %v1228 = vmul.f32 %v1121, %v1176
        %v1229 = vmul.f32 %v1126, %v1176
        %v1230 = vmul.f32 %v1129, %v1176
        %v1231 = vmul.f32 %v1134, %v1176
        %v1232 = vmul.f32 %v1137, %v1176
        %v1233 = vmul.f32 %v1142, %v1176
        %v1234 = vmul.f32 %v1145, %v1176
        %v1235 = vmul.f32 %v1150, %v1176
        %v1236 = vmul.f32 %v1153, %v1176
        %v1237 = vmul.f32 %v1158, %v1176
        %v1238 = vmul.f32 %v1161, %v1176
        %v1239 = vmul.f32 %v1166, %v1176
        %v1240 = vmul.f32 %v1169, %v1176
        %v1241 = vld [vmem:[%s3 + $0x1] sm:$0x1]
        %v1242 = vlaneseq
        %v1243 = vshrl.u32 %v1242, 7
        %v1244 = vsub.s32 0, %v1243
        %v1245 = vrot.slane %v1241, %v1244
        %v1246 = vadd.f32 %v1177, %v1245
        %v1247 = vadd.f32 %v1178, %v1245
        %v1248 = vadd.f32 %v1179, %v1245
        %v1249 = vadd.f32 %v1180, %v1245
        %v1250 = vadd.f32 %v1181, %v1245
        %v1251 = vadd.f32 %v1182, %v1245
        %v1252 = vadd.f32 %v1183, %v1245
        %v1253 = vadd.f32 %v1184, %v1245
        %v1254 = vadd.f32 %v1185, %v1245
        %v1255 = vadd.f32 %v1186, %v1245
        %v1256 = vadd.f32 %v1187, %v1245
        %v1257 = vadd.f32 %v1188, %v1245
        %v1258 = vadd.f32 %v1189, %v1245
        %v1259 = vadd.f32 %v1190, %v1245
        %v1260 = vadd.f32 %v1191, %v1245
        %v1261 = vadd.f32 %v1192, %v1245
        %v1262 = vadd.f32 %v1193, %v1245
        %v1263 = vadd.f32 %v1194, %v1245
        %v1264 = vadd.f32 %v1195, %v1245
        %v1265 = vadd.f32 %v1196, %v1245
        %v1266 = vadd.f32 %v1197, %v1245
        %v1267 = vadd.f32 %v1198, %v1245
        %v1268 = vadd.f32 %v1199, %v1245
        %v1269 = vadd.f32 %v1200, %v1245
        %v1270 = vadd.f32 %v1201, %v1245
        %v1271 = vadd.f32 %v1202, %v1245
        %v1272 = vadd.f32 %v1203, %v1245
        %v1273 = vadd.f32 %v1204, %v1245
        %v1274 = vadd.f32 %v1205, %v1245
        %v1275 = vadd.f32 %v1206, %v1245
        %v1276 = vadd.f32 %v1207, %v1245
        %v1277 = vadd.f32 %v1208, %v1245
        %v1278 = vadd.f32 %v1209, %v1245
        %v1279 = vadd.f32 %v1210, %v1245
        %v1280 = vadd.f32 %v1211, %v1245
        %v1281 = vadd.f32 %v1212, %v1245
        %v1282 = vadd.f32 %v1213, %v1245
        %v1283 = vadd.f32 %v1214, %v1245
        %v1284 = vadd.f32 %v1215, %v1245
        %v1285 = vadd.f32 %v1216, %v1245
        %v1286 = vadd.f32 %v1217, %v1245
        %v1287 = vadd.f32 %v1218, %v1245
        %v1288 = vadd.f32 %v1219, %v1245
        %v1289 = vadd.f32 %v1220, %v1245
        %v1290 = vadd.f32 %v1221, %v1245
        %v1291 = vadd.f32 %v1222, %v1245
        %v1292 = vadd.f32 %v1223, %v1245
        %v1293 = vadd.f32 %v1224, %v1245
        %v1294 = vadd.f32 %v1225, %v1245
        %v1295 = vadd.f32 %v1226, %v1245
        %v1296 = vadd.f32 %v1227, %v1245
        %v1297 = vadd.f32 %v1228, %v1245
        %v1298 = vadd.f32 %v1229, %v1245
        %v1299 = vadd.f32 %v1230, %v1245
        %v1300 = vadd.f32 %v1231, %v1245
        %v1301 = vadd.f32 %v1232, %v1245
        %v1302 = vadd.f32 %v1233, %v1245
        %v1303 = vadd.f32 %v1234, %v1245
        %v1304 = vadd.f32 %v1235, %v1245
        %v1305 = vadd.f32 %v1236, %v1245
        %v1306 = vadd.f32 %v1237, %v1245
        %v1307 = vadd.f32 %v1238, %v1245
        %v1308 = vadd.f32 %v1239, %v1245
        %v1309 = vadd.f32 %v1240, %v1245
        %v1310 = vmax.f32 %v1246, 0.0
        %v1311 = vmax.f32 %v1247, 0.0
        %v1312 = vmax.f32 %v1248, 0.0
        %v1313 = vmax.f32 %v1249, 0.0
        %v1314 = vmax.f32 %v1250, 0.0
        %v1315 = vmax.f32 %v1251, 0.0
        %v1316 = vmax.f32 %v1252, 0.0
        %v1317 = vmax.f32 %v1253, 0.0
        %v1318 = vmax.f32 %v1254, 0.0
        %v1319 = vmax.f32 %v1255, 0.0
        %v1320 = vmax.f32 %v1256, 0.0
        %v1321 = vmax.f32 %v1257, 0.0
        %v1322 = vmax.f32 %v1258, 0.0
        %v1323 = vmax.f32 %v1259, 0.0
        %v1324 = vmax.f32 %v1260, 0.0
        %v1325 = vmax.f32 %v1261, 0.0
        %v1326 = vmax.f32 %v1262, 0.0
        %v1327 = vmax.f32 %v1263, 0.0
        %v1328 = vmax.f32 %v1264, 0.0
        %v1329 = vmax.f32 %v1265, 0.0
        %v1330 = vmax.f32 %v1266, 0.0
        %v1331 = vmax.f32 %v1267, 0.0
        %v1332 = vmax.f32 %v1268, 0.0
        %v1333 = vmax.f32 %v1269, 0.0
        %v1334 = vmax.f32 %v1270, 0.0
        %v1335 = vmax.f32 %v1271, 0.0
        %v1336 = vmax.f32 %v1272, 0.0
        %v1337 = vmax.f32 %v1273, 0.0
        %v1338 = vmax.f32 %v1274, 0.0
        %v1339 = vmax.f32 %v1275, 0.0
        %v1340 = vmax.f32 %v1276, 0.0
        %v1341 = vmax.f32 %v1277, 0.0
        %v1342 = vmax.f32 %v1278, 0.0
        %v1343 = vmax.f32 %v1279, 0.0
        %v1344 = vmax.f32 %v1280, 0.0
        %v1345 = vmax.f32 %v1281, 0.0
        %v1346 = vmax.f32 %v1282, 0.0
        %v1347 = vmax.f32 %v1283, 0.0
        %v1348 = vmax.f32 %v1284, 0.0
        %v1349 = vmax.f32 %v1285, 0.0
        %v1350 = vmax.f32 %v1286, 0.0
        %v1351 = vmax.f32 %v1287, 0.0
        %v1352 = vmax.f32 %v1288, 0.0
        %v1353 = vmax.f32 %v1289, 0.0
        %v1354 = vmax.f32 %v1290, 0.0
        %v1355 = vmax.f32 %v1291, 0.0
        %v1356 = vmax.f32 %v1292, 0.0
        %v1357 = vmax.f32 %v1293, 0.0
        %v1358 = vmax.f32 %v1294, 0.0
        %v1359 = vmax.f32 %v1295, 0.0
        %v1360 = vmax.f32 %v1296, 0.0
        %v1361 = vmax.f32 %v1297, 0.0
        %v1362 = vmax.f32 %v1298, 0.0
        %v1363 = vmax.f32 %v1299, 0.0
        %v1364 = vmax.f32 %v1300, 0.0
        %v1365 = vmax.f32 %v1301, 0.0
        %v1366 = vmax.f32 %v1302, 0.0
        %v1367 = vmax.f32 %v1303, 0.0
        %v1368 = vmax.f32 %v1304, 0.0
        %v1369 = vmax.f32 %v1305, 0.0
        %v1370 = vmax.f32 %v1306, 0.0
        %v1371 = vmax.f32 %v1307, 0.0
        %v1372 = vmax.f32 %v1308, 0.0
        %v1373 = vmax.f32 %v1309, 0.0
        %vm1374 = vcmask 64512
        %1375 = vst.msk [vmem:[%s479] sm:$0xff] %vm1374, %v1310
        %1376 = vst.msk [vmem:[%s479 + $0x8] sm:$0xff] %vm1374, %v1311
        %1377 = vst.msk [vmem:[%s479 + $0x10] sm:$0xff] %vm1374, %v1312
        %1378 = vst.msk [vmem:[%s479 + $0x18] sm:$0xff] %vm1374, %v1313
        %1379 = vst.msk [vmem:[%s479 + $0x20] sm:$0xff] %vm1374, %v1314
        %1380 = vst.msk [vmem:[%s479 + $0x28] sm:$0xff] %vm1374, %v1315
        %1381 = vst.msk [vmem:[%s479 + $0x30] sm:$0xff] %vm1374, %v1316
        %1382 = vst.msk [vmem:[%s479 + $0x38] sm:$0xff] %vm1374, %v1317
        %1383 = vst.msk [vmem:[%s479 + $0x40] sm:$0xff] %vm1374, %v1318
        %1384 = vst.msk [vmem:[%s479 + $0x48] sm:$0xff] %vm1374, %v1319
        %1385 = vst.msk [vmem:[%s479 + $0x50] sm:$0xff] %vm1374, %v1320
        %1386 = vst.msk [vmem:[%s479 + $0x58] sm:$0xff] %vm1374, %v1321
        %1387 = vst.msk [vmem:[%s479 + $0x60] sm:$0xff] %vm1374, %v1322
        %1388 = vst.msk [vmem:[%s479 + $0x68] sm:$0xff] %vm1374, %v1323
        %1389 = vst.msk [vmem:[%s479 + $0x70] sm:$0xff] %vm1374, %v1324
        %1390 = vst.msk [vmem:[%s479 + $0x78] sm:$0xff] %vm1374, %v1325
        %1391 = vst.msk [vmem:[%s479 + $0x80] sm:$0xff] %vm1374, %v1326
        %1392 = vst.msk [vmem:[%s479 + $0x88] sm:$0xff] %vm1374, %v1327
        %1393 = vst.msk [vmem:[%s479 + $0x90] sm:$0xff] %vm1374, %v1328
        %1394 = vst.msk [vmem:[%s479 + $0x98] sm:$0xff] %vm1374, %v1329
        %1395 = vst.msk [vmem:[%s479 + $0xa0] sm:$0xff] %vm1374, %v1330
        %1396 = vst.msk [vmem:[%s479 + $0xa8] sm:$0xff] %vm1374, %v1331
        %1397 = vst.msk [vmem:[%s479 + $0xb0] sm:$0xff] %vm1374, %v1332
        %1398 = vst.msk [vmem:[%s479 + $0xb8] sm:$0xff] %vm1374, %v1333
        %1399 = vst.msk [vmem:[%s479 + $0xc0] sm:$0xff] %vm1374, %v1334
        %1400 = vst.msk [vmem:[%s479 + $0xc8] sm:$0xff] %vm1374, %v1335
        %1401 = vst.msk [vmem:[%s479 + $0xd0] sm:$0xff] %vm1374, %v1336
        %1402 = vst.msk [vmem:[%s479 + $0xd8] sm:$0xff] %vm1374, %v1337
        %1403 = vst.msk [vmem:[%s479 + $0xe0] sm:$0xff] %vm1374, %v1338
        %1404 = vst.msk [vmem:[%s479 + $0xe8] sm:$0xff] %vm1374, %v1339
        %1405 = vst.msk [vmem:[%s479 + $0xf0] sm:$0xff] %vm1374, %v1340
        %1406 = vst.msk [vmem:[%s479 + $0xf8] sm:$0xff] %vm1374, %v1341
        %1407 = vst.msk [vmem:[%s479 + $0x100] sm:$0xff] %vm1374, %v1342
        %1408 = vst.msk [vmem:[%s479 + $0x108] sm:$0xff] %vm1374, %v1343
        %1409 = vst.msk [vmem:[%s479 + $0x110] sm:$0xff] %vm1374, %v1344
        %1410 = vst.msk [vmem:[%s479 + $0x118] sm:$0xff] %vm1374, %v1345
        %1411 = vst.msk [vmem:[%s479 + $0x120] sm:$0xff] %vm1374, %v1346
        %1412 = vst.msk [vmem:[%s479 + $0x128] sm:$0xff] %vm1374, %v1347
        %1413 = vst.msk [vmem:[%s479 + $0x130] sm:$0xff] %vm1374, %v1348
        %1414 = vst.msk [vmem:[%s479 + $0x138] sm:$0xff] %vm1374, %v1349
        %1415 = vst.msk [vmem:[%s479 + $0x140] sm:$0xff] %vm1374, %v1350
        %1416 = vst.msk [vmem:[%s479 + $0x148] sm:$0xff] %vm1374, %v1351
        %1417 = vst.msk [vmem:[%s479 + $0x150] sm:$0xff] %vm1374, %v1352
        %1418 = vst.msk [vmem:[%s479 + $0x158] sm:$0xff] %vm1374, %v1353
        %1419 = vst.msk [vmem:[%s479 + $0x160] sm:$0xff] %vm1374, %v1354
        %1420 = vst.msk [vmem:[%s479 + $0x168] sm:$0xff] %vm1374, %v1355
        %1421 = vst.msk [vmem:[%s479 + $0x170] sm:$0xff] %vm1374, %v1356
        %1422 = vst.msk [vmem:[%s479 + $0x178] sm:$0xff] %vm1374, %v1357
        %1423 = vst.msk [vmem:[%s479 + $0x180] sm:$0xff] %vm1374, %v1358
        %1424 = vst.msk [vmem:[%s479 + $0x188] sm:$0xff] %vm1374, %v1359
        %1425 = vst.msk [vmem:[%s479 + $0x190] sm:$0xff] %vm1374, %v1360
        %1426 = vst.msk [vmem:[%s479 + $0x198] sm:$0xff] %vm1374, %v1361
        %1427 = vst.msk [vmem:[%s479 + $0x1a0] sm:$0xff] %vm1374, %v1362
        %1428 = vst.msk [vmem:[%s479 + $0x1a8] sm:$0xff] %vm1374, %v1363
        %1429 = vst.msk [vmem:[%s479 + $0x1b0] sm:$0xff] %vm1374, %v1364
        %1430 = vst.msk [vmem:[%s479 + $0x1b8] sm:$0xff] %vm1374, %v1365
        %1431 = vst.msk [vmem:[%s479 + $0x1c0] sm:$0xff] %vm1374, %v1366
        %1432 = vst.msk [vmem:[%s479 + $0x1c8] sm:$0xff] %vm1374, %v1367
        %1433 = vst.msk [vmem:[%s479 + $0x1d0] sm:$0xff] %vm1374, %v1368
        %1434 = vst.msk [vmem:[%s479 + $0x1d8] sm:$0xff] %vm1374, %v1369
        %1435 = vst.msk [vmem:[%s479 + $0x1e0] sm:$0xff] %vm1374, %v1370
        %1436 = vst.msk [vmem:[%s479 + $0x1e8] sm:$0xff] %vm1374, %v1371
        %1437 = vst.msk [vmem:[%s479 + $0x1f0] sm:$0xff] %vm1374, %v1372
        %1438 = vst.msk [vmem:[%s479 + $0x1f8] sm:$0xff] %vm1374, %v1373
        %s1439 = sand.u32 %s112, 1
        %s1440 = sand.u32 %s112, 1
        %s1441 = smul.addr %s1440, 512
        %s1442 = scalar_lea.vmem [#allocation3], %s1441
        // Predicated region
        $region75: #{decoder_block.7} parent=69 // pred_check
          %p1443 = pneg %p122
        $region76: #{decoder_block.7} parent=69 // pred_check_branch
          %1445 = sbr.rel (%p1443) target = $region78
        $region77: #{decoder_block.7} parent=69 // pred_region
          %s1446 = smul.u32 8, %s15
          %s1447 = smul.addr %s1446, 2
          %s1448 = smul.addr %s1447, 8
          %s1449 = scalar_lea.vmem %s4, %s1448
          // Predicated region
          $region79: #{decoder_block.7} parent=77 // pred_check
            _
          $region80: #{decoder_block.7} parent=77 // pred_check_branch
            %1451 = sbr.rel (0) target = $region82
          $region81: #{decoder_block.7} parent=77 // pred_region
            // Predicated region
            $region83: #{decoder_block.7} parent=81 // pred_check
              _
            $region84: #{decoder_block.7} parent=81 // pred_check_branch
              %1453 = sbr.rel (0) target = $region86
            $region85: #{decoder_block.7} parent=81 // pred_region
              // Predicated region
              $region98: #{decoder_block.7} parent=85 // pred_check
                _
              $region99: #{decoder_block.7} parent=85 // pred_check_branch
                %1594 = sbr.rel (0) target = $region101
              $region100: #{decoder_block.7} parent=85 // pred_region
                loop: start=0, step=1, limit=1
                $region102: #{decoder_block.7} parent=100 // loop_pre_header
                  _
                $region103: #{decoder_block.7} parent=100 // loop_header
                  %s1596 = sphi 0, %s1600
                  %p1597 = scmp.ge.s32.totalorder %s1596, 1
                  %s1601 = sphi %s1442, %s1442
                  %s1602 = sphi %s1449, %s1449
                $region104: #{decoder_block.7} parent=100 // loop_header_branch
                  %1599 = sbr.rel (%p1597) target = $region108
                $region105: #{decoder_block.7} parent=100 // loop_body
                  %v1603 = vld [vmem:[%s1601] sm:$0xff]
                  %1604 = vst [vmem:[%s1602] sm:$0xff] %v1603
                  %v1605 = vld [vmem:[%s1601 + $0x8] sm:$0xff]
                  %1606 = vst [vmem:[%s1602 + $0x8] sm:$0xff] %v1605
                  %v1607 = vld [vmem:[%s1601 + $0x10] sm:$0xff]
                  %1608 = vst [vmem:[%s1602 + $0x10] sm:$0xff] %v1607
                  %v1609 = vld [vmem:[%s1601 + $0x18] sm:$0xff]
                  %1610 = vst [vmem:[%s1602 + $0x18] sm:$0xff] %v1609
                  %v1611 = vld [vmem:[%s1601 + $0x20] sm:$0xff]
                  %1612 = vst [vmem:[%s1602 + $0x20] sm:$0xff] %v1611
                  %v1613 = vld [vmem:[%s1601 + $0x28] sm:$0xff]
                  %1614 = vst [vmem:[%s1602 + $0x28] sm:$0xff] %v1613
                  %v1615 = vld [vmem:[%s1601 + $0x30] sm:$0xff]
                  %1616 = vst [vmem:[%s1602 + $0x30] sm:$0xff] %v1615
                  %v1617 = vld [vmem:[%s1601 + $0x38] sm:$0xff]
                  %1618 = vst [vmem:[%s1602 + $0x38] sm:$0xff] %v1617
                  %v1619 = vld [vmem:[%s1601 + $0x40] sm:$0xff]
                  %1620 = vst [vmem:[%s1602 + $0x40] sm:$0xff] %v1619
                  %v1621 = vld [vmem:[%s1601 + $0x48] sm:$0xff]
                  %1622 = vst [vmem:[%s1602 + $0x48] sm:$0xff] %v1621
                  %v1623 = vld [vmem:[%s1601 + $0x50] sm:$0xff]
                  %1624 = vst [vmem:[%s1602 + $0x50] sm:$0xff] %v1623
                  %v1625 = vld [vmem:[%s1601 + $0x58] sm:$0xff]
                  %1626 = vst [vmem:[%s1602 + $0x58] sm:$0xff] %v1625
                  %v1627 = vld [vmem:[%s1601 + $0x60] sm:$0xff]
                  %1628 = vst [vmem:[%s1602 + $0x60] sm:$0xff] %v1627
                  %v1629 = vld [vmem:[%s1601 + $0x68] sm:$0xff]
                  %1630 = vst [vmem:[%s1602 + $0x68] sm:$0xff] %v1629
                  %v1631 = vld [vmem:[%s1601 + $0x70] sm:$0xff]
                  %1632 = vst [vmem:[%s1602 + $0x70] sm:$0xff] %v1631
                  %v1633 = vld [vmem:[%s1601 + $0x78] sm:$0xff]
                  %1634 = vst [vmem:[%s1602 + $0x78] sm:$0xff] %v1633
                  %v1635 = vld [vmem:[%s1601 + $0x80] sm:$0xff]
                  %1636 = vst [vmem:[%s1602 + $0x200] sm:$0xff] %v1635
                  %v1637 = vld [vmem:[%s1601 + $0x88] sm:$0xff]
                  %1638 = vst [vmem:[%s1602 + $0x208] sm:$0xff] %v1637
                  %v1639 = vld [vmem:[%s1601 + $0x90] sm:$0xff]
                  %1640 = vst [vmem:[%s1602 + $0x210] sm:$0xff] %v1639
                  %v1641 = vld [vmem:[%s1601 + $0x98] sm:$0xff]
                  %1642 = vst [vmem:[%s1602 + $0x218] sm:$0xff] %v1641
                  %v1643 = vld [vmem:[%s1601 + $0xa0] sm:$0xff]
                  %1644 = vst [vmem:[%s1602 + $0x220] sm:$0xff] %v1643
                  %v1645 = vld [vmem:[%s1601 + $0xa8] sm:$0xff]
                  %1646 = vst [vmem:[%s1602 + $0x228] sm:$0xff] %v1645
                  %v1647 = vld [vmem:[%s1601 + $0xb0] sm:$0xff]
                  %1648 = vst [vmem:[%s1602 + $0x230] sm:$0xff] %v1647
                  %v1649 = vld [vmem:[%s1601 + $0xb8] sm:$0xff]
                  %1650 = vst [vmem:[%s1602 + $0x238] sm:$0xff] %v1649
                  %v1651 = vld [vmem:[%s1601 + $0xc0] sm:$0xff]
                  %1652 = vst [vmem:[%s1602 + $0x240] sm:$0xff] %v1651
                  %v1653 = vld [vmem:[%s1601 + $0xc8] sm:$0xff]
                  %1654 = vst [vmem:[%s1602 + $0x248] sm:$0xff] %v1653
                  %v1655 = vld [vmem:[%s1601 + $0xd0] sm:$0xff]
                  %1656 = vst [vmem:[%s1602 + $0x250] sm:$0xff] %v1655
                  %v1657 = vld [vmem:[%s1601 + $0xd8] sm:$0xff]
                  %1658 = vst [vmem:[%s1602 + $0x258] sm:$0xff] %v1657
                  %v1659 = vld [vmem:[%s1601 + $0xe0] sm:$0xff]
                  %1660 = vst [vmem:[%s1602 + $0x260] sm:$0xff] %v1659
                  %v1661 = vld [vmem:[%s1601 + $0xe8] sm:$0xff]
                  %1662 = vst [vmem:[%s1602 + $0x268] sm:$0xff] %v1661
                  %v1663 = vld [vmem:[%s1601 + $0xf0] sm:$0xff]
                  %1664 = vst [vmem:[%s1602 + $0x270] sm:$0xff] %v1663
                  %v1665 = vld [vmem:[%s1601 + $0xf8] sm:$0xff]
                  %1666 = vst [vmem:[%s1602 + $0x278] sm:$0xff] %v1665
                  %v1667 = vld [vmem:[%s1601 + $0x100] sm:$0xff]
                  %1668 = vst [vmem:[%s1602 + $0x400] sm:$0xff] %v1667
                  %v1669 = vld [vmem:[%s1601 + $0x108] sm:$0xff]
                  %1670 = vst [vmem:[%s1602 + $0x408] sm:$0xff] %v1669
                  %v1671 = vld [vmem:[%s1601 + $0x110] sm:$0xff]
                  %1672 = vst [vmem:[%s1602 + $0x410] sm:$0xff] %v1671
                  %v1673 = vld [vmem:[%s1601 + $0x118] sm:$0xff]
                  %1674 = vst [vmem:[%s1602 + $0x418] sm:$0xff] %v1673
                  %v1675 = vld [vmem:[%s1601 + $0x120] sm:$0xff]
                  %1676 = vst [vmem:[%s1602 + $0x420] sm:$0xff] %v1675
                  %v1677 = vld [vmem:[%s1601 + $0x128] sm:$0xff]
                  %1678 = vst [vmem:[%s1602 + $0x428] sm:$0xff] %v1677
                  %v1679 = vld [vmem:[%s1601 + $0x130] sm:$0xff]
                  %1680 = vst [vmem:[%s1602 + $0x430] sm:$0xff] %v1679
                  %v1681 = vld [vmem:[%s1601 + $0x138] sm:$0xff]
                  %1682 = vst [vmem:[%s1602 + $0x438] sm:$0xff] %v1681
                  %v1683 = vld [vmem:[%s1601 + $0x140] sm:$0xff]
                  %1684 = vst [vmem:[%s1602 + $0x440] sm:$0xff] %v1683
                  %v1685 = vld [vmem:[%s1601 + $0x148] sm:$0xff]
                  %1686 = vst [vmem:[%s1602 + $0x448] sm:$0xff] %v1685
                  %v1687 = vld [vmem:[%s1601 + $0x150] sm:$0xff]
                  %1688 = vst [vmem:[%s1602 + $0x450] sm:$0xff] %v1687
                  %v1689 = vld [vmem:[%s1601 + $0x158] sm:$0xff]
                  %1690 = vst [vmem:[%s1602 + $0x458] sm:$0xff] %v1689
                  %v1691 = vld [vmem:[%s1601 + $0x160] sm:$0xff]
                  %1692 = vst [vmem:[%s1602 + $0x460] sm:$0xff] %v1691
                  %v1693 = vld [vmem:[%s1601 + $0x168] sm:$0xff]
                  %1694 = vst [vmem:[%s1602 + $0x468] sm:$0xff] %v1693
                  %v1695 = vld [vmem:[%s1601 + $0x170] sm:$0xff]
                  %1696 = vst [vmem:[%s1602 + $0x470] sm:$0xff] %v1695
                  %v1697 = vld [vmem:[%s1601 + $0x178] sm:$0xff]
                  %1698 = vst [vmem:[%s1602 + $0x478] sm:$0xff] %v1697
                  %v1699 = vld [vmem:[%s1601 + $0x180] sm:$0xff]
                  %1700 = vst [vmem:[%s1602 + $0x600] sm:$0xff] %v1699
                  %v1701 = vld [vmem:[%s1601 + $0x188] sm:$0xff]
                  %1702 = vst [vmem:[%s1602 + $0x608] sm:$0xff] %v1701
                  %v1703 = vld [vmem:[%s1601 + $0x190] sm:$0xff]
                  %1704 = vst [vmem:[%s1602 + $0x610] sm:$0xff] %v1703
                  %v1705 = vld [vmem:[%s1601 + $0x198] sm:$0xff]
                  %1706 = vst [vmem:[%s1602 + $0x618] sm:$0xff] %v1705
                  %v1707 = vld [vmem:[%s1601 + $0x1a0] sm:$0xff]
                  %1708 = vst [vmem:[%s1602 + $0x620] sm:$0xff] %v1707
                  %v1709 = vld [vmem:[%s1601 + $0x1a8] sm:$0xff]
                  %1710 = vst [vmem:[%s1602 + $0x628] sm:$0xff] %v1709
                  %v1711 = vld [vmem:[%s1601 + $0x1b0] sm:$0xff]
                  %1712 = vst [vmem:[%s1602 + $0x630] sm:$0xff] %v1711
                  %v1713 = vld [vmem:[%s1601 + $0x1b8] sm:$0xff]
                  %1714 = vst [vmem:[%s1602 + $0x638] sm:$0xff] %v1713
                  %v1715 = vld [vmem:[%s1601 + $0x1c0] sm:$0xff]
                  %1716 = vst [vmem:[%s1602 + $0x640] sm:$0xff] %v1715
                  %v1717 = vld [vmem:[%s1601 + $0x1c8] sm:$0xff]
                  %1718 = vst [vmem:[%s1602 + $0x648] sm:$0xff] %v1717
                  %v1719 = vld [vmem:[%s1601 + $0x1d0] sm:$0xff]
                  %1720 = vst [vmem:[%s1602 + $0x650] sm:$0xff] %v1719
                  %v1721 = vld [vmem:[%s1601 + $0x1d8] sm:$0xff]
                  %1722 = vst [vmem:[%s1602 + $0x658] sm:$0xff] %v1721
                  %v1723 = vld [vmem:[%s1601 + $0x1e0] sm:$0xff]
                  %1724 = vst [vmem:[%s1602 + $0x660] sm:$0xff] %v1723
                  %v1725 = vld [vmem:[%s1601 + $0x1e8] sm:$0xff]
                  %1726 = vst [vmem:[%s1602 + $0x668] sm:$0xff] %v1725
                  %v1727 = vld [vmem:[%s1601 + $0x1f0] sm:$0xff]
                  %1728 = vst [vmem:[%s1602 + $0x670] sm:$0xff] %v1727
                  %v1729 = vld [vmem:[%s1601 + $0x1f8] sm:$0xff]
                  %1730 = vst [vmem:[%s1602 + $0x678] sm:$0xff] %v1729
                $region106: #{decoder_block.7} parent=100 // loop_footer
                  %s1600 = sadd.s32 1, %s1596
                $region107: #{decoder_block.7} parent=100 // loop_footer_branch
                  %1595 = sbr.rel target = $region103
                $region108: #{decoder_block.7} parent=100 // loop_exit
                  _
              $region101: #{decoder_block.7} parent=85 // pred_fallthru
                _
              // Predicated region
              $region109: #{decoder_block.7} parent=85 // pred_check
                _
              $region110: #{decoder_block.7} parent=85 // pred_check_branch
                %1732 = sbr.rel target = $region112
              $region111: #{decoder_block.7} parent=85 // pred_region
                _
              $region112: #{decoder_block.7} parent=85 // pred_fallthru
                _
            $region86: #{decoder_block.7} parent=81 // pred_fallthru
              _
            // Predicated region
            $region87: #{decoder_block.7} parent=81 // pred_check
              _
            $region88: #{decoder_block.7} parent=81 // pred_check_branch
              %1455 = sbr.rel target = $region90
            $region89: #{decoder_block.7} parent=81 // pred_region
              loop: start=0, step=1, limit=1
              $region91: #{decoder_block.7} parent=89 // loop_pre_header
                _
              $region92: #{decoder_block.7} parent=89 // loop_header
                %s1458 = sphi 0, %s1462
                %p1459 = scmp.ge.s32.totalorder %s1458, 1
                %s1463 = sphi %s1442, %s1442
                %s1464 = sphi %s1449, %s1449
              $region93: #{decoder_block.7} parent=89 // loop_header_branch
                %1461 = sbr.rel (%p1459) target = $region97
              $region94: #{decoder_block.7} parent=89 // loop_body
                %v1465 = vld [vmem:[%s1463] sm:$0xff]
                %1466 = vst [vmem:[%s1464] sm:$0xff] %v1465
                %v1467 = vld [vmem:[%s1463 + $0x8] sm:$0xff]
                %1468 = vst [vmem:[%s1464 + $0x8] sm:$0xff] %v1467
                %v1469 = vld [vmem:[%s1463 + $0x10] sm:$0xff]
                %1470 = vst [vmem:[%s1464 + $0x10] sm:$0xff] %v1469
                %v1471 = vld [vmem:[%s1463 + $0x18] sm:$0xff]
                %1472 = vst [vmem:[%s1464 + $0x18] sm:$0xff] %v1471
                %v1473 = vld [vmem:[%s1463 + $0x20] sm:$0xff]
                %1474 = vst [vmem:[%s1464 + $0x20] sm:$0xff] %v1473
                %v1475 = vld [vmem:[%s1463 + $0x28] sm:$0xff]
                %1476 = vst [vmem:[%s1464 + $0x28] sm:$0xff] %v1475
                %v1477 = vld [vmem:[%s1463 + $0x30] sm:$0xff]
                %1478 = vst [vmem:[%s1464 + $0x30] sm:$0xff] %v1477
                %v1479 = vld [vmem:[%s1463 + $0x38] sm:$0xff]
                %1480 = vst [vmem:[%s1464 + $0x38] sm:$0xff] %v1479
                %v1481 = vld [vmem:[%s1463 + $0x40] sm:$0xff]
                %1482 = vst [vmem:[%s1464 + $0x40] sm:$0xff] %v1481
                %v1483 = vld [vmem:[%s1463 + $0x48] sm:$0xff]
                %1484 = vst [vmem:[%s1464 + $0x48] sm:$0xff] %v1483
                %v1485 = vld [vmem:[%s1463 + $0x50] sm:$0xff]
                %1486 = vst [vmem:[%s1464 + $0x50] sm:$0xff] %v1485
                %v1487 = vld [vmem:[%s1463 + $0x58] sm:$0xff]
                %1488 = vst [vmem:[%s1464 + $0x58] sm:$0xff] %v1487
                %v1489 = vld [vmem:[%s1463 + $0x60] sm:$0xff]
                %1490 = vst [vmem:[%s1464 + $0x60] sm:$0xff] %v1489
                %v1491 = vld [vmem:[%s1463 + $0x68] sm:$0xff]
                %1492 = vst [vmem:[%s1464 + $0x68] sm:$0xff] %v1491
                %v1493 = vld [vmem:[%s1463 + $0x70] sm:$0xff]
                %1494 = vst [vmem:[%s1464 + $0x70] sm:$0xff] %v1493
                %v1495 = vld [vmem:[%s1463 + $0x78] sm:$0xff]
                %1496 = vst [vmem:[%s1464 + $0x78] sm:$0xff] %v1495
                %v1497 = vld [vmem:[%s1463 + $0x80] sm:$0xff]
                %1498 = vst [vmem:[%s1464 + $0x200] sm:$0xff] %v1497
                %v1499 = vld [vmem:[%s1463 + $0x88] sm:$0xff]
                %1500 = vst [vmem:[%s1464 + $0x208] sm:$0xff] %v1499
                %v1501 = vld [vmem:[%s1463 + $0x90] sm:$0xff]
                %1502 = vst [vmem:[%s1464 + $0x210] sm:$0xff] %v1501
                %v1503 = vld [vmem:[%s1463 + $0x98] sm:$0xff]
                %1504 = vst [vmem:[%s1464 + $0x218] sm:$0xff] %v1503
                %v1505 = vld [vmem:[%s1463 + $0xa0] sm:$0xff]
                %1506 = vst [vmem:[%s1464 + $0x220] sm:$0xff] %v1505
                %v1507 = vld [vmem:[%s1463 + $0xa8] sm:$0xff]
                %1508 = vst [vmem:[%s1464 + $0x228] sm:$0xff] %v1507
                %v1509 = vld [vmem:[%s1463 + $0xb0] sm:$0xff]
                %1510 = vst [vmem:[%s1464 + $0x230] sm:$0xff] %v1509
                %v1511 = vld [vmem:[%s1463 + $0xb8] sm:$0xff]
                %1512 = vst [vmem:[%s1464 + $0x238] sm:$0xff] %v1511
                %v1513 = vld [vmem:[%s1463 + $0xc0] sm:$0xff]
                %1514 = vst [vmem:[%s1464 + $0x240] sm:$0xff] %v1513
                %v1515 = vld [vmem:[%s1463 + $0xc8] sm:$0xff]
                %1516 = vst [vmem:[%s1464 + $0x248] sm:$0xff] %v1515
                %v1517 = vld [vmem:[%s1463 + $0xd0] sm:$0xff]
                %1518 = vst [vmem:[%s1464 + $0x250] sm:$0xff] %v1517
                %v1519 = vld [vmem:[%s1463 + $0xd8] sm:$0xff]
                %1520 = vst [vmem:[%s1464 + $0x258] sm:$0xff] %v1519
                %v1521 = vld [vmem:[%s1463 + $0xe0] sm:$0xff]
                %1522 = vst [vmem:[%s1464 + $0x260] sm:$0xff] %v1521
                %v1523 = vld [vmem:[%s1463 + $0xe8] sm:$0xff]
                %1524 = vst [vmem:[%s1464 + $0x268] sm:$0xff] %v1523
                %v1525 = vld [vmem:[%s1463 + $0xf0] sm:$0xff]
                %1526 = vst [vmem:[%s1464 + $0x270] sm:$0xff] %v1525
                %v1527 = vld [vmem:[%s1463 + $0xf8] sm:$0xff]
                %1528 = vst [vmem:[%s1464 + $0x278] sm:$0xff] %v1527
                %v1529 = vld [vmem:[%s1463 + $0x100] sm:$0xff]
                %1530 = vst [vmem:[%s1464 + $0x400] sm:$0xff] %v1529
                %v1531 = vld [vmem:[%s1463 + $0x108] sm:$0xff]
                %1532 = vst [vmem:[%s1464 + $0x408] sm:$0xff] %v1531
                %v1533 = vld [vmem:[%s1463 + $0x110] sm:$0xff]
                %1534 = vst [vmem:[%s1464 + $0x410] sm:$0xff] %v1533
                %v1535 = vld [vmem:[%s1463 + $0x118] sm:$0xff]
                %1536 = vst [vmem:[%s1464 + $0x418] sm:$0xff] %v1535
                %v1537 = vld [vmem:[%s1463 + $0x120] sm:$0xff]
                %1538 = vst [vmem:[%s1464 + $0x420] sm:$0xff] %v1537
                %v1539 = vld [vmem:[%s1463 + $0x128] sm:$0xff]
                %1540 = vst [vmem:[%s1464 + $0x428] sm:$0xff] %v1539
                %v1541 = vld [vmem:[%s1463 + $0x130] sm:$0xff]
                %1542 = vst [vmem:[%s1464 + $0x430] sm:$0xff] %v1541
                %v1543 = vld [vmem:[%s1463 + $0x138] sm:$0xff]
                %1544 = vst [vmem:[%s1464 + $0x438] sm:$0xff] %v1543
                %v1545 = vld [vmem:[%s1463 + $0x140] sm:$0xff]
                %1546 = vst [vmem:[%s1464 + $0x440] sm:$0xff] %v1545
                %v1547 = vld [vmem:[%s1463 + $0x148] sm:$0xff]
                %1548 = vst [vmem:[%s1464 + $0x448] sm:$0xff] %v1547
                %v1549 = vld [vmem:[%s1463 + $0x150] sm:$0xff]
                %1550 = vst [vmem:[%s1464 + $0x450] sm:$0xff] %v1549
                %v1551 = vld [vmem:[%s1463 + $0x158] sm:$0xff]
                %1552 = vst [vmem:[%s1464 + $0x458] sm:$0xff] %v1551
                %v1553 = vld [vmem:[%s1463 + $0x160] sm:$0xff]
                %1554 = vst [vmem:[%s1464 + $0x460] sm:$0xff] %v1553
                %v1555 = vld [vmem:[%s1463 + $0x168] sm:$0xff]
                %1556 = vst [vmem:[%s1464 + $0x468] sm:$0xff] %v1555
                %v1557 = vld [vmem:[%s1463 + $0x170] sm:$0xff]
                %1558 = vst [vmem:[%s1464 + $0x470] sm:$0xff] %v1557
                %v1559 = vld [vmem:[%s1463 + $0x178] sm:$0xff]
                %1560 = vst [vmem:[%s1464 + $0x478] sm:$0xff] %v1559
                %v1561 = vld [vmem:[%s1463 + $0x180] sm:$0xff]
                %1562 = vst [vmem:[%s1464 + $0x600] sm:$0xff] %v1561
                %v1563 = vld [vmem:[%s1463 + $0x188] sm:$0xff]
                %1564 = vst [vmem:[%s1464 + $0x608] sm:$0xff] %v1563
                %v1565 = vld [vmem:[%s1463 + $0x190] sm:$0xff]
                %1566 = vst [vmem:[%s1464 + $0x610] sm:$0xff] %v1565
                %v1567 = vld [vmem:[%s1463 + $0x198] sm:$0xff]
                %1568 = vst [vmem:[%s1464 + $0x618] sm:$0xff] %v1567
                %v1569 = vld [vmem:[%s1463 + $0x1a0] sm:$0xff]
                %1570 = vst [vmem:[%s1464 + $0x620] sm:$0xff] %v1569
                %v1571 = vld [vmem:[%s1463 + $0x1a8] sm:$0xff]
                %1572 = vst [vmem:[%s1464 + $0x628] sm:$0xff] %v1571
                %v1573 = vld [vmem:[%s1463 + $0x1b0] sm:$0xff]
                %1574 = vst [vmem:[%s1464 + $0x630] sm:$0xff] %v1573
                %v1575 = vld [vmem:[%s1463 + $0x1b8] sm:$0xff]
                %1576 = vst [vmem:[%s1464 + $0x638] sm:$0xff] %v1575
                %v1577 = vld [vmem:[%s1463 + $0x1c0] sm:$0xff]
                %1578 = vst [vmem:[%s1464 + $0x640] sm:$0xff] %v1577
                %v1579 = vld [vmem:[%s1463 + $0x1c8] sm:$0xff]
                %1580 = vst [vmem:[%s1464 + $0x648] sm:$0xff] %v1579
                %v1581 = vld [vmem:[%s1463 + $0x1d0] sm:$0xff]
                %1582 = vst [vmem:[%s1464 + $0x650] sm:$0xff] %v1581
                %v1583 = vld [vmem:[%s1463 + $0x1d8] sm:$0xff]
                %1584 = vst [vmem:[%s1464 + $0x658] sm:$0xff] %v1583
                %v1585 = vld [vmem:[%s1463 + $0x1e0] sm:$0xff]
                %1586 = vst [vmem:[%s1464 + $0x660] sm:$0xff] %v1585
                %v1587 = vld [vmem:[%s1463 + $0x1e8] sm:$0xff]
                %1588 = vst [vmem:[%s1464 + $0x668] sm:$0xff] %v1587
                %v1589 = vld [vmem:[%s1463 + $0x1f0] sm:$0xff]
                %1590 = vst [vmem:[%s1464 + $0x670] sm:$0xff] %v1589
                %v1591 = vld [vmem:[%s1463 + $0x1f8] sm:$0xff]
                %1592 = vst [vmem:[%s1464 + $0x678] sm:$0xff] %v1591
              $region95: #{decoder_block.7} parent=89 // loop_footer
                %s1462 = sadd.s32 1, %s1458
              $region96: #{decoder_block.7} parent=89 // loop_footer_branch
                %1457 = sbr.rel target = $region92
              $region97: #{decoder_block.7} parent=89 // loop_exit
                _
            $region90: #{decoder_block.7} parent=81 // pred_fallthru
              _
          $region82: #{decoder_block.7} parent=77 // pred_fallthru
            _
          %1733 = vnop
        $region78: #{decoder_block.7} parent=69 // pred_fallthru
          _
      $region70: #{decoder_block.7} parent=5 // pred_fallthru
        _
      %p1734 = scmp.le.s32.totalorder 2, %s10
      // Predicated region
      $region113: #{decoder_block.7} parent=5 // pred_check
        %p1735 = pneg %p1734
      $region114: #{decoder_block.7} parent=5 // pred_check_branch
        %1737 = sbr.rel (%p1735) target = $region116
      $region115: #{decoder_block.7} parent=5 // pred_region
        %s1738 = ssub.s32 %s10, 2
        // Predicated region
        $region117: #{decoder_block.7} parent=115 // pred_check
          %p1739 = pneg %p128
        $region118: #{decoder_block.7} parent=115 // pred_check_branch
          %1741 = sbr.rel (%p1739) target = $region120
        $region119: #{decoder_block.7} parent=115 // pred_region
          %s1742 = sand.u32 %s113, 1
          %s1743 = sand.u32 %s113, 1
          %s1744 = smul.addr %s1743, 512
          %s1745 = scalar_lea.vmem [#allocation3], %s1744
        $region120: #{decoder_block.7} parent=115 // pred_fallthru
          _
      $region116: #{decoder_block.7} parent=5 // pred_fallthru
        _
    $region6: #{decoder_block.7} parent=1 // loop_footer
      %s14 = sadd.s32 1, %s10
    $region7: #{decoder_block.7} parent=1 // loop_footer_branch
      %9 = sbr.rel target = $region3
    $region8: #{decoder_block.7} parent=1 // loop_exit
      _

// kernel: decoder_block.5
$region0: #{decoder_block.5}
  #allocation0 [shape = 'u32[]', space=smem, size = 0x4, offset = 0x4, fixed_abs, tag = 'smem constant byte address 0x4 - core index']
  #allocation1 [shape = 'u32[144,128]{1,0:T(1,128)}', space=vmem, size = 0x12000, scoped, tag = 'internal scratch']
  %s0 = inlined_call_operand.vmem [shape: f32[32,16,4], index: 0, kind: input, shape index: {}, may-alias: {0,1}]
  %s1 = inlined_call_operand.vmem [shape: f32[32,16,4], index: 1, kind: input, shape index: {}, may-alias: {0,1}]
  %s2 = inlined_call_operand.vmem [shape: f32[2,4], index: 2, kind: input, shape index: {}]
  %s3 = inlined_call_operand.vmem [shape: bf16[4,36], index: 3, kind: input, shape index: {}]
  %s4 = inlined_call_operand.vmem [shape: f32[4,32,16,4], index: 4, kind: output, shape index: {0}]
  %s5 = inlined_call_operand.vmem [shape: f32[2,4], index: 5, kind: output, shape index: {1}]
  %6 = xla_tuple %s4, %s5
  %s7 = sld [smem:[#allocation0]]
  $region95: #{decoder_block.5} parent=0
    _
  %s9 = ssub.s32 1, %s7
  %s10 = scalar_select 0, %s9, %s7
  $region1: #{decoder_block.5} parent=0
    #allocation2 [shape = 'u8[524288]{0}', space=vmem, size = 0x80000, scoped, tag = 'output window, operand 0']
    loop: start=0, step=1, limit=6
    $region2: #{decoder_block.5} parent=1 // loop_pre_header
      _
    $region3: #{decoder_block.5} parent=1 // loop_header
      %s12 = sphi 0, %s16
      %p13 = scmp.ge.s32.totalorder %s12, 6
      %s22 = sphi 0, %s24
      %s25 = sphi 0, %s22
      %s26 = sphi 0, %s25
      %s42 = sphi 0, %s26
      %s56 = sphi 0, %s58
      %s59 = sphi 0, %s56
      %s60 = sphi 0, %s59
      %s76 = sphi 0, %s60
      %s80 = sphi 0, %s80
      %s82 = sphi 0, %s80
      %s83 = sphi 0, %s82
      %s97 = sphi 0, %s83
      %s101 = sphi 0, %s101
      %s103 = sphi 0, %s101
      %s104 = sphi 0, %s103
      %s118 = sphi 0, %s104
      %s124 = sphi 0, %s126
      %s127 = sphi 0, %s124
      %s128 = sphi 0, %s127
      %s144 = sphi 0, %s128
      %s148 = sphi 0, %s148
      %s150 = sphi 0, %s148
      %s151 = sphi 0, %s150
      %s165 = sphi 0, %s151
    $region4: #{decoder_block.5} parent=1 // loop_header_branch
      %15 = sbr.rel (%p13) target = $region8
    $region5: #{decoder_block.5} parent=1 // loop_body
      %s17 = ssub.s32 %s12, 1
      %s18 = ssub.s32 %s12, 2
      %s19 = sadd.s32 %s12, 1
      %s20 = ssub.s32 %s12, %s19
      %p21 = scmp.eq.s32.totalorder %s20, 0
      %s23 = sadd.s32 %s22, 1
      %s24 = scalar_select %p21, %s22, %s23
      %p27 = pneg %p21
      %p28 = scmp.eq.s32.totalorder %s12, 3
      %p29 = por %p27, %p28
      %p30 = scmp.ne.s32.totalorder %s22, %s25
      %p31 = scmp.eq.s32.totalorder %s12, 0
      %p32 = por %p30, %p31
      %p33 = scmp.ne.s32.totalorder %s22, %s25
      %p34 = scmp.eq.s32.totalorder %s17, 3
      %p35 = por %p33, %p34
      %p36 = scmp.ne.s32.totalorder %s25, %s26
      %p37 = scmp.eq.s32.totalorder %s17, 0
      %p38 = por %p36, %p37
      %p39 = scmp.ne.s32.totalorder %s25, %s26
      %p40 = scmp.eq.s32.totalorder %s18, 3
      %p41 = por %p39, %p40
      %p43 = scmp.ne.s32.totalorder %s26, %s42
      %p44 = scmp.eq.s32.totalorder %s18, 0
      %p45 = por %p43, %p44
      %s46 = sadd.s32 %s12, 1
      %s47 = smul.u32 %s46, 8
      %p48 = scmp.lt.s32.totalorder %s47, 31
      %s49 = scalar_select %p48, %s47, 31
      %s50 = sadd.s32 %s19, 1
      %s51 = smul.u32 %s50, 8
      %p52 = scmp.lt.s32.totalorder %s51, 31
      %s53 = scalar_select %p52, %s51, 31
      %s54 = ssub.s32 %s49, %s53
      %p55 = scmp.eq.s32.totalorder %s54, 0
      %s57 = sadd.s32 %s56, 1
      %s58 = scalar_select %p55, %s56, %s57
      %p61 = pneg %p55
      %p62 = scmp.eq.s32.totalorder %s12, 3
      %p63 = por %p61, %p62
      %p64 = scmp.ne.s32.totalorder %s56, %s59
      %p65 = scmp.eq.s32.totalorder %s12, 0
      %p66 = por %p64, %p65
      %p67 = scmp.ne.s32.totalorder %s56, %s59
      %p68 = scmp.eq.s32.totalorder %s17, 3
      %p69 = por %p67, %p68
      %p70 = scmp.ne.s32.totalorder %s59, %s60
      %p71 = scmp.eq.s32.totalorder %s17, 0
      %p72 = por %p70, %p71
      %p73 = scmp.ne.s32.totalorder %s59, %s60
      %p74 = scmp.eq.s32.totalorder %s18, 3
      %p75 = por %p73, %p74
      %p77 = scmp.ne.s32.totalorder %s60, %s76
      %p78 = scmp.eq.s32.totalorder %s18, 0
      %p79 = por %p77, %p78
      %s81 = sadd.s32 %s80, 1
      %p84 = scmp.eq.s32.totalorder %s12, 3
      %p85 = scmp.ne.s32.totalorder %s80, %s82
      %p86 = scmp.eq.s32.totalorder %s12, 0
      %p87 = por %p85, %p86
      %p88 = scmp.ne.s32.totalorder %s80, %s82
      %p89 = scmp.eq.s32.totalorder %s17, 3
      %p90 = por %p88, %p89
      %p91 = scmp.ne.s32.totalorder %s82, %s83
      %p92 = scmp.eq.s32.totalorder %s17, 0
      %p93 = por %p91, %p92
      %p94 = scmp.ne.s32.totalorder %s82, %s83
      %p95 = scmp.eq.s32.totalorder %s18, 3
      %p96 = por %p94, %p95
      %p98 = scmp.ne.s32.totalorder %s83, %s97
      %p99 = scmp.eq.s32.totalorder %s18, 0
      %p100 = por %p98, %p99
      %s102 = sadd.s32 %s101, 1
      %p105 = scmp.eq.s32.totalorder %s12, 3
      %p106 = scmp.ne.s32.totalorder %s101, %s103
      %p107 = scmp.eq.s32.totalorder %s12, 0
      %p108 = por %p106, %p107
      %p109 = scmp.ne.s32.totalorder %s101, %s103
      %p110 = scmp.eq.s32.totalorder %s17, 3
      %p111 = por %p109, %p110
      %p112 = scmp.ne.s32.totalorder %s103, %s104
      %p113 = scmp.eq.s32.totalorder %s17, 0
      %p114 = por %p112, %p113
      %p115 = scmp.ne.s32.totalorder %s103, %s104
      %p116 = scmp.eq.s32.totalorder %s18, 3
      %p117 = por %p115, %p116
      %p119 = scmp.ne.s32.totalorder %s104, %s118
      %p120 = scmp.eq.s32.totalorder %s18, 0
      %p121 = por %p119, %p120
      %s122 = ssub.s32 %s12, %s19
      %p123 = scmp.eq.s32.totalorder %s122, 0
      %s125 = sadd.s32 %s124, 1
      %s126 = scalar_select %p123, %s124, %s125
      %p129 = pneg %p123
      %p130 = scmp.eq.s32.totalorder %s12, 3
      %p131 = por %p129, %p130
      %p132 = scmp.ne.s32.totalorder %s124, %s127
      %p133 = scmp.eq.s32.totalorder %s12, 0
      %p134 = por %p132, %p133
      %p135 = scmp.ne.s32.totalorder %s124, %s127
      %p136 = scmp.eq.s32.totalorder %s17, 3
      %p137 = por %p135, %p136
      %p138 = scmp.ne.s32.totalorder %s127, %s128
      %p139 = scmp.eq.s32.totalorder %s17, 0
      %p140 = por %p138, %p139
      %p141 = scmp.ne.s32.totalorder %s127, %s128
      %p142 = scmp.eq.s32.totalorder %s18, 3
      %p143 = por %p141, %p142
      %p145 = scmp.ne.s32.totalorder %s128, %s144
      %p146 = scmp.eq.s32.totalorder %s18, 0
      %p147 = por %p145, %p146
      %s149 = sadd.s32 %s148, 1
      %p152 = scmp.eq.s32.totalorder %s12, 3
      %p153 = scmp.ne.s32.totalorder %s148, %s150
      %p154 = scmp.eq.s32.totalorder %s12, 0
      %p155 = por %p153, %p154
      %p156 = scmp.ne.s32.totalorder %s148, %s150
      %p157 = scmp.eq.s32.totalorder %s17, 3
      %p158 = por %p156, %p157
      %p159 = scmp.ne.s32.totalorder %s150, %s151
      %p160 = scmp.eq.s32.totalorder %s17, 0
      %p161 = por %p159, %p160
      %p162 = scmp.ne.s32.totalorder %s150, %s151
      %p163 = scmp.eq.s32.totalorder %s18, 3
      %p164 = por %p162, %p163
      %p166 = scmp.ne.s32.totalorder %s151, %s165
      %p167 = scmp.eq.s32.totalorder %s18, 0
      %p168 = por %p166, %p167
      %p169 = scmp.le.s32.totalorder 1, %s12
      %p170 = scmp.lt.s32.totalorder %s12, 5
      %p171 = pnand %p169, %p170
      %p172 = pneg %p171
      // Predicated region
      $region9: #{decoder_block.5} parent=5 // pred_check
        _
      $region10: #{decoder_block.5} parent=5 // pred_check_branch
        %174 = sbr.rel (%p171) target = $region12
      $region11: #{decoder_block.5} parent=5 // pred_region
        %s175 = ssub.s32 %s12, 1
        // Predicated region
        $region13: #{decoder_block.5} parent=11 // pred_check
          %p176 = pneg %p93
        $region14: #{decoder_block.5} parent=11 // pred_check_branch
          %178 = sbr.rel (%p176) target = $region16
        $region15: #{decoder_block.5} parent=11 // pred_region
          _
        $region16: #{decoder_block.5} parent=11 // pred_fallthru
          _
        // Predicated region
        $region17: #{decoder_block.5} parent=11 // pred_check
          %p179 = pneg %p114
        $region18: #{decoder_block.5} parent=11 // pred_check_branch
          %181 = sbr.rel (%p179) target = $region20
        $region19: #{decoder_block.5} parent=11 // pred_region
          _
        $region20: #{decoder_block.5} parent=11 // pred_fallthru
          _
      $region12: #{decoder_block.5} parent=5 // pred_fallthru
        _
      %p182 = scmp.lt.s32.totalorder %s12, 4
      // Predicated region
      $region21: #{decoder_block.5} parent=5 // pred_check
        %p183 = pneg %p182
      $region22: #{decoder_block.5} parent=5 // pred_check_branch
        %185 = sbr.rel (%p183) target = $region24
      $region23: #{decoder_block.5} parent=5 // pred_region
        // Predicated region
        $region25: #{decoder_block.5} parent=23 // pred_check
          %p186 = pneg %p32
        $region26: #{decoder_block.5} parent=23 // pred_check_branch
          %188 = sbr.rel (%p186) target = $region28
        $region27: #{decoder_block.5} parent=23 // pred_region
          %s189 = smul.u32 8, %s12
          %p190 = scmp.lt.s32.totalorder %s189, 31
          %s191 = scalar_select %p190, %s189, 31
          %s192 = smul.addr %s191, 2
          %s193 = smul.addr %s192, 8
          %s194 = scalar_lea.vmem %s0, %s193
          %s195 = smul.u32 8, %s12
        $region28: #{decoder_block.5} parent=23 // pred_fallthru
          _
        // Predicated region
        $region29: #{decoder_block.5} parent=23 // pred_check
          %p196 = pneg %p66
        $region30: #{decoder_block.5} parent=23 // pred_check_branch
          %198 = sbr.rel (%p196) target = $region32
        $region31: #{decoder_block.5} parent=23 // pred_region
          %s199 = sadd.s32 %s12, 1
          %s200 = smul.u32 %s199, 8
          %p201 = scmp.lt.s32.totalorder %s200, 31
          %s202 = scalar_select %p201, %s200, 31
          %p203 = scmp.lt.s32.totalorder %s202, 31
          %s204 = scalar_select %p203, %s202, 31
          %s205 = smul.addr %s204, 2
          %s206 = smul.addr %s205, 8
          %s207 = scalar_lea.vmem %s1, %s206
          %s208 = sadd.s32 %s12, 1
          %s209 = smul.u32 %s208, 8
          %p210 = scmp.lt.s32.totalorder %s209, 31
          %s211 = scalar_select %p210, %s209, 31
        $region32: #{decoder_block.5} parent=23 // pred_fallthru
          _
      $region24: #{decoder_block.5} parent=5 // pred_fallthru
        _
      %p212 = scmp.le.s32.totalorder 1, %s12
      %p213 = scmp.lt.s32.totalorder %s12, 5
      %p214 = pnand %p212, %p213
      %p215 = pneg %p214
      // Predicated region
      $region33: #{decoder_block.5} parent=5 // pred_check
        _
      $region34: #{decoder_block.5} parent=5 // pred_check_branch
        %217 = sbr.rel (%p214) target = $region36
      $region35: #{decoder_block.5} parent=5 // pred_region
        %s218 = ssub.s32 %s12, 1
        %s219 = smul.u32 8, %s17
        %p220 = scmp.lt.s32.totalorder %s219, 31
        %s221 = scalar_select %p220, %s219, 31
        %s222 = smul.addr %s221, 2
        %s223 = smul.addr %s222, 8
        %s224 = scalar_lea.vmem %s0, %s223
        %p225 = pneg %p38
        %p226 = pneg %p35
        %s227 = sadd.s32 %s17, 1
        %s228 = smul.u32 %s227, 8
        %p229 = scmp.lt.s32.totalorder %s228, 31
        %s230 = scalar_select %p229, %s228, 31
        %p231 = scmp.lt.s32.totalorder %s230, 31
        %s232 = scalar_select %p231, %s230, 31
        %s233 = smul.addr %s232, 2
        %s234 = smul.addr %s233, 8
        %s235 = scalar_lea.vmem %s1, %s234
        %p236 = pneg %p72
        %p237 = pneg %p69
        %p238 = pneg %p93
        %p239 = pneg %p90
        %p240 = pneg %p114
        %p241 = pneg %p111
        %p242 = pneg %p140
        %p243 = pneg %p137
        %s244 = sand.u32 %s127, 1
        %s245 = sand.u32 %s127, 1
        %s246 = smul.addr %s245, 512
        %s247 = scalar_lea.vmem [#allocation2], %s246
        %p248 = pneg %p161
        %p249 = pneg %p158
        %s250 = smul.u32 8, %s17
        %p251 = scmp.lt.s32.totalorder %s250, 31
        %s252 = scalar_select %p251, %s250, 31
        %s253 = smul.addr %s252, 2
        %s254 = smul.addr %s253, 8
        %s255 = scalar_lea.vmem %s0, %s254
        %s256 = smul.u32 8, %s17
        %s257 = sadd.s32 %s17, 1
        %s258 = smul.u32 %s257, 8
        %p259 = scmp.lt.s32.totalorder %s258, 31
        %s260 = scalar_select %p259, %s258, 31
        %p261 = scmp.lt.s32.totalorder %s260, 31
        %s262 = scalar_select %p261, %s260, 31
        %s263 = smul.addr %s262, 2
        %s264 = smul.addr %s263, 8
        %s265 = scalar_lea.vmem %s1, %s264
        %s266 = sadd.s32 %s17, 1
        %s267 = smul.u32 %s266, 8
        %p268 = scmp.lt.s32.totalorder %s267, 31
        %s269 = scalar_select %p268, %s267, 31
        %s270 = smul.u32 8, %s17
        %v272 = vld [vmem:[%s2] sm:$0x1]
        %v273 = vld [vmem:[%s2 + $0x1] sm:$0x1]
        %v274 = vld [vmem:[%s255] sm:$0xff]
        %v275 = vld [vmem:[%s255 + $0x8] sm:$0xff]
        %v276 = vld [vmem:[%s255 + $0x10] sm:$0xff]
        %v277 = vld [vmem:[%s255 + $0x18] sm:$0xff]
        %v278 = vld [vmem:[%s255 + $0x20] sm:$0xff]
        %v279 = vld [vmem:[%s255 + $0x28] sm:$0xff]
        %v280 = vld [vmem:[%s255 + $0x30] sm:$0xff]
        %v281 = vld [vmem:[%s255 + $0x38] sm:$0xff]
        %v282 = vld [vmem:[%s255 + $0x40] sm:$0xff]
        %v283 = vld [vmem:[%s255 + $0x48] sm:$0xff]
        %v284 = vld [vmem:[%s255 + $0x50] sm:$0xff]
        %v285 = vld [vmem:[%s255 + $0x58] sm:$0xff]
        %v286 = vld [vmem:[%s255 + $0x60] sm:$0xff]
        %v287 = vld [vmem:[%s255 + $0x68] sm:$0xff]
        %v288 = vld [vmem:[%s255 + $0x70] sm:$0xff]
        %v289 = vld [vmem:[%s255 + $0x78] sm:$0xff]
        %v290 = vld [vmem:[%s265] sm:$0xff]
        %v291 = vld [vmem:[%s265 + $0x8] sm:$0xff]
        %v292 = vlaneseq
        %v293 = vshrl.u32 %v292, 7
        %v294 = vsub.s32 0, %v293
        %v295 = vrot.slane %v272, %v294
        %v296 = vmul.f32 %v274, %v295
        %v297 = vmul.f32 %v275, %v295
        %v298 = vmul.f32 %v276, %v295
        %v299 = vmul.f32 %v277, %v295
        %v300 = vmul.f32 %v278, %v295
        %v301 = vmul.f32 %v279, %v295
        %v302 = vmul.f32 %v280, %v295
        %v303 = vmul.f32 %v281, %v295
        %v304 = vmul.f32 %v282, %v295
        %v305 = vmul.f32 %v283, %v295
        %v306 = vmul.f32 %v284, %v295
        %v307 = vmul.f32 %v285, %v295
        %v308 = vmul.f32 %v286, %v295
        %v309 = vmul.f32 %v287, %v295
        %v310 = vmul.f32 %v288, %v295
        %v311 = vmul.f32 %v289, %v295
        %v312 = vmul.f32 %v290, %v295
        %v313 = vmul.f32 %v291, %v295
        %v314 = vlaneseq
        %v315 = vshrl.u32 %v314, 7
        %v316 = vsub.s32 0, %v315
        %v317 = vrot.slane %v273, %v316
        %v318 = vadd.f32 %v296, %v317
        %v319 = vadd.f32 %v297, %v317
        %v320 = vadd.f32 %v298, %v317
        %v321 = vadd.f32 %v299, %v317
        %v322 = vadd.f32 %v300, %v317
        %v323 = vadd.f32 %v301, %v317
        %v324 = vadd.f32 %v302, %v317
        %v325 = vadd.f32 %v303, %v317
        %v326 = vadd.f32 %v304, %v317
        %v327 = vadd.f32 %v305, %v317
        %v328 = vadd.f32 %v306, %v317
        %v329 = vadd.f32 %v307, %v317
        %v330 = vadd.f32 %v308, %v317
        %v331 = vadd.f32 %v309, %v317
        %v332 = vadd.f32 %v310, %v317
        %v333 = vadd.f32 %v311, %v317
        %v334 = vadd.f32 %v312, %v317
        %v335 = vadd.f32 %v313, %v317
        %v336 = vmax.f32 %v318, 0.0
        %v337 = vmax.f32 %v319, 0.0
        %v338 = vmax.f32 %v320, 0.0
        %v339 = vmax.f32 %v321, 0.0
        %v340 = vmax.f32 %v322, 0.0
        %v341 = vmax.f32 %v323, 0.0
        %v342 = vmax.f32 %v324, 0.0
        %v343 = vmax.f32 %v325, 0.0
        %v344 = vmax.f32 %v326, 0.0
        %v345 = vmax.f32 %v327, 0.0
        %v346 = vmax.f32 %v328, 0.0
        %v347 = vmax.f32 %v329, 0.0
        %v348 = vmax.f32 %v330, 0.0
        %v349 = vmax.f32 %v331, 0.0
        %v350 = vmax.f32 %v332, 0.0
        %v351 = vmax.f32 %v333, 0.0
        %v352 = vmax.f32 %v334, 0.0
        %v353 = vmax.f32 %v335, 0.0
        %v354 = vpack.c.bf16 %v337, %v336
        %v355 = vpack.c.bf16 %v339, %v338
        %v356 = vpack.c.bf16 %v341, %v340
        %v357 = vpack.c.bf16 %v343, %v342
        %v358 = vpack.c.bf16 %v345, %v344
        %v359 = vpack.c.bf16 %v347, %v346
        %v360 = vpack.c.bf16 %v349, %v348
        %v361 = vpack.c.bf16 %v351, %v350
        %v362 = vpack.c.bf16 %v353, %v352
        %v363 = vld [vmem:[%s3] sm:$0x3]
        %vm364 = vcmask 31744
        %v366 = vsel %vm364, %v354, 0
        %v369 = vsel %vm364, %v355, 0
        %v372 = vsel %vm364, %v356, 0
        %v375 = vsel %vm364, %v357, 0
        %v378 = vsel %vm364, %v358, 0
        %v381 = vsel %vm364, %v359, 0
        %v384 = vsel %vm364, %v360, 0
        %v387 = vsel %vm364, %v361, 0
        %v390 = vsel %vm364, %v362, 0
        %vm392 = vcmask 1041408
        %v394 = vsel %vm392, %v363, 0
        %396 = vmatprep.subr.bf16.mxu0 0
        %397 = vmatpush1.bf16.msra.mxu0 %v394
        %398 = vmatprep.subr.bf16.mxu0 0
        %399 = vmatpush1.bf16.msra.mxu0 0
        %400 = vmatprep.subr.bf16.mxu0 0
        %401 = vmatpush1.bf16.msra.mxu0 0
        %402 = vmatprep.subr.bf16.mxu0 0
        %403 = vmatpush1.bf16.msra.mxu0 0
        %404 = vmatprep.subr.bf16.mxu0 0
        %405 = vmatpush1.bf16.msra.mxu0 0
        %406 = vmatprep.subr.bf16.mxu0 0
        %407 = vmatpush1.bf16.msra.mxu0 0
        %408 = vmatprep.subr.bf16.mxu0 0
        %409 = vmatpush1.bf16.msra.mxu0 0
        %410 = vmatprep.subr.bf16.mxu0 0
        %411 = vmatpush1.bf16.msra.mxu0 0
        %412 = vmatprep.subr.bf16.mxu0 0
        %413 = vmatpush1.bf16.msra.mxu0 0
        %414 = vmatprep.subr.bf16.mxu0 0
        %415 = vmatpush1.bf16.msra.mxu0 0
        %416 = vmatprep.subr.bf16.mxu0 0
        %417 = vmatpush1.bf16.msra.mxu0 0
        %418 = vmatprep.subr.bf16.mxu0 0
        %419 = vmatpush1.bf16.msra.mxu0 0
        %420 = vmatprep.subr.bf16.mxu0 0
        %421 = vmatpush1.bf16.msra.mxu0 0
        %422 = vmatprep.subr.bf16.mxu0 0
        %423 = vmatpush1.bf16.msra.mxu0 0
        %424 = vmatprep.subr.bf16.mxu0 0
        %425 = vmatpush1.bf16.msra.mxu0 0
        %426 = vmatprep.subr.bf16.mxu0 0
        %427 = vmatpush1.bf16.msra.mxu0 0
        %428 = vmatprep.mubr.bf16.mxu0 0
        %429 = vmatmul.mubr.bf16.gmra.mrb[0].mxu0 %v366
        %v430 = vpop.f32.mrb[0].mxu0
        %v431 = vadd.f32 0.0, %v430
        %v432 = vpop.f32.mrb[0].mxu0
        %v433 = vpop.f32.mrb[0].mxu0
        %v434 = vadd.f32 0.0, %v433
        %v435 = vpop.f32.mrb[0].mxu0
        %436 = vmatprep.mubr.bf16.mxu0 0
        %437 = vmatmul.mubr.bf16.gmra.mrb[0].mxu0 %v369
        %v438 = vpop.f32.mrb[0].mxu0
        %v439 = vadd.f32 0.0, %v438
        %v440 = vpop.f32.mrb[0].mxu0
        %v441 = vpop.f32.mrb[0].mxu0
        %v442 = vadd.f32 0.0, %v441
        %v443 = vpop.f32.mrb[0].mxu0
        %444 = vmatprep.mubr.bf16.mxu0 0
        %445 = vmatmul.mubr.bf16.gmra.mrb[0].mxu0 %v372
        %v446 = vpop.f32.mrb[0].mxu0
        %v447 = vadd.f32 0.0, %v446
        %v448 = vpop.f32.mrb[0].mxu0
        %v449 = vpop.f32.mrb[0].mxu0
        %v450 = vadd.f32 0.0, %v449
        %v451 = vpop.f32.mrb[0].mxu0
        %452 = vmatprep.mubr.bf16.mxu0 0
        %453 = vmatmul.mubr.bf16.gmra.mrb[0].mxu0 %v375
        %v454 = vpop.f32.mrb[0].mxu0
        %v455 = vadd.f32 0.0, %v454
        %v456 = vpop.f32.mrb[0].mxu0
        %v457 = vpop.f32.mrb[0].mxu0
        %v458 = vadd.f32 0.0, %v457
        %v459 = vpop.f32.mrb[0].mxu0
        %460 = vmatprep.mubr.bf16.mxu0 0
        %461 = vmatmul.mubr.bf16.gmra.mrb[0].mxu0 %v378
        %v462 = vpop.f32.mrb[0].mxu0
        %v463 = vadd.f32 0.0, %v462
        %v464 = vpop.f32.mrb[0].mxu0
        %v465 = vpop.f32.mrb[0].mxu0
        %v466 = vadd.f32 0.0, %v465
        %v467 = vpop.f32.mrb[0].mxu0
        %468 = vmatprep.mubr.bf16.mxu0 0
        %469 = vmatmul.mubr.bf16.gmra.mrb[0].mxu0 %v381
        %v470 = vpop.f32.mrb[0].mxu0
        %v471 = vadd.f32 0.0, %v470
        %v472 = vpop.f32.mrb[0].mxu0
        %v473 = vpop.f32.mrb[0].mxu0
        %v474 = vadd.f32 0.0, %v473
        %v475 = vpop.f32.mrb[0].mxu0
        %476 = vmatprep.mubr.bf16.mxu0 0
        %477 = vmatmul.mubr.bf16.gmra.mrb[0].mxu0 %v384
        %v478 = vpop.f32.mrb[0].mxu0
        %v479 = vadd.f32 0.0, %v478
        %v480 = vpop.f32.mrb[0].mxu0
        %v481 = vpop.f32.mrb[0].mxu0
        %v482 = vadd.f32 0.0, %v481
        %v483 = vpop.f32.mrb[0].mxu0
        %484 = vmatprep.mubr.bf16.mxu0 0
        %485 = vmatmul.mubr.bf16.gmra.mrb[0].mxu0 %v387
        %v486 = vpop.f32.mrb[0].mxu0
        %v487 = vadd.f32 0.0, %v486
        %v488 = vpop.f32.mrb[0].mxu0
        %v489 = vpop.f32.mrb[0].mxu0
        %v490 = vadd.f32 0.0, %v489
        %v491 = vpop.f32.mrb[0].mxu0
        %492 = vmatprep.mubr.bf16.mxu0 0
        %493 = vmatmul.mubr.bf16.gmra.mrb[0].mxu0 %v390
        %v494 = vpop.f32.mrb[0].mxu0
        %v495 = vadd.f32 0.0, %v494
        %v496 = vpop.f32.mrb[0].mxu0
        %v497 = vpop.f32.mrb[0].mxu0
        %v498 = vadd.f32 0.0, %v497
        %v499 = vpop.f32.mrb[0].mxu0
        %500 = vdwg.mxu0
        %s501 = smul.u32 %s17, 8
        %v502 = vstv %s501
        %v503 = vadd.s32 %v502, 1
        %v504 = vadd.s32 %v502, 2
        %v505 = vadd.s32 %v502, 3
        %v506 = vadd.s32 %v502, 4
        %v507 = vadd.s32 %v502, 5
        %v508 = vadd.s32 %v502, 6
        %v509 = vadd.s32 %v502, 7
        %vm510 = vcmp.lt.s32.totalorder %v502, 0
        %v511 = vsub.s32 0, %v502
        %v512 = vsel %vm510, %v511, %v502
        %v513 = vshrl.u32 %v512, 4
        %v514 = vand.u32 %v512, 15
        %v515 = vsub.s32 0, %v514
        %v516 = vsel %vm510, %v515, %v514
        %vm517 = vcmp.lt.s32.totalorder %v503, 0
        %v518 = vsub.s32 0, %v503
        %v519 = vsel %vm517, %v518, %v503
        %v520 = vshrl.u32 %v519, 4
        %v521 = vand.u32 %v519, 15
        %v522 = vsub.s32 0, %v521
        %v523 = vsel %vm517, %v522, %v521
        %vm524 = vcmp.lt.s32.totalorder %v504, 0
        %v525 = vsub.s32 0, %v504
        %v526 = vsel %vm524, %v525, %v504
        %v527 = vshrl.u32 %v526, 4
        %v528 = vand.u32 %v526, 15
        %v529 = vsub.s32 0, %v528
        %v530 = vsel %vm524, %v529, %v528
        %vm531 = vcmp.lt.s32.totalorder %v505, 0
        %v532 = vsub.s32 0, %v505
        %v533 = vsel %vm531, %v532, %v505
        %v534 = vshrl.u32 %v533, 4
        %v535 = vand.u32 %v533, 15
        %v536 = vsub.s32 0, %v535
        %v537 = vsel %vm531, %v536, %v535
        %vm538 = vcmp.lt.s32.totalorder %v506, 0
        %v539 = vsub.s32 0, %v506
        %v540 = vsel %vm538, %v539, %v506
        %v541 = vshrl.u32 %v540, 4
        %v542 = vand.u32 %v540, 15
        %v543 = vsub.s32 0, %v542
        %v544 = vsel %vm538, %v543, %v542
        %vm545 = vcmp.lt.s32.totalorder %v507, 0
        %v546 = vsub.s32 0, %v507
        %v547 = vsel %vm545, %v546, %v507
        %v548 = vshrl.u32 %v547, 4
        %v549 = vand.u32 %v547, 15
        %v550 = vsub.s32 0, %v549
        %v551 = vsel %vm545, %v550, %v549
        %vm552 = vcmp.lt.s32.totalorder %v508, 0
        %v553 = vsub.s32 0, %v508
        %v554 = vsel %vm552, %v553, %v508
        %v555 = vshrl.u32 %v554, 4
        %v556 = vand.u32 %v554, 15
        %v557 = vsub.s32 0, %v556
        %v558 = vsel %vm552, %v557, %v556
        %vm559 = vcmp.lt.s32.totalorder %v509, 0
        %v560 = vsub.s32 0, %v509
        %v561 = vsel %vm559, %v560, %v509
        %v562 = vshrl.u32 %v561, 4
        %v563 = vand.u32 %v561, 15
        %v564 = vsub.s32 0, %v563
        %v565 = vsel %vm559, %v564, %v563
        %vm566 = vcmp.ne.s32.totalorder %v516, 0
        %vm567 = vcmp.ne.s32.totalorder %v523, 0
        %vm568 = vcmp.ne.s32.totalorder %v530, 0
        %vm569 = vcmp.ne.s32.totalorder %v537, 0
        %vm570 = vcmp.ne.s32.totalorder %v544, 0
        %vm571 = vcmp.ne.s32.totalorder %v551, 0
        %vm572 = vcmp.ne.s32.totalorder %v558, 0
        %vm573 = vcmp.ne.s32.totalorder %v565, 0
        %vm574 = vcmp.lt.s32.totalorder %v516, 0
        %vm575 = vcmp.lt.s32.totalorder %v523, 0
        %vm576 = vcmp.lt.s32.totalorder %v530, 0
        %vm577 = vcmp.lt.s32.totalorder %v537, 0
        %vm578 = vcmp.lt.s32.totalorder %v544, 0
        %vm579 = vcmp.lt.s32.totalorder %v551, 0
        %vm580 = vcmp.lt.s32.totalorder %v558, 0
        %vm581 = vcmp.lt.s32.totalorder %v565, 0
        %vm582 = vmand %vm574, %vm566
        %vm583 = vmand %vm575, %vm567
        %vm584 = vmand %vm576, %vm568
        %vm585 = vmand %vm577, %vm569
        %vm586 = vmand %vm578, %vm570
        %vm587 = vmand %vm579, %vm571
        %vm588 = vmand %vm580, %vm572
        %vm589 = vmand %vm581, %vm573
        %v590 = vadd.s32 %v516, 16
        %v591 = vadd.s32 %v523, 16
        %v592 = vadd.s32 %v530, 16
        %v593 = vadd.s32 %v537, 16
        %v594 = vadd.s32 %v544, 16
        %v595 = vadd.s32 %v551, 16
        %v596 = vadd.s32 %v558, 16
        %v597 = vadd.s32 %v565, 16
        %v598 = vsel %vm582, %v590, %v516
        %v599 = vsel %vm583, %v591, %v523
        %v600 = vsel %vm584, %v592, %v530
        %v601 = vsel %vm585, %v593, %v537
        %v602 = vsel %vm586, %v594, %v544
        %v603 = vsel %vm587, %v595, %v551
        %v604 = vsel %vm588, %v596, %v558
        %v605 = vsel %vm589, %v597, %v565
        %vm606 = vcmp.ne.s32.totalorder %v598, 15
        %vm607 = vcmp.ne.s32.totalorder %v599, 15
        %vm608 = vcmp.ne.s32.totalorder %v600, 15
        %vm609 = vcmp.ne.s32.totalorder %v601, 15
        %vm610 = vcmp.ne.s32.totalorder %v602, 15
        %vm611 = vcmp.ne.s32.totalorder %v603, 15
        %vm612 = vcmp.ne.s32.totalorder %v604, 15
        %vm613 = vcmp.ne.s32.totalorder %v605, 15
        %vm630 = vcmask 1046528
        %v631 = vrot.slane %v431, 1
        %v632 = vrot.slane %v434, 1
        %v633 = vsel %vm630, %v631, %v632
        %v634 = vrot.slane %v439, 1
        %v635 = vrot.slane %v442, 1
        %v636 = vsel %vm630, %v634, %v635
        %v637 = vrot.slane %v447, 1
        %v638 = vrot.slane %v450, 1
        %v639 = vsel %vm630, %v637, %v638
        %v640 = vrot.slane %v455, 1
        %v641 = vrot.slane %v458, 1
        %v642 = vsel %vm630, %v640, %v641
        %v643 = vrot.slane %v463, 1
        %v644 = vrot.slane %v466, 1
        %v645 = vsel %vm630, %v643, %v644
        %v646 = vrot.slane %v471, 1
        %v647 = vrot.slane %v474, 1
        %v648 = vsel %vm630, %v646, %v647
        %v649 = vrot.slane %v479, 1
        %v650 = vrot.slane %v482, 1
        %v651 = vsel %vm630, %v649, %v650
        %v652 = vrot.slane %v487, 1
        %v653 = vrot.slane %v490, 1
        %v654 = vsel %vm630, %v652, %v653
        %v671 = vsel %vm630, %v632, 0.0
        %v672 = vsel %vm630, %v635, 0.0
        %v673 = vsel %vm630, %v638, 0.0
        %v674 = vsel %vm630, %v641, 0.0
        %v675 = vsel %vm630, %v644, 0.0
        %v676 = vsel %vm630, %v647, 0.0
        %v677 = vsel %vm630, %v650, 0.0
        %v678 = vsel %vm630, %v653, 0.0
        %679 = vrot.lane.b32.xlu0 %v431, 120
        %v680 = vpop.permute.xlu0 %679
        %681 = vrot.lane.b32.xlu0 %v434, 120
        %v682 = vpop.permute.xlu0 %681
        %683 = vrot.lane.b32.xlu0 %v439, 120
        %v684 = vpop.permute.xlu0 %683
        %685 = vrot.lane.b32.xlu0 %v442, 120
        %v686 = vpop.permute.xlu0 %685
        %687 = vrot.lane.b32.xlu0 %v447, 120
        %v688 = vpop.permute.xlu0 %687
        %689 = vrot.lane.b32.xlu0 %v450, 120
        %v690 = vpop.permute.xlu0 %689
        %691 = vrot.lane.b32.xlu0 %v455, 120
        %v692 = vpop.permute.xlu0 %691
        %693 = vrot.lane.b32.xlu0 %v458, 120
        %v694 = vpop.permute.xlu0 %693
        %695 = vrot.lane.b32.xlu0 %v463, 120
        %v696 = vpop.permute.xlu0 %695
        %697 = vrot.lane.b32.xlu0 %v466, 120
        %v698 = vpop.permute.xlu0 %697
        %699 = vrot.lane.b32.xlu0 %v471, 120
        %v700 = vpop.permute.xlu0 %699
        %701 = vrot.lane.b32.xlu0 %v474, 120
        %v702 = vpop.permute.xlu0 %701
        %703 = vrot.lane.b32.xlu0 %v479, 120
        %v704 = vpop.permute.xlu0 %703
        %705 = vrot.lane.b32.xlu0 %v482, 120
        %v706 = vpop.permute.xlu0 %705
        %707 = vrot.lane.b32.xlu0 %v487, 120
        %v708 = vpop.permute.xlu0 %707
        %709 = vrot.lane.b32.xlu0 %v490, 120
        %v710 = vpop.permute.xlu0 %709
        %v727 = vadd.f32 %v633, %v680
        %v728 = vadd.f32 %v671, %v682
        %v729 = vadd.f32 %v636, %v684
        %v730 = vadd.f32 %v672, %v686
        %v731 = vadd.f32 %v639, %v688
        %v732 = vadd.f32 %v673, %v690
        %v733 = vadd.f32 %v642, %v692
        %v734 = vadd.f32 %v674, %v694
        %v735 = vadd.f32 %v645, %v696
        %v736 = vadd.f32 %v675, %v698
        %v737 = vadd.f32 %v648, %v700
        %v738 = vadd.f32 %v676, %v702
        %v739 = vadd.f32 %v651, %v704
        %v740 = vadd.f32 %v677, %v706
        %v741 = vadd.f32 %v654, %v708
        %v742 = vadd.f32 %v678, %v710
        %v743 = vsel %vm606, %v439, 0.0
        %v744 = vsel %vm606, %v442, 0.0
        %v745 = vsel %vm607, %v447, 0.0
        %v746 = vsel %vm607, %v450, 0.0
        %v747 = vsel %vm608, %v455, 0.0
        %v748 = vsel %vm608, %v458, 0.0
        %v749 = vsel %vm609, %v463, 0.0
        %v750 = vsel %vm609, %v466, 0.0
        %v751 = vsel %vm610, %v471, 0.0
        %v752 = vsel %vm610, %v474, 0.0
        %v753 = vsel %vm611, %v479, 0.0
        %v754 = vsel %vm611, %v482, 0.0
        %v755 = vsel %vm612, %v487, 0.0
        %v756 = vsel %vm612, %v490, 0.0
        %v757 = vsel %vm613, %v495, 0.0
        %v758 = vsel %vm613, %v498, 0.0
        %759 = vrot.lane.b32.xlu0 %v431, 104
        %v760 = vpop.permute.xlu0 %759
        %761 = vrot.lane.b32.xlu0 %v434, 104
        %v762 = vpop.permute.xlu0 %761
        %763 = vrot.lane.b32.xlu0 %v439, 104
        %v764 = vpop.permute.xlu0 %763
        %765 = vrot.lane.b32.xlu0 %v442, 104
        %v766 = vpop.permute.xlu0 %765
        %767 = vrot.lane.b32.xlu0 %v447, 104
        %v768 = vpop.permute.xlu0 %767
        %769 = vrot.lane.b32.xlu0 %v450, 104
        %v770 = vpop.permute.xlu0 %769
        %771 = vrot.lane.b32.xlu0 %v455, 104
        %v772 = vpop.permute.xlu0 %771
        %773 = vrot.lane.b32.xlu0 %v458, 104
        %v774 = vpop.permute.xlu0 %773
        %775 = vrot.lane.b32.xlu0 %v463, 104
        %v776 = vpop.permute.xlu0 %775
        %777 = vrot.lane.b32.xlu0 %v466, 104
        %v778 = vpop.permute.xlu0 %777
        %779 = vrot.lane.b32.xlu0 %v471, 104
        %v780 = vpop.permute.xlu0 %779
        %781 = vrot.lane.b32.xlu0 %v474, 104
        %v782 = vpop.permute.xlu0 %781
        %783 = vrot.lane.b32.xlu0 %v479, 104
        %v784 = vpop.permute.xlu0 %783
        %785 = vrot.lane.b32.xlu0 %v482, 104
        %v786 = vpop.permute.xlu0 %785
        %787 = vrot.lane.b32.xlu0 %v487, 104
        %v788 = vpop.permute.xlu0 %787
        %789 = vrot.lane.b32.xlu0 %v490, 104
        %v790 = vpop.permute.xlu0 %789
        %v807 = vadd.f32 %v743, %v760
        %v808 = vadd.f32 %v744, %v762
        %v809 = vadd.f32 %v745, %v764
        %v810 = vadd.f32 %v746, %v766
        %v811 = vadd.f32 %v747, %v768
        %v812 = vadd.f32 %v748, %v770
        %v813 = vadd.f32 %v749, %v772
        %v814 = vadd.f32 %v750, %v774
        %v815 = vadd.f32 %v751, %v776
        %v816 = vadd.f32 %v752, %v778
        %v817 = vadd.f32 %v753, %v780
        %v818 = vadd.f32 %v754, %v782
        %v819 = vadd.f32 %v755, %v784
        %v820 = vadd.f32 %v756, %v786
        %v821 = vadd.f32 %v757, %v788
        %v822 = vadd.f32 %v758, %v790
        %v825 = vrot.slane %v495, 1
        %v826 = vrot.slane %v498, 1
        %v827 = vsel %vm630, %v825, %v826
        %v830 = vsel %vm630, %v826, 0.0
        %v831 = vsel %vm606, %v636, 0.0
        %v832 = vsel %vm606, %v672, 0.0
        %v833 = vsel %vm607, %v639, 0.0
        %v834 = vsel %vm607, %v673, 0.0
        %v835 = vsel %vm608, %v642, 0.0
        %v836 = vsel %vm608, %v674, 0.0
        %v837 = vsel %vm609, %v645, 0.0
        %v838 = vsel %vm609, %v675, 0.0
        %v839 = vsel %vm610, %v648, 0.0
        %v840 = vsel %vm610, %v676, 0.0
        %v841 = vsel %vm611, %v651, 0.0
        %v842 = vsel %vm611, %v677, 0.0
        %v843 = vsel %vm612, %v654, 0.0
        %v844 = vsel %vm612, %v678, 0.0
        %v845 = vsel %vm613, %v827, 0.0
        %v846 = vsel %vm613, %v830, 0.0
        %863 = vrot.lane.b32.xlu0 %v743, 120
        %v864 = vpop.permute.xlu0 %863
        %865 = vrot.lane.b32.xlu0 %v744, 120
        %v866 = vpop.permute.xlu0 %865
        %867 = vrot.lane.b32.xlu0 %v745, 120
        %v868 = vpop.permute.xlu0 %867
        %869 = vrot.lane.b32.xlu0 %v746, 120
        %v870 = vpop.permute.xlu0 %869
        %871 = vrot.lane.b32.xlu0 %v747, 120
        %v872 = vpop.permute.xlu0 %871
        %873 = vrot.lane.b32.xlu0 %v748, 120
        %v874 = vpop.permute.xlu0 %873
        %875 = vrot.lane.b32.xlu0 %v749, 120
        %v876 = vpop.permute.xlu0 %875
        %877 = vrot.lane.b32.xlu0 %v750, 120
        %v878 = vpop.permute.xlu0 %877
        %879 = vrot.lane.b32.xlu0 %v751, 120
        %v880 = vpop.permute.xlu0 %879
        %881 = vrot.lane.b32.xlu0 %v752, 120
        %v882 = vpop.permute.xlu0 %881
        %883 = vrot.lane.b32.xlu0 %v753, 120
        %v884 = vpop.permute.xlu0 %883
        %885 = vrot.lane.b32.xlu0 %v754, 120
        %v886 = vpop.permute.xlu0 %885
        %887 = vrot.lane.b32.xlu0 %v755, 120
        %v888 = vpop.permute.xlu0 %887
        %889 = vrot.lane.b32.xlu0 %v756, 120
        %v890 = vpop.permute.xlu0 %889
        %891 = vrot.lane.b32.xlu0 %v757, 120
        %v892 = vpop.permute.xlu0 %891
        %893 = vrot.lane.b32.xlu0 %v758, 120
        %v894 = vpop.permute.xlu0 %893
        %v911 = vadd.f32 %v831, %v864
        %v912 = vadd.f32 %v832, %v866
        %v913 = vadd.f32 %v833, %v868
        %v914 = vadd.f32 %v834, %v870
        %v915 = vadd.f32 %v835, %v872
        %v916 = vadd.f32 %v836, %v874
        %v917 = vadd.f32 %v837, %v876
        %v918 = vadd.f32 %v838, %v878
        %v919 = vadd.f32 %v839, %v880
        %v920 = vadd.f32 %v840, %v882
        %v921 = vadd.f32 %v841, %v884
        %v922 = vadd.f32 %v842, %v886
        %v923 = vadd.f32 %v843, %v888
        %v924 = vadd.f32 %v844, %v890
        %v925 = vadd.f32 %v845, %v892
        %v926 = vadd.f32 %v846, %v894
        %935 = vrot.lane.b32.xlu0 %v633, 104
        %v936 = vpop.permute.xlu0 %935
        %937 = vrot.lane.b32.xlu0 %v671, 104
        %v938 = vpop.permute.xlu0 %937
        %939 = vrot.lane.b32.xlu0 %v636, 104
        %v940 = vpop.permute.xlu0 %939
        %941 = vrot.lane.b32.xlu0 %v672, 104
        %v942 = vpop.permute.xlu0 %941
        %943 = vrot.lane.b32.xlu0 %v639, 104
        %v944 = vpop.permute.xlu0 %943
        %945 = vrot.lane.b32.xlu0 %v673, 104
        %v946 = vpop.permute.xlu0 %945
        %947 = vrot.lane.b32.xlu0 %v642, 104
        %v948 = vpop.permute.xlu0 %947
        %949 = vrot.lane.b32.xlu0 %v674, 104
        %v950 = vpop.permute.xlu0 %949
        %951 = vrot.lane.b32.xlu0 %v645, 104
        %v952 = vpop.permute.xlu0 %951
        %953 = vrot.lane.b32.xlu0 %v675, 104
        %v954 = vpop.permute.xlu0 %953
        %955 = vrot.lane.b32.xlu0 %v648, 104
        %v956 = vpop.permute.xlu0 %955
        %957 = vrot.lane.b32.xlu0 %v676, 104
        %v958 = vpop.permute.xlu0 %957
        %959 = vrot.lane.b32.xlu0 %v651, 104
        %v960 = vpop.permute.xlu0 %959
        %961 = vrot.lane.b32.xlu0 %v677, 104
        %v962 = vpop.permute.xlu0 %961
        %963 = vrot.lane.b32.xlu0 %v654, 104
        %v964 = vpop.permute.xlu0 %963
        %965 = vrot.lane.b32.xlu0 %v678, 104
        %v966 = vpop.permute.xlu0 %965
        %v983 = vadd.f32 %v911, %v936
        %v984 = vadd.f32 %v912, %v938
        %v985 = vadd.f32 %v913, %v940
        %v986 = vadd.f32 %v914, %v942
        %v987 = vadd.f32 %v915, %v944
        %v988 = vadd.f32 %v916, %v946
        %v989 = vadd.f32 %v917, %v948
        %v990 = vadd.f32 %v918, %v950
        %v991 = vadd.f32 %v919, %v952
        %v992 = vadd.f32 %v920, %v954
        %v993 = vadd.f32 %v921, %v956
        %v994 = vadd.f32 %v922, %v958
        %v995 = vadd.f32 %v923, %v960
        %v996 = vadd.f32 %v924, %v962
        %v997 = vadd.f32 %v925, %v964
        %v998 = vadd.f32 %v926, %v966
        %999 = vrot.lane.b32.xlu0 %v431, 96
        %v1000 = vpop.permute.xlu0 %999
        %1001 = vrot.lane.b32.xlu0 %v434, 96
        %v1002 = vpop.permute.xlu0 %1001
        %1003 = vrot.lane.b32.xlu0 %v439, 96
        %v1004 = vpop.permute.xlu0 %1003
        %1005 = vrot.lane.b32.xlu0 %v442, 96
        %v1006 = vpop.permute.xlu0 %1005
        %1007 = vrot.lane.b32.xlu0 %v447, 96
        %v1008 = vpop.permute.xlu0 %1007
        %1009 = vrot.lane.b32.xlu0 %v450, 96
        %v1010 = vpop.permute.xlu0 %1009
        %1011 = vrot.lane.b32.xlu0 %v455, 96
        %v1012 = vpop.permute.xlu0 %1011
        %1013 = vrot.lane.b32.xlu0 %v458, 96
        %v1014 = vpop.permute.xlu0 %1013
        %1015 = vrot.lane.b32.xlu0 %v463, 96
        %v1016 = vpop.permute.xlu0 %1015
        %1017 = vrot.lane.b32.xlu0 %v466, 96
        %v1018 = vpop.permute.xlu0 %1017
        %1019 = vrot.lane.b32.xlu0 %v471, 96
        %v1020 = vpop.permute.xlu0 %1019
        %1021 = vrot.lane.b32.xlu0 %v474, 96
        %v1022 = vpop.permute.xlu0 %1021
        %1023 = vrot.lane.b32.xlu0 %v479, 96
        %v1024 = vpop.permute.xlu0 %1023
        %1025 = vrot.lane.b32.xlu0 %v482, 96
        %v1026 = vpop.permute.xlu0 %1025
        %1027 = vrot.lane.b32.xlu0 %v487, 96
        %v1028 = vpop.permute.xlu0 %1027
        %1029 = vrot.lane.b32.xlu0 %v490, 96
        %v1030 = vpop.permute.xlu0 %1029
        %v1047 = vadd.f32 %v983, %v1000
        %v1048 = vadd.f32 %v984, %v1002
        %v1049 = vadd.f32 %v985, %v1004
        %v1050 = vadd.f32 %v986, %v1006
        %v1051 = vadd.f32 %v987, %v1008
        %v1052 = vadd.f32 %v988, %v1010
        %v1053 = vadd.f32 %v989, %v1012
        %v1054 = vadd.f32 %v990, %v1014
        %v1055 = vadd.f32 %v991, %v1016
        %v1056 = vadd.f32 %v992, %v1018
        %v1057 = vadd.f32 %v993, %v1020
        %v1058 = vadd.f32 %v994, %v1022
        %v1059 = vadd.f32 %v995, %v1024
        %v1060 = vadd.f32 %v996, %v1026
        %v1061 = vadd.f32 %v997, %v1028
        %v1062 = vadd.f32 %v998, %v1030
        %1063 = vrot.lane.b32.xlu0 %v431, 112
        %v1064 = vpop.permute.xlu0 %1063
        %1065 = vrot.lane.b32.xlu0 %v434, 112
        %v1066 = vpop.permute.xlu0 %1065
        %1067 = vrot.lane.b32.xlu0 %v439, 112
        %v1068 = vpop.permute.xlu0 %1067
        %1069 = vrot.lane.b32.xlu0 %v442, 112
        %v1070 = vpop.permute.xlu0 %1069
        %1071 = vrot.lane.b32.xlu0 %v447, 112
        %v1072 = vpop.permute.xlu0 %1071
        %1073 = vrot.lane.b32.xlu0 %v450, 112
        %v1074 = vpop.permute.xlu0 %1073
        %1075 = vrot.lane.b32.xlu0 %v455, 112
        %v1076 = vpop.permute.xlu0 %1075
        %1077 = vrot.lane.b32.xlu0 %v458, 112
        %v1078 = vpop.permute.xlu0 %1077
        %1079 = vrot.lane.b32.xlu0 %v463, 112
        %v1080 = vpop.permute.xlu0 %1079
        %1081 = vrot.lane.b32.xlu0 %v466, 112
        %v1082 = vpop.permute.xlu0 %1081
        %1083 = vrot.lane.b32.xlu0 %v471, 112
        %v1084 = vpop.permute.xlu0 %1083
        %1085 = vrot.lane.b32.xlu0 %v474, 112
        %v1086 = vpop.permute.xlu0 %1085
        %1087 = vrot.lane.b32.xlu0 %v479, 112
        %v1088 = vpop.permute.xlu0 %1087
        %1089 = vrot.lane.b32.xlu0 %v482, 112
        %v1090 = vpop.permute.xlu0 %1089
        %1091 = vrot.lane.b32.xlu0 %v487, 112
        %v1092 = vpop.permute.xlu0 %1091
        %1093 = vrot.lane.b32.xlu0 %v490, 112
        %v1094 = vpop.permute.xlu0 %1093
        %1111 = vst.msk [vmem:[%s247] sm:$0xff] %vm364, %v1064
        %1112 = vst.msk [vmem:[%s247 + $0x8] sm:$0xff] %vm364, %v1066
        %1113 = vst.msk [vmem:[%s247 + $0x10] sm:$0xff] %vm364, %v1068
        %1114 = vst.msk [vmem:[%s247 + $0x18] sm:$0xff] %vm364, %v1070
        %1115 = vst.msk [vmem:[%s247 + $0x20] sm:$0xff] %vm364, %v1072
        %1116 = vst.msk [vmem:[%s247 + $0x28] sm:$0xff] %vm364, %v1074
        %1117 = vst.msk [vmem:[%s247 + $0x30] sm:$0xff] %vm364, %v1076
        %1118 = vst.msk [vmem:[%s247 + $0x38] sm:$0xff] %vm364, %v1078
        %1119 = vst.msk [vmem:[%s247 + $0x40] sm:$0xff] %vm364, %v1080
        %1120 = vst.msk [vmem:[%s247 + $0x48] sm:$0xff] %vm364, %v1082
        %1121 = vst.msk [vmem:[%s247 + $0x50] sm:$0xff] %vm364, %v1084
        %1122 = vst.msk [vmem:[%s247 + $0x58] sm:$0xff] %vm364, %v1086
        %1123 = vst.msk [vmem:[%s247 + $0x60] sm:$0xff] %vm364, %v1088
        %1124 = vst.msk [vmem:[%s247 + $0x68] sm:$0xff] %vm364, %v1090
        %1125 = vst.msk [vmem:[%s247 + $0x70] sm:$0xff] %vm364, %v1092
        %1126 = vst.msk [vmem:[%s247 + $0x78] sm:$0xff] %vm364, %v1094
        %1143 = vrot.lane.b32.xlu0 %v727, 116
        %v1144 = vpop.permute.xlu0 %1143
        %1145 = vrot.lane.b32.xlu0 %v728, 116
        %v1146 = vpop.permute.xlu0 %1145
        %1147 = vrot.lane.b32.xlu0 %v729, 116
        %v1148 = vpop.permute.xlu0 %1147
        %1149 = vrot.lane.b32.xlu0 %v730, 116
        %v1150 = vpop.permute.xlu0 %1149
        %1151 = vrot.lane.b32.xlu0 %v731, 116
        %v1152 = vpop.permute.xlu0 %1151
        %1153 = vrot.lane.b32.xlu0 %v732, 116
        %v1154 = vpop.permute.xlu0 %1153
        %1155 = vrot.lane.b32.xlu0 %v733, 116
        %v1156 = vpop.permute.xlu0 %1155
        %1157 = vrot.lane.b32.xlu0 %v734, 116
        %v1158 = vpop.permute.xlu0 %1157
        %1159 = vrot.lane.b32.xlu0 %v735, 116
        %v1160 = vpop.permute.xlu0 %1159
        %1161 = vrot.lane.b32.xlu0 %v736, 116
        %v1162 = vpop.permute.xlu0 %1161
        %1163 = vrot.lane.b32.xlu0 %v737, 116
        %v1164 = vpop.permute.xlu0 %1163
        %1165 = vrot.lane.b32.xlu0 %v738, 116
        %v1166 = vpop.permute.xlu0 %1165
        %1167 = vrot.lane.b32.xlu0 %v739, 116
        %v1168 = vpop.permute.xlu0 %1167
        %1169 = vrot.lane.b32.xlu0 %v740, 116
        %v1170 = vpop.permute.xlu0 %1169
        %1171 = vrot.lane.b32.xlu0 %v741, 116
        %v1172 = vpop.permute.xlu0 %1171
        %1173 = vrot.lane.b32.xlu0 %v742, 116
        %v1174 = vpop.permute.xlu0 %1173
        %s1191 = scalar_lea.vmem %s247, 128 [#allocation2]
        %1192 = vst.msk [vmem:[%s1191] sm:$0xff] %vm364, %v1144
        %1193 = vst.msk [vmem:[%s1191 + $0x8] sm:$0xff] %vm364, %v1146
        %1194 = vst.msk [vmem:[%s1191 + $0x10] sm:$0xff] %vm364, %v1148
        %1195 = vst.msk [vmem:[%s1191 + $0x18] sm:$0xff] %vm364, %v1150
        %1196 = vst.msk [vmem:[%s1191 + $0x20] sm:$0xff] %vm364, %v1152
        %1197 = vst.msk [vmem:[%s1191 + $0x28] sm:$0xff] %vm364, %v1154
        %1198 = vst.msk [vmem:[%s1191 + $0x30] sm:$0xff] %vm364, %v1156
        %1199 = vst.msk [vmem:[%s1191 + $0x38] sm:$0xff] %vm364, %v1158
        %1200 = vst.msk [vmem:[%s1191 + $0x40] sm:$0xff] %vm364, %v1160
        %1201 = vst.msk [vmem:[%s1191 + $0x48] sm:$0xff] %vm364, %v1162
        %1202 = vst.msk [vmem:[%s1191 + $0x50] sm:$0xff] %vm364, %v1164
        %1203 = vst.msk [vmem:[%s1191 + $0x58] sm:$0xff] %vm364, %v1166
        %1204 = vst.msk [vmem:[%s1191 + $0x60] sm:$0xff] %vm364, %v1168
        %1205 = vst.msk [vmem:[%s1191 + $0x68] sm:$0xff] %vm364, %v1170
        %1206 = vst.msk [vmem:[%s1191 + $0x70] sm:$0xff] %vm364, %v1172
        %1207 = vst.msk [vmem:[%s1191 + $0x78] sm:$0xff] %vm364, %v1174
        %1224 = vrot.lane.b32.xlu0 %v807, 124
        %v1225 = vpop.permute.xlu0 %1224
        %1226 = vrot.lane.b32.xlu0 %v808, 124
        %v1227 = vpop.permute.xlu0 %1226
        %1228 = vrot.lane.b32.xlu0 %v809, 124
        %v1229 = vpop.permute.xlu0 %1228
        %1230 = vrot.lane.b32.xlu0 %v810, 124
        %v1231 = vpop.permute.xlu0 %1230
        %1232 = vrot.lane.b32.xlu0 %v811, 124
        %v1233 = vpop.permute.xlu0 %1232
        %1234 = vrot.lane.b32.xlu0 %v812, 124
        %v1235 = vpop.permute.xlu0 %1234
        %1236 = vrot.lane.b32.xlu0 %v813, 124
        %v1237 = vpop.permute.xlu0 %1236
        %1238 = vrot.lane.b32.xlu0 %v814, 124
        %v1239 = vpop.permute.xlu0 %1238
        %1240 = vrot.lane.b32.xlu0 %v815, 124
        %v1241 = vpop.permute.xlu0 %1240
        %1242 = vrot.lane.b32.xlu0 %v816, 124
        %v1243 = vpop.permute.xlu0 %1242
        %1244 = vrot.lane.b32.xlu0 %v817, 124
        %v1245 = vpop.permute.xlu0 %1244
        %1246 = vrot.lane.b32.xlu0 %v818, 124
        %v1247 = vpop.permute.xlu0 %1246
        %1248 = vrot.lane.b32.xlu0 %v819, 124
        %v1249 = vpop.permute.xlu0 %1248
        %1250 = vrot.lane.b32.xlu0 %v820, 124
        %v1251 = vpop.permute.xlu0 %1250
        %1252 = vrot.lane.b32.xlu0 %v821, 124
        %v1253 = vpop.permute.xlu0 %1252
        %1254 = vrot.lane.b32.xlu0 %v822, 124
        %v1255 = vpop.permute.xlu0 %1254
        %s1272 = scalar_lea.vmem %s247, 256 [#allocation2]
        %1273 = vst.msk [vmem:[%s1272] sm:$0xff] %vm364, %v1225
        %1274 = vst.msk [vmem:[%s1272 + $0x8] sm:$0xff] %vm364, %v1227
        %1275 = vst.msk [vmem:[%s1272 + $0x10] sm:$0xff] %vm364, %v1229
        %1276 = vst.msk [vmem:[%s1272 + $0x18] sm:$0xff] %vm364, %v1231
        %1277 = vst.msk [vmem:[%s1272 + $0x20] sm:$0xff] %vm364, %v1233
        %1278 = vst.msk [vmem:[%s1272 + $0x28] sm:$0xff] %vm364, %v1235
        %1279 = vst.msk [vmem:[%s1272 + $0x30] sm:$0xff] %vm364, %v1237
        %1280 = vst.msk [vmem:[%s1272 + $0x38] sm:$0xff] %vm364, %v1239
        %1281 = vst.msk [vmem:[%s1272 + $0x40] sm:$0xff] %vm364, %v1241
        %1282 = vst.msk [vmem:[%s1272 + $0x48] sm:$0xff] %vm364, %v1243
        %1283 = vst.msk [vmem:[%s1272 + $0x50] sm:$0xff] %vm364, %v1245
        %1284 = vst.msk [vmem:[%s1272 + $0x58] sm:$0xff] %vm364, %v1247
        %1285 = vst.msk [vmem:[%s1272 + $0x60] sm:$0xff] %vm364, %v1249
        %1286 = vst.msk [vmem:[%s1272 + $0x68] sm:$0xff] %vm364, %v1251
        %1287 = vst.msk [vmem:[%s1272 + $0x70] sm:$0xff] %vm364, %v1253
        %1288 = vst.msk [vmem:[%s1272 + $0x78] sm:$0xff] %vm364, %v1255
        %s1289 = scalar_lea.vmem %s247, 384 [#allocation2]
        %1290 = vst.msk [vmem:[%s1289] sm:$0xff] %vm364, %v1047
        %1291 = vst.msk [vmem:[%s1289 + $0x8] sm:$0xff] %vm364, %v1048
        %1292 = vst.msk [vmem:[%s1289 + $0x10] sm:$0xff] %vm364, %v1049
        %1293 = vst.msk [vmem:[%s1289 + $0x18] sm:$0xff] %vm364, %v1050
        %1294 = vst.msk [vmem:[%s1289 + $0x20] sm:$0xff] %vm364, %v1051
        %1295 = vst.msk [vmem:[%s1289 + $0x28] sm:$0xff] %vm364, %v1052
        %1296 = vst.msk [vmem:[%s1289 + $0x30] sm:$0xff] %vm364, %v1053
        %1297 = vst.msk [vmem:[%s1289 + $0x38] sm:$0xff] %vm364, %v1054
        %1298 = vst.msk [vmem:[%s1289 + $0x40] sm:$0xff] %vm364, %v1055
        %1299 = vst.msk [vmem:[%s1289 + $0x48] sm:$0xff] %vm364, %v1056
        %1300 = vst.msk [vmem:[%s1289 + $0x50] sm:$0xff] %vm364, %v1057
        %1301 = vst.msk [vmem:[%s1289 + $0x58] sm:$0xff] %vm364, %v1058
        %1302 = vst.msk [vmem:[%s1289 + $0x60] sm:$0xff] %vm364, %v1059
        %1303 = vst.msk [vmem:[%s1289 + $0x68] sm:$0xff] %vm364, %v1060
        %1304 = vst.msk [vmem:[%s1289 + $0x70] sm:$0xff] %vm364, %v1061
        %1305 = vst.msk [vmem:[%s1289 + $0x78] sm:$0xff] %vm364, %v1062
        %p1306 = scmp.eq.s32.totalorder %s17, 0
        // Predicated region
        $region37: #{decoder_block.5} parent=35 // pred_check
          %p1307 = pneg %p1306
        $region38: #{decoder_block.5} parent=35 // pred_check_branch
          %1309 = sbr.rel (%p1307) target = $region40
        $region39: #{decoder_block.5} parent=35 // pred_region
          %vm1310 = vcmask 25600
          %1311 = vst.msk [vmem:[%s5] sm:$0x3] %vm1310, 0.0
        $region40: #{decoder_block.5} parent=35 // pred_fallthru
          _
        %vm1312 = vcmask 162944
        %v1313 = vsel %vm1312, %v431, 0.0
        %v1314 = vsel %vm1312, %v434, 0.0
        %v1315 = vadd.f32 %v1313, %v1314
        %v1316 = vsel %vm1312, %v439, 0.0
        %v1317 = vadd.f32 %v1315, %v1316
        %v1318 = vsel %vm1312, %v442, 0.0
        %v1319 = vadd.f32 %v1317, %v1318
        %v1320 = vsel %vm1312, %v447, 0.0
        %v1321 = vadd.f32 %v1319, %v1320
        %v1322 = vsel %vm1312, %v450, 0.0
        %v1323 = vadd.f32 %v1321, %v1322
        %v1324 = vsel %vm1312, %v455, 0.0
        %v1325 = vadd.f32 %v1323, %v1324
        %v1326 = vsel %vm1312, %v458, 0.0
        %v1327 = vadd.f32 %v1325, %v1326
        %v1328 = vsel %vm1312, %v463, 0.0
        %v1329 = vadd.f32 %v1327, %v1328
        %v1330 = vsel %vm1312, %v466, 0.0
        %v1331 = vadd.f32 %v1329, %v1330
        %v1332 = vsel %vm1312, %v471, 0.0
        %v1333 = vadd.f32 %v1331, %v1332
        %v1334 = vsel %vm1312, %v474, 0.0
        %v1335 = vadd.f32 %v1333, %v1334
        %v1336 = vsel %vm1312, %v479, 0.0
        %v1337 = vadd.f32 %v1335, %v1336
        %v1338 = vsel %vm1312, %v482, 0.0
        %v1339 = vadd.f32 %v1337, %v1338
        %v1340 = vsel %vm1312, %v487, 0.0
        %v1341 = vadd.f32 %v1339, %v1340
        %v1342 = vsel %vm1312, %v490, 0.0
        %v1343 = vadd.f32 %v1341, %v1342
        %v1344 = vrot.slane %v1343, 4
        %v1345 = vadd.f32 %v1343, %v1344
        %v1346 = vrot.slane %v1345, 2
        %v1347 = vadd.f32 %v1345, %v1346
        %v1348 = vrot.slane %v1347, 1
        %v1349 = vadd.f32 %v1347, %v1348
        %v1350 = vadd.f32 %v1349, 0.0
        %v1351 = vmul.f32 %v431, %v431
        %v1352 = vmul.f32 %v434, %v434
        %v1353 = vmul.f32 %v439, %v439
        %v1354 = vmul.f32 %v442, %v442
        %v1355 = vmul.f32 %v447, %v447
        %v1356 = vmul.f32 %v450, %v450
        %v1357 = vmul.f32 %v455, %v455
        %v1358 = vmul.f32 %v458, %v458
        %v1359 = vmul.f32 %v463, %v463
        %v1360 = vmul.f32 %v466, %v466
        %v1361 = vmul.f32 %v471, %v471
        %v1362 = vmul.f32 %v474, %v474
        %v1363 = vmul.f32 %v479, %v479
        %v1364 = vmul.f32 %v482, %v482
        %v1365 = vmul.f32 %v487, %v487
        %v1366 = vmul.f32 %v490, %v490
        %v1367 = vsel %vm1312, %v1351, 0.0
        %v1368 = vsel %vm1312, %v1352, 0.0
        %v1369 = vadd.f32 %v1367, %v1368
        %v1370 = vsel %vm1312, %v1353, 0.0
        %v1371 = vadd.f32 %v1369, %v1370
        %v1372 = vsel %vm1312, %v1354, 0.0
        %v1373 = vadd.f32 %v1371, %v1372
        %v1374 = vsel %vm1312, %v1355, 0.0
        %v1375 = vadd.f32 %v1373, %v1374
        %v1376 = vsel %vm1312, %v1356, 0.0
        %v1377 = vadd.f32 %v1375, %v1376
        %v1378 = vsel %vm1312, %v1357, 0.0
        %v1379 = vadd.f32 %v1377, %v1378
        %v1380 = vsel %vm1312, %v1358, 0.0
        %v1381 = vadd.f32 %v1379, %v1380
        %v1382 = vsel %vm1312, %v1359, 0.0
        %v1383 = vadd.f32 %v1381, %v1382
        %v1384 = vsel %vm1312, %v1360, 0.0
        %v1385 = vadd.f32 %v1383, %v1384
        %v1386 = vsel %vm1312, %v1361, 0.0
        %v1387 = vadd.f32 %v1385, %v1386
        %v1388 = vsel %vm1312, %v1362, 0.0
        %v1389 = vadd.f32 %v1387, %v1388
        %v1390 = vsel %vm1312, %v1363, 0.0
        %v1391 = vadd.f32 %v1389, %v1390
        %v1392 = vsel %vm1312, %v1364, 0.0
        %v1393 = vadd.f32 %v1391, %v1392
        %v1394 = vsel %vm1312, %v1365, 0.0
        %v1395 = vadd.f32 %v1393, %v1394
        %v1396 = vsel %vm1312, %v1366, 0.0
        %v1397 = vadd.f32 %v1395, %v1396
        %v1398 = vrot.slane %v1397, 4
        %v1399 = vadd.f32 %v1397, %v1398
        %v1400 = vrot.slane %v1399, 2
        %v1401 = vadd.f32 %v1399, %v1400
        %v1402 = vrot.slane %v1401, 1
        %v1403 = vadd.f32 %v1401, %v1402
        %v1404 = vadd.f32 %v1403, 0.0
        %vm1405 = vcmask 130144
        %v1406 = vsel %vm1405, %v727, 0.0
        %v1407 = vsel %vm1405, %v728, 0.0
        %v1408 = vadd.f32 %v1406, %v1407
        %v1409 = vsel %vm1405, %v729, 0.0
        %v1410 = vadd.f32 %v1408, %v1409
        %v1411 = vsel %vm1405, %v730, 0.0
        %v1412 = vadd.f32 %v1410, %v1411
        %v1413 = vsel %vm1405, %v731, 0.0
        %v1414 = vadd.f32 %v1412, %v1413
        %v1415 = vsel %vm1405, %v732, 0.0
        %v1416 = vadd.f32 %v1414, %v1415
        %v1417 = vsel %vm1405, %v733, 0.0
        %v1418 = vadd.f32 %v1416, %v1417
        %v1419 = vsel %vm1405, %v734, 0.0
        %v1420 = vadd.f32 %v1418, %v1419
        %v1421 = vsel %vm1405, %v735, 0.0
        %v1422 = vadd.f32 %v1420, %v1421
        %v1423 = vsel %vm1405, %v736, 0.0
        %v1424 = vadd.f32 %v1422, %v1423
        %v1425 = vsel %vm1405, %v737, 0.0
        %v1426 = vadd.f32 %v1424, %v1425
        %v1427 = vsel %vm1405, %v738, 0.0
        %v1428 = vadd.f32 %v1426, %v1427
        %v1429 = vsel %vm1405, %v739, 0.0
        %v1430 = vadd.f32 %v1428, %v1429
        %v1431 = vsel %vm1405, %v740, 0.0
        %v1432 = vadd.f32 %v1430, %v1431
        %v1433 = vsel %vm1405, %v741, 0.0
        %v1434 = vadd.f32 %v1432, %v1433
        %v1435 = vsel %vm1405, %v742, 0.0
        %v1436 = vadd.f32 %v1434, %v1435
        %v1437 = vrot.slane %v1436, 4
        %v1438 = vadd.f32 %v1436, %v1437
        %v1439 = vrot.slane %v1438, 2
        %v1440 = vadd.f32 %v1438, %v1439
        %v1441 = vrot.slane %v1440, 1
        %v1442 = vadd.f32 %v1440, %v1441
        %1444 = vrot.lane.b32.xlu0 %v1442, 4
        %v1445 = vpop.permute.xlu0 %1444
        %v1447 = vadd.f32 %v1350, %v1445
        %v1448 = vmul.f32 %v727, %v727
        %v1449 = vmul.f32 %v728, %v728
        %v1450 = vmul.f32 %v729, %v729
        %v1451 = vmul.f32 %v730, %v730
        %v1452 = vmul.f32 %v731, %v731
        %v1453 = vmul.f32 %v732, %v732
        %v1454 = vmul.f32 %v733, %v733
        %v1455 = vmul.f32 %v734, %v734
        %v1456 = vmul.f32 %v735, %v735
        %v1457 = vmul.f32 %v736, %v736
        %v1458 = vmul.f32 %v737, %v737
        %v1459 = vmul.f32 %v738, %v738
        %v1460 = vmul.f32 %v739, %v739
        %v1461 = vmul.f32 %v740, %v740
        %v1462 = vmul.f32 %v741, %v741
        %v1463 = vmul.f32 %v742, %v742
        %v1464 = vsel %vm1405, %v1448, 0.0
        %v1465 = vsel %vm1405, %v1449, 0.0
        %v1466 = vadd.f32 %v1464, %v1465
        %v1467 = vsel %vm1405, %v1450, 0.0
        %v1468 = vadd.f32 %v1466, %v1467
        %v1469 = vsel %vm1405, %v1451, 0.0
        %v1470 = vadd.f32 %v1468, %v1469
        %v1471 = vsel %vm1405, %v1452, 0.0
        %v1472 = vadd.f32 %v1470, %v1471
        %v1473 = vsel %vm1405, %v1453, 0.0
        %v1474 = vadd.f32 %v1472, %v1473
        %v1475 = vsel %vm1405, %v1454, 0.0
        %v1476 = vadd.f32 %v1474, %v1475
        %v1477 = vsel %vm1405, %v1455, 0.0
        %v1478 = vadd.f32 %v1476, %v1477
        %v1479 = vsel %vm1405, %v1456, 0.0
        %v1480 = vadd.f32 %v1478, %v1479
        %v1481 = vsel %vm1405, %v1457, 0.0
        %v1482 = vadd.f32 %v1480, %v1481
        %v1483 = vsel %vm1405, %v1458, 0.0
        %v1484 = vadd.f32 %v1482, %v1483
        %v1485 = vsel %vm1405, %v1459, 0.0
        %v1486 = vadd.f32 %v1484, %v1485
        %v1487 = vsel %vm1405, %v1460, 0.0
        %v1488 = vadd.f32 %v1486, %v1487
        %v1489 = vsel %vm1405, %v1461, 0.0
        %v1490 = vadd.f32 %v1488, %v1489
        %v1491 = vsel %vm1405, %v1462, 0.0
        %v1492 = vadd.f32 %v1490, %v1491
        %v1493 = vsel %vm1405, %v1463, 0.0
        %v1494 = vadd.f32 %v1492, %v1493
        %v1495 = vrot.slane %v1494, 4
        %v1496 = vadd.f32 %v1494, %v1495
        %v1497 = vrot.slane %v1496, 2
        %v1498 = vadd.f32 %v1496, %v1497
        %v1499 = vrot.slane %v1498, 1
        %v1500 = vadd.f32 %v1498, %v1499
        %1502 = vrot.lane.b32.xlu0 %v1500, 4
        %v1503 = vpop.permute.xlu0 %1502
        %v1505 = vadd.f32 %v1404, %v1503
        %vm1506 = vcmask 64544
        %v1507 = vsel %vm1506, %v807, 0.0
        %v1508 = vsel %vm1506, %v808, 0.0
        %v1509 = vadd.f32 %v1507, %v1508
        %v1510 = vsel %vm1506, %v809, 0.0
        %v1511 = vadd.f32 %v1509, %v1510
        %v1512 = vsel %vm1506, %v810, 0.0
        %v1513 = vadd.f32 %v1511, %v1512
        %v1514 = vsel %vm1506, %v811, 0.0
        %v1515 = vadd.f32 %v1513, %v1514
        %v1516 = vsel %vm1506, %v812, 0.0
        %v1517 = vadd.f32 %v1515, %v1516
        %v1518 = vsel %vm1506, %v813, 0.0
        %v1519 = vadd.f32 %v1517, %v1518
        %v1520 = vsel %vm1506, %v814, 0.0
        %v1521 = vadd.f32 %v1519, %v1520
        %v1522 = vsel %vm1506, %v815, 0.0
        %v1523 = vadd.f32 %v1521, %v1522
        %v1524 = vsel %vm1506, %v816, 0.0
        %v1525 = vadd.f32 %v1523, %v1524
        %v1526 = vsel %vm1506, %v817, 0.0
        %v1527 = vadd.f32 %v1525, %v1526
        %v1528 = vsel %vm1506, %v818, 0.0
        %v1529 = vadd.f32 %v1527, %v1528
        %v1530 = vsel %vm1506, %v819, 0.0
        %v1531 = vadd.f32 %v1529, %v1530
        %v1532 = vsel %vm1506, %v820, 0.0
        %v1533 = vadd.f32 %v1531, %v1532
        %v1534 = vsel %vm1506, %v821, 0.0
        %v1535 = vadd.f32 %v1533, %v1534
        %v1536 = vsel %vm1506, %v822, 0.0
        %v1537 = vadd.f32 %v1535, %v1536
        %v1538 = vrot.slane %v1537, 4
        %v1539 = vadd.f32 %v1537, %v1538
        %v1540 = vrot.slane %v1539, 2
        %v1541 = vadd.f32 %v1539, %v1540
        %v1542 = vrot.slane %v1541, 1
        %v1543 = vadd.f32 %v1541, %v1542
        %1545 = vrot.lane.b32.xlu0 %v1543, 12
        %v1546 = vpop.permute.xlu0 %1545
        %v1548 = vadd.f32 %v1447, %v1546
        %v1549 = vmul.f32 %v807, %v807
        %v1550 = vmul.f32 %v808, %v808
        %v1551 = vmul.f32 %v809, %v809
        %v1552 = vmul.f32 %v810, %v810
        %v1553 = vmul.f32 %v811, %v811
        %v1554 = vmul.f32 %v812, %v812
        %v1555 = vmul.f32 %v813, %v813
        %v1556 = vmul.f32 %v814, %v814
        %v1557 = vmul.f32 %v815, %v815
        %v1558 = vmul.f32 %v816, %v816
        %v1559 = vmul.f32 %v817, %v817
        %v1560 = vmul.f32 %v818, %v818
        %v1561 = vmul.f32 %v819, %v819
        %v1562 = vmul.f32 %v820, %v820
        %v1563 = vmul.f32 %v821, %v821
        %v1564 = vmul.f32 %v822, %v822
        %v1565 = vsel %vm1506, %v1549, 0.0
        %v1566 = vsel %vm1506, %v1550, 0.0
        %v1567 = vadd.f32 %v1565, %v1566
        %v1568 = vsel %vm1506, %v1551, 0.0
        %v1569 = vadd.f32 %v1567, %v1568
        %v1570 = vsel %vm1506, %v1552, 0.0
        %v1571 = vadd.f32 %v1569, %v1570
        %v1572 = vsel %vm1506, %v1553, 0.0
        %v1573 = vadd.f32 %v1571, %v1572
        %v1574 = vsel %vm1506, %v1554, 0.0
        %v1575 = vadd.f32 %v1573, %v1574
        %v1576 = vsel %vm1506, %v1555, 0.0
        %v1577 = vadd.f32 %v1575, %v1576
        %v1578 = vsel %vm1506, %v1556, 0.0
        %v1579 = vadd.f32 %v1577, %v1578
        %v1580 = vsel %vm1506, %v1557, 0.0
        %v1581 = vadd.f32 %v1579, %v1580
        %v1582 = vsel %vm1506, %v1558, 0.0
        %v1583 = vadd.f32 %v1581, %v1582
        %v1584 = vsel %vm1506, %v1559, 0.0
        %v1585 = vadd.f32 %v1583, %v1584
        %v1586 = vsel %vm1506, %v1560, 0.0
        %v1587 = vadd.f32 %v1585, %v1586
        %v1588 = vsel %vm1506, %v1561, 0.0
        %v1589 = vadd.f32 %v1587, %v1588
        %v1590 = vsel %vm1506, %v1562, 0.0
        %v1591 = vadd.f32 %v1589, %v1590
        %v1592 = vsel %vm1506, %v1563, 0.0
        %v1593 = vadd.f32 %v1591, %v1592
        %v1594 = vsel %vm1506, %v1564, 0.0
        %v1595 = vadd.f32 %v1593, %v1594
        %v1596 = vrot.slane %v1595, 4
        %v1597 = vadd.f32 %v1595, %v1596
        %v1598 = vrot.slane %v1597, 2
        %v1599 = vadd.f32 %v1597, %v1598
        %v1600 = vrot.slane %v1599, 1
        %v1601 = vadd.f32 %v1599, %v1600
        %1603 = vrot.lane.b32.xlu0 %v1601, 12
        %v1604 = vpop.permute.xlu0 %1603
        %v1606 = vadd.f32 %v1505, %v1604
        %v1607 = vsel %vm364, %v1047, 0.0
        %v1608 = vsel %vm364, %v1048, 0.0
        %v1609 = vadd.f32 %v1607, %v1608
        %v1610 = vsel %vm364, %v1049, 0.0
        %v1611 = vadd.f32 %v1609, %v1610
        %v1612 = vsel %vm364, %v1050, 0.0
        %v1613 = vadd.f32 %v1611, %v1612
        %v1614 = vsel %vm364, %v1051, 0.0
        %v1615 = vadd.f32 %v1613, %v1614
        %v1616 = vsel %vm364, %v1052, 0.0
        %v1617 = vadd.f32 %v1615, %v1616
        %v1618 = vsel %vm364, %v1053, 0.0
        %v1619 = vadd.f32 %v1617, %v1618
        %v1620 = vsel %vm364, %v1054, 0.0
        %v1621 = vadd.f32 %v1619, %v1620
        %v1622 = vsel %vm364, %v1055, 0.0
        %v1623 = vadd.f32 %v1621, %v1622
        %v1624 = vsel %vm364, %v1056, 0.0
        %v1625 = vadd.f32 %v1623, %v1624
        %v1626 = vsel %vm364, %v1057, 0.0
        %v1627 = vadd.f32 %v1625, %v1626
        %v1628 = vsel %vm364, %v1058, 0.0
        %v1629 = vadd.f32 %v1627, %v1628
        %v1630 = vsel %vm364, %v1059, 0.0
        %v1631 = vadd.f32 %v1629, %v1630
        %v1632 = vsel %vm364, %v1060, 0.0
        %v1633 = vadd.f32 %v1631, %v1632
        %v1634 = vsel %vm364, %v1061, 0.0
        %v1635 = vadd.f32 %v1633, %v1634
        %v1636 = vsel %vm364, %v1062, 0.0
        %v1637 = vadd.f32 %v1635, %v1636
        %v1638 = vrot.slane %v1637, 4
        %v1639 = vadd.f32 %v1637, %v1638
        %v1640 = vrot.slane %v1639, 2
        %v1641 = vadd.f32 %v1639, %v1640
        %v1642 = vrot.slane %v1641, 1
        %v1643 = vadd.f32 %v1641, %v1642
        %1645 = vrot.lane.b32.xlu0 %v1643, 16
        %v1646 = vpop.permute.xlu0 %1645
        %v1648 = vadd.f32 %v1548, %v1646
        %v1649 = vmul.f32 %v1047, %v1047
        %v1650 = vmul.f32 %v1048, %v1048
        %v1651 = vmul.f32 %v1049, %v1049
        %v1652 = vmul.f32 %v1050, %v1050
        %v1653 = vmul.f32 %v1051, %v1051
        %v1654 = vmul.f32 %v1052, %v1052
        %v1655 = vmul.f32 %v1053, %v1053
        %v1656 = vmul.f32 %v1054, %v1054
        %v1657 = vmul.f32 %v1055, %v1055
        %v1658 = vmul.f32 %v1056, %v1056
        %v1659 = vmul.f32 %v1057, %v1057
        %v1660 = vmul.f32 %v1058, %v1058
        %v1661 = vmul.f32 %v1059, %v1059
        %v1662 = vmul.f32 %v1060, %v1060
        %v1663 = vmul.f32 %v1061, %v1061
        %v1664 = vmul.f32 %v1062, %v1062
        %v1665 = vsel %vm364, %v1649, 0.0
        %v1666 = vsel %vm364, %v1650, 0.0
        %v1667 = vadd.f32 %v1665, %v1666
        %v1668 = vsel %vm364, %v1651, 0.0
        %v1669 = vadd.f32 %v1667, %v1668
        %v1670 = vsel %vm364, %v1652, 0.0
        %v1671 = vadd.f32 %v1669, %v1670
        %v1672 = vsel %vm364, %v1653, 0.0
        %v1673 = vadd.f32 %v1671, %v1672
        %v1674 = vsel %vm364, %v1654, 0.0
        %v1675 = vadd.f32 %v1673, %v1674
        %v1676 = vsel %vm364, %v1655, 0.0
        %v1677 = vadd.f32 %v1675, %v1676
        %v1678 = vsel %vm364, %v1656, 0.0
        %v1679 = vadd.f32 %v1677, %v1678
        %v1680 = vsel %vm364, %v1657, 0.0
        %v1681 = vadd.f32 %v1679, %v1680
        %v1682 = vsel %vm364, %v1658, 0.0
        %v1683 = vadd.f32 %v1681, %v1682
        %v1684 = vsel %vm364, %v1659, 0.0
        %v1685 = vadd.f32 %v1683, %v1684
        %v1686 = vsel %vm364, %v1660, 0.0
        %v1687 = vadd.f32 %v1685, %v1686
        %v1688 = vsel %vm364, %v1661, 0.0
        %v1689 = vadd.f32 %v1687, %v1688
        %v1690 = vsel %vm364, %v1662, 0.0
        %v1691 = vadd.f32 %v1689, %v1690
        %v1692 = vsel %vm364, %v1663, 0.0
        %v1693 = vadd.f32 %v1691, %v1692
        %v1694 = vsel %vm364, %v1664, 0.0
        %v1695 = vadd.f32 %v1693, %v1694
        %v1696 = vrot.slane %v1695, 4
        %v1697 = vadd.f32 %v1695, %v1696
        %v1698 = vrot.slane %v1697, 2
        %v1699 = vadd.f32 %v1697, %v1698
        %v1700 = vrot.slane %v1699, 1
        %v1701 = vadd.f32 %v1699, %v1700
        %1703 = vrot.lane.b32.xlu0 %v1701, 16
        %v1704 = vpop.permute.xlu0 %1703
        %v1706 = vadd.f32 %v1606, %v1704
        %v1707 = vld [vmem:[%s5] sm:$0x1]
        %1709 = vrot.lane.b32.xlu0 %v1648, 112
        %v1710 = vpop.permute.xlu0 %1709
        %v1712 = vadd.f32 %v1707, %v1710
        %vm1713 = vcmask 24576
        %1714 = vst.msk [vmem:[%s5] sm:$0x1] %vm1713, %v1712
        %v1715 = vld [vmem:[%s5 + $0x1] sm:$0x1]
        %1717 = vrot.lane.b32.xlu0 %v1706, 112
        %v1718 = vpop.permute.xlu0 %1717
        %v1720 = vadd.f32 %v1715, %v1718
        %1721 = vst.msk [vmem:[%s5 + $0x1] sm:$0x1] %vm1713, %v1720
        %s1722 = sand.u32 %s127, 1
        %s1723 = sand.u32 %s127, 1
        %s1724 = smul.addr %s1723, 512
        %s1725 = scalar_lea.vmem [#allocation2], %s1724
        // Predicated region
        $region41: #{decoder_block.5} parent=35 // pred_check
          %p1726 = pneg %p137
        $region42: #{decoder_block.5} parent=35 // pred_check_branch
          %1728 = sbr.rel (%p1726) target = $region44
        $region43: #{decoder_block.5} parent=35 // pred_region
          %s1729 = smul.u32 8, %s17
          %s1730 = smul.addr %s1729, 2
          %s1731 = smul.addr %s1730, 8
          %s1732 = scalar_lea.vmem %s4, %s1731
          // Predicated region
          $region45: #{decoder_block.5} parent=43 // pred_check
            _
          $region46: #{decoder_block.5} parent=43 // pred_check_branch
            %1734 = sbr.rel (0) target = $region48
          $region47: #{decoder_block.5} parent=43 // pred_region
            // Predicated region
            $region49: #{decoder_block.5} parent=47 // pred_check
              _
            $region50: #{decoder_block.5} parent=47 // pred_check_branch
              %1736 = sbr.rel (0) target = $region52
            $region51: #{decoder_block.5} parent=47 // pred_region
              // Predicated region
              $region64: #{decoder_block.5} parent=51 // pred_check
                _
              $region65: #{decoder_block.5} parent=51 // pred_check_branch
                %1877 = sbr.rel (0) target = $region67
              $region66: #{decoder_block.5} parent=51 // pred_region
                loop: start=0, step=1, limit=1
                $region68: #{decoder_block.5} parent=66 // loop_pre_header
                  _
                $region69: #{decoder_block.5} parent=66 // loop_header
                  %s1879 = sphi 0, %s1883
                  %p1880 = scmp.ge.s32.totalorder %s1879, 1
                  %s1884 = sphi %s1725, %s1725
                  %s1885 = sphi %s1732, %s1732
                $region70: #{decoder_block.5} parent=66 // loop_header_branch
                  %1882 = sbr.rel (%p1880) target = $region74
                $region71: #{decoder_block.5} parent=66 // loop_body
                  %v1886 = vld [vmem:[%s1884] sm:$0xff]
                  %1887 = vst [vmem:[%s1885] sm:$0xff] %v1886
                  %v1888 = vld [vmem:[%s1884 + $0x8] sm:$0xff]
                  %1889 = vst [vmem:[%s1885 + $0x8] sm:$0xff] %v1888
                  %v1890 = vld [vmem:[%s1884 + $0x10] sm:$0xff]
                  %1891 = vst [vmem:[%s1885 + $0x10] sm:$0xff] %v1890
                  %v1892 = vld [vmem:[%s1884 + $0x18] sm:$0xff]
                  %1893 = vst [vmem:[%s1885 + $0x18] sm:$0xff] %v1892
                  %v1894 = vld [vmem:[%s1884 + $0x20] sm:$0xff]
                  %1895 = vst [vmem:[%s1885 + $0x20] sm:$0xff] %v1894
                  %v1896 = vld [vmem:[%s1884 + $0x28] sm:$0xff]
                  %1897 = vst [vmem:[%s1885 + $0x28] sm:$0xff] %v1896
                  %v1898 = vld [vmem:[%s1884 + $0x30] sm:$0xff]
                  %1899 = vst [vmem:[%s1885 + $0x30] sm:$0xff] %v1898
                  %v1900 = vld [vmem:[%s1884 + $0x38] sm:$0xff]
                  %1901 = vst [vmem:[%s1885 + $0x38] sm:$0xff] %v1900
                  %v1902 = vld [vmem:[%s1884 + $0x40] sm:$0xff]
                  %1903 = vst [vmem:[%s1885 + $0x40] sm:$0xff] %v1902
                  %v1904 = vld [vmem:[%s1884 + $0x48] sm:$0xff]
                  %1905 = vst [vmem:[%s1885 + $0x48] sm:$0xff] %v1904
                  %v1906 = vld [vmem:[%s1884 + $0x50] sm:$0xff]
                  %1907 = vst [vmem:[%s1885 + $0x50] sm:$0xff] %v1906
                  %v1908 = vld [vmem:[%s1884 + $0x58] sm:$0xff]
                  %1909 = vst [vmem:[%s1885 + $0x58] sm:$0xff] %v1908
                  %v1910 = vld [vmem:[%s1884 + $0x60] sm:$0xff]
                  %1911 = vst [vmem:[%s1885 + $0x60] sm:$0xff] %v1910
                  %v1912 = vld [vmem:[%s1884 + $0x68] sm:$0xff]
                  %1913 = vst [vmem:[%s1885 + $0x68] sm:$0xff] %v1912
                  %v1914 = vld [vmem:[%s1884 + $0x70] sm:$0xff]
                  %1915 = vst [vmem:[%s1885 + $0x70] sm:$0xff] %v1914
                  %v1916 = vld [vmem:[%s1884 + $0x78] sm:$0xff]
                  %1917 = vst [vmem:[%s1885 + $0x78] sm:$0xff] %v1916
                  %v1918 = vld [vmem:[%s1884 + $0x80] sm:$0xff]
                  %1919 = vst [vmem:[%s1885 + $0x200] sm:$0xff] %v1918
                  %v1920 = vld [vmem:[%s1884 + $0x88] sm:$0xff]
                  %1921 = vst [vmem:[%s1885 + $0x208] sm:$0xff] %v1920
                  %v1922 = vld [vmem:[%s1884 + $0x90] sm:$0xff]
                  %1923 = vst [vmem:[%s1885 + $0x210] sm:$0xff] %v1922
                  %v1924 = vld [vmem:[%s1884 + $0x98] sm:$0xff]
                  %1925 = vst [vmem:[%s1885 + $0x218] sm:$0xff] %v1924
                  %v1926 = vld [vmem:[%s1884 + $0xa0] sm:$0xff]
                  %1927 = vst [vmem:[%s1885 + $0x220] sm:$0xff] %v1926
                  %v1928 = vld [vmem:[%s1884 + $0xa8] sm:$0xff]
                  %1929 = vst [vmem:[%s1885 + $0x228] sm:$0xff] %v1928
                  %v1930 = vld [vmem:[%s1884 + $0xb0] sm:$0xff]
                  %1931 = vst [vmem:[%s1885 + $0x230] sm:$0xff] %v1930
                  %v1932 = vld [vmem:[%s1884 + $0xb8] sm:$0xff]
                  %1933 = vst [vmem:[%s1885 + $0x238] sm:$0xff] %v1932
                  %v1934 = vld [vmem:[%s1884 + $0xc0] sm:$0xff]
                  %1935 = vst [vmem:[%s1885 + $0x240] sm:$0xff] %v1934
                  %v1936 = vld [vmem:[%s1884 + $0xc8] sm:$0xff]
                  %1937 = vst [vmem:[%s1885 + $0x248] sm:$0xff] %v1936
                  %v1938 = vld [vmem:[%s1884 + $0xd0] sm:$0xff]
                  %1939 = vst [vmem:[%s1885 + $0x250] sm:$0xff] %v1938
                  %v1940 = vld [vmem:[%s1884 + $0xd8] sm:$0xff]
                  %1941 = vst [vmem:[%s1885 + $0x258] sm:$0xff] %v1940
                  %v1942 = vld [vmem:[%s1884 + $0xe0] sm:$0xff]
                  %1943 = vst [vmem:[%s1885 + $0x260] sm:$0xff] %v1942
                  %v1944 = vld [vmem:[%s1884 + $0xe8] sm:$0xff]
                  %1945 = vst [vmem:[%s1885 + $0x268] sm:$0xff] %v1944
                  %v1946 = vld [vmem:[%s1884 + $0xf0] sm:$0xff]
                  %1947 = vst [vmem:[%s1885 + $0x270] sm:$0xff] %v1946
                  %v1948 = vld [vmem:[%s1884 + $0xf8] sm:$0xff]
                  %1949 = vst [vmem:[%s1885 + $0x278] sm:$0xff] %v1948
                  %v1950 = vld [vmem:[%s1884 + $0x100] sm:$0xff]
                  %1951 = vst [vmem:[%s1885 + $0x400] sm:$0xff] %v1950
                  %v1952 = vld [vmem:[%s1884 + $0x108] sm:$0xff]
                  %1953 = vst [vmem:[%s1885 + $0x408] sm:$0xff] %v1952
                  %v1954 = vld [vmem:[%s1884 + $0x110] sm:$0xff]
                  %1955 = vst [vmem:[%s1885 + $0x410] sm:$0xff] %v1954
                  %v1956 = vld [vmem:[%s1884 + $0x118] sm:$0xff]
                  %1957 = vst [vmem:[%s1885 + $0x418] sm:$0xff] %v1956
                  %v1958 = vld [vmem:[%s1884 + $0x120] sm:$0xff]
                  %1959 = vst [vmem:[%s1885 + $0x420] sm:$0xff] %v1958
                  %v1960 = vld [vmem:[%s1884 + $0x128] sm:$0xff]
                  %1961 = vst [vmem:[%s1885 + $0x428] sm:$0xff] %v1960
                  %v1962 = vld [vmem:[%s1884 + $0x130] sm:$0xff]
                  %1963 = vst [vmem:[%s1885 + $0x430] sm:$0xff] %v1962
                  %v1964 = vld [vmem:[%s1884 + $0x138] sm:$0xff]
                  %1965 = vst [vmem:[%s1885 + $0x438] sm:$0xff] %v1964
                  %v1966 = vld [vmem:[%s1884 + $0x140] sm:$0xff]
                  %1967 = vst [vmem:[%s1885 + $0x440] sm:$0xff] %v1966
                  %v1968 = vld [vmem:[%s1884 + $0x148] sm:$0xff]
                  %1969 = vst [vmem:[%s1885 + $0x448] sm:$0xff] %v1968
                  %v1970 = vld [vmem:[%s1884 + $0x150] sm:$0xff]
                  %1971 = vst [vmem:[%s1885 + $0x450] sm:$0xff] %v1970
                  %v1972 = vld [vmem:[%s1884 + $0x158] sm:$0xff]
                  %1973 = vst [vmem:[%s1885 + $0x458] sm:$0xff] %v1972
                  %v1974 = vld [vmem:[%s1884 + $0x160] sm:$0xff]
                  %1975 = vst [vmem:[%s1885 + $0x460] sm:$0xff] %v1974
                  %v1976 = vld [vmem:[%s1884 + $0x168] sm:$0xff]
                  %1977 = vst [vmem:[%s1885 + $0x468] sm:$0xff] %v1976
                  %v1978 = vld [vmem:[%s1884 + $0x170] sm:$0xff]
                  %1979 = vst [vmem:[%s1885 + $0x470] sm:$0xff] %v1978
                  %v1980 = vld [vmem:[%s1884 + $0x178] sm:$0xff]
                  %1981 = vst [vmem:[%s1885 + $0x478] sm:$0xff] %v1980
                  %v1982 = vld [vmem:[%s1884 + $0x180] sm:$0xff]
                  %1983 = vst [vmem:[%s1885 + $0x600] sm:$0xff] %v1982
                  %v1984 = vld [vmem:[%s1884 + $0x188] sm:$0xff]
                  %1985 = vst [vmem:[%s1885 + $0x608] sm:$0xff] %v1984
                  %v1986 = vld [vmem:[%s1884 + $0x190] sm:$0xff]
                  %1987 = vst [vmem:[%s1885 + $0x610] sm:$0xff] %v1986
                  %v1988 = vld [vmem:[%s1884 + $0x198] sm:$0xff]
                  %1989 = vst [vmem:[%s1885 + $0x618] sm:$0xff] %v1988
                  %v1990 = vld [vmem:[%s1884 + $0x1a0] sm:$0xff]
                  %1991 = vst [vmem:[%s1885 + $0x620] sm:$0xff] %v1990
                  %v1992 = vld [vmem:[%s1884 + $0x1a8] sm:$0xff]
                  %1993 = vst [vmem:[%s1885 + $0x628] sm:$0xff] %v1992
                  %v1994 = vld [vmem:[%s1884 + $0x1b0] sm:$0xff]
                  %1995 = vst [vmem:[%s1885 + $0x630] sm:$0xff] %v1994
                  %v1996 = vld [vmem:[%s1884 + $0x1b8] sm:$0xff]
                  %1997 = vst [vmem:[%s1885 + $0x638] sm:$0xff] %v1996
                  %v1998 = vld [vmem:[%s1884 + $0x1c0] sm:$0xff]
                  %1999 = vst [vmem:[%s1885 + $0x640] sm:$0xff] %v1998
                  %v2000 = vld [vmem:[%s1884 + $0x1c8] sm:$0xff]
                  %2001 = vst [vmem:[%s1885 + $0x648] sm:$0xff] %v2000
                  %v2002 = vld [vmem:[%s1884 + $0x1d0] sm:$0xff]
                  %2003 = vst [vmem:[%s1885 + $0x650] sm:$0xff] %v2002
                  %v2004 = vld [vmem:[%s1884 + $0x1d8] sm:$0xff]
                  %2005 = vst [vmem:[%s1885 + $0x658] sm:$0xff] %v2004
                  %v2006 = vld [vmem:[%s1884 + $0x1e0] sm:$0xff]
                  %2007 = vst [vmem:[%s1885 + $0x660] sm:$0xff] %v2006
                  %v2008 = vld [vmem:[%s1884 + $0x1e8] sm:$0xff]
                  %2009 = vst [vmem:[%s1885 + $0x668] sm:$0xff] %v2008
                  %v2010 = vld [vmem:[%s1884 + $0x1f0] sm:$0xff]
                  %2011 = vst [vmem:[%s1885 + $0x670] sm:$0xff] %v2010
                  %v2012 = vld [vmem:[%s1884 + $0x1f8] sm:$0xff]
                  %2013 = vst [vmem:[%s1885 + $0x678] sm:$0xff] %v2012
                $region72: #{decoder_block.5} parent=66 // loop_footer
                  %s1883 = sadd.s32 1, %s1879
                $region73: #{decoder_block.5} parent=66 // loop_footer_branch
                  %1878 = sbr.rel target = $region69
                $region74: #{decoder_block.5} parent=66 // loop_exit
                  _
              $region67: #{decoder_block.5} parent=51 // pred_fallthru
                _
              // Predicated region
              $region75: #{decoder_block.5} parent=51 // pred_check
                _
              $region76: #{decoder_block.5} parent=51 // pred_check_branch
                %2015 = sbr.rel target = $region78
              $region77: #{decoder_block.5} parent=51 // pred_region
                _
              $region78: #{decoder_block.5} parent=51 // pred_fallthru
                _
            $region52: #{decoder_block.5} parent=47 // pred_fallthru
              _
            // Predicated region
            $region53: #{decoder_block.5} parent=47 // pred_check
              _
            $region54: #{decoder_block.5} parent=47 // pred_check_branch
              %1738 = sbr.rel target = $region56
            $region55: #{decoder_block.5} parent=47 // pred_region
              loop: start=0, step=1, limit=1
              $region57: #{decoder_block.5} parent=55 // loop_pre_header
                _
              $region58: #{decoder_block.5} parent=55 // loop_header
                %s1741 = sphi 0, %s1745
                %p1742 = scmp.ge.s32.totalorder %s1741, 1
                %s1746 = sphi %s1725, %s1725
                %s1747 = sphi %s1732, %s1732
              $region59: #{decoder_block.5} parent=55 // loop_header_branch
                %1744 = sbr.rel (%p1742) target = $region63
              $region60: #{decoder_block.5} parent=55 // loop_body
                %v1748 = vld [vmem:[%s1746] sm:$0xff]
                %1749 = vst [vmem:[%s1747] sm:$0xff] %v1748
                %v1750 = vld [vmem:[%s1746 + $0x8] sm:$0xff]
                %1751 = vst [vmem:[%s1747 + $0x8] sm:$0xff] %v1750
                %v1752 = vld [vmem:[%s1746 + $0x10] sm:$0xff]
                %1753 = vst [vmem:[%s1747 + $0x10] sm:$0xff] %v1752
                %v1754 = vld [vmem:[%s1746 + $0x18] sm:$0xff]
                %1755 = vst [vmem:[%s1747 + $0x18] sm:$0xff] %v1754
                %v1756 = vld [vmem:[%s1746 + $0x20] sm:$0xff]
                %1757 = vst [vmem:[%s1747 + $0x20] sm:$0xff] %v1756
                %v1758 = vld [vmem:[%s1746 + $0x28] sm:$0xff]
                %1759 = vst [vmem:[%s1747 + $0x28] sm:$0xff] %v1758
                %v1760 = vld [vmem:[%s1746 + $0x30] sm:$0xff]
                %1761 = vst [vmem:[%s1747 + $0x30] sm:$0xff] %v1760
                %v1762 = vld [vmem:[%s1746 + $0x38] sm:$0xff]
                %1763 = vst [vmem:[%s1747 + $0x38] sm:$0xff] %v1762
                %v1764 = vld [vmem:[%s1746 + $0x40] sm:$0xff]
                %1765 = vst [vmem:[%s1747 + $0x40] sm:$0xff] %v1764
                %v1766 = vld [vmem:[%s1746 + $0x48] sm:$0xff]
                %1767 = vst [vmem:[%s1747 + $0x48] sm:$0xff] %v1766
                %v1768 = vld [vmem:[%s1746 + $0x50] sm:$0xff]
                %1769 = vst [vmem:[%s1747 + $0x50] sm:$0xff] %v1768
                %v1770 = vld [vmem:[%s1746 + $0x58] sm:$0xff]
                %1771 = vst [vmem:[%s1747 + $0x58] sm:$0xff] %v1770
                %v1772 = vld [vmem:[%s1746 + $0x60] sm:$0xff]
                %1773 = vst [vmem:[%s1747 + $0x60] sm:$0xff] %v1772
                %v1774 = vld [vmem:[%s1746 + $0x68] sm:$0xff]
                %1775 = vst [vmem:[%s1747 + $0x68] sm:$0xff] %v1774
                %v1776 = vld [vmem:[%s1746 + $0x70] sm:$0xff]
                %1777 = vst [vmem:[%s1747 + $0x70] sm:$0xff] %v1776
                %v1778 = vld [vmem:[%s1746 + $0x78] sm:$0xff]
                %1779 = vst [vmem:[%s1747 + $0x78] sm:$0xff] %v1778
                %v1780 = vld [vmem:[%s1746 + $0x80] sm:$0xff]
                %1781 = vst [vmem:[%s1747 + $0x200] sm:$0xff] %v1780
                %v1782 = vld [vmem:[%s1746 + $0x88] sm:$0xff]
                %1783 = vst [vmem:[%s1747 + $0x208] sm:$0xff] %v1782
                %v1784 = vld [vmem:[%s1746 + $0x90] sm:$0xff]
                %1785 = vst [vmem:[%s1747 + $0x210] sm:$0xff] %v1784
                %v1786 = vld [vmem:[%s1746 + $0x98] sm:$0xff]
                %1787 = vst [vmem:[%s1747 + $0x218] sm:$0xff] %v1786
                %v1788 = vld [vmem:[%s1746 + $0xa0] sm:$0xff]
                %1789 = vst [vmem:[%s1747 + $0x220] sm:$0xff] %v1788
                %v1790 = vld [vmem:[%s1746 + $0xa8] sm:$0xff]
                %1791 = vst [vmem:[%s1747 + $0x228] sm:$0xff] %v1790
                %v1792 = vld [vmem:[%s1746 + $0xb0] sm:$0xff]
                %1793 = vst [vmem:[%s1747 + $0x230] sm:$0xff] %v1792
                %v1794 = vld [vmem:[%s1746 + $0xb8] sm:$0xff]
                %1795 = vst [vmem:[%s1747 + $0x238] sm:$0xff] %v1794
                %v1796 = vld [vmem:[%s1746 + $0xc0] sm:$0xff]
                %1797 = vst [vmem:[%s1747 + $0x240] sm:$0xff] %v1796
                %v1798 = vld [vmem:[%s1746 + $0xc8] sm:$0xff]
                %1799 = vst [vmem:[%s1747 + $0x248] sm:$0xff] %v1798
                %v1800 = vld [vmem:[%s1746 + $0xd0] sm:$0xff]
                %1801 = vst [vmem:[%s1747 + $0x250] sm:$0xff] %v1800
                %v1802 = vld [vmem:[%s1746 + $0xd8] sm:$0xff]
                %1803 = vst [vmem:[%s1747 + $0x258] sm:$0xff] %v1802
                %v1804 = vld [vmem:[%s1746 + $0xe0] sm:$0xff]
                %1805 = vst [vmem:[%s1747 + $0x260] sm:$0xff] %v1804
                %v1806 = vld [vmem:[%s1746 + $0xe8] sm:$0xff]
                %1807 = vst [vmem:[%s1747 + $0x268] sm:$0xff] %v1806
                %v1808 = vld [vmem:[%s1746 + $0xf0] sm:$0xff]
                %1809 = vst [vmem:[%s1747 + $0x270] sm:$0xff] %v1808
                %v1810 = vld [vmem:[%s1746 + $0xf8] sm:$0xff]
                %1811 = vst [vmem:[%s1747 + $0x278] sm:$0xff] %v1810
                %v1812 = vld [vmem:[%s1746 + $0x100] sm:$0xff]
                %1813 = vst [vmem:[%s1747 + $0x400] sm:$0xff] %v1812
                %v1814 = vld [vmem:[%s1746 + $0x108] sm:$0xff]
                %1815 = vst [vmem:[%s1747 + $0x408] sm:$0xff] %v1814
                %v1816 = vld [vmem:[%s1746 + $0x110] sm:$0xff]
                %1817 = vst [vmem:[%s1747 + $0x410] sm:$0xff] %v1816
                %v1818 = vld [vmem:[%s1746 + $0x118] sm:$0xff]
                %1819 = vst [vmem:[%s1747 + $0x418] sm:$0xff] %v1818
                %v1820 = vld [vmem:[%s1746 + $0x120] sm:$0xff]
                %1821 = vst [vmem:[%s1747 + $0x420] sm:$0xff] %v1820
                %v1822 = vld [vmem:[%s1746 + $0x128] sm:$0xff]
                %1823 = vst [vmem:[%s1747 + $0x428] sm:$0xff] %v1822
                %v1824 = vld [vmem:[%s1746 + $0x130] sm:$0xff]
                %1825 = vst [vmem:[%s1747 + $0x430] sm:$0xff] %v1824
                %v1826 = vld [vmem:[%s1746 + $0x138] sm:$0xff]
                %1827 = vst [vmem:[%s1747 + $0x438] sm:$0xff] %v1826
                %v1828 = vld [vmem:[%s1746 + $0x140] sm:$0xff]
                %1829 = vst [vmem:[%s1747 + $0x440] sm:$0xff] %v1828
                %v1830 = vld [vmem:[%s1746 + $0x148] sm:$0xff]
                %1831 = vst [vmem:[%s1747 + $0x448] sm:$0xff] %v1830
                %v1832 = vld [vmem:[%s1746 + $0x150] sm:$0xff]
                %1833 = vst [vmem:[%s1747 + $0x450] sm:$0xff] %v1832
                %v1834 = vld [vmem:[%s1746 + $0x158] sm:$0xff]
                %1835 = vst [vmem:[%s1747 + $0x458] sm:$0xff] %v1834
                %v1836 = vld [vmem:[%s1746 + $0x160] sm:$0xff]
                %1837 = vst [vmem:[%s1747 + $0x460] sm:$0xff] %v1836
                %v1838 = vld [vmem:[%s1746 + $0x168] sm:$0xff]
                %1839 = vst [vmem:[%s1747 + $0x468] sm:$0xff] %v1838
                %v1840 = vld [vmem:[%s1746 + $0x170] sm:$0xff]
                %1841 = vst [vmem:[%s1747 + $0x470] sm:$0xff] %v1840
                %v1842 = vld [vmem:[%s1746 + $0x178] sm:$0xff]
                %1843 = vst [vmem:[%s1747 + $0x478] sm:$0xff] %v1842
                %v1844 = vld [vmem:[%s1746 + $0x180] sm:$0xff]
                %1845 = vst [vmem:[%s1747 + $0x600] sm:$0xff] %v1844
                %v1846 = vld [vmem:[%s1746 + $0x188] sm:$0xff]
                %1847 = vst [vmem:[%s1747 + $0x608] sm:$0xff] %v1846
                %v1848 = vld [vmem:[%s1746 + $0x190] sm:$0xff]
                %1849 = vst [vmem:[%s1747 + $0x610] sm:$0xff] %v1848
                %v1850 = vld [vmem:[%s1746 + $0x198] sm:$0xff]
                %1851 = vst [vmem:[%s1747 + $0x618] sm:$0xff] %v1850
                %v1852 = vld [vmem:[%s1746 + $0x1a0] sm:$0xff]
                %1853 = vst [vmem:[%s1747 + $0x620] sm:$0xff] %v1852
                %v1854 = vld [vmem:[%s1746 + $0x1a8] sm:$0xff]
                %1855 = vst [vmem:[%s1747 + $0x628] sm:$0xff] %v1854
                %v1856 = vld [vmem:[%s1746 + $0x1b0] sm:$0xff]
                %1857 = vst [vmem:[%s1747 + $0x630] sm:$0xff] %v1856
                %v1858 = vld [vmem:[%s1746 + $0x1b8] sm:$0xff]
                %1859 = vst [vmem:[%s1747 + $0x638] sm:$0xff] %v1858
                %v1860 = vld [vmem:[%s1746 + $0x1c0] sm:$0xff]
                %1861 = vst [vmem:[%s1747 + $0x640] sm:$0xff] %v1860
                %v1862 = vld [vmem:[%s1746 + $0x1c8] sm:$0xff]
                %1863 = vst [vmem:[%s1747 + $0x648] sm:$0xff] %v1862
                %v1864 = vld [vmem:[%s1746 + $0x1d0] sm:$0xff]
                %1865 = vst [vmem:[%s1747 + $0x650] sm:$0xff] %v1864
                %v1866 = vld [vmem:[%s1746 + $0x1d8] sm:$0xff]
                %1867 = vst [vmem:[%s1747 + $0x658] sm:$0xff] %v1866
                %v1868 = vld [vmem:[%s1746 + $0x1e0] sm:$0xff]
                %1869 = vst [vmem:[%s1747 + $0x660] sm:$0xff] %v1868
                %v1870 = vld [vmem:[%s1746 + $0x1e8] sm:$0xff]
                %1871 = vst [vmem:[%s1747 + $0x668] sm:$0xff] %v1870
                %v1872 = vld [vmem:[%s1746 + $0x1f0] sm:$0xff]
                %1873 = vst [vmem:[%s1747 + $0x670] sm:$0xff] %v1872
                %v1874 = vld [vmem:[%s1746 + $0x1f8] sm:$0xff]
                %1875 = vst [vmem:[%s1747 + $0x678] sm:$0xff] %v1874
              $region61: #{decoder_block.5} parent=55 // loop_footer
                %s1745 = sadd.s32 1, %s1741
              $region62: #{decoder_block.5} parent=55 // loop_footer_branch
                %1740 = sbr.rel target = $region58
              $region63: #{decoder_block.5} parent=55 // loop_exit
                _
            $region56: #{decoder_block.5} parent=47 // pred_fallthru
              _
          $region48: #{decoder_block.5} parent=43 // pred_fallthru
            _
          %2016 = vnop
        $region44: #{decoder_block.5} parent=35 // pred_fallthru
          _
        // Predicated region
        $region79: #{decoder_block.5} parent=35 // pred_check
          %p2017 = pneg %p158
        $region80: #{decoder_block.5} parent=35 // pred_check_branch
          %2019 = sbr.rel (%p2017) target = $region82
        $region81: #{decoder_block.5} parent=35 // pred_region
          _
        $region82: #{decoder_block.5} parent=35 // pred_fallthru
          _
        // Predicated region
        $region83: #{decoder_block.5} parent=35 // pred_check
          %p2020 = pneg %p158
        $region84: #{decoder_block.5} parent=35 // pred_check_branch
          %2022 = sbr.rel (%p2020) target = $region86
        $region85: #{decoder_block.5} parent=35 // pred_region
          _
        $region86: #{decoder_block.5} parent=35 // pred_fallthru
          _
      $region36: #{decoder_block.5} parent=5 // pred_fallthru
        _
      %p2023 = scmp.le.s32.totalorder 2, %s12
      // Predicated region
      $region87: #{decoder_block.5} parent=5 // pred_check
        %p2024 = pneg %p2023
      $region88: #{decoder_block.5} parent=5 // pred_check_branch
        %2026 = sbr.rel (%p2024) target = $region90
      $region89: #{decoder_block.5} parent=5 // pred_region
        %s2027 = ssub.s32 %s12, 2
        // Predicated region
        $region91: #{decoder_block.5} parent=89 // pred_check
          %p2028 = pneg %p143
        $region92: #{decoder_block.5} parent=89 // pred_check_branch
          %2030 = sbr.rel (%p2028) target = $region94
        $region93: #{decoder_block.5} parent=89 // pred_region
          %s2031 = sand.u32 %s128, 1
          %s2032 = sand.u32 %s128, 1
          %s2033 = smul.addr %s2032, 512
          %s2034 = scalar_lea.vmem [#allocation2], %s2033
        $region94: #{decoder_block.5} parent=89 // pred_fallthru
          _
      $region90: #{decoder_block.5} parent=5 // pred_fallthru
        _
    $region6: #{decoder_block.5} parent=1 // loop_footer
      %s16 = sadd.s32 1, %s12
    $region7: #{decoder_block.5} parent=1 // loop_footer_branch
      %11 = sbr.rel target = $region3
    $region8: #{decoder_block.5} parent=1 // loop_exit
      _

</llo_original>
